<compile_context>
chip_gen: v5e
topology: v5e:2x2
jax: 0.10.0
libtpu: 0.0.40
codegen_flags: <defaults>
</compile_context>

<pallas_src>
import functools

import jax
import jax.numpy as jnp
from jax.experimental import pallas as pl
from jax.experimental.pallas import tpu as pltpu

K = 5      # conv kernel size
PAD = 2    # conv padding
EPS = 1e-5


def _conv_bn_relu(h, w_ref, scale, shift, *, L, NB):
    """h: (L, NB, Cin) f32 -> (L, NB, Cout) f32.

    Conv1d(k=5, pad=2) as 5 shifted bf16 MXU matmuls with f32 accumulation,
    followed by folded BatchNorm (scale/shift) and ReLU in f32.
    """
    Cin = h.shape[-1]
    Cout = w_ref.shape[-1]
    z = jnp.zeros((PAD, NB, Cin), jnp.bfloat16)
    # Padding along the leading (sequence) dim: whole (NB, Cin) planes, tile aligned.
    xp = jnp.concatenate([z, h.astype(jnp.bfloat16), z], axis=0)      # (L+4, NB, Cin)
    acc = jnp.zeros((L * NB, Cout), jnp.float32)
    for k in range(K):
        tap = xp[k:k + L].reshape(L * NB, Cin)       # free reshape (NB multiple of 16)
        acc = acc + jnp.dot(tap, w_ref[k], preferred_element_type=jnp.float32)
    y = jnp.maximum(acc * scale + shift, 0.0)        # folded BN + ReLU (f32)
    return y.reshape(L, NB, Cout)


def deepinfomax_kernel(x0_ref, w0_ref, b0_ref,
                       w1_ref, s1_ref, t1_ref,
                       w2_ref, s2_ref, t2_ref,
                       w3_ref, s3_ref, t3_ref,
                       wl_ref, bl_ref,
                       wf1_ref, bf1_ref, wf2_ref, bf2_ref,
                       y_ref, enc_ref, feat_ref,
                       *, L, NB):
    f32 = jnp.float32

    # ---- c0 + relu (5 taps merged on host into a K=20 im2col) -------------------
    x0 = x0_ref[...].reshape(L * NB, K * 4)                            # (L*NB, 20)
    h0 = jnp.maximum(jnp.dot(x0, w0_ref[...], preferred_element_type=f32)
                     + b0_ref[...], 0.0)
    h0 = h0.reshape(L, NB, 64)

    # ---- c1 + bn1 + relu  -> features --------------------------------------------
    h1 = _conv_bn_relu(h0, w1_ref, s1_ref[...], t1_ref[...], L=L, NB=NB)
    feat_ref[...] = h1

    # ---- c2 + bn2 + relu / c3 + bn3 + relu ----------------------------------------
    h2 = _conv_bn_relu(h1, w2_ref, s2_ref[...], t2_ref[...], L=L, NB=NB)
    h3 = _conv_bn_relu(h2, w3_ref, s3_ref[...], t3_ref[...], L=L, NB=NB)

    # ---- l1 on the (C, L)-order flatten: one batched contraction ------------------
    # wl_ref[l] is the (512, 64) slice multiplying the channel vector at seq pos l.
    part = jnp.einsum('lnc,lco->lno', h3.astype(jnp.bfloat16), wl_ref[...],
                      preferred_element_type=f32)                     # (L, NB, 64)
    enc = part.sum(axis=0) + bl_ref[...]                              # (NB, 64)
    enc_ref[...] = enc

    # ---- fc head: Linear(64,8) -> ReLU -> Linear(8,1) -> ReLU ---------------------
    fc1 = jnp.maximum(jnp.dot(enc, wf1_ref[...], preferred_element_type=f32)
                      + bf1_ref[...], 0.0)
    y = jnp.maximum(jnp.dot(fc1, wf2_ref[...], preferred_element_type=f32)
                    + bf2_ref[...], 0.0)
    y_ref[...] = y


def deepinfomax_forward(x, p, *, L, NB=16):
    """x: (N, 4, L) float32 (PyTorch NCL layout).

    Returns (out (N,), encoded (N, 64), features (N, 128, L)).
    `out` matches deepinfomax.forward; (encoded, features) match Encoder.forward.
    """
    N = x.shape[0]
    npad = -(-N // NB) * NB          # pad batch to a multiple of NB
    bf16 = jnp.bfloat16

    # ---- parameter plumbing (plain-JAX glue) --------------------------------------
    def conv_w(w, dtype):            # (Cout, Cin, 5) -> (5, Cin, Cout)
        return jnp.transpose(w, (2, 1, 0)).astype(dtype)

    def bn_fold(conv_b, gamma, beta, mean, var):
        scale = gamma / jnp.sqrt(var + EPS)
        shift = (conv_b - mean) * scale + beta       # fold conv bias into BN shift
        return (scale.reshape(1, -1).astype(jnp.float32),
                shift.reshape(1, -1).astype(jnp.float32))

    w0col = conv_w(p['w0'], jnp.float32).reshape(K * 4, 64)   # (20, 64), row = k*4 + c
    b0 = p['b0'].reshape(1, 64)
    w1k = conv_w(p['w1'], bf16); s1, t1 = bn_fold(p['b1'], p['g1'], p['beta1'], p['m1'], p['v1'])
    w2k = conv_w(p['w2'], bf16); s2, t2 = bn_fold(p['b2'], p['g2'], p['beta2'], p['m2'], p['v2'])
    w3k = conv_w(p['w3'], bf16); s3, t3 = bn_fold(p['b3'], p['g3'], p['beta3'], p['m3'], p['v3'])
    # Linear weight (64, 512*L) with flat index c*L + l  ->  (L, 512, 64)
    wlk = jnp.transpose(p['wl'].reshape(64, 512, L), (2, 1, 0)).astype(bf16)
    bl = p['bl'].reshape(1, 64)
    wf1 = p['wf1'].T                 # (64, 8)
    bf1 = p['bf1'].reshape(1, 8)
    wf2 = p['wf2'].T                 # (8, 1)
    bf2 = p['bf2'].reshape(1, 1)

    # ---- layer-0 im2col input, sequence-major (L, Npad, 20) -----------------------
    x_lc = jnp.transpose(x, (0, 2, 1))                                # (N, L, 4)
    x_lc = jnp.pad(x_lc, ((0, npad - N), (0, 0), (0, 0)))             # (Npad, L, 4)
    x_sp = jnp.pad(x_lc, ((0, 0), (PAD, PAD), (0, 0)))                # (Npad, L+4, 4)
    x_col = jnp.concatenate([x_sp[:, k:k + L, :] for k in range(K)], axis=-1)
    x_col = jnp.transpose(x_col, (1, 0, 2))                           # (L, Npad, 20)

    full = lambda a: pl.BlockSpec(a.shape, lambda i: (0,) * a.ndim)

    y, enc, feat = pl.pallas_call(
        functools.partial(deepinfomax_kernel, L=L, NB=NB),
        out_shape=(jax.ShapeDtypeStruct((npad, 1), jnp.float32),
                   jax.ShapeDtypeStruct((npad, 64), jnp.float32),
                   jax.ShapeDtypeStruct((L, npad, 128), jnp.float32)),
        grid_spec=pltpu.PrefetchScalarGridSpec(
            num_scalar_prefetch=0,
            grid=(npad // NB,),
            in_specs=[
                pl.BlockSpec((L, NB, K * 4), lambda i: (0, i, 0)),
                full(w0col), full(b0),
                full(w1k), full(s1), full(t1),
                full(w2k), full(s2), full(t2),
                full(w3k), full(s3), full(t3),
                full(wlk), full(bl),
                full(wf1), full(bf1), full(wf2), full(bf2),
            ],
            out_specs=[
                pl.BlockSpec((NB, 1), lambda i: (i, 0)),
                pl.BlockSpec((NB, 64), lambda i: (i, 0)),
                pl.BlockSpec((L, NB, 128), lambda i: (0, i, 0)),
            ],
        ),
        compiler_params=pltpu.CompilerParams(
            dimension_semantics=("parallel",),        # megacore-shardable batch grid
            vmem_limit_bytes=32 * 1024 * 1024,        # fits v7x's 64 MiB physical VMEM
        ),
    )(x_col, w0col, b0, w1k, s1, t1, w2k, s2, t2, w3k, s3, t3, wlk, bl,
      wf1, bf1, wf2, bf2)

    out = y[:N, 0]                                    # (N,)
    encoded = enc[:N]                                 # (N, 64)
    features = jnp.transpose(feat[:, :N, :], (1, 2, 0))   # back to PyTorch (N, 128, L)
    return out, encoded, features


# ------------------------------- pure-JAX reference ----------------------------------
def reference_forward(x, p):
    def conv(x, w, b):
        y = jax.lax.conv_general_dilated(
            x, w, window_strides=(1,), padding=((PAD, PAD),),
            dimension_numbers=('NCH', 'OIH', 'NCH'))
        return y + b[None, :, None]

    def bn(x, g, b, m, v):
        return ((x - m[None, :, None]) / jnp.sqrt(v[None, :, None] + EPS)
                * g[None, :, None] + b[None, :, None])

    h = jax.nn.relu(conv(x, p['w0'], p['b0']))
    feats = jax.nn.relu(bn(conv(h, p['w1'], p['b1']),
                           p['g1'], p['beta1'], p['m1'], p['v1']))
    h = jax.nn.relu(bn(conv(feats, p['w2'], p['b2']),
                       p['g2'], p['beta2'], p['m2'], p['v2']))
    h = jax.nn.relu(bn(conv(h, p['w3'], p['b3']),
                       p['g3'], p['beta3'], p['m3'], p['v3']))
    enc = h.reshape(x.shape[0], -1) @ p['wl'].T + p['bl']
    fc1 = jax.nn.relu(enc @ p['wf1'].T + p['bf1'])
    out = jax.nn.relu((fc1 @ p['wf2'].T + p['bf2'])[:, 0])
    return out, enc, feats


if __name__ == "__main__":
    N, Cin, L = 2, 4, 8                      # small seqL=8 for the synthetic test
    key = jax.random.PRNGKey(0)
    keys = iter(jax.random.split(key, 48))

    def rnd(shape, scale=0.1):
        return scale * jax.random.normal(next(keys), shape, jnp.float32)

    def bn_params(C):
        return dict(g=1.0 + rnd((C,)), beta=rnd((C,)),
                    m=rnd((C,)), v=1.0 + 0.1 * jnp.abs(rnd((C,), 1.0)))

    bn1, bn2, bn3 = bn_params(128), bn_params(256), bn_params(512)
    params = dict(
        w0=rnd((64, 4, K)),    b0=rnd((64,)),
        w1=rnd((128, 64, K)),  b1=rnd((128,)),
        g1=bn1['g'], beta1=bn1['beta'], m1=bn1['m'], v1=bn1['v'],
        w2=rnd((256, 128, K)), b2=rnd((256,)),
        g2=bn2['g'], beta2=bn2['beta'], m2=bn2['m'], v2=bn2['v'],
        w3=rnd((512, 256, K)), b3=rnd((512,)),
        g3=bn3['g'], beta3=bn3['beta'], m3=bn3['m'], v3=bn3['v'],
        wl=rnd((64, 512 * L), 0.02), bl=rnd((64,)),
        wf1=rnd((8, 64)), bf1=rnd((8,)),
        wf2=rnd((1, 8)),  bf2=rnd((1,)),
    )

    x = rnd((N, Cin, L), 1.0)

    out, encoded, features = jax.block_until_ready(
        deepinfomax_forward(x, params, L=L, NB=16))
    out_ref, enc_ref, feat_ref = reference_forward(x, params)

    assert out.shape == (N,) and encoded.shape == (N, 64) and features.shape == (N, 128, L)
    # bf16 matmul operands (f32 accumulation) -> slightly relaxed tolerances vs f32 ref.
    assert jnp.allclose(features, feat_ref, atol=1e-2, rtol=1e-2), "features mismatch"
    assert jnp.allclose(encoded, enc_ref, atol=2e-2, rtol=2e-2), "encoded mismatch"
    assert jnp.allclose(out, out_ref, atol=2e-2, rtol=2e-2), "output mismatch"
    print("KERNEL_OK")
</pallas_src>

<mosaic_0001>
module attributes {stable_mosaic.version = 11 : i64} {
  func.func @deepinfomax_kernel(%arg0: i32, %arg1: memref<8x16x20xf32, #tpu.memory_space<vmem>>, %arg2: memref<20x64xf32, #tpu.memory_space<vmem>>, %arg3: memref<1x64xf32, #tpu.memory_space<vmem>>, %arg4: memref<5x64x128xbf16, #tpu.memory_space<vmem>>, %arg5: memref<1x128xf32, #tpu.memory_space<vmem>>, %arg6: memref<1x128xf32, #tpu.memory_space<vmem>>, %arg7: memref<5x128x256xbf16, #tpu.memory_space<vmem>>, %arg8: memref<1x256xf32, #tpu.memory_space<vmem>>, %arg9: memref<1x256xf32, #tpu.memory_space<vmem>>, %arg10: memref<5x256x512xbf16, #tpu.memory_space<vmem>>, %arg11: memref<1x512xf32, #tpu.memory_space<vmem>>, %arg12: memref<1x512xf32, #tpu.memory_space<vmem>>, %arg13: memref<8x512x64xbf16, #tpu.memory_space<vmem>>, %arg14: memref<1x64xf32, #tpu.memory_space<vmem>>, %arg15: memref<64x8xf32, #tpu.memory_space<vmem>>, %arg16: memref<1x8xf32, #tpu.memory_space<vmem>>, %arg17: memref<8x1xf32, #tpu.memory_space<vmem>>, %arg18: memref<1x1xf32, #tpu.memory_space<vmem>>, %arg19: memref<16x1xf32, #tpu.memory_space<vmem>>, %arg20: memref<16x64xf32, #tpu.memory_space<vmem>>, %arg21: memref<8x16x128xf32, #tpu.memory_space<vmem>>) attributes {dimension_semantics = [#tpu.dimension_semantics<parallel>], iteration_bounds = array<i64: 1>, scalar_prefetch = 0 : i64, scratch_operands = 0 : i64, tpu.core_type = #tpu.core_type<tc>, window_params = [{transform_indices = @transform_0, window_bounds = array<i64: 8, 16, 20>}, {pipeline_mode = #tpu.pipeline_mode<synchronous>, transform_indices = @transform_1, window_bounds = array<i64: 20, 64>}, {pipeline_mode = #tpu.pipeline_mode<synchronous>, transform_indices = @transform_2, window_bounds = array<i64: 1, 64>}, {pipeline_mode = #tpu.pipeline_mode<synchronous>, transform_indices = @transform_3, window_bounds = array<i64: 5, 64, 128>}, {pipeline_mode = #tpu.pipeline_mode<synchronous>, transform_indices = @transform_4, window_bounds = array<i64: 1, 128>}, {pipeline_mode = #tpu.pipeline_mode<synchronous>, transform_indices = @transform_5, window_bounds = array<i64: 1, 128>}, {pipeline_mode = #tpu.pipeline_mode<synchronous>, transform_indices = @transform_6, window_bounds = array<i64: 5, 128, 256>}, {pipeline_mode = #tpu.pipeline_mode<synchronous>, transform_indices = @transform_7, window_bounds = array<i64: 1, 256>}, {pipeline_mode = #tpu.pipeline_mode<synchronous>, transform_indices = @transform_8, window_bounds = array<i64: 1, 256>}, {pipeline_mode = #tpu.pipeline_mode<synchronous>, transform_indices = @transform_9, window_bounds = array<i64: 5, 256, 512>}, {pipeline_mode = #tpu.pipeline_mode<synchronous>, transform_indices = @transform_10, window_bounds = array<i64: 1, 512>}, {pipeline_mode = #tpu.pipeline_mode<synchronous>, transform_indices = @transform_11, window_bounds = array<i64: 1, 512>}, {pipeline_mode = #tpu.pipeline_mode<synchronous>, transform_indices = @transform_12, window_bounds = array<i64: 8, 512, 64>}, {pipeline_mode = #tpu.pipeline_mode<synchronous>, transform_indices = @transform_13, window_bounds = array<i64: 1, 64>}, {pipeline_mode = #tpu.pipeline_mode<synchronous>, transform_indices = @transform_14, window_bounds = array<i64: 64, 8>}, {pipeline_mode = #tpu.pipeline_mode<synchronous>, transform_indices = @transform_15, window_bounds = array<i64: 1, 8>}, {pipeline_mode = #tpu.pipeline_mode<synchronous>, transform_indices = @transform_16, window_bounds = array<i64: 8, 1>}, {pipeline_mode = #tpu.pipeline_mode<synchronous>, transform_indices = @transform_17, window_bounds = array<i64: 1, 1>}, {transform_indices = @transform_18, window_bounds = array<i64: 16, 1>}, {transform_indices = @transform_19, window_bounds = array<i64: 16, 64>}, {transform_indices = @transform_20, window_bounds = array<i64: 8, 16, 128>}]} {
    %c0 = arith.constant 0 : index
    %c0_0 = arith.constant 0 : index
    %c0_1 = arith.constant 0 : index
    %0 = vector.load %arg1[%c0, %c0_0, %c0_1] : memref<8x16x20xf32, #tpu.memory_space<vmem>>, vector<8x16x20xf32>
    %1 = vector.shape_cast %0 : vector<8x16x20xf32> to vector<128x20xf32>
    %c0_2 = arith.constant 0 : index
    %c0_3 = arith.constant 0 : index
    %2 = vector.load %arg2[%c0_2, %c0_3] : memref<20x64xf32, #tpu.memory_space<vmem>>, vector<20x64xf32>
    %cst = arith.constant dense<0.000000e+00> : vector<128x64xf32>
    %3 = tpu.matmul %1, %2, %cst {dimension_numbers = #tpu.dot_dimension_numbers<[1], [0], [0], [1], [0, 0, 1, 1], [], []>} : vector<128x20xf32>, vector<20x64xf32>, vector<128x64xf32> -> vector<128x64xf32>
    %c0_4 = arith.constant 0 : index
    %c0_5 = arith.constant 0 : index
    %4 = vector.load %arg3[%c0_4, %c0_5] : memref<1x64xf32, #tpu.memory_space<vmem>>, vector<1x64xf32>
    %5 = vector.broadcast %4 : vector<1x64xf32> to vector<128x64xf32>
    %6 = arith.addf %3, %5 : vector<128x64xf32>
    %cst_6 = arith.constant 0.000000e+00 : f32
    %7 = vector.broadcast %cst_6 : f32 to vector<128x64xf32>
    %8 = arith.maximumf %6, %7 : vector<128x64xf32>
    %9 = vector.shape_cast %8 : vector<128x64xf32> to vector<8x16x64xf32>
    %c0_7 = arith.constant 0 : index
    %c0_8 = arith.constant 0 : index
    %10 = vector.load %arg5[%c0_7, %c0_8] : memref<1x128xf32, #tpu.memory_space<vmem>>, vector<1x128xf32>
    %c0_9 = arith.constant 0 : index
    %c0_10 = arith.constant 0 : index
    %11 = vector.load %arg6[%c0_9, %c0_10] : memref<1x128xf32, #tpu.memory_space<vmem>>, vector<1x128xf32>
    %cst_11 = arith.constant 0.000000e+00 : bf16
    %12 = vector.broadcast %cst_11 : bf16 to vector<2x16x64xbf16>
    %13 = arith.truncf %9 : vector<8x16x64xf32> to vector<8x16x64xbf16>
    %14 = tpu.concatenate %12, %13, %12 in 0 : vector<2x16x64xbf16>, vector<8x16x64xbf16>, vector<2x16x64xbf16> -> vector<12x16x64xbf16>
    %cst_12 = arith.constant 0.000000e+00 : f32
    %15 = vector.broadcast %cst_12 : f32 to vector<128x128xf32>
    %16 = vector.extract_strided_slice %14 {offsets = [0, 0, 0], sizes = [8, 16, 64], strides = [1, 1, 1]} : vector<12x16x64xbf16> to vector<8x16x64xbf16>
    %17 = vector.shape_cast %16 : vector<8x16x64xbf16> to vector<128x64xbf16>
    %c0_13 = arith.constant 0 : index
    %c0_14 = arith.constant 0 : index
    %c0_15 = arith.constant 0 : index
    %18 = vector.load %arg4[%c0_13, %c0_14, %c0_15] : memref<5x64x128xbf16, #tpu.memory_space<vmem>>, vector<1x64x128xbf16>
    %19 = vector.shape_cast %18 : vector<1x64x128xbf16> to vector<64x128xbf16>
    %cst_16 = arith.constant dense<0.000000e+00> : vector<128x128xf32>
    %20 = tpu.matmul %17, %19, %cst_16 {dimension_numbers = #tpu.dot_dimension_numbers<[1], [0], [0], [1], [0, 0, 1, 1], [], []>} : vector<128x64xbf16>, vector<64x128xbf16>, vector<128x128xf32> -> vector<128x128xf32>
    %21 = arith.addf %15, %20 : vector<128x128xf32>
    %22 = vector.extract_strided_slice %14 {offsets = [1, 0, 0], sizes = [8, 16, 64], strides = [1, 1, 1]} : vector<12x16x64xbf16> to vector<8x16x64xbf16>
    %23 = vector.shape_cast %22 : vector<8x16x64xbf16> to vector<128x64xbf16>
    %c1 = arith.constant 1 : index
    %c0_17 = arith.constant 0 : index
    %c0_18 = arith.constant 0 : index
    %24 = vector.load %arg4[%c1, %c0_17, %c0_18] : memref<5x64x128xbf16, #tpu.memory_space<vmem>>, vector<1x64x128xbf16>
    %25 = vector.shape_cast %24 : vector<1x64x128xbf16> to vector<64x128xbf16>
    %cst_19 = arith.constant dense<0.000000e+00> : vector<128x128xf32>
    %26 = tpu.matmul %23, %25, %cst_19 {dimension_numbers = #tpu.dot_dimension_numbers<[1], [0], [0], [1], [0, 0, 1, 1], [], []>} : vector<128x64xbf16>, vector<64x128xbf16>, vector<128x128xf32> -> vector<128x128xf32>
    %27 = arith.addf %21, %26 : vector<128x128xf32>
    %28 = vector.extract_strided_slice %14 {offsets = [2, 0, 0], sizes = [8, 16, 64], strides = [1, 1, 1]} : vector<12x16x64xbf16> to vector<8x16x64xbf16>
    %29 = vector.shape_cast %28 : vector<8x16x64xbf16> to vector<128x64xbf16>
    %c2 = arith.constant 2 : index
    %c0_20 = arith.constant 0 : index
    %c0_21 = arith.constant 0 : index
    %30 = vector.load %arg4[%c2, %c0_20, %c0_21] : memref<5x64x128xbf16, #tpu.memory_space<vmem>>, vector<1x64x128xbf16>
    %31 = vector.shape_cast %30 : vector<1x64x128xbf16> to vector<64x128xbf16>
    %cst_22 = arith.constant dense<0.000000e+00> : vector<128x128xf32>
    %32 = tpu.matmul %29, %31, %cst_22 {dimension_numbers = #tpu.dot_dimension_numbers<[1], [0], [0], [1], [0, 0, 1, 1], [], []>} : vector<128x64xbf16>, vector<64x128xbf16>, vector<128x128xf32> -> vector<128x128xf32>
    %33 = arith.addf %27, %32 : vector<128x128xf32>
    %34 = vector.extract_strided_slice %14 {offsets = [3, 0, 0], sizes = [8, 16, 64], strides = [1, 1, 1]} : vector<12x16x64xbf16> to vector<8x16x64xbf16>
    %35 = vector.shape_cast %34 : vector<8x16x64xbf16> to vector<128x64xbf16>
    %c3 = arith.constant 3 : index
    %c0_23 = arith.constant 0 : index
    %c0_24 = arith.constant 0 : index
    %36 = vector.load %arg4[%c3, %c0_23, %c0_24] : memref<5x64x128xbf16, #tpu.memory_space<vmem>>, vector<1x64x128xbf16>
    %37 = vector.shape_cast %36 : vector<1x64x128xbf16> to vector<64x128xbf16>
    %cst_25 = arith.constant dense<0.000000e+00> : vector<128x128xf32>
    %38 = tpu.matmul %35, %37, %cst_25 {dimension_numbers = #tpu.dot_dimension_numbers<[1], [0], [0], [1], [0, 0, 1, 1], [], []>} : vector<128x64xbf16>, vector<64x128xbf16>, vector<128x128xf32> -> vector<128x128xf32>
    %39 = arith.addf %33, %38 : vector<128x128xf32>
    %40 = vector.extract_strided_slice %14 {offsets = [4, 0, 0], sizes = [8, 16, 64], strides = [1, 1, 1]} : vector<12x16x64xbf16> to vector<8x16x64xbf16>
    %41 = vector.shape_cast %40 : vector<8x16x64xbf16> to vector<128x64xbf16>
    %c4 = arith.constant 4 : index
    %c0_26 = arith.constant 0 : index
    %c0_27 = arith.constant 0 : index
    %42 = vector.load %arg4[%c4, %c0_26, %c0_27] : memref<5x64x128xbf16, #tpu.memory_space<vmem>>, vector<1x64x128xbf16>
    %43 = vector.shape_cast %42 : vector<1x64x128xbf16> to vector<64x128xbf16>
    %cst_28 = arith.constant dense<0.000000e+00> : vector<128x128xf32>
    %44 = tpu.matmul %41, %43, %cst_28 {dimension_numbers = #tpu.dot_dimension_numbers<[1], [0], [0], [1], [0, 0, 1, 1], [], []>} : vector<128x64xbf16>, vector<64x128xbf16>, vector<128x128xf32> -> vector<128x128xf32>
    %45 = arith.addf %39, %44 : vector<128x128xf32>
    %46 = vector.broadcast %10 : vector<1x128xf32> to vector<128x128xf32>
    %47 = arith.mulf %45, %46 : vector<128x128xf32>
    %48 = vector.broadcast %11 : vector<1x128xf32> to vector<128x128xf32>
    %49 = arith.addf %47, %48 : vector<128x128xf32>
    %cst_29 = arith.constant 0.000000e+00 : f32
    %50 = vector.broadcast %cst_29 : f32 to vector<128x128xf32>
    %51 = arith.maximumf %49, %50 : vector<128x128xf32>
    %52 = vector.shape_cast %51 : vector<128x128xf32> to vector<8x16x128xf32>
    %c0_30 = arith.constant 0 : index
    %c0_31 = arith.constant 0 : index
    %c0_32 = arith.constant 0 : index
    %53 = vector.load %arg21[%c0_30, %c0_31, %c0_32] : memref<8x16x128xf32, #tpu.memory_space<vmem>>, vector<8x16x128xf32>
    tpu.vector_store %arg21[%c0_30, %c0_31, %c0_32], %52 {strides = array<i32>} : memref<8x16x128xf32, #tpu.memory_space<vmem>>, vector<8x16x128xf32>,
    %c0_33 = arith.constant 0 : index
    %c0_34 = arith.constant 0 : index
    %54 = vector.load %arg8[%c0_33, %c0_34] : memref<1x256xf32, #tpu.memory_space<vmem>>, vector<1x256xf32>
    %c0_35 = arith.constant 0 : index
    %c0_36 = arith.constant 0 : index
    %55 = vector.load %arg9[%c0_35, %c0_36] : memref<1x256xf32, #tpu.memory_space<vmem>>, vector<1x256xf32>
    %cst_37 = arith.constant 0.000000e+00 : bf16
    %56 = vector.broadcast %cst_37 : bf16 to vector<2x16x128xbf16>
    %57 = arith.truncf %52 : vector<8x16x128xf32> to vector<8x16x128xbf16>
    %58 = tpu.concatenate %56, %57, %56 in 0 : vector<2x16x128xbf16>, vector<8x16x128xbf16>, vector<2x16x128xbf16> -> vector<12x16x128xbf16>
    %cst_38 = arith.constant 0.000000e+00 : f32
    %59 = vector.broadcast %cst_38 : f32 to vector<128x256xf32>
    %60 = vector.extract_strided_slice %58 {offsets = [0, 0, 0], sizes = [8, 16, 128], strides = [1, 1, 1]} : vector<12x16x128xbf16> to vector<8x16x128xbf16>
    %61 = vector.shape_cast %60 : vector<8x16x128xbf16> to vector<128x128xbf16>
    %c0_39 = arith.constant 0 : index
    %c0_40 = arith.constant 0 : index
    %c0_41 = arith.constant 0 : index
    %62 = vector.load %arg7[%c0_39, %c0_40, %c0_41] : memref<5x128x256xbf16, #tpu.memory_space<vmem>>, vector<1x128x256xbf16>
    %63 = vector.shape_cast %62 : vector<1x128x256xbf16> to vector<128x256xbf16>
    %cst_42 = arith.constant dense<0.000000e+00> : vector<128x256xf32>
    %64 = tpu.matmul %61, %63, %cst_42 {dimension_numbers = #tpu.dot_dimension_numbers<[1], [0], [0], [1], [0, 0, 1, 1], [], []>} : vector<128x128xbf16>, vector<128x256xbf16>, vector<128x256xf32> -> vector<128x256xf32>
    %65 = arith.addf %59, %64 : vector<128x256xf32>
    %66 = vector.extract_strided_slice %58 {offsets = [1, 0, 0], sizes = [8, 16, 128], strides = [1, 1, 1]} : vector<12x16x128xbf16> to vector<8x16x128xbf16>
    %67 = vector.shape_cast %66 : vector<8x16x128xbf16> to vector<128x128xbf16>
    %c1_43 = arith.constant 1 : index
    %c0_44 = arith.constant 0 : index
    %c0_45 = arith.constant 0 : index
    %68 = vector.load %arg7[%c1_43, %c0_44, %c0_45] : memref<5x128x256xbf16, #tpu.memory_space<vmem>>, vector<1x128x256xbf16>
    %69 = vector.shape_cast %68 : vector<1x128x256xbf16> to vector<128x256xbf16>
    %cst_46 = arith.constant dense<0.000000e+00> : vector<128x256xf32>
    %70 = tpu.matmul %67, %69, %cst_46 {dimension_numbers = #tpu.dot_dimension_numbers<[1], [0], [0], [1], [0, 0, 1, 1], [], []>} : vector<128x128xbf16>, vector<128x256xbf16>, vector<128x256xf32> -> vector<128x256xf32>
    %71 = arith.addf %65, %70 : vector<128x256xf32>
    %72 = vector.extract_strided_slice %58 {offsets = [2, 0, 0], sizes = [8, 16, 128], strides = [1, 1, 1]} : vector<12x16x128xbf16> to vector<8x16x128xbf16>
    %73 = vector.shape_cast %72 : vector<8x16x128xbf16> to vector<128x128xbf16>
    %c2_47 = arith.constant 2 : index
    %c0_48 = arith.constant 0 : index
    %c0_49 = arith.constant 0 : index
    %74 = vector.load %arg7[%c2_47, %c0_48, %c0_49] : memref<5x128x256xbf16, #tpu.memory_space<vmem>>, vector<1x128x256xbf16>
    %75 = vector.shape_cast %74 : vector<1x128x256xbf16> to vector<128x256xbf16>
    %cst_50 = arith.constant dense<0.000000e+00> : vector<128x256xf32>
    %76 = tpu.matmul %73, %75, %cst_50 {dimension_numbers = #tpu.dot_dimension_numbers<[1], [0], [0], [1], [0, 0, 1, 1], [], []>} : vector<128x128xbf16>, vector<128x256xbf16>, vector<128x256xf32> -> vector<128x256xf32>
    %77 = arith.addf %71, %76 : vector<128x256xf32>
    %78 = vector.extract_strided_slice %58 {offsets = [3, 0, 0], sizes = [8, 16, 128], strides = [1, 1, 1]} : vector<12x16x128xbf16> to vector<8x16x128xbf16>
    %79 = vector.shape_cast %78 : vector<8x16x128xbf16> to vector<128x128xbf16>
    %c3_51 = arith.constant 3 : index
    %c0_52 = arith.constant 0 : index
    %c0_53 = arith.constant 0 : index
    %80 = vector.load %arg7[%c3_51, %c0_52, %c0_53] : memref<5x128x256xbf16, #tpu.memory_space<vmem>>, vector<1x128x256xbf16>
    %81 = vector.shape_cast %80 : vector<1x128x256xbf16> to vector<128x256xbf16>
    %cst_54 = arith.constant dense<0.000000e+00> : vector<128x256xf32>
    %82 = tpu.matmul %79, %81, %cst_54 {dimension_numbers = #tpu.dot_dimension_numbers<[1], [0], [0], [1], [0, 0, 1, 1], [], []>} : vector<128x128xbf16>, vector<128x256xbf16>, vector<128x256xf32> -> vector<128x256xf32>
    %83 = arith.addf %77, %82 : vector<128x256xf32>
    %84 = vector.extract_strided_slice %58 {offsets = [4, 0, 0], sizes = [8, 16, 128], strides = [1, 1, 1]} : vector<12x16x128xbf16> to vector<8x16x128xbf16>
    %85 = vector.shape_cast %84 : vector<8x16x128xbf16> to vector<128x128xbf16>
    %c4_55 = arith.constant 4 : index
    %c0_56 = arith.constant 0 : index
    %c0_57 = arith.constant 0 : index
    %86 = vector.load %arg7[%c4_55, %c0_56, %c0_57] : memref<5x128x256xbf16, #tpu.memory_space<vmem>>, vector<1x128x256xbf16>
    %87 = vector.shape_cast %86 : vector<1x128x256xbf16> to vector<128x256xbf16>
    %cst_58 = arith.constant dense<0.000000e+00> : vector<128x256xf32>
    %88 = tpu.matmul %85, %87, %cst_58 {dimension_numbers = #tpu.dot_dimension_numbers<[1], [0], [0], [1], [0, 0, 1, 1], [], []>} : vector<128x128xbf16>, vector<128x256xbf16>, vector<128x256xf32> -> vector<128x256xf32>
    %89 = arith.addf %83, %88 : vector<128x256xf32>
    %90 = vector.broadcast %54 : vector<1x256xf32> to vector<128x256xf32>
    %91 = arith.mulf %89, %90 : vector<128x256xf32>
    %92 = vector.broadcast %55 : vector<1x256xf32> to vector<128x256xf32>
    %93 = arith.addf %91, %92 : vector<128x256xf32>
    %cst_59 = arith.constant 0.000000e+00 : f32
    %94 = vector.broadcast %cst_59 : f32 to vector<128x256xf32>
    %95 = arith.maximumf %93, %94 : vector<128x256xf32>
    %96 = vector.shape_cast %95 : vector<128x256xf32> to vector<8x16x256xf32>
    %c0_60 = arith.constant 0 : index
    %c0_61 = arith.constant 0 : index
    %97 = vector.load %arg11[%c0_60, %c0_61] : memref<1x512xf32, #tpu.memory_space<vmem>>, vector<1x512xf32>
    %c0_62 = arith.constant 0 : index
    %c0_63 = arith.constant 0 : index
    %98 = vector.load %arg12[%c0_62, %c0_63] : memref<1x512xf32, #tpu.memory_space<vmem>>, vector<1x512xf32>
    %cst_64 = arith.constant 0.000000e+00 : bf16
    %99 = vector.broadcast %cst_64 : bf16 to vector<2x16x256xbf16>
    %100 = arith.truncf %96 : vector<8x16x256xf32> to vector<8x16x256xbf16>
    %101 = tpu.concatenate %99, %100, %99 in 0 : vector<2x16x256xbf16>, vector<8x16x256xbf16>, vector<2x16x256xbf16> -> vector<12x16x256xbf16>
    %cst_65 = arith.constant 0.000000e+00 : f32
    %102 = vector.broadcast %cst_65 : f32 to vector<128x512xf32>
    %103 = vector.extract_strided_slice %101 {offsets = [0, 0, 0], sizes = [8, 16, 256], strides = [1, 1, 1]} : vector<12x16x256xbf16> to vector<8x16x256xbf16>
    %104 = vector.shape_cast %103 : vector<8x16x256xbf16> to vector<128x256xbf16>
    %c0_66 = arith.constant 0 : index
    %c0_67 = arith.constant 0 : index
    %c0_68 = arith.constant 0 : index
    %105 = vector.load %arg10[%c0_66, %c0_67, %c0_68] : memref<5x256x512xbf16, #tpu.memory_space<vmem>>, vector<1x256x512xbf16>
    %106 = vector.shape_cast %105 : vector<1x256x512xbf16> to vector<256x512xbf16>
    %cst_69 = arith.constant dense<0.000000e+00> : vector<128x512xf32>
    %107 = tpu.matmul %104, %106, %cst_69 {dimension_numbers = #tpu.dot_dimension_numbers<[1], [0], [0], [1], [0, 0, 1, 1], [], []>} : vector<128x256xbf16>, vector<256x512xbf16>, vector<128x512xf32> -> vector<128x512xf32>
    %108 = arith.addf %102, %107 : vector<128x512xf32>
    %109 = vector.extract_strided_slice %101 {offsets = [1, 0, 0], sizes = [8, 16, 256], strides = [1, 1, 1]} : vector<12x16x256xbf16> to vector<8x16x256xbf16>
    %110 = vector.shape_cast %109 : vector<8x16x256xbf16> to vector<128x256xbf16>
    %c1_70 = arith.constant 1 : index
    %c0_71 = arith.constant 0 : index
    %c0_72 = arith.constant 0 : index
    %111 = vector.load %arg10[%c1_70, %c0_71, %c0_72] : memref<5x256x512xbf16, #tpu.memory_space<vmem>>, vector<1x256x512xbf16>
    %112 = vector.shape_cast %111 : vector<1x256x512xbf16> to vector<256x512xbf16>
    %cst_73 = arith.constant dense<0.000000e+00> : vector<128x512xf32>
    %113 = tpu.matmul %110, %112, %cst_73 {dimension_numbers = #tpu.dot_dimension_numbers<[1], [0], [0], [1], [0, 0, 1, 1], [], []>} : vector<128x256xbf16>, vector<256x512xbf16>, vector<128x512xf32> -> vector<128x512xf32>
    %114 = arith.addf %108, %113 : vector<128x512xf32>
    %115 = vector.extract_strided_slice %101 {offsets = [2, 0, 0], sizes = [8, 16, 256], strides = [1, 1, 1]} : vector<12x16x256xbf16> to vector<8x16x256xbf16>
    %116 = vector.shape_cast %115 : vector<8x16x256xbf16> to vector<128x256xbf16>
    %c2_74 = arith.constant 2 : index
    %c0_75 = arith.constant 0 : index
    %c0_76 = arith.constant 0 : index
    %117 = vector.load %arg10[%c2_74, %c0_75, %c0_76] : memref<5x256x512xbf16, #tpu.memory_space<vmem>>, vector<1x256x512xbf16>
    %118 = vector.shape_cast %117 : vector<1x256x512xbf16> to vector<256x512xbf16>
    %cst_77 = arith.constant dense<0.000000e+00> : vector<128x512xf32>
    %119 = tpu.matmul %116, %118, %cst_77 {dimension_numbers = #tpu.dot_dimension_numbers<[1], [0], [0], [1], [0, 0, 1, 1], [], []>} : vector<128x256xbf16>, vector<256x512xbf16>, vector<128x512xf32> -> vector<128x512xf32>
    %120 = arith.addf %114, %119 : vector<128x512xf32>
    %121 = vector.extract_strided_slice %101 {offsets = [3, 0, 0], sizes = [8, 16, 256], strides = [1, 1, 1]} : vector<12x16x256xbf16> to vector<8x16x256xbf16>
    %122 = vector.shape_cast %121 : vector<8x16x256xbf16> to vector<128x256xbf16>
    %c3_78 = arith.constant 3 : index
    %c0_79 = arith.constant 0 : index
    %c0_80 = arith.constant 0 : index
    %123 = vector.load %arg10[%c3_78, %c0_79, %c0_80] : memref<5x256x512xbf16, #tpu.memory_space<vmem>>, vector<1x256x512xbf16>
    %124 = vector.shape_cast %123 : vector<1x256x512xbf16> to vector<256x512xbf16>
    %cst_81 = arith.constant dense<0.000000e+00> : vector<128x512xf32>
    %125 = tpu.matmul %122, %124, %cst_81 {dimension_numbers = #tpu.dot_dimension_numbers<[1], [0], [0], [1], [0, 0, 1, 1], [], []>} : vector<128x256xbf16>, vector<256x512xbf16>, vector<128x512xf32> -> vector<128x512xf32>
    %126 = arith.addf %120, %125 : vector<128x512xf32>
    %127 = vector.extract_strided_slice %101 {offsets = [4, 0, 0], sizes = [8, 16, 256], strides = [1, 1, 1]} : vector<12x16x256xbf16> to vector<8x16x256xbf16>
    %128 = vector.shape_cast %127 : vector<8x16x256xbf16> to vector<128x256xbf16>
    %c4_82 = arith.constant 4 : index
    %c0_83 = arith.constant 0 : index
    %c0_84 = arith.constant 0 : index
    %129 = vector.load %arg10[%c4_82, %c0_83, %c0_84] : memref<5x256x512xbf16, #tpu.memory_space<vmem>>, vector<1x256x512xbf16>
    %130 = vector.shape_cast %129 : vector<1x256x512xbf16> to vector<256x512xbf16>
    %cst_85 = arith.constant dense<0.000000e+00> : vector<128x512xf32>
    %131 = tpu.matmul %128, %130, %cst_85 {dimension_numbers = #tpu.dot_dimension_numbers<[1], [0], [0], [1], [0, 0, 1, 1], [], []>} : vector<128x256xbf16>, vector<256x512xbf16>, vector<128x512xf32> -> vector<128x512xf32>
    %132 = arith.addf %126, %131 : vector<128x512xf32>
    %133 = vector.broadcast %97 : vector<1x512xf32> to vector<128x512xf32>
    %134 = arith.mulf %132, %133 : vector<128x512xf32>
    %135 = vector.broadcast %98 : vector<1x512xf32> to vector<128x512xf32>
    %136 = arith.addf %134, %135 : vector<128x512xf32>
    %cst_86 = arith.constant 0.000000e+00 : f32
    %137 = vector.broadcast %cst_86 : f32 to vector<128x512xf32>
    %138 = arith.maximumf %136, %137 : vector<128x512xf32>
    %139 = vector.shape_cast %138 : vector<128x512xf32> to vector<8x16x512xf32>
    %140 = arith.truncf %139 : vector<8x16x512xf32> to vector<8x16x512xbf16>
    %c0_87 = arith.constant 0 : index
    %c0_88 = arith.constant 0 : index
    %c0_89 = arith.constant 0 : index
    %141 = vector.load %arg13[%c0_87, %c0_88, %c0_89] : memref<8x512x64xbf16, #tpu.memory_space<vmem>>, vector<8x512x64xbf16>
    "tpu.trace_start"() <{level = 10 : i32, message = "lnc,lco->lno"}> : () -> ()
    %cst_90 = arith.constant dense<0.000000e+00> : vector<8x16x64xf32>
    %142 = tpu.matmul %140, %141, %cst_90 {dimension_numbers = #tpu.dot_dimension_numbers<[2], [1], [1], [2], [0, 0, 0, 1, 1, 2], [0], [0]>} : vector<8x16x512xbf16>, vector<8x512x64xbf16>, vector<8x16x64xf32> -> vector<8x16x64xf32>
    "tpu.trace_stop"() : () -> ()
    %cst_91 = arith.constant dense<0.000000e+00> : vector<16x64xf32>
    %143 = vector.multi_reduction <add>, %142, %cst_91 [0] : vector<8x16x64xf32> to vector<16x64xf32>
    %c0_92 = arith.constant 0 : index
    %c0_93 = arith.constant 0 : index
    %144 = vector.load %arg14[%c0_92, %c0_93] : memref<1x64xf32, #tpu.memory_space<vmem>>, vector<1x64xf32>
    %145 = vector.broadcast %144 : vector<1x64xf32> to vector<16x64xf32>
    %146 = arith.addf %143, %145 : vector<16x64xf32>
    %c0_94 = arith.constant 0 : index
    %c0_95 = arith.constant 0 : index
    %147 = vector.load %arg20[%c0_94, %c0_95] : memref<16x64xf32, #tpu.memory_space<vmem>>, vector<16x64xf32>
    tpu.vector_store %arg20[%c0_94, %c0_95], %146 {strides = array<i32>} : memref<16x64xf32, #tpu.memory_space<vmem>>, vector<16x64xf32>,
    %c0_96 = arith.constant 0 : index
    %c0_97 = arith.constant 0 : index
    %148 = vector.load %arg15[%c0_96, %c0_97] : memref<64x8xf32, #tpu.memory_space<vmem>>, vector<64x8xf32>
    %cst_98 = arith.constant dense<0.000000e+00> : vector<16x8xf32>
    %149 = tpu.matmul %146, %148, %cst_98 {dimension_numbers = #tpu.dot_dimension_numbers<[1], [0], [0], [1], [0, 0, 1, 1], [], []>} : vector<16x64xf32>, vector<64x8xf32>, vector<16x8xf32> -> vector<16x8xf32>
    %c0_99 = arith.constant 0 : index
    %c0_100 = arith.constant 0 : index
    %150 = vector.load %arg16[%c0_99, %c0_100] : memref<1x8xf32, #tpu.memory_space<vmem>>, vector<1x8xf32>
    %151 = vector.broadcast %150 : vector<1x8xf32> to vector<16x8xf32>
    %152 = arith.addf %149, %151 : vector<16x8xf32>
    %cst_101 = arith.constant 0.000000e+00 : f32
    %153 = vector.broadcast %cst_101 : f32 to vector<16x8xf32>
    %154 = arith.maximumf %152, %153 : vector<16x8xf32>
    %c0_102 = arith.constant 0 : index
    %c0_103 = arith.constant 0 : index
    %155 = vector.load %arg17[%c0_102, %c0_103] : memref<8x1xf32, #tpu.memory_space<vmem>>, vector<8x1xf32>
    %cst_104 = arith.constant dense<0.000000e+00> : vector<16x1xf32>
    %156 = tpu.matmul %154, %155, %cst_104 {dimension_numbers = #tpu.dot_dimension_numbers<[1], [0], [0], [1], [0, 0, 1, 1], [], []>} : vector<16x8xf32>, vector<8x1xf32>, vector<16x1xf32> -> vector<16x1xf32>
    %c0_105 = arith.constant 0 : index
    %c0_106 = arith.constant 0 : index
    %157 = vector.load %arg18[%c0_105, %c0_106] : memref<1x1xf32, #tpu.memory_space<vmem>>, vector<1x1xf32>
    %158 = vector.broadcast %157 : vector<1x1xf32> to vector<16x1xf32>
    %159 = arith.addf %156, %158 : vector<16x1xf32>
    %cst_107 = arith.constant 0.000000e+00 : f32
    %160 = vector.broadcast %cst_107 : f32 to vector<16x1xf32>
    %161 = arith.maximumf %159, %160 : vector<16x1xf32>
    %c0_108 = arith.constant 0 : index
    %c0_109 = arith.constant 0 : index
    %162 = vector.load %arg19[%c0_108, %c0_109] : memref<16x1xf32, #tpu.memory_space<vmem>>, vector<16x1xf32>
    tpu.vector_store %arg19[%c0_108, %c0_109], %161 {strides = array<i32>} : memref<16x1xf32, #tpu.memory_space<vmem>>, vector<16x1xf32>,
    return
  }
  func.func @transform_0(%arg0: i32) -> (i32, i32, i32) {
    %c0_i32 = arith.constant 0 : i32
    %c0_i32_0 = arith.constant 0 : i32
    %c0_i32_1 = arith.constant 0 : i32
    return %c0_i32, %arg0, %c0_i32_0 : i32, i32, i32
  }
  func.func @transform_1(%arg0: i32) -> (i32, i32) {
    %c0_i32 = arith.constant 0 : i32
    %c0_i32_0 = arith.constant 0 : i32
    %c0_i32_1 = arith.constant 0 : i32
    return %c0_i32, %c0_i32_0 : i32, i32
  }
  func.func @transform_2(%arg0: i32) -> (i32, i32) {
    %c0_i32 = arith.constant 0 : i32
    %c0_i32_0 = arith.constant 0 : i32
    %c0_i32_1 = arith.constant 0 : i32
    return %c0_i32, %c0_i32_0 : i32, i32
  }
  func.func @transform_3(%arg0: i32) -> (i32, i32, i32) {
    %c0_i32 = arith.constant 0 : i32
    %c0_i32_0 = arith.constant 0 : i32
    %c0_i32_1 = arith.constant 0 : i32
    %c0_i32_2 = arith.constant 0 : i32
    return %c0_i32, %c0_i32_0, %c0_i32_1 : i32, i32, i32
  }
  func.func @transform_4(%arg0: i32) -> (i32, i32) {
    %c0_i32 = arith.constant 0 : i32
    %c0_i32_0 = arith.constant 0 : i32
    %c0_i32_1 = arith.constant 0 : i32
    return %c0_i32, %c0_i32_0 : i32, i32
  }
  func.func @transform_5(%arg0: i32) -> (i32, i32) {
    %c0_i32 = arith.constant 0 : i32
    %c0_i32_0 = arith.constant 0 : i32
    %c0_i32_1 = arith.constant 0 : i32
    return %c0_i32, %c0_i32_0 : i32, i32
  }
  func.func @transform_6(%arg0: i32) -> (i32, i32, i32) {
    %c0_i32 = arith.constant 0 : i32
    %c0_i32_0 = arith.constant 0 : i32
    %c0_i32_1 = arith.constant 0 : i32
    %c0_i32_2 = arith.constant 0 : i32
    return %c0_i32, %c0_i32_0, %c0_i32_1 : i32, i32, i32
  }
  func.func @transform_7(%arg0: i32) -> (i32, i32) {
    %c0_i32 = arith.constant 0 : i32
    %c0_i32_0 = arith.constant 0 : i32
    %c0_i32_1 = arith.constant 0 : i32
    return %c0_i32, %c0_i32_0 : i32, i32
  }
  func.func @transform_8(%arg0: i32) -> (i32, i32) {
    %c0_i32 = arith.constant 0 : i32
    %c0_i32_0 = arith.constant 0 : i32
    %c0_i32_1 = arith.constant 0 : i32
    return %c0_i32, %c0_i32_0 : i32, i32
  }
  func.func @transform_9(%arg0: i32) -> (i32, i32, i32) {
    %c0_i32 = arith.constant 0 : i32
    %c0_i32_0 = arith.constant 0 : i32
    %c0_i32_1 = arith.constant 0 : i32
    %c0_i32_2 = arith.constant 0 : i32
    return %c0_i32, %c0_i32_0, %c0_i32_1 : i32, i32, i32
  }
  func.func @transform_10(%arg0: i32) -> (i32, i32) {
    %c0_i32 = arith.constant 0 : i32
    %c0_i32_0 = arith.constant 0 : i32
    %c0_i32_1 = arith.constant 0 : i32
    return %c0_i32, %c0_i32_0 : i32, i32
  }
  func.func @transform_11(%arg0: i32) -> (i32, i32) {
    %c0_i32 = arith.constant 0 : i32
    %c0_i32_0 = arith.constant 0 : i32
    %c0_i32_1 = arith.constant 0 : i32
    return %c0_i32, %c0_i32_0 : i32, i32
  }
  func.func @transform_12(%arg0: i32) -> (i32, i32, i32) {
    %c0_i32 = arith.constant 0 : i32
    %c0_i32_0 = arith.constant 0 : i32
    %c0_i32_1 = arith.constant 0 : i32
    %c0_i32_2 = arith.constant 0 : i32
    return %c0_i32, %c0_i32_0, %c0_i32_1 : i32, i32, i32
  }
  func.func @transform_13(%arg0: i32) -> (i32, i32) {
    %c0_i32 = arith.constant 0 : i32
    %c0_i32_0 = arith.constant 0 : i32
    %c0_i32_1 = arith.constant 0 : i32
    return %c0_i32, %c0_i32_0 : i32, i32
  }
  func.func @transform_14(%arg0: i32) -> (i32, i32) {
    %c0_i32 = arith.constant 0 : i32
    %c0_i32_0 = arith.constant 0 : i32
    %c0_i32_1 = arith.constant 0 : i32
    return %c0_i32, %c0_i32_0 : i32, i32
  }
  func.func @transform_15(%arg0: i32) -> (i32, i32) {
    %c0_i32 = arith.constant 0 : i32
    %c0_i32_0 = arith.constant 0 : i32
    %c0_i32_1 = arith.constant 0 : i32
    return %c0_i32, %c0_i32_0 : i32, i32
  }
  func.func @transform_16(%arg0: i32) -> (i32, i32) {
    %c0_i32 = arith.constant 0 : i32
    %c0_i32_0 = arith.constant 0 : i32
    %c0_i32_1 = arith.constant 0 : i32
    return %c0_i32, %c0_i32_0 : i32, i32
  }
  func.func @transform_17(%arg0: i32) -> (i32, i32) {
    %c0_i32 = arith.constant 0 : i32
    %c0_i32_0 = arith.constant 0 : i32
    %c0_i32_1 = arith.constant 0 : i32
    return %c0_i32, %c0_i32_0 : i32, i32
  }
  func.func @transform_18(%arg0: i32) -> (i32, i32) {
    %c0_i32 = arith.constant 0 : i32
    %c0_i32_0 = arith.constant 0 : i32
    return %arg0, %c0_i32 : i32, i32
  }
  func.func @transform_19(%arg0: i32) -> (i32, i32) {
    %c0_i32 = arith.constant 0 : i32
    %c0_i32_0 = arith.constant 0 : i32
    return %arg0, %c0_i32 : i32, i32
  }
  func.func @transform_20(%arg0: i32) -> (i32, i32, i32) {
    %c0_i32 = arith.constant 0 : i32
    %c0_i32_0 = arith.constant 0 : i32
    %c0_i32_1 = arith.constant 0 : i32
    return %c0_i32, %arg0, %c0_i32_0 : i32, i32, i32
  }
}

</mosaic_0001>

<llo_original>
// kernel: tpu_custom_call.1
$region0: #{tpu_custom_call.1}
  #allocation0 [shape = 'u32[]', space=smem, size = 0x4, offset = 0x4, fixed_abs, tag = 'smem constant byte address 0x4 - core index']
  #allocation1 [shape = 'u32[72,128]{1,0:T(1,128)}', space=vmem, size = 0x9000, scoped, tag = 'internal scratch']
  #allocation2 [shape = 'f32[1,1]{1,0:T(1,128)S(1)}', space=vmem, size = 0x200, scoped, tag = 'scoped memory for tpu_custom_call.1']
  %s0 = inlined_call_operand.vmem [shape: f32[8,16,20], index: 0, kind: input, shape index: {}]
  %s1 = inlined_call_operand.vmem [shape: f32[20,64], index: 1, kind: input, shape index: {}]
  %s2 = inlined_call_operand.vmem [shape: f32[1,64], index: 2, kind: input, shape index: {}]
  %s3 = inlined_call_operand.vmem [shape: bf16[5,64,128], index: 3, kind: input, shape index: {}]
  %s4 = inlined_call_operand.vmem [shape: f32[1,128], index: 4, kind: input, shape index: {}]
  %s5 = inlined_call_operand.vmem [shape: f32[1,128], index: 5, kind: input, shape index: {}]
  %s6 = inlined_call_operand.hbm [shape: bf16[5,128,256], index: 6, kind: input, shape index: {}]
  %s7 = inlined_call_operand.vmem [shape: f32[1,256], index: 7, kind: input, shape index: {}]
  %s8 = inlined_call_operand.vmem [shape: f32[1,256], index: 8, kind: input, shape index: {}]
  %s9 = inlined_call_operand.vmem [shape: bf16[5,256,512], index: 9, kind: input, shape index: {}]
  %s10 = inlined_call_operand.vmem [shape: f32[1,512], index: 10, kind: input, shape index: {}]
  %s11 = inlined_call_operand.vmem [shape: f32[1,512], index: 11, kind: input, shape index: {}]
  %s12 = inlined_call_operand.vmem [shape: bf16[8,512,64], index: 12, kind: input, shape index: {}]
  %s13 = inlined_call_operand.vmem [shape: f32[1,64], index: 13, kind: input, shape index: {}]
  %s14 = inlined_call_operand.vmem [shape: f32[64,8], index: 14, kind: input, shape index: {}]
  %s15 = inlined_call_operand.vmem [shape: f32[1,8], index: 15, kind: input, shape index: {}]
  %s16 = inlined_call_operand.vmem [shape: f32[8,1], index: 16, kind: input, shape index: {}]
  %s17 = inlined_call_operand.<no memory space> [shape: f32[1,1], index: 17, kind: input, shape index: {}]
  %s18 = inlined_call_operand.vmem [shape: f32[16,1], index: 18, kind: output, shape index: {0}]
  %s19 = inlined_call_operand.hbm [shape: f32[16,64], index: 19, kind: output, shape index: {1}]
  %s20 = inlined_call_operand.hbm [shape: f32[8,16,128], index: 20, kind: output, shape index: {2}]
  %21 = xla_tuple %s18, %s19, %s20
  %s22 = sld [smem:[#allocation0]]
  $region102: #{tpu_custom_call.1} parent=0
    _
  %s24 = ssub.s32 1, %s22
  %s25 = scalar_select 0, %s24, %s22
  %v26 = vstv %s17
  %27 = vst [vmem:[#allocation2] sm:$0x1] %v26
  $region1: #{tpu_custom_call.1} parent=0
    #allocation3 [shape = 'u8[327680]{0}', space=vmem, size = 0x50000, scoped, tag = 'input window, operand 6, single buffered']
    #allocation4 [shape = 's32[1]{0}', space=sflag, size = 0x4, scoped, tag = 'scoped memory for tpu_custom_call.1']
    #allocation5 [shape = 's32[1]{0}', space=sflag, size = 0x4, scoped, tag = 'scoped memory for tpu_custom_call.1']
    #allocation6 [shape = 'u8[8192]{0}', space=vmem, size = 0x2000, scoped, tag = 'output window, operand 1, single buffered']
    #allocation7 [shape = 'u8[65536]{0}', space=vmem, size = 0x10000, scoped, tag = 'output window, operand 2, single buffered']
    #allocation8 [shape = 's32[1]{0}', space=sflag, size = 0x4, scoped, tag = 'scoped memory for tpu_custom_call.1']
    %28 = vsyncpa [#allocation4], 0
    %29 = vsyncpa [#allocation5], 0
    %30 = vsyncpa [#allocation8], 0
    // Predicated region
    $region2: #{tpu_custom_call.1} parent=1 // pred_check
      _
    $region3: #{tpu_custom_call.1} parent=1 // pred_check_branch
      %32 = sbr.rel (0) target = $region5
    $region4: #{tpu_custom_call.1} parent=1 // pred_region
      _
    $region5: #{tpu_custom_call.1} parent=1 // pred_fallthru
      _
    // Predicated region
    $region6: #{tpu_custom_call.1} parent=1 // pred_check
      _
    $region7: #{tpu_custom_call.1} parent=1 // pred_check_branch
      %34 = sbr.rel (0) target = $region9
    $region8: #{tpu_custom_call.1} parent=1 // pred_region
      _
    $region9: #{tpu_custom_call.1} parent=1 // pred_fallthru
      _
    // Predicated region
    $region10: #{tpu_custom_call.1} parent=1 // pred_check
      _
    $region11: #{tpu_custom_call.1} parent=1 // pred_check_branch
      %36 = sbr.rel (0) target = $region13
    $region12: #{tpu_custom_call.1} parent=1 // pred_region
      _
    $region13: #{tpu_custom_call.1} parent=1 // pred_fallthru
      _
    // Predicated region
    $region14: #{tpu_custom_call.1} parent=1 // pred_check
      _
    $region15: #{tpu_custom_call.1} parent=1 // pred_check_branch
      %38 = sbr.rel (0) target = $region17
    $region16: #{tpu_custom_call.1} parent=1 // pred_region
      _
    $region17: #{tpu_custom_call.1} parent=1 // pred_fallthru
      _
    // Predicated region
    $region18: #{tpu_custom_call.1} parent=1 // pred_check
      _
    $region19: #{tpu_custom_call.1} parent=1 // pred_check_branch
      %40 = sbr.rel (0) target = $region21
    $region20: #{tpu_custom_call.1} parent=1 // pred_region
      _
    $region21: #{tpu_custom_call.1} parent=1 // pred_fallthru
      _
    // Predicated region
    $region22: #{tpu_custom_call.1} parent=1 // pred_check
      _
    $region23: #{tpu_custom_call.1} parent=1 // pred_check_branch
      %42 = sbr.rel (0) target = $region25
    $region24: #{tpu_custom_call.1} parent=1 // pred_region
      _
    $region25: #{tpu_custom_call.1} parent=1 // pred_fallthru
      _
    // Predicated region
    $region26: #{tpu_custom_call.1} parent=1 // pred_check
      _
    $region27: #{tpu_custom_call.1} parent=1 // pred_check_branch
      %44 = sbr.rel (0) target = $region29
    $region28: #{tpu_custom_call.1} parent=1 // pred_region
      %46 = vsyncadd [#allocation4], 0
      %s47 = sshll.u32 %s6, 4
      %s48 = int_to_ptr.hbm [resolvable:$true] %s47
      %s49 = sshll.u32 [#allocation3], 4
      %s50 = int_to_ptr.vmem [resolvable:$true] %s49
      %55 = dma.hbm_to_vmem [thread:$0]  %s48, 10240, %s50, [#allocation4], 128, 128, 8
    $region29: #{tpu_custom_call.1} parent=1 // pred_fallthru
      _
    // Predicated region
    $region30: #{tpu_custom_call.1} parent=1 // pred_check
      _
    $region31: #{tpu_custom_call.1} parent=1 // pred_check_branch
      %57 = sbr.rel (0) target = $region33
    $region32: #{tpu_custom_call.1} parent=1 // pred_region
      _
    $region33: #{tpu_custom_call.1} parent=1 // pred_fallthru
      _
    // Predicated region
    $region34: #{tpu_custom_call.1} parent=1 // pred_check
      _
    $region35: #{tpu_custom_call.1} parent=1 // pred_check_branch
      %59 = sbr.rel (0) target = $region37
    $region36: #{tpu_custom_call.1} parent=1 // pred_region
      _
    $region37: #{tpu_custom_call.1} parent=1 // pred_fallthru
      _
    // Predicated region
    $region38: #{tpu_custom_call.1} parent=1 // pred_check
      _
    $region39: #{tpu_custom_call.1} parent=1 // pred_check_branch
      %61 = sbr.rel (0) target = $region41
    $region40: #{tpu_custom_call.1} parent=1 // pred_region
      _
    $region41: #{tpu_custom_call.1} parent=1 // pred_fallthru
      _
    // Predicated region
    $region42: #{tpu_custom_call.1} parent=1 // pred_check
      _
    $region43: #{tpu_custom_call.1} parent=1 // pred_check_branch
      %63 = sbr.rel (0) target = $region45
    $region44: #{tpu_custom_call.1} parent=1 // pred_region
      _
    $region45: #{tpu_custom_call.1} parent=1 // pred_fallthru
      _
    // Predicated region
    $region46: #{tpu_custom_call.1} parent=1 // pred_check
      _
    $region47: #{tpu_custom_call.1} parent=1 // pred_check_branch
      %65 = sbr.rel (0) target = $region49
    $region48: #{tpu_custom_call.1} parent=1 // pred_region
      _
    $region49: #{tpu_custom_call.1} parent=1 // pred_fallthru
      _
    // Predicated region
    $region50: #{tpu_custom_call.1} parent=1 // pred_check
      _
    $region51: #{tpu_custom_call.1} parent=1 // pred_check_branch
      %67 = sbr.rel (0) target = $region53
    $region52: #{tpu_custom_call.1} parent=1 // pred_region
      _
    $region53: #{tpu_custom_call.1} parent=1 // pred_fallthru
      _
    // Predicated region
    $region54: #{tpu_custom_call.1} parent=1 // pred_check
      _
    $region55: #{tpu_custom_call.1} parent=1 // pred_check_branch
      %69 = sbr.rel (0) target = $region57
    $region56: #{tpu_custom_call.1} parent=1 // pred_region
      _
    $region57: #{tpu_custom_call.1} parent=1 // pred_fallthru
      _
    // Predicated region
    $region58: #{tpu_custom_call.1} parent=1 // pred_check
      _
    $region59: #{tpu_custom_call.1} parent=1 // pred_check_branch
      %71 = sbr.rel (0) target = $region61
    $region60: #{tpu_custom_call.1} parent=1 // pred_region
      _
    $region61: #{tpu_custom_call.1} parent=1 // pred_fallthru
      _
    // Predicated region
    $region62: #{tpu_custom_call.1} parent=1 // pred_check
      _
    $region63: #{tpu_custom_call.1} parent=1 // pred_check_branch
      %73 = sbr.rel (0) target = $region65
    $region64: #{tpu_custom_call.1} parent=1 // pred_region
      _
    $region65: #{tpu_custom_call.1} parent=1 // pred_fallthru
      _
    // Predicated region
    $region66: #{tpu_custom_call.1} parent=1 // pred_check
      _
    $region67: #{tpu_custom_call.1} parent=1 // pred_check_branch
      %75 = sbr.rel (0) target = $region69
    $region68: #{tpu_custom_call.1} parent=1 // pred_region
      _
    $region69: #{tpu_custom_call.1} parent=1 // pred_fallthru
      _
    // Predicated region
    $region70: #{tpu_custom_call.1} parent=1 // pred_check
      _
    $region71: #{tpu_custom_call.1} parent=1 // pred_check_branch
      %77 = sbr.rel (0) target = $region73
    $region72: #{tpu_custom_call.1} parent=1 // pred_region
      _
    $region73: #{tpu_custom_call.1} parent=1 // pred_fallthru
      _
    // Predicated region
    $region74: #{tpu_custom_call.1} parent=1 // pred_check
      _
    $region75: #{tpu_custom_call.1} parent=1 // pred_check_branch
      %79 = sbr.rel (0) target = $region77
    $region76: #{tpu_custom_call.1} parent=1 // pred_region
      %81 = dma.done [#allocation4], 10240
    $region77: #{tpu_custom_call.1} parent=1 // pred_fallthru
      _
    %v83 = vld [vmem:[%s0] sm:$0xff]
    %v84 = vld [vmem:[%s0 + $0x8] sm:$0xff]
    %v85 = vld [vmem:[%s0 + $0x10] sm:$0xff]
    %v86 = vld [vmem:[%s0 + $0x18] sm:$0xff]
    %v87 = vld [vmem:[%s0 + $0x20] sm:$0xff]
    %v88 = vld [vmem:[%s0 + $0x28] sm:$0xff]
    %v89 = vld [vmem:[%s0 + $0x30] sm:$0xff]
    %v90 = vld [vmem:[%s0 + $0x38] sm:$0xff]
    %v91 = vld [vmem:[%s0 + $0x40] sm:$0xff]
    %v92 = vld [vmem:[%s0 + $0x48] sm:$0xff]
    %v93 = vld [vmem:[%s0 + $0x50] sm:$0xff]
    %v94 = vld [vmem:[%s0 + $0x58] sm:$0xff]
    %v95 = vld [vmem:[%s0 + $0x60] sm:$0xff]
    %v96 = vld [vmem:[%s0 + $0x68] sm:$0xff]
    %v97 = vld [vmem:[%s0 + $0x70] sm:$0xff]
    %v98 = vld [vmem:[%s0 + $0x78] sm:$0xff]
    %v99 = vld [vmem:[%s1] sm:$0xff]
    %v100 = vld [vmem:[%s1 + $0x8] sm:$0xff]
    %v101 = vld [vmem:[%s1 + $0x10] sm:$0xf]
    %v102 = vld [vmem:[%s2] sm:$0x1]
    %v104 = vperm.slane %v102, 0
    %vm106 = vcmask 162816
    %v108 = vsel %vm106, %v83, 0
    %v111 = vsel %vm106, %v84, 0
    %v114 = vsel %vm106, %v85, 0
    %v117 = vsel %vm106, %v86, 0
    %v120 = vsel %vm106, %v87, 0
    %v123 = vsel %vm106, %v88, 0
    %v126 = vsel %vm106, %v89, 0
    %v129 = vsel %vm106, %v90, 0
    %v132 = vsel %vm106, %v91, 0
    %v135 = vsel %vm106, %v92, 0
    %v138 = vsel %vm106, %v93, 0
    %v141 = vsel %vm106, %v94, 0
    %v144 = vsel %vm106, %v95, 0
    %v147 = vsel %vm106, %v96, 0
    %v150 = vsel %vm106, %v97, 0
    %v153 = vsel %vm106, %v98, 0
    %vm155 = vcmask 1043456
    %v157 = vsel %vm155, %v101, 0
    %159 = vmatpush.msra.mxu0 0.0
    %160 = vmatpush.msra.mxu0 0.0
    %161 = vmatpush.msra.mxu0 0.0
    %162 = vmatpush.msra.mxu0 0.0
    %163 = vmatpush.msra.mxu0 0.0
    %164 = vmatpush.msra.mxu0 0.0
    %165 = vmatpush.msra.mxu0 0.0
    %166 = vmatpush.msra.mxu0 0.0
    %167 = vmatpush.msra.mxu0 0.0
    %168 = vmatpush.msra.mxu0 0.0
    %169 = vmatpush.msra.mxu0 0.0
    %170 = vmatpush.msra.mxu0 0.0
    %171 = vmatpush.msra.mxu0 0.0
    %172 = vmatpush.msra.mxu0 %v157
    %173 = vmatpush.msra.mxu0 %v100
    %174 = vmatpush.msra.mxu0 %v99
    %175 = vmatmul.f32.gmra.mxu0 %v108
    %v176 = vpop.f32.mrf.mxu0
    %v177 = vadd.f32 %v104, %v176
    %178 = vmatmul.f32.gmra.mxu0 %v111
    %v179 = vpop.f32.mrf.mxu0
    %v180 = vadd.f32 %v104, %v179
    %181 = vmatmul.f32.gmra.mxu0 %v114
    %v182 = vpop.f32.mrf.mxu0
    %v183 = vadd.f32 %v104, %v182
    %184 = vmatmul.f32.gmra.mxu0 %v117
    %v185 = vpop.f32.mrf.mxu0
    %v186 = vadd.f32 %v104, %v185
    %187 = vmatmul.f32.gmra.mxu0 %v120
    %v188 = vpop.f32.mrf.mxu0
    %v189 = vadd.f32 %v104, %v188
    %190 = vmatmul.f32.gmra.mxu0 %v123
    %v191 = vpop.f32.mrf.mxu0
    %v192 = vadd.f32 %v104, %v191
    %193 = vmatmul.f32.gmra.mxu0 %v126
    %v194 = vpop.f32.mrf.mxu0
    %v195 = vadd.f32 %v104, %v194
    %196 = vmatmul.f32.gmra.mxu0 %v129
    %v197 = vpop.f32.mrf.mxu0
    %v198 = vadd.f32 %v104, %v197
    %199 = vmatmul.f32.gmra.mxu0 %v132
    %v200 = vpop.f32.mrf.mxu0
    %v201 = vadd.f32 %v104, %v200
    %202 = vmatmul.f32.gmra.mxu0 %v135
    %v203 = vpop.f32.mrf.mxu0
    %v204 = vadd.f32 %v104, %v203
    %205 = vmatmul.f32.gmra.mxu0 %v138
    %v206 = vpop.f32.mrf.mxu0
    %v207 = vadd.f32 %v104, %v206
    %208 = vmatmul.f32.gmra.mxu0 %v141
    %v209 = vpop.f32.mrf.mxu0
    %v210 = vadd.f32 %v104, %v209
    %211 = vmatmul.f32.gmra.mxu0 %v144
    %v212 = vpop.f32.mrf.mxu0
    %v213 = vadd.f32 %v104, %v212
    %214 = vmatmul.f32.gmra.mxu0 %v147
    %v215 = vpop.f32.mrf.mxu0
    %v216 = vadd.f32 %v104, %v215
    %217 = vmatmul.f32.gmra.mxu0 %v150
    %v218 = vpop.f32.mrf.mxu0
    %v219 = vadd.f32 %v104, %v218
    %220 = vmatmul.f32.gmra.mxu0 %v153
    %v221 = vpop.f32.mrf.mxu0
    %v222 = vadd.f32 %v104, %v221
    %223 = vdwg.mxu0
    %v224 = vmax.f32 %v177, 0.0
    %v225 = vmax.f32 %v180, 0.0
    %v226 = vmax.f32 %v183, 0.0
    %v227 = vmax.f32 %v186, 0.0
    %v228 = vmax.f32 %v189, 0.0
    %v229 = vmax.f32 %v192, 0.0
    %v230 = vmax.f32 %v195, 0.0
    %v231 = vmax.f32 %v198, 0.0
    %v232 = vmax.f32 %v201, 0.0
    %v233 = vmax.f32 %v204, 0.0
    %v234 = vmax.f32 %v207, 0.0
    %v235 = vmax.f32 %v210, 0.0
    %v236 = vmax.f32 %v213, 0.0
    %v237 = vmax.f32 %v216, 0.0
    %v238 = vmax.f32 %v219, 0.0
    %v239 = vmax.f32 %v222, 0.0
    %v240 = vld [vmem:[%s4] sm:$0x1]
    %v241 = vld [vmem:[%s5] sm:$0x1]
    %v242 = vpack.c.bf16 %v224, %v224
    %v243 = vpack.c.bf16 %v225, %v225
    %v244 = vpack.c.bf16 %v226, %v226
    %v245 = vpack.c.bf16 %v227, %v227
    %v246 = vpack.c.bf16 %v228, %v228
    %v247 = vpack.c.bf16 %v229, %v229
    %v248 = vpack.c.bf16 %v230, %v230
    %v249 = vpack.c.bf16 %v231, %v231
    %v250 = vpack.c.bf16 %v232, %v232
    %v251 = vpack.c.bf16 %v233, %v233
    %v252 = vpack.c.bf16 %v234, %v234
    %v253 = vpack.c.bf16 %v235, %v235
    %v254 = vpack.c.bf16 %v236, %v236
    %v255 = vpack.c.bf16 %v237, %v237
    %v256 = vpack.c.bf16 %v238, %v238
    %v257 = vpack.c.bf16 %v239, %v239
    %v274 = vunpack.c.l.b16 %v242
    %v275 = vunpack.c.l.b16 %v243
    %v276 = vunpack.c.l.b16 %v244
    %v277 = vunpack.c.l.b16 %v245
    %v278 = vunpack.c.l.b16 %v246
    %v279 = vunpack.c.l.b16 %v247
    %v280 = vunpack.c.l.b16 %v248
    %v281 = vunpack.c.l.b16 %v249
    %v282 = vunpack.c.l.b16 %v250
    %v283 = vunpack.c.l.b16 %v251
    %v284 = vunpack.c.l.b16 %v252
    %v285 = vunpack.c.l.b16 %v253
    %v286 = vunpack.c.l.b16 %v254
    %v287 = vunpack.c.l.b16 %v255
    %v288 = vunpack.c.l.b16 %v256
    %v289 = vunpack.c.l.b16 %v257
    %v290 = vpack.c.b16 %v275, %v274
    %v291 = vpack.c.b16 %v277, %v276
    %v292 = vpack.c.b16 %v279, %v278
    %v293 = vpack.c.b16 %v281, %v280
    %v294 = vpack.c.b16 %v283, %v282
    %v295 = vpack.c.b16 %v285, %v284
    %v296 = vpack.c.b16 %v287, %v286
    %v297 = vpack.c.b16 %v289, %v288
    %v298 = vld [vmem:[%s3] sm:$0xf]
    %v299 = vld [vmem:[%s3 + $0x4] sm:$0xf]
    %v300 = vld [vmem:[%s3 + $0x8] sm:$0xf]
    %v301 = vld [vmem:[%s3 + $0xc] sm:$0xf]
    %v302 = vld [vmem:[%s3 + $0x10] sm:$0xf]
    %v303 = vld [vmem:[%s3 + $0x14] sm:$0xf]
    %v304 = vld [vmem:[%s3 + $0x18] sm:$0xf]
    %v305 = vld [vmem:[%s3 + $0x1c] sm:$0xf]
    %s306 = scalar_lea.vmem %s3, 32
    %v307 = vld [vmem:[%s306] sm:$0xf]
    %v308 = vld [vmem:[%s306 + $0x4] sm:$0xf]
    %v309 = vld [vmem:[%s306 + $0x8] sm:$0xf]
    %v310 = vld [vmem:[%s306 + $0xc] sm:$0xf]
    %v311 = vld [vmem:[%s306 + $0x10] sm:$0xf]
    %v312 = vld [vmem:[%s306 + $0x14] sm:$0xf]
    %v313 = vld [vmem:[%s306 + $0x18] sm:$0xf]
    %v314 = vld [vmem:[%s306 + $0x1c] sm:$0xf]
    %v323 = vunpack.c.l.b16 %v307
    %v324 = vunpack.c.l.b16 %v308
    %v325 = vunpack.c.l.b16 %v309
    %v326 = vunpack.c.l.b16 %v310
    %v327 = vunpack.c.l.b16 %v311
    %v328 = vunpack.c.l.b16 %v312
    %v329 = vunpack.c.l.b16 %v313
    %v330 = vunpack.c.l.b16 %v314
    %v331 = vpack.c.b16 %v324, %v323
    %v332 = vpack.c.b16 %v326, %v325
    %v333 = vpack.c.b16 %v328, %v327
    %v334 = vpack.c.b16 %v330, %v329
    %vm339 = vcmask 523264
    %v341 = vsel %vm339, 0, 0
    %v344 = vsel %vm339, %v290, 0
    %v347 = vsel %vm339, %v291, 0
    %v350 = vsel %vm339, %v292, 0
    %v353 = vsel %vm339, %v293, 0
    %v356 = vsel %vm339, %v294, 0
    %v359 = vsel %vm339, %v295, 0
    %v362 = vsel %vm339, %v296, 0
    %364 = vmatpush.bf16.msra.mxu0 0
    %365 = vmatpush.bf16.msra.mxu0 0
    %366 = vmatpush.bf16.msra.mxu0 0
    %367 = vmatpush.bf16.msra.mxu0 0
    %368 = vmatpush.bf16.msra.mxu0 %v334
    %369 = vmatpush.bf16.msra.mxu0 %v333
    %370 = vmatpush.bf16.msra.mxu0 %v332
    %371 = vmatpush.bf16.msra.mxu0 %v331
    %372 = vmatmul.bf16.gmra.mxu0 %v341
    %v373 = vpop.f32.mrf.mxu0
    %v374 = vadd.f32 0.0, %v373
    %v375 = vpop.f32.mrf.mxu0
    %v376 = vadd.f32 0.0, %v375
    %377 = vmatmul.bf16.gmra.mxu0 %v344
    %v378 = vpop.f32.mrf.mxu0
    %v379 = vadd.f32 0.0, %v378
    %v380 = vpop.f32.mrf.mxu0
    %v381 = vadd.f32 0.0, %v380
    %382 = vmatmul.bf16.gmra.mxu0 %v347
    %v383 = vpop.f32.mrf.mxu0
    %v384 = vadd.f32 0.0, %v383
    %v385 = vpop.f32.mrf.mxu0
    %v386 = vadd.f32 0.0, %v385
    %387 = vmatmul.bf16.gmra.mxu0 %v350
    %v388 = vpop.f32.mrf.mxu0
    %v389 = vadd.f32 0.0, %v388
    %v390 = vpop.f32.mrf.mxu0
    %v391 = vadd.f32 0.0, %v390
    %392 = vmatmul.bf16.gmra.mxu0 %v353
    %v393 = vpop.f32.mrf.mxu0
    %v394 = vadd.f32 0.0, %v393
    %v395 = vpop.f32.mrf.mxu0
    %v396 = vadd.f32 0.0, %v395
    %397 = vmatmul.bf16.gmra.mxu0 %v356
    %v398 = vpop.f32.mrf.mxu0
    %v399 = vadd.f32 0.0, %v398
    %v400 = vpop.f32.mrf.mxu0
    %v401 = vadd.f32 0.0, %v400
    %402 = vmatmul.bf16.gmra.mxu0 %v359
    %v403 = vpop.f32.mrf.mxu0
    %v404 = vadd.f32 0.0, %v403
    %v405 = vpop.f32.mrf.mxu0
    %v406 = vadd.f32 0.0, %v405
    %407 = vmatmul.bf16.gmra.mxu0 %v362
    %v408 = vpop.f32.mrf.mxu0
    %v409 = vadd.f32 0.0, %v408
    %v410 = vpop.f32.mrf.mxu0
    %v411 = vadd.f32 0.0, %v410
    %412 = vdwg.mxu0
    %v421 = vunpack.c.l.b16 %v298
    %v422 = vunpack.c.l.b16 %v299
    %v423 = vunpack.c.l.b16 %v300
    %v424 = vunpack.c.l.b16 %v301
    %v425 = vunpack.c.l.b16 %v302
    %v426 = vunpack.c.l.b16 %v303
    %v427 = vunpack.c.l.b16 %v304
    %v428 = vunpack.c.l.b16 %v305
    %v429 = vpack.c.b16 %v422, %v421
    %v430 = vpack.c.b16 %v424, %v423
    %v431 = vpack.c.b16 %v426, %v425
    %v432 = vpack.c.b16 %v428, %v427
    %437 = vmatpush.bf16.msra.mxu0 0
    %438 = vmatpush.bf16.msra.mxu0 0
    %439 = vmatpush.bf16.msra.mxu0 0
    %440 = vmatpush.bf16.msra.mxu0 0
    %441 = vmatpush.bf16.msra.mxu0 %v432
    %442 = vmatpush.bf16.msra.mxu0 %v431
    %443 = vmatpush.bf16.msra.mxu0 %v430
    %444 = vmatpush.bf16.msra.mxu0 %v429
    %445 = vmatmul.bf16.gmra.mxu0 %v341
    %v446 = vpop.f32.mrf.mxu0
    %v447 = vadd.f32 %v374, %v446
    %v448 = vpop.f32.mrf.mxu0
    %v449 = vadd.f32 %v376, %v448
    %450 = vmatmul.bf16.gmra.mxu0 %v341
    %v451 = vpop.f32.mrf.mxu0
    %v452 = vadd.f32 %v379, %v451
    %v453 = vpop.f32.mrf.mxu0
    %v454 = vadd.f32 %v381, %v453
    %455 = vmatmul.bf16.gmra.mxu0 %v344
    %v456 = vpop.f32.mrf.mxu0
    %v457 = vadd.f32 %v384, %v456
    %v458 = vpop.f32.mrf.mxu0
    %v459 = vadd.f32 %v386, %v458
    %460 = vmatmul.bf16.gmra.mxu0 %v347
    %v461 = vpop.f32.mrf.mxu0
    %v462 = vadd.f32 %v389, %v461
    %v463 = vpop.f32.mrf.mxu0
    %v464 = vadd.f32 %v391, %v463
    %465 = vmatmul.bf16.gmra.mxu0 %v350
    %v466 = vpop.f32.mrf.mxu0
    %v467 = vadd.f32 %v394, %v466
    %v468 = vpop.f32.mrf.mxu0
    %v469 = vadd.f32 %v396, %v468
    %470 = vmatmul.bf16.gmra.mxu0 %v353
    %v471 = vpop.f32.mrf.mxu0
    %v472 = vadd.f32 %v399, %v471
    %v473 = vpop.f32.mrf.mxu0
    %v474 = vadd.f32 %v401, %v473
    %475 = vmatmul.bf16.gmra.mxu0 %v356
    %v476 = vpop.f32.mrf.mxu0
    %v477 = vadd.f32 %v404, %v476
    %v478 = vpop.f32.mrf.mxu0
    %v479 = vadd.f32 %v406, %v478
    %480 = vmatmul.bf16.gmra.mxu0 %v359
    %v481 = vpop.f32.mrf.mxu0
    %v482 = vadd.f32 %v409, %v481
    %v483 = vpop.f32.mrf.mxu0
    %v484 = vadd.f32 %v411, %v483
    %485 = vdwg.mxu0
    %s486 = scalar_lea.vmem %s3, 64
    %v487 = vld [vmem:[%s486] sm:$0xf]
    %v488 = vld [vmem:[%s486 + $0x4] sm:$0xf]
    %v489 = vld [vmem:[%s486 + $0x8] sm:$0xf]
    %v490 = vld [vmem:[%s486 + $0xc] sm:$0xf]
    %v491 = vld [vmem:[%s486 + $0x10] sm:$0xf]
    %v492 = vld [vmem:[%s486 + $0x14] sm:$0xf]
    %v493 = vld [vmem:[%s486 + $0x18] sm:$0xf]
    %v494 = vld [vmem:[%s486 + $0x1c] sm:$0xf]
    %v503 = vunpack.c.l.b16 %v487
    %v504 = vunpack.c.l.b16 %v488
    %v505 = vunpack.c.l.b16 %v489
    %v506 = vunpack.c.l.b16 %v490
    %v507 = vunpack.c.l.b16 %v491
    %v508 = vunpack.c.l.b16 %v492
    %v509 = vunpack.c.l.b16 %v493
    %v510 = vunpack.c.l.b16 %v494
    %v511 = vpack.c.b16 %v504, %v503
    %v512 = vpack.c.b16 %v506, %v505
    %v513 = vpack.c.b16 %v508, %v507
    %v514 = vpack.c.b16 %v510, %v509
    %v520 = vsel %vm339, %v297, 0
    %522 = vmatpush.bf16.msra.mxu0 0
    %523 = vmatpush.bf16.msra.mxu0 0
    %524 = vmatpush.bf16.msra.mxu0 0
    %525 = vmatpush.bf16.msra.mxu0 0
    %526 = vmatpush.bf16.msra.mxu0 %v514
    %527 = vmatpush.bf16.msra.mxu0 %v513
    %528 = vmatpush.bf16.msra.mxu0 %v512
    %529 = vmatpush.bf16.msra.mxu0 %v511
    %530 = vmatmul.bf16.gmra.mxu0 %v344
    %v531 = vpop.f32.mrf.mxu0
    %v532 = vadd.f32 0.0, %v531
    %v533 = vpop.f32.mrf.mxu0
    %v534 = vadd.f32 0.0, %v533
    %535 = vmatmul.bf16.gmra.mxu0 %v347
    %v536 = vpop.f32.mrf.mxu0
    %v537 = vadd.f32 0.0, %v536
    %v538 = vpop.f32.mrf.mxu0
    %v539 = vadd.f32 0.0, %v538
    %540 = vmatmul.bf16.gmra.mxu0 %v350
    %v541 = vpop.f32.mrf.mxu0
    %v542 = vadd.f32 0.0, %v541
    %v543 = vpop.f32.mrf.mxu0
    %v544 = vadd.f32 0.0, %v543
    %545 = vmatmul.bf16.gmra.mxu0 %v353
    %v546 = vpop.f32.mrf.mxu0
    %v547 = vadd.f32 0.0, %v546
    %v548 = vpop.f32.mrf.mxu0
    %v549 = vadd.f32 0.0, %v548
    %550 = vmatmul.bf16.gmra.mxu0 %v356
    %v551 = vpop.f32.mrf.mxu0
    %v552 = vadd.f32 0.0, %v551
    %v553 = vpop.f32.mrf.mxu0
    %v554 = vadd.f32 0.0, %v553
    %555 = vmatmul.bf16.gmra.mxu0 %v359
    %v556 = vpop.f32.mrf.mxu0
    %v557 = vadd.f32 0.0, %v556
    %v558 = vpop.f32.mrf.mxu0
    %v559 = vadd.f32 0.0, %v558
    %560 = vmatmul.bf16.gmra.mxu0 %v362
    %v561 = vpop.f32.mrf.mxu0
    %v562 = vadd.f32 0.0, %v561
    %v563 = vpop.f32.mrf.mxu0
    %v564 = vadd.f32 0.0, %v563
    %565 = vmatmul.bf16.gmra.mxu0 %v520
    %v566 = vpop.f32.mrf.mxu0
    %v567 = vadd.f32 0.0, %v566
    %v568 = vpop.f32.mrf.mxu0
    %v569 = vadd.f32 0.0, %v568
    %570 = vdwg.mxu0
    %v571 = vadd.f32 %v447, %v532
    %v572 = vadd.f32 %v449, %v534
    %v573 = vadd.f32 %v452, %v537
    %v574 = vadd.f32 %v454, %v539
    %v575 = vadd.f32 %v457, %v542
    %v576 = vadd.f32 %v459, %v544
    %v577 = vadd.f32 %v462, %v547
    %v578 = vadd.f32 %v464, %v549
    %v579 = vadd.f32 %v467, %v552
    %v580 = vadd.f32 %v469, %v554
    %v581 = vadd.f32 %v472, %v557
    %v582 = vadd.f32 %v474, %v559
    %v583 = vadd.f32 %v477, %v562
    %v584 = vadd.f32 %v479, %v564
    %v585 = vadd.f32 %v482, %v567
    %v586 = vadd.f32 %v484, %v569
    %s587 = scalar_lea.vmem %s3, 96
    %v588 = vld [vmem:[%s587] sm:$0xf]
    %v589 = vld [vmem:[%s587 + $0x4] sm:$0xf]
    %v590 = vld [vmem:[%s587 + $0x8] sm:$0xf]
    %v591 = vld [vmem:[%s587 + $0xc] sm:$0xf]
    %v592 = vld [vmem:[%s587 + $0x10] sm:$0xf]
    %v593 = vld [vmem:[%s587 + $0x14] sm:$0xf]
    %v594 = vld [vmem:[%s587 + $0x18] sm:$0xf]
    %v595 = vld [vmem:[%s587 + $0x1c] sm:$0xf]
    %v604 = vunpack.c.l.b16 %v588
    %v605 = vunpack.c.l.b16 %v589
    %v606 = vunpack.c.l.b16 %v590
    %v607 = vunpack.c.l.b16 %v591
    %v608 = vunpack.c.l.b16 %v592
    %v609 = vunpack.c.l.b16 %v593
    %v610 = vunpack.c.l.b16 %v594
    %v611 = vunpack.c.l.b16 %v595
    %v612 = vpack.c.b16 %v605, %v604
    %v613 = vpack.c.b16 %v607, %v606
    %v614 = vpack.c.b16 %v609, %v608
    %v615 = vpack.c.b16 %v611, %v610
    %620 = vmatpush.bf16.msra.mxu0 0
    %621 = vmatpush.bf16.msra.mxu0 0
    %622 = vmatpush.bf16.msra.mxu0 0
    %623 = vmatpush.bf16.msra.mxu0 0
    %624 = vmatpush.bf16.msra.mxu0 %v615
    %625 = vmatpush.bf16.msra.mxu0 %v614
    %626 = vmatpush.bf16.msra.mxu0 %v613
    %627 = vmatpush.bf16.msra.mxu0 %v612
    %628 = vmatmul.bf16.gmra.mxu0 %v347
    %v629 = vpop.f32.mrf.mxu0
    %v630 = vadd.f32 0.0, %v629
    %v631 = vpop.f32.mrf.mxu0
    %v632 = vadd.f32 0.0, %v631
    %633 = vmatmul.bf16.gmra.mxu0 %v350
    %v634 = vpop.f32.mrf.mxu0
    %v635 = vadd.f32 0.0, %v634
    %v636 = vpop.f32.mrf.mxu0
    %v637 = vadd.f32 0.0, %v636
    %638 = vmatmul.bf16.gmra.mxu0 %v353
    %v639 = vpop.f32.mrf.mxu0
    %v640 = vadd.f32 0.0, %v639
    %v641 = vpop.f32.mrf.mxu0
    %v642 = vadd.f32 0.0, %v641
    %643 = vmatmul.bf16.gmra.mxu0 %v356
    %v644 = vpop.f32.mrf.mxu0
    %v645 = vadd.f32 0.0, %v644
    %v646 = vpop.f32.mrf.mxu0
    %v647 = vadd.f32 0.0, %v646
    %648 = vmatmul.bf16.gmra.mxu0 %v359
    %v649 = vpop.f32.mrf.mxu0
    %v650 = vadd.f32 0.0, %v649
    %v651 = vpop.f32.mrf.mxu0
    %v652 = vadd.f32 0.0, %v651
    %653 = vmatmul.bf16.gmra.mxu0 %v362
    %v654 = vpop.f32.mrf.mxu0
    %v655 = vadd.f32 0.0, %v654
    %v656 = vpop.f32.mrf.mxu0
    %v657 = vadd.f32 0.0, %v656
    %658 = vmatmul.bf16.gmra.mxu0 %v520
    %v659 = vpop.f32.mrf.mxu0
    %v660 = vadd.f32 0.0, %v659
    %v661 = vpop.f32.mrf.mxu0
    %v662 = vadd.f32 0.0, %v661
    %663 = vmatmul.bf16.gmra.mxu0 %v341
    %v664 = vpop.f32.mrf.mxu0
    %v665 = vadd.f32 0.0, %v664
    %v666 = vpop.f32.mrf.mxu0
    %v667 = vadd.f32 0.0, %v666
    %668 = vdwg.mxu0
    %v669 = vadd.f32 %v571, %v630
    %v670 = vadd.f32 %v572, %v632
    %v671 = vadd.f32 %v573, %v635
    %v672 = vadd.f32 %v574, %v637
    %v673 = vadd.f32 %v575, %v640
    %v674 = vadd.f32 %v576, %v642
    %v675 = vadd.f32 %v577, %v645
    %v676 = vadd.f32 %v578, %v647
    %v677 = vadd.f32 %v579, %v650
    %v678 = vadd.f32 %v580, %v652
    %v679 = vadd.f32 %v581, %v655
    %v680 = vadd.f32 %v582, %v657
    %v681 = vadd.f32 %v583, %v660
    %v682 = vadd.f32 %v584, %v662
    %v683 = vadd.f32 %v585, %v665
    %v684 = vadd.f32 %v586, %v667
    %s685 = scalar_lea.vmem %s3, 128
    %v686 = vld [vmem:[%s685] sm:$0xf]
    %v687 = vld [vmem:[%s685 + $0x4] sm:$0xf]
    %v688 = vld [vmem:[%s685 + $0x8] sm:$0xf]
    %v689 = vld [vmem:[%s685 + $0xc] sm:$0xf]
    %v690 = vld [vmem:[%s685 + $0x10] sm:$0xf]
    %v691 = vld [vmem:[%s685 + $0x14] sm:$0xf]
    %v692 = vld [vmem:[%s685 + $0x18] sm:$0xf]
    %v693 = vld [vmem:[%s685 + $0x1c] sm:$0xf]
    %v702 = vunpack.c.l.b16 %v686
    %v703 = vunpack.c.l.b16 %v687
    %v704 = vunpack.c.l.b16 %v688
    %v705 = vunpack.c.l.b16 %v689
    %v706 = vunpack.c.l.b16 %v690
    %v707 = vunpack.c.l.b16 %v691
    %v708 = vunpack.c.l.b16 %v692
    %v709 = vunpack.c.l.b16 %v693
    %v710 = vpack.c.b16 %v703, %v702
    %v711 = vpack.c.b16 %v705, %v704
    %v712 = vpack.c.b16 %v707, %v706
    %v713 = vpack.c.b16 %v709, %v708
    %718 = vmatpush.bf16.msra.mxu0 0
    %719 = vmatpush.bf16.msra.mxu0 0
    %720 = vmatpush.bf16.msra.mxu0 0
    %721 = vmatpush.bf16.msra.mxu0 0
    %722 = vmatpush.bf16.msra.mxu0 %v713
    %723 = vmatpush.bf16.msra.mxu0 %v712
    %724 = vmatpush.bf16.msra.mxu0 %v711
    %725 = vmatpush.bf16.msra.mxu0 %v710
    %726 = vmatmul.bf16.gmra.mxu0 %v350
    %v727 = vpop.f32.mrf.mxu0
    %v728 = vadd.f32 0.0, %v727
    %v729 = vpop.f32.mrf.mxu0
    %v730 = vadd.f32 0.0, %v729
    %731 = vmatmul.bf16.gmra.mxu0 %v353
    %v732 = vpop.f32.mrf.mxu0
    %v733 = vadd.f32 0.0, %v732
    %v734 = vpop.f32.mrf.mxu0
    %v735 = vadd.f32 0.0, %v734
    %736 = vmatmul.bf16.gmra.mxu0 %v356
    %v737 = vpop.f32.mrf.mxu0
    %v738 = vadd.f32 0.0, %v737
    %v739 = vpop.f32.mrf.mxu0
    %v740 = vadd.f32 0.0, %v739
    %741 = vmatmul.bf16.gmra.mxu0 %v359
    %v742 = vpop.f32.mrf.mxu0
    %v743 = vadd.f32 0.0, %v742
    %v744 = vpop.f32.mrf.mxu0
    %v745 = vadd.f32 0.0, %v744
    %746 = vmatmul.bf16.gmra.mxu0 %v362
    %v747 = vpop.f32.mrf.mxu0
    %v748 = vadd.f32 0.0, %v747
    %v749 = vpop.f32.mrf.mxu0
    %v750 = vadd.f32 0.0, %v749
    %751 = vmatmul.bf16.gmra.mxu0 %v520
    %v752 = vpop.f32.mrf.mxu0
    %v753 = vadd.f32 0.0, %v752
    %v754 = vpop.f32.mrf.mxu0
    %v755 = vadd.f32 0.0, %v754
    %756 = vmatmul.bf16.gmra.mxu0 %v341
    %v757 = vpop.f32.mrf.mxu0
    %v758 = vadd.f32 0.0, %v757
    %v759 = vpop.f32.mrf.mxu0
    %v760 = vadd.f32 0.0, %v759
    %761 = vmatmul.bf16.gmra.mxu0 %v341
    %v762 = vpop.f32.mrf.mxu0
    %v763 = vadd.f32 0.0, %v762
    %v764 = vpop.f32.mrf.mxu0
    %v765 = vadd.f32 0.0, %v764
    %766 = vdwg.mxu0
    %v767 = vadd.f32 %v669, %v728
    %v768 = vadd.f32 %v670, %v730
    %v769 = vadd.f32 %v671, %v733
    %v770 = vadd.f32 %v672, %v735
    %v771 = vadd.f32 %v673, %v738
    %v772 = vadd.f32 %v674, %v740
    %v773 = vadd.f32 %v675, %v743
    %v774 = vadd.f32 %v676, %v745
    %v775 = vadd.f32 %v677, %v748
    %v776 = vadd.f32 %v678, %v750
    %v777 = vadd.f32 %v679, %v753
    %v778 = vadd.f32 %v680, %v755
    %v779 = vadd.f32 %v681, %v758
    %v780 = vadd.f32 %v682, %v760
    %v781 = vadd.f32 %v683, %v763
    %v782 = vadd.f32 %v684, %v765
    %v784 = vperm.slane %v240, 0
    %v786 = vmul.f32 %v767, %v784
    %v787 = vmul.f32 %v768, %v784
    %v788 = vmul.f32 %v769, %v784
    %v789 = vmul.f32 %v770, %v784
    %v790 = vmul.f32 %v771, %v784
    %v791 = vmul.f32 %v772, %v784
    %v792 = vmul.f32 %v773, %v784
    %v793 = vmul.f32 %v774, %v784
    %v794 = vmul.f32 %v775, %v784
    %v795 = vmul.f32 %v776, %v784
    %v796 = vmul.f32 %v777, %v784
    %v797 = vmul.f32 %v778, %v784
    %v798 = vmul.f32 %v779, %v784
    %v799 = vmul.f32 %v780, %v784
    %v800 = vmul.f32 %v781, %v784
    %v801 = vmul.f32 %v782, %v784
    %v803 = vperm.slane %v241, 0
    %v805 = vadd.f32 %v786, %v803
    %v806 = vadd.f32 %v787, %v803
    %v807 = vadd.f32 %v788, %v803
    %v808 = vadd.f32 %v789, %v803
    %v809 = vadd.f32 %v790, %v803
    %v810 = vadd.f32 %v791, %v803
    %v811 = vadd.f32 %v792, %v803
    %v812 = vadd.f32 %v793, %v803
    %v813 = vadd.f32 %v794, %v803
    %v814 = vadd.f32 %v795, %v803
    %v815 = vadd.f32 %v796, %v803
    %v816 = vadd.f32 %v797, %v803
    %v817 = vadd.f32 %v798, %v803
    %v818 = vadd.f32 %v799, %v803
    %v819 = vadd.f32 %v800, %v803
    %v820 = vadd.f32 %v801, %v803
    %v821 = vmax.f32 %v805, 0.0
    %v822 = vmax.f32 %v806, 0.0
    %v823 = vmax.f32 %v807, 0.0
    %v824 = vmax.f32 %v808, 0.0
    %v825 = vmax.f32 %v809, 0.0
    %v826 = vmax.f32 %v810, 0.0
    %v827 = vmax.f32 %v811, 0.0
    %v828 = vmax.f32 %v812, 0.0
    %v829 = vmax.f32 %v813, 0.0
    %v830 = vmax.f32 %v814, 0.0
    %v831 = vmax.f32 %v815, 0.0
    %v832 = vmax.f32 %v816, 0.0
    %v833 = vmax.f32 %v817, 0.0
    %v834 = vmax.f32 %v818, 0.0
    %v835 = vmax.f32 %v819, 0.0
    %v836 = vmax.f32 %v820, 0.0
    %837 = vst [vmem:[#allocation7] sm:$0xff] %v821
    %838 = vst [vmem:[#allocation7 + $0x8] sm:$0xff] %v822
    %839 = vst [vmem:[#allocation7 + $0x10] sm:$0xff] %v823
    %840 = vst [vmem:[#allocation7 + $0x18] sm:$0xff] %v824
    %841 = vst [vmem:[#allocation7 + $0x20] sm:$0xff] %v825
    %842 = vst [vmem:[#allocation7 + $0x28] sm:$0xff] %v826
    %843 = vst [vmem:[#allocation7 + $0x30] sm:$0xff] %v827
    %844 = vst [vmem:[#allocation7 + $0x38] sm:$0xff] %v828
    %845 = vst [vmem:[#allocation7 + $0x40] sm:$0xff] %v829
    %846 = vst [vmem:[#allocation7 + $0x48] sm:$0xff] %v830
    %847 = vst [vmem:[#allocation7 + $0x50] sm:$0xff] %v831
    %848 = vst [vmem:[#allocation7 + $0x58] sm:$0xff] %v832
    %849 = vst [vmem:[#allocation7 + $0x60] sm:$0xff] %v833
    %850 = vst [vmem:[#allocation7 + $0x68] sm:$0xff] %v834
    %851 = vst [vmem:[#allocation7 + $0x70] sm:$0xff] %v835
    %852 = vst [vmem:[#allocation7 + $0x78] sm:$0xff] %v836
    %v853 = vld [vmem:[%s7] sm:$0x3]
    %v854 = vld [vmem:[%s8] sm:$0x3]
    %v855 = vpack.c.bf16 %v821, %v821
    %v856 = vpack.c.bf16 %v822, %v822
    %v857 = vpack.c.bf16 %v823, %v823
    %v858 = vpack.c.bf16 %v824, %v824
    %v859 = vpack.c.bf16 %v825, %v825
    %v860 = vpack.c.bf16 %v826, %v826
    %v861 = vpack.c.bf16 %v827, %v827
    %v862 = vpack.c.bf16 %v828, %v828
    %v863 = vpack.c.bf16 %v829, %v829
    %v864 = vpack.c.bf16 %v830, %v830
    %v865 = vpack.c.bf16 %v831, %v831
    %v866 = vpack.c.bf16 %v832, %v832
    %v867 = vpack.c.bf16 %v833, %v833
    %v868 = vpack.c.bf16 %v834, %v834
    %v869 = vpack.c.bf16 %v835, %v835
    %v870 = vpack.c.bf16 %v836, %v836
    %v887 = vunpack.c.l.b16 %v855
    %v888 = vunpack.c.l.b16 %v856
    %v889 = vunpack.c.l.b16 %v857
    %v890 = vunpack.c.l.b16 %v858
    %v891 = vunpack.c.l.b16 %v859
    %v892 = vunpack.c.l.b16 %v860
    %v893 = vunpack.c.l.b16 %v861
    %v894 = vunpack.c.l.b16 %v862
    %v895 = vunpack.c.l.b16 %v863
    %v896 = vunpack.c.l.b16 %v864
    %v897 = vunpack.c.l.b16 %v865
    %v898 = vunpack.c.l.b16 %v866
    %v899 = vunpack.c.l.b16 %v867
    %v900 = vunpack.c.l.b16 %v868
    %v901 = vunpack.c.l.b16 %v869
    %v902 = vunpack.c.l.b16 %v870
    %v903 = vpack.c.b16 %v888, %v887
    %v904 = vpack.c.b16 %v890, %v889
    %v905 = vpack.c.b16 %v892, %v891
    %v906 = vpack.c.b16 %v894, %v893
    %v907 = vpack.c.b16 %v896, %v895
    %v908 = vpack.c.b16 %v898, %v897
    %v909 = vpack.c.b16 %v900, %v899
    %v910 = vpack.c.b16 %v902, %v901
    %v919 = vld [vmem:[#allocation3] sm:$0xff]
    %v920 = vld [vmem:[#allocation3 + $0x8] sm:$0xff]
    %v921 = vld [vmem:[#allocation3 + $0x10] sm:$0xff]
    %v922 = vld [vmem:[#allocation3 + $0x18] sm:$0xff]
    %v923 = vld [vmem:[#allocation3 + $0x20] sm:$0xff]
    %v924 = vld [vmem:[#allocation3 + $0x28] sm:$0xff]
    %v925 = vld [vmem:[#allocation3 + $0x30] sm:$0xff]
    %v926 = vld [vmem:[#allocation3 + $0x38] sm:$0xff]
    %v927 = vld [vmem:[#allocation3 + $0x40] sm:$0xff]
    %v928 = vld [vmem:[#allocation3 + $0x48] sm:$0xff]
    %v929 = vld [vmem:[#allocation3 + $0x50] sm:$0xff]
    %v930 = vld [vmem:[#allocation3 + $0x58] sm:$0xff]
    %v931 = vld [vmem:[#allocation3 + $0x60] sm:$0xff]
    %v932 = vld [vmem:[#allocation3 + $0x68] sm:$0xff]
    %v933 = vld [vmem:[#allocation3 + $0x70] sm:$0xff]
    %v934 = vld [vmem:[#allocation3 + $0x78] sm:$0xff]
    %s935 = scalar_lea.vmem [#allocation3], 128
    %v936 = vld [vmem:[%s935] sm:$0xff]
    %v937 = vld [vmem:[%s935 + $0x8] sm:$0xff]
    %v938 = vld [vmem:[%s935 + $0x10] sm:$0xff]
    %v939 = vld [vmem:[%s935 + $0x18] sm:$0xff]
    %v940 = vld [vmem:[%s935 + $0x20] sm:$0xff]
    %v941 = vld [vmem:[%s935 + $0x28] sm:$0xff]
    %v942 = vld [vmem:[%s935 + $0x30] sm:$0xff]
    %v943 = vld [vmem:[%s935 + $0x38] sm:$0xff]
    %v944 = vld [vmem:[%s935 + $0x40] sm:$0xff]
    %v945 = vld [vmem:[%s935 + $0x48] sm:$0xff]
    %v946 = vld [vmem:[%s935 + $0x50] sm:$0xff]
    %v947 = vld [vmem:[%s935 + $0x58] sm:$0xff]
    %v948 = vld [vmem:[%s935 + $0x60] sm:$0xff]
    %v949 = vld [vmem:[%s935 + $0x68] sm:$0xff]
    %v950 = vld [vmem:[%s935 + $0x70] sm:$0xff]
    %v951 = vld [vmem:[%s935 + $0x78] sm:$0xff]
    %v968 = vunpack.c.l.b16 %v936
    %v969 = vunpack.c.h.b16 %v936
    %v970 = vunpack.c.l.b16 %v937
    %v971 = vunpack.c.h.b16 %v937
    %v972 = vunpack.c.l.b16 %v938
    %v973 = vunpack.c.h.b16 %v938
    %v974 = vunpack.c.l.b16 %v939
    %v975 = vunpack.c.h.b16 %v939
    %v976 = vunpack.c.l.b16 %v940
    %v977 = vunpack.c.h.b16 %v940
    %v978 = vunpack.c.l.b16 %v941
    %v979 = vunpack.c.h.b16 %v941
    %v980 = vunpack.c.l.b16 %v942
    %v981 = vunpack.c.h.b16 %v942
    %v982 = vunpack.c.l.b16 %v943
    %v983 = vunpack.c.h.b16 %v943
    %v984 = vunpack.c.l.b16 %v944
    %v985 = vunpack.c.h.b16 %v944
    %v986 = vunpack.c.l.b16 %v945
    %v987 = vunpack.c.h.b16 %v945
    %v988 = vunpack.c.l.b16 %v946
    %v989 = vunpack.c.h.b16 %v946
    %v990 = vunpack.c.l.b16 %v947
    %v991 = vunpack.c.h.b16 %v947
    %v992 = vunpack.c.l.b16 %v948
    %v993 = vunpack.c.h.b16 %v948
    %v994 = vunpack.c.l.b16 %v949
    %v995 = vunpack.c.h.b16 %v949
    %v996 = vunpack.c.l.b16 %v950
    %v997 = vunpack.c.h.b16 %v950
    %v998 = vunpack.c.l.b16 %v951
    %v999 = vunpack.c.h.b16 %v951
    %v1000 = vpack.c.b16 %v970, %v968
    %v1001 = vpack.c.b16 %v971, %v969
    %v1002 = vpack.c.b16 %v974, %v972
    %v1003 = vpack.c.b16 %v975, %v973
    %v1004 = vpack.c.b16 %v978, %v976
    %v1005 = vpack.c.b16 %v979, %v977
    %v1006 = vpack.c.b16 %v982, %v980
    %v1007 = vpack.c.b16 %v983, %v981
    %v1008 = vpack.c.b16 %v986, %v984
    %v1009 = vpack.c.b16 %v987, %v985
    %v1010 = vpack.c.b16 %v990, %v988
    %v1011 = vpack.c.b16 %v991, %v989
    %v1012 = vpack.c.b16 %v994, %v992
    %v1013 = vpack.c.b16 %v995, %v993
    %v1014 = vpack.c.b16 %v998, %v996
    %v1015 = vpack.c.b16 %v999, %v997
    %1032 = vmatpush.bf16.msra.mxu0 %v1014
    %1033 = vmatpush.bf16.msra.mxu0 %v1012
    %1034 = vmatpush.bf16.msra.mxu0 %v1010
    %1035 = vmatpush.bf16.msra.mxu0 %v1008
    %1036 = vmatpush.bf16.msra.mxu0 %v1006
    %1037 = vmatpush.bf16.msra.mxu0 %v1004
    %1038 = vmatpush.bf16.msra.mxu0 %v1002
    %1039 = vmatpush.bf16.msra.mxu0 %v1000
    %1040 = vmatmul.bf16.gmra.mxu0 0
    %v1041 = vpop.f32.mrf.mxu0
    %v1042 = vadd.f32 0.0, %v1041
    %v1043 = vpop.f32.mrf.mxu0
    %v1044 = vadd.f32 0.0, %v1043
    %1045 = vmatmul.bf16.gmra.mxu0 %v903
    %v1046 = vpop.f32.mrf.mxu0
    %v1047 = vadd.f32 0.0, %v1046
    %v1048 = vpop.f32.mrf.mxu0
    %v1049 = vadd.f32 0.0, %v1048
    %1050 = vmatmul.bf16.gmra.mxu0 %v904
    %v1051 = vpop.f32.mrf.mxu0
    %v1052 = vadd.f32 0.0, %v1051
    %v1053 = vpop.f32.mrf.mxu0
    %v1054 = vadd.f32 0.0, %v1053
    %1055 = vmatmul.bf16.gmra.mxu0 %v905
    %v1056 = vpop.f32.mrf.mxu0
    %v1057 = vadd.f32 0.0, %v1056
    %v1058 = vpop.f32.mrf.mxu0
    %v1059 = vadd.f32 0.0, %v1058
    %1060 = vmatmul.bf16.gmra.mxu0 %v906
    %v1061 = vpop.f32.mrf.mxu0
    %v1062 = vadd.f32 0.0, %v1061
    %v1063 = vpop.f32.mrf.mxu0
    %v1064 = vadd.f32 0.0, %v1063
    %1065 = vmatmul.bf16.gmra.mxu0 %v907
    %v1066 = vpop.f32.mrf.mxu0
    %v1067 = vadd.f32 0.0, %v1066
    %v1068 = vpop.f32.mrf.mxu0
    %v1069 = vadd.f32 0.0, %v1068
    %1070 = vmatmul.bf16.gmra.mxu0 %v908
    %v1071 = vpop.f32.mrf.mxu0
    %v1072 = vadd.f32 0.0, %v1071
    %v1073 = vpop.f32.mrf.mxu0
    %v1074 = vadd.f32 0.0, %v1073
    %1075 = vmatmul.bf16.gmra.mxu0 %v909
    %v1076 = vpop.f32.mrf.mxu0
    %v1077 = vadd.f32 0.0, %v1076
    %v1078 = vpop.f32.mrf.mxu0
    %v1079 = vadd.f32 0.0, %v1078
    %1080 = vdwg.mxu0
    %1081 = vmatpush.bf16.msra.mxu0 %v1015
    %1082 = vmatpush.bf16.msra.mxu0 %v1013
    %1083 = vmatpush.bf16.msra.mxu0 %v1011
    %1084 = vmatpush.bf16.msra.mxu0 %v1009
    %1085 = vmatpush.bf16.msra.mxu0 %v1007
    %1086 = vmatpush.bf16.msra.mxu0 %v1005
    %1087 = vmatpush.bf16.msra.mxu0 %v1003
    %1088 = vmatpush.bf16.msra.mxu0 %v1001
    %1089 = vmatmul.bf16.gmra.mxu0 0
    %v1090 = vpop.f32.mrf.mxu0
    %v1091 = vadd.f32 0.0, %v1090
    %v1092 = vpop.f32.mrf.mxu0
    %v1093 = vadd.f32 0.0, %v1092
    %1094 = vmatmul.bf16.gmra.mxu0 %v903
    %v1095 = vpop.f32.mrf.mxu0
    %v1096 = vadd.f32 0.0, %v1095
    %v1097 = vpop.f32.mrf.mxu0
    %v1098 = vadd.f32 0.0, %v1097
    %1099 = vmatmul.bf16.gmra.mxu0 %v904
    %v1100 = vpop.f32.mrf.mxu0
    %v1101 = vadd.f32 0.0, %v1100
    %v1102 = vpop.f32.mrf.mxu0
    %v1103 = vadd.f32 0.0, %v1102
    %1104 = vmatmul.bf16.gmra.mxu0 %v905
    %v1105 = vpop.f32.mrf.mxu0
    %v1106 = vadd.f32 0.0, %v1105
    %v1107 = vpop.f32.mrf.mxu0
    %v1108 = vadd.f32 0.0, %v1107
    %1109 = vmatmul.bf16.gmra.mxu0 %v906
    %v1110 = vpop.f32.mrf.mxu0
    %v1111 = vadd.f32 0.0, %v1110
    %v1112 = vpop.f32.mrf.mxu0
    %v1113 = vadd.f32 0.0, %v1112
    %1114 = vmatmul.bf16.gmra.mxu0 %v907
    %v1115 = vpop.f32.mrf.mxu0
    %v1116 = vadd.f32 0.0, %v1115
    %v1117 = vpop.f32.mrf.mxu0
    %v1118 = vadd.f32 0.0, %v1117
    %1119 = vmatmul.bf16.gmra.mxu0 %v908
    %v1120 = vpop.f32.mrf.mxu0
    %v1121 = vadd.f32 0.0, %v1120
    %v1122 = vpop.f32.mrf.mxu0
    %v1123 = vadd.f32 0.0, %v1122
    %1124 = vmatmul.bf16.gmra.mxu0 %v909
    %v1125 = vpop.f32.mrf.mxu0
    %v1126 = vadd.f32 0.0, %v1125
    %v1127 = vpop.f32.mrf.mxu0
    %v1128 = vadd.f32 0.0, %v1127
    %1129 = vdwg.mxu0
    %v1146 = vunpack.c.l.b16 %v919
    %v1147 = vunpack.c.h.b16 %v919
    %v1148 = vunpack.c.l.b16 %v920
    %v1149 = vunpack.c.h.b16 %v920
    %v1150 = vunpack.c.l.b16 %v921
    %v1151 = vunpack.c.h.b16 %v921
    %v1152 = vunpack.c.l.b16 %v922
    %v1153 = vunpack.c.h.b16 %v922
    %v1154 = vunpack.c.l.b16 %v923
    %v1155 = vunpack.c.h.b16 %v923
    %v1156 = vunpack.c.l.b16 %v924
    %v1157 = vunpack.c.h.b16 %v924
    %v1158 = vunpack.c.l.b16 %v925
    %v1159 = vunpack.c.h.b16 %v925
    %v1160 = vunpack.c.l.b16 %v926
    %v1161 = vunpack.c.h.b16 %v926
    %v1162 = vunpack.c.l.b16 %v927
    %v1163 = vunpack.c.h.b16 %v927
    %v1164 = vunpack.c.l.b16 %v928
    %v1165 = vunpack.c.h.b16 %v928
    %v1166 = vunpack.c.l.b16 %v929
    %v1167 = vunpack.c.h.b16 %v929
    %v1168 = vunpack.c.l.b16 %v930
    %v1169 = vunpack.c.h.b16 %v930
    %v1170 = vunpack.c.l.b16 %v931
    %v1171 = vunpack.c.h.b16 %v931
    %v1172 = vunpack.c.l.b16 %v932
    %v1173 = vunpack.c.h.b16 %v932
    %v1174 = vunpack.c.l.b16 %v933
    %v1175 = vunpack.c.h.b16 %v933
    %v1176 = vunpack.c.l.b16 %v934
    %v1177 = vunpack.c.h.b16 %v934
    %v1178 = vpack.c.b16 %v1148, %v1146
    %v1179 = vpack.c.b16 %v1149, %v1147
    %v1180 = vpack.c.b16 %v1152, %v1150
    %v1181 = vpack.c.b16 %v1153, %v1151
    %v1182 = vpack.c.b16 %v1156, %v1154
    %v1183 = vpack.c.b16 %v1157, %v1155
    %v1184 = vpack.c.b16 %v1160, %v1158
    %v1185 = vpack.c.b16 %v1161, %v1159
    %v1186 = vpack.c.b16 %v1164, %v1162
    %v1187 = vpack.c.b16 %v1165, %v1163
    %v1188 = vpack.c.b16 %v1168, %v1166
    %v1189 = vpack.c.b16 %v1169, %v1167
    %v1190 = vpack.c.b16 %v1172, %v1170
    %v1191 = vpack.c.b16 %v1173, %v1171
    %v1192 = vpack.c.b16 %v1176, %v1174
    %v1193 = vpack.c.b16 %v1177, %v1175
    %1210 = vmatpush.bf16.msra.mxu0 %v1192
    %1211 = vmatpush.bf16.msra.mxu0 %v1190
    %1212 = vmatpush.bf16.msra.mxu0 %v1188
    %1213 = vmatpush.bf16.msra.mxu0 %v1186
    %1214 = vmatpush.bf16.msra.mxu0 %v1184
    %1215 = vmatpush.bf16.msra.mxu0 %v1182
    %1216 = vmatpush.bf16.msra.mxu0 %v1180
    %1217 = vmatpush.bf16.msra.mxu0 %v1178
    %1218 = vmatmul.bf16.gmra.mxu0 0
    %v1219 = vpop.f32.mrf.mxu0
    %v1220 = vadd.f32 %v1042, %v1219
    %v1221 = vpop.f32.mrf.mxu0
    %v1222 = vadd.f32 %v1044, %v1221
    %1223 = vmatmul.bf16.gmra.mxu0 0
    %v1224 = vpop.f32.mrf.mxu0
    %v1225 = vadd.f32 %v1047, %v1224
    %v1226 = vpop.f32.mrf.mxu0
    %v1227 = vadd.f32 %v1049, %v1226
    %1228 = vmatmul.bf16.gmra.mxu0 %v903
    %v1229 = vpop.f32.mrf.mxu0
    %v1230 = vadd.f32 %v1052, %v1229
    %v1231 = vpop.f32.mrf.mxu0
    %v1232 = vadd.f32 %v1054, %v1231
    %1233 = vmatmul.bf16.gmra.mxu0 %v904
    %v1234 = vpop.f32.mrf.mxu0
    %v1235 = vadd.f32 %v1057, %v1234
    %v1236 = vpop.f32.mrf.mxu0
    %v1237 = vadd.f32 %v1059, %v1236
    %1238 = vmatmul.bf16.gmra.mxu0 %v905
    %v1239 = vpop.f32.mrf.mxu0
    %v1240 = vadd.f32 %v1062, %v1239
    %v1241 = vpop.f32.mrf.mxu0
    %v1242 = vadd.f32 %v1064, %v1241
    %1243 = vmatmul.bf16.gmra.mxu0 %v906
    %v1244 = vpop.f32.mrf.mxu0
    %v1245 = vadd.f32 %v1067, %v1244
    %v1246 = vpop.f32.mrf.mxu0
    %v1247 = vadd.f32 %v1069, %v1246
    %1248 = vmatmul.bf16.gmra.mxu0 %v907
    %v1249 = vpop.f32.mrf.mxu0
    %v1250 = vadd.f32 %v1072, %v1249
    %v1251 = vpop.f32.mrf.mxu0
    %v1252 = vadd.f32 %v1074, %v1251
    %1253 = vmatmul.bf16.gmra.mxu0 %v908
    %v1254 = vpop.f32.mrf.mxu0
    %v1255 = vadd.f32 %v1077, %v1254
    %v1256 = vpop.f32.mrf.mxu0
    %v1257 = vadd.f32 %v1079, %v1256
    %1258 = vdwg.mxu0
    %1259 = vmatpush.bf16.msra.mxu0 %v1193
    %1260 = vmatpush.bf16.msra.mxu0 %v1191
    %1261 = vmatpush.bf16.msra.mxu0 %v1189
    %1262 = vmatpush.bf16.msra.mxu0 %v1187
    %1263 = vmatpush.bf16.msra.mxu0 %v1185
    %1264 = vmatpush.bf16.msra.mxu0 %v1183
    %1265 = vmatpush.bf16.msra.mxu0 %v1181
    %1266 = vmatpush.bf16.msra.mxu0 %v1179
    %1267 = vmatmul.bf16.gmra.mxu0 0
    %v1268 = vpop.f32.mrf.mxu0
    %v1269 = vadd.f32 %v1091, %v1268
    %v1270 = vpop.f32.mrf.mxu0
    %v1271 = vadd.f32 %v1093, %v1270
    %1272 = vmatmul.bf16.gmra.mxu0 0
    %v1273 = vpop.f32.mrf.mxu0
    %v1274 = vadd.f32 %v1096, %v1273
    %v1275 = vpop.f32.mrf.mxu0
    %v1276 = vadd.f32 %v1098, %v1275
    %1277 = vmatmul.bf16.gmra.mxu0 %v903
    %v1278 = vpop.f32.mrf.mxu0
    %v1279 = vadd.f32 %v1101, %v1278
    %v1280 = vpop.f32.mrf.mxu0
    %v1281 = vadd.f32 %v1103, %v1280
    %1282 = vmatmul.bf16.gmra.mxu0 %v904
    %v1283 = vpop.f32.mrf.mxu0
    %v1284 = vadd.f32 %v1106, %v1283
    %v1285 = vpop.f32.mrf.mxu0
    %v1286 = vadd.f32 %v1108, %v1285
    %1287 = vmatmul.bf16.gmra.mxu0 %v905
    %v1288 = vpop.f32.mrf.mxu0
    %v1289 = vadd.f32 %v1111, %v1288
    %v1290 = vpop.f32.mrf.mxu0
    %v1291 = vadd.f32 %v1113, %v1290
    %1292 = vmatmul.bf16.gmra.mxu0 %v906
    %v1293 = vpop.f32.mrf.mxu0
    %v1294 = vadd.f32 %v1116, %v1293
    %v1295 = vpop.f32.mrf.mxu0
    %v1296 = vadd.f32 %v1118, %v1295
    %1297 = vmatmul.bf16.gmra.mxu0 %v907
    %v1298 = vpop.f32.mrf.mxu0
    %v1299 = vadd.f32 %v1121, %v1298
    %v1300 = vpop.f32.mrf.mxu0
    %v1301 = vadd.f32 %v1123, %v1300
    %1302 = vmatmul.bf16.gmra.mxu0 %v908
    %v1303 = vpop.f32.mrf.mxu0
    %v1304 = vadd.f32 %v1126, %v1303
    %v1305 = vpop.f32.mrf.mxu0
    %v1306 = vadd.f32 %v1128, %v1305
    %1307 = vdwg.mxu0
    %s1308 = scalar_lea.vmem [#allocation3], 256
    %v1309 = vld [vmem:[%s1308] sm:$0xff]
    %v1310 = vld [vmem:[%s1308 + $0x8] sm:$0xff]
    %v1311 = vld [vmem:[%s1308 + $0x10] sm:$0xff]
    %v1312 = vld [vmem:[%s1308 + $0x18] sm:$0xff]
    %v1313 = vld [vmem:[%s1308 + $0x20] sm:$0xff]
    %v1314 = vld [vmem:[%s1308 + $0x28] sm:$0xff]
    %v1315 = vld [vmem:[%s1308 + $0x30] sm:$0xff]
    %v1316 = vld [vmem:[%s1308 + $0x38] sm:$0xff]
    %v1317 = vld [vmem:[%s1308 + $0x40] sm:$0xff]
    %v1318 = vld [vmem:[%s1308 + $0x48] sm:$0xff]
    %v1319 = vld [vmem:[%s1308 + $0x50] sm:$0xff]
    %v1320 = vld [vmem:[%s1308 + $0x58] sm:$0xff]
    %v1321 = vld [vmem:[%s1308 + $0x60] sm:$0xff]
    %v1322 = vld [vmem:[%s1308 + $0x68] sm:$0xff]
    %v1323 = vld [vmem:[%s1308 + $0x70] sm:$0xff]
    %v1324 = vld [vmem:[%s1308 + $0x78] sm:$0xff]
    %v1341 = vunpack.c.l.b16 %v1309
    %v1342 = vunpack.c.h.b16 %v1309
    %v1343 = vunpack.c.l.b16 %v1310
    %v1344 = vunpack.c.h.b16 %v1310
    %v1345 = vunpack.c.l.b16 %v1311
    %v1346 = vunpack.c.h.b16 %v1311
    %v1347 = vunpack.c.l.b16 %v1312
    %v1348 = vunpack.c.h.b16 %v1312
    %v1349 = vunpack.c.l.b16 %v1313
    %v1350 = vunpack.c.h.b16 %v1313
    %v1351 = vunpack.c.l.b16 %v1314
    %v1352 = vunpack.c.h.b16 %v1314
    %v1353 = vunpack.c.l.b16 %v1315
    %v1354 = vunpack.c.h.b16 %v1315
    %v1355 = vunpack.c.l.b16 %v1316
    %v1356 = vunpack.c.h.b16 %v1316
    %v1357 = vunpack.c.l.b16 %v1317
    %v1358 = vunpack.c.h.b16 %v1317
    %v1359 = vunpack.c.l.b16 %v1318
    %v1360 = vunpack.c.h.b16 %v1318
    %v1361 = vunpack.c.l.b16 %v1319
    %v1362 = vunpack.c.h.b16 %v1319
    %v1363 = vunpack.c.l.b16 %v1320
    %v1364 = vunpack.c.h.b16 %v1320
    %v1365 = vunpack.c.l.b16 %v1321
    %v1366 = vunpack.c.h.b16 %v1321
    %v1367 = vunpack.c.l.b16 %v1322
    %v1368 = vunpack.c.h.b16 %v1322
    %v1369 = vunpack.c.l.b16 %v1323
    %v1370 = vunpack.c.h.b16 %v1323
    %v1371 = vunpack.c.l.b16 %v1324
    %v1372 = vunpack.c.h.b16 %v1324
    %v1373 = vpack.c.b16 %v1343, %v1341
    %v1374 = vpack.c.b16 %v1344, %v1342
    %v1375 = vpack.c.b16 %v1347, %v1345
    %v1376 = vpack.c.b16 %v1348, %v1346
    %v1377 = vpack.c.b16 %v1351, %v1349
    %v1378 = vpack.c.b16 %v1352, %v1350
    %v1379 = vpack.c.b16 %v1355, %v1353
    %v1380 = vpack.c.b16 %v1356, %v1354
    %v1381 = vpack.c.b16 %v1359, %v1357
    %v1382 = vpack.c.b16 %v1360, %v1358
    %v1383 = vpack.c.b16 %v1363, %v1361
    %v1384 = vpack.c.b16 %v1364, %v1362
    %v1385 = vpack.c.b16 %v1367, %v1365
    %v1386 = vpack.c.b16 %v1368, %v1366
    %v1387 = vpack.c.b16 %v1371, %v1369
    %v1388 = vpack.c.b16 %v1372, %v1370
    %1405 = vmatpush.bf16.msra.mxu0 %v1387
    %1406 = vmatpush.bf16.msra.mxu0 %v1385
    %1407 = vmatpush.bf16.msra.mxu0 %v1383
    %1408 = vmatpush.bf16.msra.mxu0 %v1381
    %1409 = vmatpush.bf16.msra.mxu0 %v1379
    %1410 = vmatpush.bf16.msra.mxu0 %v1377
    %1411 = vmatpush.bf16.msra.mxu0 %v1375
    %1412 = vmatpush.bf16.msra.mxu0 %v1373
    %1413 = vmatmul.bf16.gmra.mxu0 %v903
    %v1414 = vpop.f32.mrf.mxu0
    %v1415 = vadd.f32 0.0, %v1414
    %v1416 = vpop.f32.mrf.mxu0
    %v1417 = vadd.f32 0.0, %v1416
    %1418 = vmatmul.bf16.gmra.mxu0 %v904
    %v1419 = vpop.f32.mrf.mxu0
    %v1420 = vadd.f32 0.0, %v1419
    %v1421 = vpop.f32.mrf.mxu0
    %v1422 = vadd.f32 0.0, %v1421
    %1423 = vmatmul.bf16.gmra.mxu0 %v905
    %v1424 = vpop.f32.mrf.mxu0
    %v1425 = vadd.f32 0.0, %v1424
    %v1426 = vpop.f32.mrf.mxu0
    %v1427 = vadd.f32 0.0, %v1426
    %1428 = vmatmul.bf16.gmra.mxu0 %v906
    %v1429 = vpop.f32.mrf.mxu0
    %v1430 = vadd.f32 0.0, %v1429
    %v1431 = vpop.f32.mrf.mxu0
    %v1432 = vadd.f32 0.0, %v1431
    %1433 = vmatmul.bf16.gmra.mxu0 %v907
    %v1434 = vpop.f32.mrf.mxu0
    %v1435 = vadd.f32 0.0, %v1434
    %v1436 = vpop.f32.mrf.mxu0
    %v1437 = vadd.f32 0.0, %v1436
    %1438 = vmatmul.bf16.gmra.mxu0 %v908
    %v1439 = vpop.f32.mrf.mxu0
    %v1440 = vadd.f32 0.0, %v1439
    %v1441 = vpop.f32.mrf.mxu0
    %v1442 = vadd.f32 0.0, %v1441
    %1443 = vmatmul.bf16.gmra.mxu0 %v909
    %v1444 = vpop.f32.mrf.mxu0
    %v1445 = vadd.f32 0.0, %v1444
    %v1446 = vpop.f32.mrf.mxu0
    %v1447 = vadd.f32 0.0, %v1446
    %1448 = vmatmul.bf16.gmra.mxu0 %v910
    %v1449 = vpop.f32.mrf.mxu0
    %v1450 = vadd.f32 0.0, %v1449
    %v1451 = vpop.f32.mrf.mxu0
    %v1452 = vadd.f32 0.0, %v1451
    %1453 = vdwg.mxu0
    %1454 = vmatpush.bf16.msra.mxu0 %v1388
    %1455 = vmatpush.bf16.msra.mxu0 %v1386
    %1456 = vmatpush.bf16.msra.mxu0 %v1384
    %1457 = vmatpush.bf16.msra.mxu0 %v1382
    %1458 = vmatpush.bf16.msra.mxu0 %v1380
    %1459 = vmatpush.bf16.msra.mxu0 %v1378
    %1460 = vmatpush.bf16.msra.mxu0 %v1376
    %1461 = vmatpush.bf16.msra.mxu0 %v1374
    %1462 = vmatmul.bf16.gmra.mxu0 %v903
    %v1463 = vpop.f32.mrf.mxu0
    %v1464 = vadd.f32 0.0, %v1463
    %v1465 = vpop.f32.mrf.mxu0
    %v1466 = vadd.f32 0.0, %v1465
    %1467 = vmatmul.bf16.gmra.mxu0 %v904
    %v1468 = vpop.f32.mrf.mxu0
    %v1469 = vadd.f32 0.0, %v1468
    %v1470 = vpop.f32.mrf.mxu0
    %v1471 = vadd.f32 0.0, %v1470
    %1472 = vmatmul.bf16.gmra.mxu0 %v905
    %v1473 = vpop.f32.mrf.mxu0
    %v1474 = vadd.f32 0.0, %v1473
    %v1475 = vpop.f32.mrf.mxu0
    %v1476 = vadd.f32 0.0, %v1475
    %1477 = vmatmul.bf16.gmra.mxu0 %v906
    %v1478 = vpop.f32.mrf.mxu0
    %v1479 = vadd.f32 0.0, %v1478
    %v1480 = vpop.f32.mrf.mxu0
    %v1481 = vadd.f32 0.0, %v1480
    %1482 = vmatmul.bf16.gmra.mxu0 %v907
    %v1483 = vpop.f32.mrf.mxu0
    %v1484 = vadd.f32 0.0, %v1483
    %v1485 = vpop.f32.mrf.mxu0
    %v1486 = vadd.f32 0.0, %v1485
    %1487 = vmatmul.bf16.gmra.mxu0 %v908
    %v1488 = vpop.f32.mrf.mxu0
    %v1489 = vadd.f32 0.0, %v1488
    %v1490 = vpop.f32.mrf.mxu0
    %v1491 = vadd.f32 0.0, %v1490
    %1492 = vmatmul.bf16.gmra.mxu0 %v909
    %v1493 = vpop.f32.mrf.mxu0
    %v1494 = vadd.f32 0.0, %v1493
    %v1495 = vpop.f32.mrf.mxu0
    %v1496 = vadd.f32 0.0, %v1495
    %1497 = vmatmul.bf16.gmra.mxu0 %v910
    %v1498 = vpop.f32.mrf.mxu0
    %v1499 = vadd.f32 0.0, %v1498
    %v1500 = vpop.f32.mrf.mxu0
    %v1501 = vadd.f32 0.0, %v1500
    %1502 = vdwg.mxu0
    %v1503 = vadd.f32 %v1220, %v1415
    %v1504 = vadd.f32 %v1269, %v1464
    %v1505 = vadd.f32 %v1222, %v1417
    %v1506 = vadd.f32 %v1271, %v1466
    %v1507 = vadd.f32 %v1225, %v1420
    %v1508 = vadd.f32 %v1274, %v1469
    %v1509 = vadd.f32 %v1227, %v1422
    %v1510 = vadd.f32 %v1276, %v1471
    %v1511 = vadd.f32 %v1230, %v1425
    %v1512 = vadd.f32 %v1279, %v1474
    %v1513 = vadd.f32 %v1232, %v1427
    %v1514 = vadd.f32 %v1281, %v1476
    %v1515 = vadd.f32 %v1235, %v1430
    %v1516 = vadd.f32 %v1284, %v1479
    %v1517 = vadd.f32 %v1237, %v1432
    %v1518 = vadd.f32 %v1286, %v1481
    %v1519 = vadd.f32 %v1240, %v1435
    %v1520 = vadd.f32 %v1289, %v1484
    %v1521 = vadd.f32 %v1242, %v1437
    %v1522 = vadd.f32 %v1291, %v1486
    %v1523 = vadd.f32 %v1245, %v1440
    %v1524 = vadd.f32 %v1294, %v1489
    %v1525 = vadd.f32 %v1247, %v1442
    %v1526 = vadd.f32 %v1296, %v1491
    %v1527 = vadd.f32 %v1250, %v1445
    %v1528 = vadd.f32 %v1299, %v1494
    %v1529 = vadd.f32 %v1252, %v1447
    %v1530 = vadd.f32 %v1301, %v1496
    %v1531 = vadd.f32 %v1255, %v1450
    %v1532 = vadd.f32 %v1304, %v1499
    %v1533 = vadd.f32 %v1257, %v1452
    %v1534 = vadd.f32 %v1306, %v1501
    %s1535 = scalar_lea.vmem [#allocation3], 384
    %v1536 = vld [vmem:[%s1535] sm:$0xff]
    %v1537 = vld [vmem:[%s1535 + $0x8] sm:$0xff]
    %v1538 = vld [vmem:[%s1535 + $0x10] sm:$0xff]
    %v1539 = vld [vmem:[%s1535 + $0x18] sm:$0xff]
    %v1540 = vld [vmem:[%s1535 + $0x20] sm:$0xff]
    %v1541 = vld [vmem:[%s1535 + $0x28] sm:$0xff]
    %v1542 = vld [vmem:[%s1535 + $0x30] sm:$0xff]
    %v1543 = vld [vmem:[%s1535 + $0x38] sm:$0xff]
    %v1544 = vld [vmem:[%s1535 + $0x40] sm:$0xff]
    %v1545 = vld [vmem:[%s1535 + $0x48] sm:$0xff]
    %v1546 = vld [vmem:[%s1535 + $0x50] sm:$0xff]
    %v1547 = vld [vmem:[%s1535 + $0x58] sm:$0xff]
    %v1548 = vld [vmem:[%s1535 + $0x60] sm:$0xff]
    %v1549 = vld [vmem:[%s1535 + $0x68] sm:$0xff]
    %v1550 = vld [vmem:[%s1535 + $0x70] sm:$0xff]
    %v1551 = vld [vmem:[%s1535 + $0x78] sm:$0xff]
    %v1568 = vunpack.c.l.b16 %v1536
    %v1569 = vunpack.c.h.b16 %v1536
    %v1570 = vunpack.c.l.b16 %v1537
    %v1571 = vunpack.c.h.b16 %v1537
    %v1572 = vunpack.c.l.b16 %v1538
    %v1573 = vunpack.c.h.b16 %v1538
    %v1574 = vunpack.c.l.b16 %v1539
    %v1575 = vunpack.c.h.b16 %v1539
    %v1576 = vunpack.c.l.b16 %v1540
    %v1577 = vunpack.c.h.b16 %v1540
    %v1578 = vunpack.c.l.b16 %v1541
    %v1579 = vunpack.c.h.b16 %v1541
    %v1580 = vunpack.c.l.b16 %v1542
    %v1581 = vunpack.c.h.b16 %v1542
    %v1582 = vunpack.c.l.b16 %v1543
    %v1583 = vunpack.c.h.b16 %v1543
    %v1584 = vunpack.c.l.b16 %v1544
    %v1585 = vunpack.c.h.b16 %v1544
    %v1586 = vunpack.c.l.b16 %v1545
    %v1587 = vunpack.c.h.b16 %v1545
    %v1588 = vunpack.c.l.b16 %v1546
    %v1589 = vunpack.c.h.b16 %v1546
    %v1590 = vunpack.c.l.b16 %v1547
    %v1591 = vunpack.c.h.b16 %v1547
    %v1592 = vunpack.c.l.b16 %v1548
    %v1593 = vunpack.c.h.b16 %v1548
    %v1594 = vunpack.c.l.b16 %v1549
    %v1595 = vunpack.c.h.b16 %v1549
    %v1596 = vunpack.c.l.b16 %v1550
    %v1597 = vunpack.c.h.b16 %v1550
    %v1598 = vunpack.c.l.b16 %v1551
    %v1599 = vunpack.c.h.b16 %v1551
    %v1600 = vpack.c.b16 %v1570, %v1568
    %v1601 = vpack.c.b16 %v1571, %v1569
    %v1602 = vpack.c.b16 %v1574, %v1572
    %v1603 = vpack.c.b16 %v1575, %v1573
    %v1604 = vpack.c.b16 %v1578, %v1576
    %v1605 = vpack.c.b16 %v1579, %v1577
    %v1606 = vpack.c.b16 %v1582, %v1580
    %v1607 = vpack.c.b16 %v1583, %v1581
    %v1608 = vpack.c.b16 %v1586, %v1584
    %v1609 = vpack.c.b16 %v1587, %v1585
    %v1610 = vpack.c.b16 %v1590, %v1588
    %v1611 = vpack.c.b16 %v1591, %v1589
    %v1612 = vpack.c.b16 %v1594, %v1592
    %v1613 = vpack.c.b16 %v1595, %v1593
    %v1614 = vpack.c.b16 %v1598, %v1596
    %v1615 = vpack.c.b16 %v1599, %v1597
    %1632 = vmatpush.bf16.msra.mxu0 %v1614
    %1633 = vmatpush.bf16.msra.mxu0 %v1612
    %1634 = vmatpush.bf16.msra.mxu0 %v1610
    %1635 = vmatpush.bf16.msra.mxu0 %v1608
    %1636 = vmatpush.bf16.msra.mxu0 %v1606
    %1637 = vmatpush.bf16.msra.mxu0 %v1604
    %1638 = vmatpush.bf16.msra.mxu0 %v1602
    %1639 = vmatpush.bf16.msra.mxu0 %v1600
    %1640 = vmatmul.bf16.gmra.mxu0 %v904
    %v1641 = vpop.f32.mrf.mxu0
    %v1642 = vadd.f32 0.0, %v1641
    %v1643 = vpop.f32.mrf.mxu0
    %v1644 = vadd.f32 0.0, %v1643
    %1645 = vmatmul.bf16.gmra.mxu0 %v905
    %v1646 = vpop.f32.mrf.mxu0
    %v1647 = vadd.f32 0.0, %v1646
    %v1648 = vpop.f32.mrf.mxu0
    %v1649 = vadd.f32 0.0, %v1648
    %1650 = vmatmul.bf16.gmra.mxu0 %v906
    %v1651 = vpop.f32.mrf.mxu0
    %v1652 = vadd.f32 0.0, %v1651
    %v1653 = vpop.f32.mrf.mxu0
    %v1654 = vadd.f32 0.0, %v1653
    %1655 = vmatmul.bf16.gmra.mxu0 %v907
    %v1656 = vpop.f32.mrf.mxu0
    %v1657 = vadd.f32 0.0, %v1656
    %v1658 = vpop.f32.mrf.mxu0
    %v1659 = vadd.f32 0.0, %v1658
    %1660 = vmatmul.bf16.gmra.mxu0 %v908
    %v1661 = vpop.f32.mrf.mxu0
    %v1662 = vadd.f32 0.0, %v1661
    %v1663 = vpop.f32.mrf.mxu0
    %v1664 = vadd.f32 0.0, %v1663
    %1665 = vmatmul.bf16.gmra.mxu0 %v909
    %v1666 = vpop.f32.mrf.mxu0
    %v1667 = vadd.f32 0.0, %v1666
    %v1668 = vpop.f32.mrf.mxu0
    %v1669 = vadd.f32 0.0, %v1668
    %1670 = vmatmul.bf16.gmra.mxu0 %v910
    %v1671 = vpop.f32.mrf.mxu0
    %v1672 = vadd.f32 0.0, %v1671
    %v1673 = vpop.f32.mrf.mxu0
    %v1674 = vadd.f32 0.0, %v1673
    %1675 = vmatmul.bf16.gmra.mxu0 0
    %v1676 = vpop.f32.mrf.mxu0
    %v1677 = vadd.f32 0.0, %v1676
    %v1678 = vpop.f32.mrf.mxu0
    %v1679 = vadd.f32 0.0, %v1678
    %1680 = vdwg.mxu0
    %1681 = vmatpush.bf16.msra.mxu0 %v1615
    %1682 = vmatpush.bf16.msra.mxu0 %v1613
    %1683 = vmatpush.bf16.msra.mxu0 %v1611
    %1684 = vmatpush.bf16.msra.mxu0 %v1609
    %1685 = vmatpush.bf16.msra.mxu0 %v1607
    %1686 = vmatpush.bf16.msra.mxu0 %v1605
    %1687 = vmatpush.bf16.msra.mxu0 %v1603
    %1688 = vmatpush.bf16.msra.mxu0 %v1601
    %1689 = vmatmul.bf16.gmra.mxu0 %v904
    %v1690 = vpop.f32.mrf.mxu0
    %v1691 = vadd.f32 0.0, %v1690
    %v1692 = vpop.f32.mrf.mxu0
    %v1693 = vadd.f32 0.0, %v1692
    %1694 = vmatmul.bf16.gmra.mxu0 %v905
    %v1695 = vpop.f32.mrf.mxu0
    %v1696 = vadd.f32 0.0, %v1695
    %v1697 = vpop.f32.mrf.mxu0
    %v1698 = vadd.f32 0.0, %v1697
    %1699 = vmatmul.bf16.gmra.mxu0 %v906
    %v1700 = vpop.f32.mrf.mxu0
    %v1701 = vadd.f32 0.0, %v1700
    %v1702 = vpop.f32.mrf.mxu0
    %v1703 = vadd.f32 0.0, %v1702
    %1704 = vmatmul.bf16.gmra.mxu0 %v907
    %v1705 = vpop.f32.mrf.mxu0
    %v1706 = vadd.f32 0.0, %v1705
    %v1707 = vpop.f32.mrf.mxu0
    %v1708 = vadd.f32 0.0, %v1707
    %1709 = vmatmul.bf16.gmra.mxu0 %v908
    %v1710 = vpop.f32.mrf.mxu0
    %v1711 = vadd.f32 0.0, %v1710
    %v1712 = vpop.f32.mrf.mxu0
    %v1713 = vadd.f32 0.0, %v1712
    %1714 = vmatmul.bf16.gmra.mxu0 %v909
    %v1715 = vpop.f32.mrf.mxu0
    %v1716 = vadd.f32 0.0, %v1715
    %v1717 = vpop.f32.mrf.mxu0
    %v1718 = vadd.f32 0.0, %v1717
    %1719 = vmatmul.bf16.gmra.mxu0 %v910
    %v1720 = vpop.f32.mrf.mxu0
    %v1721 = vadd.f32 0.0, %v1720
    %v1722 = vpop.f32.mrf.mxu0
    %v1723 = vadd.f32 0.0, %v1722
    %1724 = vmatmul.bf16.gmra.mxu0 0
    %v1725 = vpop.f32.mrf.mxu0
    %v1726 = vadd.f32 0.0, %v1725
    %v1727 = vpop.f32.mrf.mxu0
    %v1728 = vadd.f32 0.0, %v1727
    %1729 = vdwg.mxu0
    %v1730 = vadd.f32 %v1503, %v1642
    %v1731 = vadd.f32 %v1504, %v1691
    %v1732 = vadd.f32 %v1505, %v1644
    %v1733 = vadd.f32 %v1506, %v1693
    %v1734 = vadd.f32 %v1507, %v1647
    %v1735 = vadd.f32 %v1508, %v1696
    %v1736 = vadd.f32 %v1509, %v1649
    %v1737 = vadd.f32 %v1510, %v1698
    %v1738 = vadd.f32 %v1511, %v1652
    %v1739 = vadd.f32 %v1512, %v1701
    %v1740 = vadd.f32 %v1513, %v1654
    %v1741 = vadd.f32 %v1514, %v1703
    %v1742 = vadd.f32 %v1515, %v1657
    %v1743 = vadd.f32 %v1516, %v1706
    %v1744 = vadd.f32 %v1517, %v1659
    %v1745 = vadd.f32 %v1518, %v1708
    %v1746 = vadd.f32 %v1519, %v1662
    %v1747 = vadd.f32 %v1520, %v1711
    %v1748 = vadd.f32 %v1521, %v1664
    %v1749 = vadd.f32 %v1522, %v1713
    %v1750 = vadd.f32 %v1523, %v1667
    %v1751 = vadd.f32 %v1524, %v1716
    %v1752 = vadd.f32 %v1525, %v1669
    %v1753 = vadd.f32 %v1526, %v1718
    %v1754 = vadd.f32 %v1527, %v1672
    %v1755 = vadd.f32 %v1528, %v1721
    %v1756 = vadd.f32 %v1529, %v1674
    %v1757 = vadd.f32 %v1530, %v1723
    %v1758 = vadd.f32 %v1531, %v1677
    %v1759 = vadd.f32 %v1532, %v1726
    %v1760 = vadd.f32 %v1533, %v1679
    %v1761 = vadd.f32 %v1534, %v1728
    %s1762 = scalar_lea.vmem [#allocation3], 512
    %v1763 = vld [vmem:[%s1762] sm:$0xff]
    %v1764 = vld [vmem:[%s1762 + $0x8] sm:$0xff]
    %v1765 = vld [vmem:[%s1762 + $0x10] sm:$0xff]
    %v1766 = vld [vmem:[%s1762 + $0x18] sm:$0xff]
    %v1767 = vld [vmem:[%s1762 + $0x20] sm:$0xff]
    %v1768 = vld [vmem:[%s1762 + $0x28] sm:$0xff]
    %v1769 = vld [vmem:[%s1762 + $0x30] sm:$0xff]
    %v1770 = vld [vmem:[%s1762 + $0x38] sm:$0xff]
    %v1771 = vld [vmem:[%s1762 + $0x40] sm:$0xff]
    %v1772 = vld [vmem:[%s1762 + $0x48] sm:$0xff]
    %v1773 = vld [vmem:[%s1762 + $0x50] sm:$0xff]
    %v1774 = vld [vmem:[%s1762 + $0x58] sm:$0xff]
    %v1775 = vld [vmem:[%s1762 + $0x60] sm:$0xff]
    %v1776 = vld [vmem:[%s1762 + $0x68] sm:$0xff]
    %v1777 = vld [vmem:[%s1762 + $0x70] sm:$0xff]
    %v1778 = vld [vmem:[%s1762 + $0x78] sm:$0xff]
    %v1795 = vunpack.c.l.b16 %v1763
    %v1796 = vunpack.c.h.b16 %v1763
    %v1797 = vunpack.c.l.b16 %v1764
    %v1798 = vunpack.c.h.b16 %v1764
    %v1799 = vunpack.c.l.b16 %v1765
    %v1800 = vunpack.c.h.b16 %v1765
    %v1801 = vunpack.c.l.b16 %v1766
    %v1802 = vunpack.c.h.b16 %v1766
    %v1803 = vunpack.c.l.b16 %v1767
    %v1804 = vunpack.c.h.b16 %v1767
    %v1805 = vunpack.c.l.b16 %v1768
    %v1806 = vunpack.c.h.b16 %v1768
    %v1807 = vunpack.c.l.b16 %v1769
    %v1808 = vunpack.c.h.b16 %v1769
    %v1809 = vunpack.c.l.b16 %v1770
    %v1810 = vunpack.c.h.b16 %v1770
    %v1811 = vunpack.c.l.b16 %v1771
    %v1812 = vunpack.c.h.b16 %v1771
    %v1813 = vunpack.c.l.b16 %v1772
    %v1814 = vunpack.c.h.b16 %v1772
    %v1815 = vunpack.c.l.b16 %v1773
    %v1816 = vunpack.c.h.b16 %v1773
    %v1817 = vunpack.c.l.b16 %v1774
    %v1818 = vunpack.c.h.b16 %v1774
    %v1819 = vunpack.c.l.b16 %v1775
    %v1820 = vunpack.c.h.b16 %v1775
    %v1821 = vunpack.c.l.b16 %v1776
    %v1822 = vunpack.c.h.b16 %v1776
    %v1823 = vunpack.c.l.b16 %v1777
    %v1824 = vunpack.c.h.b16 %v1777
    %v1825 = vunpack.c.l.b16 %v1778
    %v1826 = vunpack.c.h.b16 %v1778
    %v1827 = vpack.c.b16 %v1797, %v1795
    %v1828 = vpack.c.b16 %v1798, %v1796
    %v1829 = vpack.c.b16 %v1801, %v1799
    %v1830 = vpack.c.b16 %v1802, %v1800
    %v1831 = vpack.c.b16 %v1805, %v1803
    %v1832 = vpack.c.b16 %v1806, %v1804
    %v1833 = vpack.c.b16 %v1809, %v1807
    %v1834 = vpack.c.b16 %v1810, %v1808
    %v1835 = vpack.c.b16 %v1813, %v1811
    %v1836 = vpack.c.b16 %v1814, %v1812
    %v1837 = vpack.c.b16 %v1817, %v1815
    %v1838 = vpack.c.b16 %v1818, %v1816
    %v1839 = vpack.c.b16 %v1821, %v1819
    %v1840 = vpack.c.b16 %v1822, %v1820
    %v1841 = vpack.c.b16 %v1825, %v1823
    %v1842 = vpack.c.b16 %v1826, %v1824
    %1859 = vmatpush.bf16.msra.mxu0 %v1841
    %1860 = vmatpush.bf16.msra.mxu0 %v1839
    %1861 = vmatpush.bf16.msra.mxu0 %v1837
    %1862 = vmatpush.bf16.msra.mxu0 %v1835
    %1863 = vmatpush.bf16.msra.mxu0 %v1833
    %1864 = vmatpush.bf16.msra.mxu0 %v1831
    %1865 = vmatpush.bf16.msra.mxu0 %v1829
    %1866 = vmatpush.bf16.msra.mxu0 %v1827
    %1867 = vmatmul.bf16.gmra.mxu0 %v905
    %v1868 = vpop.f32.mrf.mxu0
    %v1869 = vadd.f32 0.0, %v1868
    %v1870 = vpop.f32.mrf.mxu0
    %v1871 = vadd.f32 0.0, %v1870
    %1872 = vmatmul.bf16.gmra.mxu0 %v906
    %v1873 = vpop.f32.mrf.mxu0
    %v1874 = vadd.f32 0.0, %v1873
    %v1875 = vpop.f32.mrf.mxu0
    %v1876 = vadd.f32 0.0, %v1875
    %1877 = vmatmul.bf16.gmra.mxu0 %v907
    %v1878 = vpop.f32.mrf.mxu0
    %v1879 = vadd.f32 0.0, %v1878
    %v1880 = vpop.f32.mrf.mxu0
    %v1881 = vadd.f32 0.0, %v1880
    %1882 = vmatmul.bf16.gmra.mxu0 %v908
    %v1883 = vpop.f32.mrf.mxu0
    %v1884 = vadd.f32 0.0, %v1883
    %v1885 = vpop.f32.mrf.mxu0
    %v1886 = vadd.f32 0.0, %v1885
    %1887 = vmatmul.bf16.gmra.mxu0 %v909
    %v1888 = vpop.f32.mrf.mxu0
    %v1889 = vadd.f32 0.0, %v1888
    %v1890 = vpop.f32.mrf.mxu0
    %v1891 = vadd.f32 0.0, %v1890
    %1892 = vmatmul.bf16.gmra.mxu0 %v910
    %v1893 = vpop.f32.mrf.mxu0
    %v1894 = vadd.f32 0.0, %v1893
    %v1895 = vpop.f32.mrf.mxu0
    %v1896 = vadd.f32 0.0, %v1895
    %1897 = vmatmul.bf16.gmra.mxu0 0
    %v1898 = vpop.f32.mrf.mxu0
    %v1899 = vadd.f32 0.0, %v1898
    %v1900 = vpop.f32.mrf.mxu0
    %v1901 = vadd.f32 0.0, %v1900
    %1902 = vmatmul.bf16.gmra.mxu0 0
    %v1903 = vpop.f32.mrf.mxu0
    %v1904 = vadd.f32 0.0, %v1903
    %v1905 = vpop.f32.mrf.mxu0
    %v1906 = vadd.f32 0.0, %v1905
    %1907 = vdwg.mxu0
    %1908 = vmatpush.bf16.msra.mxu0 %v1842
    %1909 = vmatpush.bf16.msra.mxu0 %v1840
    %1910 = vmatpush.bf16.msra.mxu0 %v1838
    %1911 = vmatpush.bf16.msra.mxu0 %v1836
    %1912 = vmatpush.bf16.msra.mxu0 %v1834
    %1913 = vmatpush.bf16.msra.mxu0 %v1832
    %1914 = vmatpush.bf16.msra.mxu0 %v1830
    %1915 = vmatpush.bf16.msra.mxu0 %v1828
    %1916 = vmatmul.bf16.gmra.mxu0 %v905
    %v1917 = vpop.f32.mrf.mxu0
    %v1918 = vadd.f32 0.0, %v1917
    %v1919 = vpop.f32.mrf.mxu0
    %v1920 = vadd.f32 0.0, %v1919
    %1921 = vmatmul.bf16.gmra.mxu0 %v906
    %v1922 = vpop.f32.mrf.mxu0
    %v1923 = vadd.f32 0.0, %v1922
    %v1924 = vpop.f32.mrf.mxu0
    %v1925 = vadd.f32 0.0, %v1924
    %1926 = vmatmul.bf16.gmra.mxu0 %v907
    %v1927 = vpop.f32.mrf.mxu0
    %v1928 = vadd.f32 0.0, %v1927
    %v1929 = vpop.f32.mrf.mxu0
    %v1930 = vadd.f32 0.0, %v1929
    %1931 = vmatmul.bf16.gmra.mxu0 %v908
    %v1932 = vpop.f32.mrf.mxu0
    %v1933 = vadd.f32 0.0, %v1932
    %v1934 = vpop.f32.mrf.mxu0
    %v1935 = vadd.f32 0.0, %v1934
    %1936 = vmatmul.bf16.gmra.mxu0 %v909
    %v1937 = vpop.f32.mrf.mxu0
    %v1938 = vadd.f32 0.0, %v1937
    %v1939 = vpop.f32.mrf.mxu0
    %v1940 = vadd.f32 0.0, %v1939
    %1941 = vmatmul.bf16.gmra.mxu0 %v910
    %v1942 = vpop.f32.mrf.mxu0
    %v1943 = vadd.f32 0.0, %v1942
    %v1944 = vpop.f32.mrf.mxu0
    %v1945 = vadd.f32 0.0, %v1944
    %1946 = vmatmul.bf16.gmra.mxu0 0
    %v1947 = vpop.f32.mrf.mxu0
    %v1948 = vadd.f32 0.0, %v1947
    %v1949 = vpop.f32.mrf.mxu0
    %v1950 = vadd.f32 0.0, %v1949
    %1951 = vmatmul.bf16.gmra.mxu0 0
    %v1952 = vpop.f32.mrf.mxu0
    %v1953 = vadd.f32 0.0, %v1952
    %v1954 = vpop.f32.mrf.mxu0
    %v1955 = vadd.f32 0.0, %v1954
    %1956 = vdwg.mxu0
    %v1957 = vadd.f32 %v1730, %v1869
    %v1958 = vadd.f32 %v1731, %v1918
    %v1959 = vadd.f32 %v1732, %v1871
    %v1960 = vadd.f32 %v1733, %v1920
    %v1961 = vadd.f32 %v1734, %v1874
    %v1962 = vadd.f32 %v1735, %v1923
    %v1963 = vadd.f32 %v1736, %v1876
    %v1964 = vadd.f32 %v1737, %v1925
    %v1965 = vadd.f32 %v1738, %v1879
    %v1966 = vadd.f32 %v1739, %v1928
    %v1967 = vadd.f32 %v1740, %v1881
    %v1968 = vadd.f32 %v1741, %v1930
    %v1969 = vadd.f32 %v1742, %v1884
    %v1970 = vadd.f32 %v1743, %v1933
    %v1971 = vadd.f32 %v1744, %v1886
    %v1972 = vadd.f32 %v1745, %v1935
    %v1973 = vadd.f32 %v1746, %v1889
    %v1974 = vadd.f32 %v1747, %v1938
    %v1975 = vadd.f32 %v1748, %v1891
    %v1976 = vadd.f32 %v1749, %v1940
    %v1977 = vadd.f32 %v1750, %v1894
    %v1978 = vadd.f32 %v1751, %v1943
    %v1979 = vadd.f32 %v1752, %v1896
    %v1980 = vadd.f32 %v1753, %v1945
    %v1981 = vadd.f32 %v1754, %v1899
    %v1982 = vadd.f32 %v1755, %v1948
    %v1983 = vadd.f32 %v1756, %v1901
    %v1984 = vadd.f32 %v1757, %v1950
    %v1985 = vadd.f32 %v1758, %v1904
    %v1986 = vadd.f32 %v1759, %v1953
    %v1987 = vadd.f32 %v1760, %v1906
    %v1988 = vadd.f32 %v1761, %v1955
    %v1990 = vperm.slane %v853, 0
    %v1991 = vperm.slane %v853, 1
    %v1994 = vmul.f32 %v1957, %v1990
    %v1995 = vmul.f32 %v1958, %v1991
    %v1996 = vmul.f32 %v1959, %v1990
    %v1997 = vmul.f32 %v1960, %v1991
    %v1998 = vmul.f32 %v1961, %v1990
    %v1999 = vmul.f32 %v1962, %v1991
    %v2000 = vmul.f32 %v1963, %v1990
    %v2001 = vmul.f32 %v1964, %v1991
    %v2002 = vmul.f32 %v1965, %v1990
    %v2003 = vmul.f32 %v1966, %v1991
    %v2004 = vmul.f32 %v1967, %v1990
    %v2005 = vmul.f32 %v1968, %v1991
    %v2006 = vmul.f32 %v1969, %v1990
    %v2007 = vmul.f32 %v1970, %v1991
    %v2008 = vmul.f32 %v1971, %v1990
    %v2009 = vmul.f32 %v1972, %v1991
    %v2010 = vmul.f32 %v1973, %v1990
    %v2011 = vmul.f32 %v1974, %v1991
    %v2012 = vmul.f32 %v1975, %v1990
    %v2013 = vmul.f32 %v1976, %v1991
    %v2014 = vmul.f32 %v1977, %v1990
    %v2015 = vmul.f32 %v1978, %v1991
    %v2016 = vmul.f32 %v1979, %v1990
    %v2017 = vmul.f32 %v1980, %v1991
    %v2018 = vmul.f32 %v1981, %v1990
    %v2019 = vmul.f32 %v1982, %v1991
    %v2020 = vmul.f32 %v1983, %v1990
    %v2021 = vmul.f32 %v1984, %v1991
    %v2022 = vmul.f32 %v1985, %v1990
    %v2023 = vmul.f32 %v1986, %v1991
    %v2024 = vmul.f32 %v1987, %v1990
    %v2025 = vmul.f32 %v1988, %v1991
    %v2027 = vperm.slane %v854, 0
    %v2028 = vperm.slane %v854, 1
    %v2031 = vadd.f32 %v1994, %v2027
    %v2032 = vadd.f32 %v1995, %v2028
    %v2033 = vadd.f32 %v1996, %v2027
    %v2034 = vadd.f32 %v1997, %v2028
    %v2035 = vadd.f32 %v1998, %v2027
    %v2036 = vadd.f32 %v1999, %v2028
    %v2037 = vadd.f32 %v2000, %v2027
    %v2038 = vadd.f32 %v2001, %v2028
    %v2039 = vadd.f32 %v2002, %v2027
    %v2040 = vadd.f32 %v2003, %v2028
    %v2041 = vadd.f32 %v2004, %v2027
    %v2042 = vadd.f32 %v2005, %v2028
    %v2043 = vadd.f32 %v2006, %v2027
    %v2044 = vadd.f32 %v2007, %v2028
    %v2045 = vadd.f32 %v2008, %v2027
    %v2046 = vadd.f32 %v2009, %v2028
    %v2047 = vadd.f32 %v2010, %v2027
    %v2048 = vadd.f32 %v2011, %v2028
    %v2049 = vadd.f32 %v2012, %v2027
    %v2050 = vadd.f32 %v2013, %v2028
    %v2051 = vadd.f32 %v2014, %v2027
    %v2052 = vadd.f32 %v2015, %v2028
    %v2053 = vadd.f32 %v2016, %v2027
    %v2054 = vadd.f32 %v2017, %v2028
    %v2055 = vadd.f32 %v2018, %v2027
    %v2056 = vadd.f32 %v2019, %v2028
    %v2057 = vadd.f32 %v2020, %v2027
    %v2058 = vadd.f32 %v2021, %v2028
    %v2059 = vadd.f32 %v2022, %v2027
    %v2060 = vadd.f32 %v2023, %v2028
    %v2061 = vadd.f32 %v2024, %v2027
    %v2062 = vadd.f32 %v2025, %v2028
    %v2063 = vmax.f32 %v2031, 0.0
    %v2064 = vmax.f32 %v2032, 0.0
    %v2065 = vmax.f32 %v2033, 0.0
    %v2066 = vmax.f32 %v2034, 0.0
    %v2067 = vmax.f32 %v2035, 0.0
    %v2068 = vmax.f32 %v2036, 0.0
    %v2069 = vmax.f32 %v2037, 0.0
    %v2070 = vmax.f32 %v2038, 0.0
    %v2071 = vmax.f32 %v2039, 0.0
    %v2072 = vmax.f32 %v2040, 0.0
    %v2073 = vmax.f32 %v2041, 0.0
    %v2074 = vmax.f32 %v2042, 0.0
    %v2075 = vmax.f32 %v2043, 0.0
    %v2076 = vmax.f32 %v2044, 0.0
    %v2077 = vmax.f32 %v2045, 0.0
    %v2078 = vmax.f32 %v2046, 0.0
    %v2079 = vmax.f32 %v2047, 0.0
    %v2080 = vmax.f32 %v2048, 0.0
    %v2081 = vmax.f32 %v2049, 0.0
    %v2082 = vmax.f32 %v2050, 0.0
    %v2083 = vmax.f32 %v2051, 0.0
    %v2084 = vmax.f32 %v2052, 0.0
    %v2085 = vmax.f32 %v2053, 0.0
    %v2086 = vmax.f32 %v2054, 0.0
    %v2087 = vmax.f32 %v2055, 0.0
    %v2088 = vmax.f32 %v2056, 0.0
    %v2089 = vmax.f32 %v2057, 0.0
    %v2090 = vmax.f32 %v2058, 0.0
    %v2091 = vmax.f32 %v2059, 0.0
    %v2092 = vmax.f32 %v2060, 0.0
    %v2093 = vmax.f32 %v2061, 0.0
    %v2094 = vmax.f32 %v2062, 0.0
    %v2095 = vld [vmem:[%s10] sm:$0xf]
    %v2096 = vld [vmem:[%s11] sm:$0xf]
    %v2097 = vpack.c.bf16 %v2064, %v2063
    %v2098 = vpack.c.bf16 %v2066, %v2065
    %v2099 = vpack.c.bf16 %v2068, %v2067
    %v2100 = vpack.c.bf16 %v2070, %v2069
    %v2101 = vpack.c.bf16 %v2072, %v2071
    %v2102 = vpack.c.bf16 %v2074, %v2073
    %v2103 = vpack.c.bf16 %v2076, %v2075
    %v2104 = vpack.c.bf16 %v2078, %v2077
    %v2105 = vpack.c.bf16 %v2080, %v2079
    %v2106 = vpack.c.bf16 %v2082, %v2081
    %v2107 = vpack.c.bf16 %v2084, %v2083
    %v2108 = vpack.c.bf16 %v2086, %v2085
    %v2109 = vpack.c.bf16 %v2088, %v2087
    %v2110 = vpack.c.bf16 %v2090, %v2089
    %v2111 = vpack.c.bf16 %v2092, %v2091
    %v2112 = vpack.c.bf16 %v2094, %v2093
    %v2129 = vunpack.c.l.b16 %v2097
    %v2130 = vunpack.c.h.b16 %v2097
    %v2131 = vunpack.c.l.b16 %v2098
    %v2132 = vunpack.c.h.b16 %v2098
    %v2133 = vunpack.c.l.b16 %v2099
    %v2134 = vunpack.c.h.b16 %v2099
    %v2135 = vunpack.c.l.b16 %v2100
    %v2136 = vunpack.c.h.b16 %v2100
    %v2137 = vunpack.c.l.b16 %v2101
    %v2138 = vunpack.c.h.b16 %v2101
    %v2139 = vunpack.c.l.b16 %v2102
    %v2140 = vunpack.c.h.b16 %v2102
    %v2141 = vunpack.c.l.b16 %v2103
    %v2142 = vunpack.c.h.b16 %v2103
    %v2143 = vunpack.c.l.b16 %v2104
    %v2144 = vunpack.c.h.b16 %v2104
    %v2145 = vunpack.c.l.b16 %v2105
    %v2146 = vunpack.c.h.b16 %v2105
    %v2147 = vunpack.c.l.b16 %v2106
    %v2148 = vunpack.c.h.b16 %v2106
    %v2149 = vunpack.c.l.b16 %v2107
    %v2150 = vunpack.c.h.b16 %v2107
    %v2151 = vunpack.c.l.b16 %v2108
    %v2152 = vunpack.c.h.b16 %v2108
    %v2153 = vunpack.c.l.b16 %v2109
    %v2154 = vunpack.c.h.b16 %v2109
    %v2155 = vunpack.c.l.b16 %v2110
    %v2156 = vunpack.c.h.b16 %v2110
    %v2157 = vunpack.c.l.b16 %v2111
    %v2158 = vunpack.c.h.b16 %v2111
    %v2159 = vunpack.c.l.b16 %v2112
    %v2160 = vunpack.c.h.b16 %v2112
    %v2161 = vpack.c.b16 %v2131, %v2129
    %v2162 = vpack.c.b16 %v2132, %v2130
    %v2163 = vpack.c.b16 %v2135, %v2133
    %v2164 = vpack.c.b16 %v2136, %v2134
    %v2165 = vpack.c.b16 %v2139, %v2137
    %v2166 = vpack.c.b16 %v2140, %v2138
    %v2167 = vpack.c.b16 %v2143, %v2141
    %v2168 = vpack.c.b16 %v2144, %v2142
    %v2169 = vpack.c.b16 %v2147, %v2145
    %v2170 = vpack.c.b16 %v2148, %v2146
    %v2171 = vpack.c.b16 %v2151, %v2149
    %v2172 = vpack.c.b16 %v2152, %v2150
    %v2173 = vpack.c.b16 %v2155, %v2153
    %v2174 = vpack.c.b16 %v2156, %v2154
    %v2175 = vpack.c.b16 %v2159, %v2157
    %v2176 = vpack.c.b16 %v2160, %v2158
    %v2193 = vld [vmem:[%s9] sm:$0xff]
    %v2194 = vld [vmem:[%s9 + $0x8] sm:$0xff]
    %v2195 = vld [vmem:[%s9 + $0x10] sm:$0xff]
    %v2196 = vld [vmem:[%s9 + $0x18] sm:$0xff]
    %v2197 = vld [vmem:[%s9 + $0x20] sm:$0xff]
    %v2198 = vld [vmem:[%s9 + $0x28] sm:$0xff]
    %v2199 = vld [vmem:[%s9 + $0x30] sm:$0xff]
    %v2200 = vld [vmem:[%s9 + $0x38] sm:$0xff]
    %v2201 = vld [vmem:[%s9 + $0x40] sm:$0xff]
    %v2202 = vld [vmem:[%s9 + $0x48] sm:$0xff]
    %v2203 = vld [vmem:[%s9 + $0x50] sm:$0xff]
    %v2204 = vld [vmem:[%s9 + $0x58] sm:$0xff]
    %v2205 = vld [vmem:[%s9 + $0x60] sm:$0xff]
    %v2206 = vld [vmem:[%s9 + $0x68] sm:$0xff]
    %v2207 = vld [vmem:[%s9 + $0x70] sm:$0xff]
    %v2208 = vld [vmem:[%s9 + $0x78] sm:$0xff]
    %v2209 = vld [vmem:[%s9 + $0x80] sm:$0xff]
    %v2210 = vld [vmem:[%s9 + $0x88] sm:$0xff]
    %v2211 = vld [vmem:[%s9 + $0x90] sm:$0xff]
    %v2212 = vld [vmem:[%s9 + $0x98] sm:$0xff]
    %v2213 = vld [vmem:[%s9 + $0xa0] sm:$0xff]
    %v2214 = vld [vmem:[%s9 + $0xa8] sm:$0xff]
    %v2215 = vld [vmem:[%s9 + $0xb0] sm:$0xff]
    %v2216 = vld [vmem:[%s9 + $0xb8] sm:$0xff]
    %v2217 = vld [vmem:[%s9 + $0xc0] sm:$0xff]
    %v2218 = vld [vmem:[%s9 + $0xc8] sm:$0xff]
    %v2219 = vld [vmem:[%s9 + $0xd0] sm:$0xff]
    %v2220 = vld [vmem:[%s9 + $0xd8] sm:$0xff]
    %v2221 = vld [vmem:[%s9 + $0xe0] sm:$0xff]
    %v2222 = vld [vmem:[%s9 + $0xe8] sm:$0xff]
    %v2223 = vld [vmem:[%s9 + $0xf0] sm:$0xff]
    %v2224 = vld [vmem:[%s9 + $0xf8] sm:$0xff]
    %v2225 = vld [vmem:[%s9 + $0x100] sm:$0xff]
    %v2226 = vld [vmem:[%s9 + $0x108] sm:$0xff]
    %v2227 = vld [vmem:[%s9 + $0x110] sm:$0xff]
    %v2228 = vld [vmem:[%s9 + $0x118] sm:$0xff]
    %v2229 = vld [vmem:[%s9 + $0x120] sm:$0xff]
    %v2230 = vld [vmem:[%s9 + $0x128] sm:$0xff]
    %v2231 = vld [vmem:[%s9 + $0x130] sm:$0xff]
    %v2232 = vld [vmem:[%s9 + $0x138] sm:$0xff]
    %v2233 = vld [vmem:[%s9 + $0x140] sm:$0xff]
    %v2234 = vld [vmem:[%s9 + $0x148] sm:$0xff]
    %v2235 = vld [vmem:[%s9 + $0x150] sm:$0xff]
    %v2236 = vld [vmem:[%s9 + $0x158] sm:$0xff]
    %v2237 = vld [vmem:[%s9 + $0x160] sm:$0xff]
    %v2238 = vld [vmem:[%s9 + $0x168] sm:$0xff]
    %v2239 = vld [vmem:[%s9 + $0x170] sm:$0xff]
    %v2240 = vld [vmem:[%s9 + $0x178] sm:$0xff]
    %v2241 = vld [vmem:[%s9 + $0x180] sm:$0xff]
    %v2242 = vld [vmem:[%s9 + $0x188] sm:$0xff]
    %v2243 = vld [vmem:[%s9 + $0x190] sm:$0xff]
    %v2244 = vld [vmem:[%s9 + $0x198] sm:$0xff]
    %v2245 = vld [vmem:[%s9 + $0x1a0] sm:$0xff]
    %v2246 = vld [vmem:[%s9 + $0x1a8] sm:$0xff]
    %v2247 = vld [vmem:[%s9 + $0x1b0] sm:$0xff]
    %v2248 = vld [vmem:[%s9 + $0x1b8] sm:$0xff]
    %v2249 = vld [vmem:[%s9 + $0x1c0] sm:$0xff]
    %v2250 = vld [vmem:[%s9 + $0x1c8] sm:$0xff]
    %v2251 = vld [vmem:[%s9 + $0x1d0] sm:$0xff]
    %v2252 = vld [vmem:[%s9 + $0x1d8] sm:$0xff]
    %v2253 = vld [vmem:[%s9 + $0x1e0] sm:$0xff]
    %v2254 = vld [vmem:[%s9 + $0x1e8] sm:$0xff]
    %v2255 = vld [vmem:[%s9 + $0x1f0] sm:$0xff]
    %v2256 = vld [vmem:[%s9 + $0x1f8] sm:$0xff]
    %s2257 = scalar_lea.vmem %s9, 512
    %v2258 = vld [vmem:[%s2257] sm:$0xff]
    %v2259 = vld [vmem:[%s2257 + $0x8] sm:$0xff]
    %v2260 = vld [vmem:[%s2257 + $0x10] sm:$0xff]
    %v2261 = vld [vmem:[%s2257 + $0x18] sm:$0xff]
    %v2262 = vld [vmem:[%s2257 + $0x20] sm:$0xff]
    %v2263 = vld [vmem:[%s2257 + $0x28] sm:$0xff]
    %v2264 = vld [vmem:[%s2257 + $0x30] sm:$0xff]
    %v2265 = vld [vmem:[%s2257 + $0x38] sm:$0xff]
    %v2266 = vld [vmem:[%s2257 + $0x40] sm:$0xff]
    %v2267 = vld [vmem:[%s2257 + $0x48] sm:$0xff]
    %v2268 = vld [vmem:[%s2257 + $0x50] sm:$0xff]
    %v2269 = vld [vmem:[%s2257 + $0x58] sm:$0xff]
    %v2270 = vld [vmem:[%s2257 + $0x60] sm:$0xff]
    %v2271 = vld [vmem:[%s2257 + $0x68] sm:$0xff]
    %v2272 = vld [vmem:[%s2257 + $0x70] sm:$0xff]
    %v2273 = vld [vmem:[%s2257 + $0x78] sm:$0xff]
    %v2274 = vld [vmem:[%s2257 + $0x80] sm:$0xff]
    %v2275 = vld [vmem:[%s2257 + $0x88] sm:$0xff]
    %v2276 = vld [vmem:[%s2257 + $0x90] sm:$0xff]
    %v2277 = vld [vmem:[%s2257 + $0x98] sm:$0xff]
    %v2278 = vld [vmem:[%s2257 + $0xa0] sm:$0xff]
    %v2279 = vld [vmem:[%s2257 + $0xa8] sm:$0xff]
    %v2280 = vld [vmem:[%s2257 + $0xb0] sm:$0xff]
    %v2281 = vld [vmem:[%s2257 + $0xb8] sm:$0xff]
    %v2282 = vld [vmem:[%s2257 + $0xc0] sm:$0xff]
    %v2283 = vld [vmem:[%s2257 + $0xc8] sm:$0xff]
    %v2284 = vld [vmem:[%s2257 + $0xd0] sm:$0xff]
    %v2285 = vld [vmem:[%s2257 + $0xd8] sm:$0xff]
    %v2286 = vld [vmem:[%s2257 + $0xe0] sm:$0xff]
    %v2287 = vld [vmem:[%s2257 + $0xe8] sm:$0xff]
    %v2288 = vld [vmem:[%s2257 + $0xf0] sm:$0xff]
    %v2289 = vld [vmem:[%s2257 + $0xf8] sm:$0xff]
    %v2290 = vld [vmem:[%s2257 + $0x100] sm:$0xff]
    %v2291 = vld [vmem:[%s2257 + $0x108] sm:$0xff]
    %v2292 = vld [vmem:[%s2257 + $0x110] sm:$0xff]
    %v2293 = vld [vmem:[%s2257 + $0x118] sm:$0xff]
    %v2294 = vld [vmem:[%s2257 + $0x120] sm:$0xff]
    %v2295 = vld [vmem:[%s2257 + $0x128] sm:$0xff]
    %v2296 = vld [vmem:[%s2257 + $0x130] sm:$0xff]
    %v2297 = vld [vmem:[%s2257 + $0x138] sm:$0xff]
    %v2298 = vld [vmem:[%s2257 + $0x140] sm:$0xff]
    %v2299 = vld [vmem:[%s2257 + $0x148] sm:$0xff]
    %v2300 = vld [vmem:[%s2257 + $0x150] sm:$0xff]
    %v2301 = vld [vmem:[%s2257 + $0x158] sm:$0xff]
    %v2302 = vld [vmem:[%s2257 + $0x160] sm:$0xff]
    %v2303 = vld [vmem:[%s2257 + $0x168] sm:$0xff]
    %v2304 = vld [vmem:[%s2257 + $0x170] sm:$0xff]
    %v2305 = vld [vmem:[%s2257 + $0x178] sm:$0xff]
    %v2306 = vld [vmem:[%s2257 + $0x180] sm:$0xff]
    %v2307 = vld [vmem:[%s2257 + $0x188] sm:$0xff]
    %v2308 = vld [vmem:[%s2257 + $0x190] sm:$0xff]
    %v2309 = vld [vmem:[%s2257 + $0x198] sm:$0xff]
    %v2310 = vld [vmem:[%s2257 + $0x1a0] sm:$0xff]
    %v2311 = vld [vmem:[%s2257 + $0x1a8] sm:$0xff]
    %v2312 = vld [vmem:[%s2257 + $0x1b0] sm:$0xff]
    %v2313 = vld [vmem:[%s2257 + $0x1b8] sm:$0xff]
    %v2314 = vld [vmem:[%s2257 + $0x1c0] sm:$0xff]
    %v2315 = vld [vmem:[%s2257 + $0x1c8] sm:$0xff]
    %v2316 = vld [vmem:[%s2257 + $0x1d0] sm:$0xff]
    %v2317 = vld [vmem:[%s2257 + $0x1d8] sm:$0xff]
    %v2318 = vld [vmem:[%s2257 + $0x1e0] sm:$0xff]
    %v2319 = vld [vmem:[%s2257 + $0x1e8] sm:$0xff]
    %v2320 = vld [vmem:[%s2257 + $0x1f0] sm:$0xff]
    %v2321 = vld [vmem:[%s2257 + $0x1f8] sm:$0xff]
    %v2386 = vunpack.c.l.b16 %v2258
    %v2387 = vunpack.c.h.b16 %v2258
    %v2388 = vunpack.c.l.b16 %v2259
    %v2389 = vunpack.c.h.b16 %v2259
    %v2390 = vunpack.c.l.b16 %v2260
    %v2391 = vunpack.c.h.b16 %v2260
    %v2392 = vunpack.c.l.b16 %v2261
    %v2393 = vunpack.c.h.b16 %v2261
    %v2394 = vunpack.c.l.b16 %v2262
    %v2395 = vunpack.c.h.b16 %v2262
    %v2396 = vunpack.c.l.b16 %v2263
    %v2397 = vunpack.c.h.b16 %v2263
    %v2398 = vunpack.c.l.b16 %v2264
    %v2399 = vunpack.c.h.b16 %v2264
    %v2400 = vunpack.c.l.b16 %v2265
    %v2401 = vunpack.c.h.b16 %v2265
    %v2402 = vunpack.c.l.b16 %v2266
    %v2403 = vunpack.c.h.b16 %v2266
    %v2404 = vunpack.c.l.b16 %v2267
    %v2405 = vunpack.c.h.b16 %v2267
    %v2406 = vunpack.c.l.b16 %v2268
    %v2407 = vunpack.c.h.b16 %v2268
    %v2408 = vunpack.c.l.b16 %v2269
    %v2409 = vunpack.c.h.b16 %v2269
    %v2410 = vunpack.c.l.b16 %v2270
    %v2411 = vunpack.c.h.b16 %v2270
    %v2412 = vunpack.c.l.b16 %v2271
    %v2413 = vunpack.c.h.b16 %v2271
    %v2414 = vunpack.c.l.b16 %v2272
    %v2415 = vunpack.c.h.b16 %v2272
    %v2416 = vunpack.c.l.b16 %v2273
    %v2417 = vunpack.c.h.b16 %v2273
    %v2418 = vunpack.c.l.b16 %v2274
    %v2419 = vunpack.c.h.b16 %v2274
    %v2420 = vunpack.c.l.b16 %v2275
    %v2421 = vunpack.c.h.b16 %v2275
    %v2422 = vunpack.c.l.b16 %v2276
    %v2423 = vunpack.c.h.b16 %v2276
    %v2424 = vunpack.c.l.b16 %v2277
    %v2425 = vunpack.c.h.b16 %v2277
    %v2426 = vunpack.c.l.b16 %v2278
    %v2427 = vunpack.c.h.b16 %v2278
    %v2428 = vunpack.c.l.b16 %v2279
    %v2429 = vunpack.c.h.b16 %v2279
    %v2430 = vunpack.c.l.b16 %v2280
    %v2431 = vunpack.c.h.b16 %v2280
    %v2432 = vunpack.c.l.b16 %v2281
    %v2433 = vunpack.c.h.b16 %v2281
    %v2434 = vunpack.c.l.b16 %v2282
    %v2435 = vunpack.c.h.b16 %v2282
    %v2436 = vunpack.c.l.b16 %v2283
    %v2437 = vunpack.c.h.b16 %v2283
    %v2438 = vunpack.c.l.b16 %v2284
    %v2439 = vunpack.c.h.b16 %v2284
    %v2440 = vunpack.c.l.b16 %v2285
    %v2441 = vunpack.c.h.b16 %v2285
    %v2442 = vunpack.c.l.b16 %v2286
    %v2443 = vunpack.c.h.b16 %v2286
    %v2444 = vunpack.c.l.b16 %v2287
    %v2445 = vunpack.c.h.b16 %v2287
    %v2446 = vunpack.c.l.b16 %v2288
    %v2447 = vunpack.c.h.b16 %v2288
    %v2448 = vunpack.c.l.b16 %v2289
    %v2449 = vunpack.c.h.b16 %v2289
    %v2450 = vunpack.c.l.b16 %v2290
    %v2451 = vunpack.c.h.b16 %v2290
    %v2452 = vunpack.c.l.b16 %v2291
    %v2453 = vunpack.c.h.b16 %v2291
    %v2454 = vunpack.c.l.b16 %v2292
    %v2455 = vunpack.c.h.b16 %v2292
    %v2456 = vunpack.c.l.b16 %v2293
    %v2457 = vunpack.c.h.b16 %v2293
    %v2458 = vunpack.c.l.b16 %v2294
    %v2459 = vunpack.c.h.b16 %v2294
    %v2460 = vunpack.c.l.b16 %v2295
    %v2461 = vunpack.c.h.b16 %v2295
    %v2462 = vunpack.c.l.b16 %v2296
    %v2463 = vunpack.c.h.b16 %v2296
    %v2464 = vunpack.c.l.b16 %v2297
    %v2465 = vunpack.c.h.b16 %v2297
    %v2466 = vunpack.c.l.b16 %v2298
    %v2467 = vunpack.c.h.b16 %v2298
    %v2468 = vunpack.c.l.b16 %v2299
    %v2469 = vunpack.c.h.b16 %v2299
    %v2470 = vunpack.c.l.b16 %v2300
    %v2471 = vunpack.c.h.b16 %v2300
    %v2472 = vunpack.c.l.b16 %v2301
    %v2473 = vunpack.c.h.b16 %v2301
    %v2474 = vunpack.c.l.b16 %v2302
    %v2475 = vunpack.c.h.b16 %v2302
    %v2476 = vunpack.c.l.b16 %v2303
    %v2477 = vunpack.c.h.b16 %v2303
    %v2478 = vunpack.c.l.b16 %v2304
    %v2479 = vunpack.c.h.b16 %v2304
    %v2480 = vunpack.c.l.b16 %v2305
    %v2481 = vunpack.c.h.b16 %v2305
    %v2482 = vunpack.c.l.b16 %v2306
    %v2483 = vunpack.c.h.b16 %v2306
    %v2484 = vunpack.c.l.b16 %v2307
    %v2485 = vunpack.c.h.b16 %v2307
    %v2486 = vunpack.c.l.b16 %v2308
    %v2487 = vunpack.c.h.b16 %v2308
    %v2488 = vunpack.c.l.b16 %v2309
    %v2489 = vunpack.c.h.b16 %v2309
    %v2490 = vunpack.c.l.b16 %v2310
    %v2491 = vunpack.c.h.b16 %v2310
    %v2492 = vunpack.c.l.b16 %v2311
    %v2493 = vunpack.c.h.b16 %v2311
    %v2494 = vunpack.c.l.b16 %v2312
    %v2495 = vunpack.c.h.b16 %v2312
    %v2496 = vunpack.c.l.b16 %v2313
    %v2497 = vunpack.c.h.b16 %v2313
    %v2498 = vunpack.c.l.b16 %v2314
    %v2499 = vunpack.c.h.b16 %v2314
    %v2500 = vunpack.c.l.b16 %v2315
    %v2501 = vunpack.c.h.b16 %v2315
    %v2502 = vunpack.c.l.b16 %v2316
    %v2503 = vunpack.c.h.b16 %v2316
    %v2504 = vunpack.c.l.b16 %v2317
    %v2505 = vunpack.c.h.b16 %v2317
    %v2506 = vunpack.c.l.b16 %v2318
    %v2507 = vunpack.c.h.b16 %v2318
    %v2508 = vunpack.c.l.b16 %v2319
    %v2509 = vunpack.c.h.b16 %v2319
    %v2510 = vunpack.c.l.b16 %v2320
    %v2511 = vunpack.c.h.b16 %v2320
    %v2512 = vunpack.c.l.b16 %v2321
    %v2513 = vunpack.c.h.b16 %v2321
    %v2514 = vpack.c.b16 %v2390, %v2386
    %v2515 = vpack.c.b16 %v2391, %v2387
    %v2516 = vpack.c.b16 %v2392, %v2388
    %v2517 = vpack.c.b16 %v2393, %v2389
    %v2518 = vpack.c.b16 %v2398, %v2394
    %v2519 = vpack.c.b16 %v2399, %v2395
    %v2520 = vpack.c.b16 %v2400, %v2396
    %v2521 = vpack.c.b16 %v2401, %v2397
    %v2522 = vpack.c.b16 %v2406, %v2402
    %v2523 = vpack.c.b16 %v2407, %v2403
    %v2524 = vpack.c.b16 %v2408, %v2404
    %v2525 = vpack.c.b16 %v2409, %v2405
    %v2526 = vpack.c.b16 %v2414, %v2410
    %v2527 = vpack.c.b16 %v2415, %v2411
    %v2528 = vpack.c.b16 %v2416, %v2412
    %v2529 = vpack.c.b16 %v2417, %v2413
    %v2530 = vpack.c.b16 %v2422, %v2418
    %v2531 = vpack.c.b16 %v2423, %v2419
    %v2532 = vpack.c.b16 %v2424, %v2420
    %v2533 = vpack.c.b16 %v2425, %v2421
    %v2534 = vpack.c.b16 %v2430, %v2426
    %v2535 = vpack.c.b16 %v2431, %v2427
    %v2536 = vpack.c.b16 %v2432, %v2428
    %v2537 = vpack.c.b16 %v2433, %v2429
    %v2538 = vpack.c.b16 %v2438, %v2434
    %v2539 = vpack.c.b16 %v2439, %v2435
    %v2540 = vpack.c.b16 %v2440, %v2436
    %v2541 = vpack.c.b16 %v2441, %v2437
    %v2542 = vpack.c.b16 %v2446, %v2442
    %v2543 = vpack.c.b16 %v2447, %v2443
    %v2544 = vpack.c.b16 %v2448, %v2444
    %v2545 = vpack.c.b16 %v2449, %v2445
    %v2546 = vpack.c.b16 %v2454, %v2450
    %v2547 = vpack.c.b16 %v2455, %v2451
    %v2548 = vpack.c.b16 %v2456, %v2452
    %v2549 = vpack.c.b16 %v2457, %v2453
    %v2550 = vpack.c.b16 %v2462, %v2458
    %v2551 = vpack.c.b16 %v2463, %v2459
    %v2552 = vpack.c.b16 %v2464, %v2460
    %v2553 = vpack.c.b16 %v2465, %v2461
    %v2554 = vpack.c.b16 %v2470, %v2466
    %v2555 = vpack.c.b16 %v2471, %v2467
    %v2556 = vpack.c.b16 %v2472, %v2468
    %v2557 = vpack.c.b16 %v2473, %v2469
    %v2558 = vpack.c.b16 %v2478, %v2474
    %v2559 = vpack.c.b16 %v2479, %v2475
    %v2560 = vpack.c.b16 %v2480, %v2476
    %v2561 = vpack.c.b16 %v2481, %v2477
    %v2562 = vpack.c.b16 %v2486, %v2482
    %v2563 = vpack.c.b16 %v2487, %v2483
    %v2564 = vpack.c.b16 %v2488, %v2484
    %v2565 = vpack.c.b16 %v2489, %v2485
    %v2566 = vpack.c.b16 %v2494, %v2490
    %v2567 = vpack.c.b16 %v2495, %v2491
    %v2568 = vpack.c.b16 %v2496, %v2492
    %v2569 = vpack.c.b16 %v2497, %v2493
    %v2570 = vpack.c.b16 %v2502, %v2498
    %v2571 = vpack.c.b16 %v2503, %v2499
    %v2572 = vpack.c.b16 %v2504, %v2500
    %v2573 = vpack.c.b16 %v2505, %v2501
    %v2574 = vpack.c.b16 %v2510, %v2506
    %v2575 = vpack.c.b16 %v2511, %v2507
    %v2576 = vpack.c.b16 %v2512, %v2508
    %v2577 = vpack.c.b16 %v2513, %v2509
    %2642 = vmatpush.bf16.msra.mxu0 %v2542
    %2643 = vmatpush.bf16.msra.mxu0 %v2538
    %2644 = vmatpush.bf16.msra.mxu0 %v2534
    %2645 = vmatpush.bf16.msra.mxu0 %v2530
    %2646 = vmatpush.bf16.msra.mxu0 %v2526
    %2647 = vmatpush.bf16.msra.mxu0 %v2522
    %2648 = vmatpush.bf16.msra.mxu0 %v2518
    %2649 = vmatpush.bf16.msra.mxu0 %v2514
    %2650 = vmatmul.bf16.gmra.mxu0 0
    %v2651 = vpop.f32.mrf.mxu0
    %v2652 = vadd.f32 0.0, %v2651
    %v2653 = vpop.f32.mrf.mxu0
    %v2654 = vadd.f32 0.0, %v2653
    %2655 = vmatmul.bf16.gmra.mxu0 %v2161
    %v2656 = vpop.f32.mrf.mxu0
    %v2657 = vadd.f32 0.0, %v2656
    %v2658 = vpop.f32.mrf.mxu0
    %v2659 = vadd.f32 0.0, %v2658
    %2660 = vmatmul.bf16.gmra.mxu0 %v2163
    %v2661 = vpop.f32.mrf.mxu0
    %v2662 = vadd.f32 0.0, %v2661
    %v2663 = vpop.f32.mrf.mxu0
    %v2664 = vadd.f32 0.0, %v2663
    %2665 = vmatmul.bf16.gmra.mxu0 %v2165
    %v2666 = vpop.f32.mrf.mxu0
    %v2667 = vadd.f32 0.0, %v2666
    %v2668 = vpop.f32.mrf.mxu0
    %v2669 = vadd.f32 0.0, %v2668
    %2670 = vmatmul.bf16.gmra.mxu0 %v2167
    %v2671 = vpop.f32.mrf.mxu0
    %v2672 = vadd.f32 0.0, %v2671
    %v2673 = vpop.f32.mrf.mxu0
    %v2674 = vadd.f32 0.0, %v2673
    %2675 = vmatmul.bf16.gmra.mxu0 %v2169
    %v2676 = vpop.f32.mrf.mxu0
    %v2677 = vadd.f32 0.0, %v2676
    %v2678 = vpop.f32.mrf.mxu0
    %v2679 = vadd.f32 0.0, %v2678
    %2680 = vmatmul.bf16.gmra.mxu0 %v2171
    %v2681 = vpop.f32.mrf.mxu0
    %v2682 = vadd.f32 0.0, %v2681
    %v2683 = vpop.f32.mrf.mxu0
    %v2684 = vadd.f32 0.0, %v2683
    %2685 = vmatmul.bf16.gmra.mxu0 %v2173
    %v2686 = vpop.f32.mrf.mxu0
    %v2687 = vadd.f32 0.0, %v2686
    %v2688 = vpop.f32.mrf.mxu0
    %v2689 = vadd.f32 0.0, %v2688
    %2690 = vdwg.mxu0
    %2691 = vmatpush.bf16.msra.mxu0 %v2574
    %2692 = vmatpush.bf16.msra.mxu0 %v2570
    %2693 = vmatpush.bf16.msra.mxu0 %v2566
    %2694 = vmatpush.bf16.msra.mxu0 %v2562
    %2695 = vmatpush.bf16.msra.mxu0 %v2558
    %2696 = vmatpush.bf16.msra.mxu0 %v2554
    %2697 = vmatpush.bf16.msra.mxu0 %v2550
    %2698 = vmatpush.bf16.msra.mxu0 %v2546
    %2699 = vmatmul.bf16.gmra.mxu0 0
    %v2700 = vpop.f32.mrf.mxu0
    %v2701 = vadd.f32 %v2652, %v2700
    %v2702 = vpop.f32.mrf.mxu0
    %v2703 = vadd.f32 %v2654, %v2702
    %2704 = vmatmul.bf16.gmra.mxu0 %v2162
    %v2705 = vpop.f32.mrf.mxu0
    %v2706 = vadd.f32 %v2657, %v2705
    %v2707 = vpop.f32.mrf.mxu0
    %v2708 = vadd.f32 %v2659, %v2707
    %2709 = vmatmul.bf16.gmra.mxu0 %v2164
    %v2710 = vpop.f32.mrf.mxu0
    %v2711 = vadd.f32 %v2662, %v2710
    %v2712 = vpop.f32.mrf.mxu0
    %v2713 = vadd.f32 %v2664, %v2712
    %2714 = vmatmul.bf16.gmra.mxu0 %v2166
    %v2715 = vpop.f32.mrf.mxu0
    %v2716 = vadd.f32 %v2667, %v2715
    %v2717 = vpop.f32.mrf.mxu0
    %v2718 = vadd.f32 %v2669, %v2717
    %2719 = vmatmul.bf16.gmra.mxu0 %v2168
    %v2720 = vpop.f32.mrf.mxu0
    %v2721 = vadd.f32 %v2672, %v2720
    %v2722 = vpop.f32.mrf.mxu0
    %v2723 = vadd.f32 %v2674, %v2722
    %2724 = vmatmul.bf16.gmra.mxu0 %v2170
    %v2725 = vpop.f32.mrf.mxu0
    %v2726 = vadd.f32 %v2677, %v2725
    %v2727 = vpop.f32.mrf.mxu0
    %v2728 = vadd.f32 %v2679, %v2727
    %2729 = vmatmul.bf16.gmra.mxu0 %v2172
    %v2730 = vpop.f32.mrf.mxu0
    %v2731 = vadd.f32 %v2682, %v2730
    %v2732 = vpop.f32.mrf.mxu0
    %v2733 = vadd.f32 %v2684, %v2732
    %2734 = vmatmul.bf16.gmra.mxu0 %v2174
    %v2735 = vpop.f32.mrf.mxu0
    %v2736 = vadd.f32 %v2687, %v2735
    %v2737 = vpop.f32.mrf.mxu0
    %v2738 = vadd.f32 %v2689, %v2737
    %2739 = vdwg.mxu0
    %2740 = vmatpush.bf16.msra.mxu0 %v2543
    %2741 = vmatpush.bf16.msra.mxu0 %v2539
    %2742 = vmatpush.bf16.msra.mxu0 %v2535
    %2743 = vmatpush.bf16.msra.mxu0 %v2531
    %2744 = vmatpush.bf16.msra.mxu0 %v2527
    %2745 = vmatpush.bf16.msra.mxu0 %v2523
    %2746 = vmatpush.bf16.msra.mxu0 %v2519
    %2747 = vmatpush.bf16.msra.mxu0 %v2515
    %2748 = vmatmul.bf16.gmra.mxu0 0
    %v2749 = vpop.f32.mrf.mxu0
    %v2750 = vadd.f32 0.0, %v2749
    %v2751 = vpop.f32.mrf.mxu0
    %v2752 = vadd.f32 0.0, %v2751
    %2753 = vmatmul.bf16.gmra.mxu0 %v2161
    %v2754 = vpop.f32.mrf.mxu0
    %v2755 = vadd.f32 0.0, %v2754
    %v2756 = vpop.f32.mrf.mxu0
    %v2757 = vadd.f32 0.0, %v2756
    %2758 = vmatmul.bf16.gmra.mxu0 %v2163
    %v2759 = vpop.f32.mrf.mxu0
    %v2760 = vadd.f32 0.0, %v2759
    %v2761 = vpop.f32.mrf.mxu0
    %v2762 = vadd.f32 0.0, %v2761
    %2763 = vmatmul.bf16.gmra.mxu0 %v2165
    %v2764 = vpop.f32.mrf.mxu0
    %v2765 = vadd.f32 0.0, %v2764
    %v2766 = vpop.f32.mrf.mxu0
    %v2767 = vadd.f32 0.0, %v2766
    %2768 = vmatmul.bf16.gmra.mxu0 %v2167
    %v2769 = vpop.f32.mrf.mxu0
    %v2770 = vadd.f32 0.0, %v2769
    %v2771 = vpop.f32.mrf.mxu0
    %v2772 = vadd.f32 0.0, %v2771
    %2773 = vmatmul.bf16.gmra.mxu0 %v2169
    %v2774 = vpop.f32.mrf.mxu0
    %v2775 = vadd.f32 0.0, %v2774
    %v2776 = vpop.f32.mrf.mxu0
    %v2777 = vadd.f32 0.0, %v2776
    %2778 = vmatmul.bf16.gmra.mxu0 %v2171
    %v2779 = vpop.f32.mrf.mxu0
    %v2780 = vadd.f32 0.0, %v2779
    %v2781 = vpop.f32.mrf.mxu0
    %v2782 = vadd.f32 0.0, %v2781
    %2783 = vmatmul.bf16.gmra.mxu0 %v2173
    %v2784 = vpop.f32.mrf.mxu0
    %v2785 = vadd.f32 0.0, %v2784
    %v2786 = vpop.f32.mrf.mxu0
    %v2787 = vadd.f32 0.0, %v2786
    %2788 = vdwg.mxu0
    %2789 = vmatpush.bf16.msra.mxu0 %v2575
    %2790 = vmatpush.bf16.msra.mxu0 %v2571
    %2791 = vmatpush.bf16.msra.mxu0 %v2567
    %2792 = vmatpush.bf16.msra.mxu0 %v2563
    %2793 = vmatpush.bf16.msra.mxu0 %v2559
    %2794 = vmatpush.bf16.msra.mxu0 %v2555
    %2795 = vmatpush.bf16.msra.mxu0 %v2551
    %2796 = vmatpush.bf16.msra.mxu0 %v2547
    %2797 = vmatmul.bf16.gmra.mxu0 0
    %v2798 = vpop.f32.mrf.mxu0
    %v2799 = vadd.f32 %v2750, %v2798
    %v2800 = vpop.f32.mrf.mxu0
    %v2801 = vadd.f32 %v2752, %v2800
    %2802 = vmatmul.bf16.gmra.mxu0 %v2162
    %v2803 = vpop.f32.mrf.mxu0
    %v2804 = vadd.f32 %v2755, %v2803
    %v2805 = vpop.f32.mrf.mxu0
    %v2806 = vadd.f32 %v2757, %v2805
    %2807 = vmatmul.bf16.gmra.mxu0 %v2164
    %v2808 = vpop.f32.mrf.mxu0
    %v2809 = vadd.f32 %v2760, %v2808
    %v2810 = vpop.f32.mrf.mxu0
    %v2811 = vadd.f32 %v2762, %v2810
    %2812 = vmatmul.bf16.gmra.mxu0 %v2166
    %v2813 = vpop.f32.mrf.mxu0
    %v2814 = vadd.f32 %v2765, %v2813
    %v2815 = vpop.f32.mrf.mxu0
    %v2816 = vadd.f32 %v2767, %v2815
    %2817 = vmatmul.bf16.gmra.mxu0 %v2168
    %v2818 = vpop.f32.mrf.mxu0
    %v2819 = vadd.f32 %v2770, %v2818
    %v2820 = vpop.f32.mrf.mxu0
    %v2821 = vadd.f32 %v2772, %v2820
    %2822 = vmatmul.bf16.gmra.mxu0 %v2170
    %v2823 = vpop.f32.mrf.mxu0
    %v2824 = vadd.f32 %v2775, %v2823
    %v2825 = vpop.f32.mrf.mxu0
    %v2826 = vadd.f32 %v2777, %v2825
    %2827 = vmatmul.bf16.gmra.mxu0 %v2172
    %v2828 = vpop.f32.mrf.mxu0
    %v2829 = vadd.f32 %v2780, %v2828
    %v2830 = vpop.f32.mrf.mxu0
    %v2831 = vadd.f32 %v2782, %v2830
    %2832 = vmatmul.bf16.gmra.mxu0 %v2174
    %v2833 = vpop.f32.mrf.mxu0
    %v2834 = vadd.f32 %v2785, %v2833
    %v2835 = vpop.f32.mrf.mxu0
    %v2836 = vadd.f32 %v2787, %v2835
    %2837 = vdwg.mxu0
    %2838 = vmatpush.bf16.msra.mxu0 %v2544
    %2839 = vmatpush.bf16.msra.mxu0 %v2540
    %2840 = vmatpush.bf16.msra.mxu0 %v2536
    %2841 = vmatpush.bf16.msra.mxu0 %v2532
    %2842 = vmatpush.bf16.msra.mxu0 %v2528
    %2843 = vmatpush.bf16.msra.mxu0 %v2524
    %2844 = vmatpush.bf16.msra.mxu0 %v2520
    %2845 = vmatpush.bf16.msra.mxu0 %v2516
    %2846 = vmatmul.bf16.gmra.mxu0 0
    %v2847 = vpop.f32.mrf.mxu0
    %v2848 = vadd.f32 0.0, %v2847
    %v2849 = vpop.f32.mrf.mxu0
    %v2850 = vadd.f32 0.0, %v2849
    %2851 = vmatmul.bf16.gmra.mxu0 %v2161
    %v2852 = vpop.f32.mrf.mxu0
    %v2853 = vadd.f32 0.0, %v2852
    %v2854 = vpop.f32.mrf.mxu0
    %v2855 = vadd.f32 0.0, %v2854
    %2856 = vmatmul.bf16.gmra.mxu0 %v2163
    %v2857 = vpop.f32.mrf.mxu0
    %v2858 = vadd.f32 0.0, %v2857
    %v2859 = vpop.f32.mrf.mxu0
    %v2860 = vadd.f32 0.0, %v2859
    %2861 = vmatmul.bf16.gmra.mxu0 %v2165
    %v2862 = vpop.f32.mrf.mxu0
    %v2863 = vadd.f32 0.0, %v2862
    %v2864 = vpop.f32.mrf.mxu0
    %v2865 = vadd.f32 0.0, %v2864
    %2866 = vmatmul.bf16.gmra.mxu0 %v2167
    %v2867 = vpop.f32.mrf.mxu0
    %v2868 = vadd.f32 0.0, %v2867
    %v2869 = vpop.f32.mrf.mxu0
    %v2870 = vadd.f32 0.0, %v2869
    %2871 = vmatmul.bf16.gmra.mxu0 %v2169
    %v2872 = vpop.f32.mrf.mxu0
    %v2873 = vadd.f32 0.0, %v2872
    %v2874 = vpop.f32.mrf.mxu0
    %v2875 = vadd.f32 0.0, %v2874
    %2876 = vmatmul.bf16.gmra.mxu0 %v2171
    %v2877 = vpop.f32.mrf.mxu0
    %v2878 = vadd.f32 0.0, %v2877
    %v2879 = vpop.f32.mrf.mxu0
    %v2880 = vadd.f32 0.0, %v2879
    %2881 = vmatmul.bf16.gmra.mxu0 %v2173
    %v2882 = vpop.f32.mrf.mxu0
    %v2883 = vadd.f32 0.0, %v2882
    %v2884 = vpop.f32.mrf.mxu0
    %v2885 = vadd.f32 0.0, %v2884
    %2886 = vdwg.mxu0
    %2887 = vmatpush.bf16.msra.mxu0 %v2576
    %2888 = vmatpush.bf16.msra.mxu0 %v2572
    %2889 = vmatpush.bf16.msra.mxu0 %v2568
    %2890 = vmatpush.bf16.msra.mxu0 %v2564
    %2891 = vmatpush.bf16.msra.mxu0 %v2560
    %2892 = vmatpush.bf16.msra.mxu0 %v2556
    %2893 = vmatpush.bf16.msra.mxu0 %v2552
    %2894 = vmatpush.bf16.msra.mxu0 %v2548
    %2895 = vmatmul.bf16.gmra.mxu0 0
    %v2896 = vpop.f32.mrf.mxu0
    %v2897 = vadd.f32 %v2848, %v2896
    %v2898 = vpop.f32.mrf.mxu0
    %v2899 = vadd.f32 %v2850, %v2898
    %2900 = vmatmul.bf16.gmra.mxu0 %v2162
    %v2901 = vpop.f32.mrf.mxu0
    %v2902 = vadd.f32 %v2853, %v2901
    %v2903 = vpop.f32.mrf.mxu0
    %v2904 = vadd.f32 %v2855, %v2903
    %2905 = vmatmul.bf16.gmra.mxu0 %v2164
    %v2906 = vpop.f32.mrf.mxu0
    %v2907 = vadd.f32 %v2858, %v2906
    %v2908 = vpop.f32.mrf.mxu0
    %v2909 = vadd.f32 %v2860, %v2908
    %2910 = vmatmul.bf16.gmra.mxu0 %v2166
    %v2911 = vpop.f32.mrf.mxu0
    %v2912 = vadd.f32 %v2863, %v2911
    %v2913 = vpop.f32.mrf.mxu0
    %v2914 = vadd.f32 %v2865, %v2913
    %2915 = vmatmul.bf16.gmra.mxu0 %v2168
    %v2916 = vpop.f32.mrf.mxu0
    %v2917 = vadd.f32 %v2868, %v2916
    %v2918 = vpop.f32.mrf.mxu0
    %v2919 = vadd.f32 %v2870, %v2918
    %2920 = vmatmul.bf16.gmra.mxu0 %v2170
    %v2921 = vpop.f32.mrf.mxu0
    %v2922 = vadd.f32 %v2873, %v2921
    %v2923 = vpop.f32.mrf.mxu0
    %v2924 = vadd.f32 %v2875, %v2923
    %2925 = vmatmul.bf16.gmra.mxu0 %v2172
    %v2926 = vpop.f32.mrf.mxu0
    %v2927 = vadd.f32 %v2878, %v2926
    %v2928 = vpop.f32.mrf.mxu0
    %v2929 = vadd.f32 %v2880, %v2928
    %2930 = vmatmul.bf16.gmra.mxu0 %v2174
    %v2931 = vpop.f32.mrf.mxu0
    %v2932 = vadd.f32 %v2883, %v2931
    %v2933 = vpop.f32.mrf.mxu0
    %v2934 = vadd.f32 %v2885, %v2933
    %2935 = vdwg.mxu0
    %2936 = vmatpush.bf16.msra.mxu0 %v2545
    %2937 = vmatpush.bf16.msra.mxu0 %v2541
    %2938 = vmatpush.bf16.msra.mxu0 %v2537
    %2939 = vmatpush.bf16.msra.mxu0 %v2533
    %2940 = vmatpush.bf16.msra.mxu0 %v2529
    %2941 = vmatpush.bf16.msra.mxu0 %v2525
    %2942 = vmatpush.bf16.msra.mxu0 %v2521
    %2943 = vmatpush.bf16.msra.mxu0 %v2517
    %2944 = vmatmul.bf16.gmra.mxu0 0
    %v2945 = vpop.f32.mrf.mxu0
    %v2946 = vadd.f32 0.0, %v2945
    %v2947 = vpop.f32.mrf.mxu0
    %v2948 = vadd.f32 0.0, %v2947
    %2949 = vmatmul.bf16.gmra.mxu0 %v2161
    %v2950 = vpop.f32.mrf.mxu0
    %v2951 = vadd.f32 0.0, %v2950
    %v2952 = vpop.f32.mrf.mxu0
    %v2953 = vadd.f32 0.0, %v2952
    %2954 = vmatmul.bf16.gmra.mxu0 %v2163
    %v2955 = vpop.f32.mrf.mxu0
    %v2956 = vadd.f32 0.0, %v2955
    %v2957 = vpop.f32.mrf.mxu0
    %v2958 = vadd.f32 0.0, %v2957
    %2959 = vmatmul.bf16.gmra.mxu0 %v2165
    %v2960 = vpop.f32.mrf.mxu0
    %v2961 = vadd.f32 0.0, %v2960
    %v2962 = vpop.f32.mrf.mxu0
    %v2963 = vadd.f32 0.0, %v2962
    %2964 = vmatmul.bf16.gmra.mxu0 %v2167
    %v2965 = vpop.f32.mrf.mxu0
    %v2966 = vadd.f32 0.0, %v2965
    %v2967 = vpop.f32.mrf.mxu0
    %v2968 = vadd.f32 0.0, %v2967
    %2969 = vmatmul.bf16.gmra.mxu0 %v2169
    %v2970 = vpop.f32.mrf.mxu0
    %v2971 = vadd.f32 0.0, %v2970
    %v2972 = vpop.f32.mrf.mxu0
    %v2973 = vadd.f32 0.0, %v2972
    %2974 = vmatmul.bf16.gmra.mxu0 %v2171
    %v2975 = vpop.f32.mrf.mxu0
    %v2976 = vadd.f32 0.0, %v2975
    %v2977 = vpop.f32.mrf.mxu0
    %v2978 = vadd.f32 0.0, %v2977
    %2979 = vmatmul.bf16.gmra.mxu0 %v2173
    %v2980 = vpop.f32.mrf.mxu0
    %v2981 = vadd.f32 0.0, %v2980
    %v2982 = vpop.f32.mrf.mxu0
    %v2983 = vadd.f32 0.0, %v2982
    %2984 = vdwg.mxu0
    %2985 = vmatpush.bf16.msra.mxu0 %v2577
    %2986 = vmatpush.bf16.msra.mxu0 %v2573
    %2987 = vmatpush.bf16.msra.mxu0 %v2569
    %2988 = vmatpush.bf16.msra.mxu0 %v2565
    %2989 = vmatpush.bf16.msra.mxu0 %v2561
    %2990 = vmatpush.bf16.msra.mxu0 %v2557
    %2991 = vmatpush.bf16.msra.mxu0 %v2553
    %2992 = vmatpush.bf16.msra.mxu0 %v2549
    %2993 = vmatmul.bf16.gmra.mxu0 0
    %v2994 = vpop.f32.mrf.mxu0
    %v2995 = vadd.f32 %v2946, %v2994
    %v2996 = vpop.f32.mrf.mxu0
    %v2997 = vadd.f32 %v2948, %v2996
    %2998 = vmatmul.bf16.gmra.mxu0 %v2162
    %v2999 = vpop.f32.mrf.mxu0
    %v3000 = vadd.f32 %v2951, %v2999
    %v3001 = vpop.f32.mrf.mxu0
    %v3002 = vadd.f32 %v2953, %v3001
    %3003 = vmatmul.bf16.gmra.mxu0 %v2164
    %v3004 = vpop.f32.mrf.mxu0
    %v3005 = vadd.f32 %v2956, %v3004
    %v3006 = vpop.f32.mrf.mxu0
    %v3007 = vadd.f32 %v2958, %v3006
    %3008 = vmatmul.bf16.gmra.mxu0 %v2166
    %v3009 = vpop.f32.mrf.mxu0
    %v3010 = vadd.f32 %v2961, %v3009
    %v3011 = vpop.f32.mrf.mxu0
    %v3012 = vadd.f32 %v2963, %v3011
    %3013 = vmatmul.bf16.gmra.mxu0 %v2168
    %v3014 = vpop.f32.mrf.mxu0
    %v3015 = vadd.f32 %v2966, %v3014
    %v3016 = vpop.f32.mrf.mxu0
    %v3017 = vadd.f32 %v2968, %v3016
    %3018 = vmatmul.bf16.gmra.mxu0 %v2170
    %v3019 = vpop.f32.mrf.mxu0
    %v3020 = vadd.f32 %v2971, %v3019
    %v3021 = vpop.f32.mrf.mxu0
    %v3022 = vadd.f32 %v2973, %v3021
    %3023 = vmatmul.bf16.gmra.mxu0 %v2172
    %v3024 = vpop.f32.mrf.mxu0
    %v3025 = vadd.f32 %v2976, %v3024
    %v3026 = vpop.f32.mrf.mxu0
    %v3027 = vadd.f32 %v2978, %v3026
    %3028 = vmatmul.bf16.gmra.mxu0 %v2174
    %v3029 = vpop.f32.mrf.mxu0
    %v3030 = vadd.f32 %v2981, %v3029
    %v3031 = vpop.f32.mrf.mxu0
    %v3032 = vadd.f32 %v2983, %v3031
    %3033 = vdwg.mxu0
    %v3098 = vunpack.c.l.b16 %v2193
    %v3099 = vunpack.c.h.b16 %v2193
    %v3100 = vunpack.c.l.b16 %v2194
    %v3101 = vunpack.c.h.b16 %v2194
    %v3102 = vunpack.c.l.b16 %v2195
    %v3103 = vunpack.c.h.b16 %v2195
    %v3104 = vunpack.c.l.b16 %v2196
    %v3105 = vunpack.c.h.b16 %v2196
    %v3106 = vunpack.c.l.b16 %v2197
    %v3107 = vunpack.c.h.b16 %v2197
    %v3108 = vunpack.c.l.b16 %v2198
    %v3109 = vunpack.c.h.b16 %v2198
    %v3110 = vunpack.c.l.b16 %v2199
    %v3111 = vunpack.c.h.b16 %v2199
    %v3112 = vunpack.c.l.b16 %v2200
    %v3113 = vunpack.c.h.b16 %v2200
    %v3114 = vunpack.c.l.b16 %v2201
    %v3115 = vunpack.c.h.b16 %v2201
    %v3116 = vunpack.c.l.b16 %v2202
    %v3117 = vunpack.c.h.b16 %v2202
    %v3118 = vunpack.c.l.b16 %v2203
    %v3119 = vunpack.c.h.b16 %v2203
    %v3120 = vunpack.c.l.b16 %v2204
    %v3121 = vunpack.c.h.b16 %v2204
    %v3122 = vunpack.c.l.b16 %v2205
    %v3123 = vunpack.c.h.b16 %v2205
    %v3124 = vunpack.c.l.b16 %v2206
    %v3125 = vunpack.c.h.b16 %v2206
    %v3126 = vunpack.c.l.b16 %v2207
    %v3127 = vunpack.c.h.b16 %v2207
    %v3128 = vunpack.c.l.b16 %v2208
    %v3129 = vunpack.c.h.b16 %v2208
    %v3130 = vunpack.c.l.b16 %v2209
    %v3131 = vunpack.c.h.b16 %v2209
    %v3132 = vunpack.c.l.b16 %v2210
    %v3133 = vunpack.c.h.b16 %v2210
    %v3134 = vunpack.c.l.b16 %v2211
    %v3135 = vunpack.c.h.b16 %v2211
    %v3136 = vunpack.c.l.b16 %v2212
    %v3137 = vunpack.c.h.b16 %v2212
    %v3138 = vunpack.c.l.b16 %v2213
    %v3139 = vunpack.c.h.b16 %v2213
    %v3140 = vunpack.c.l.b16 %v2214
    %v3141 = vunpack.c.h.b16 %v2214
    %v3142 = vunpack.c.l.b16 %v2215
    %v3143 = vunpack.c.h.b16 %v2215
    %v3144 = vunpack.c.l.b16 %v2216
    %v3145 = vunpack.c.h.b16 %v2216
    %v3146 = vunpack.c.l.b16 %v2217
    %v3147 = vunpack.c.h.b16 %v2217
    %v3148 = vunpack.c.l.b16 %v2218
    %v3149 = vunpack.c.h.b16 %v2218
    %v3150 = vunpack.c.l.b16 %v2219
    %v3151 = vunpack.c.h.b16 %v2219
    %v3152 = vunpack.c.l.b16 %v2220
    %v3153 = vunpack.c.h.b16 %v2220
    %v3154 = vunpack.c.l.b16 %v2221
    %v3155 = vunpack.c.h.b16 %v2221
    %v3156 = vunpack.c.l.b16 %v2222
    %v3157 = vunpack.c.h.b16 %v2222
    %v3158 = vunpack.c.l.b16 %v2223
    %v3159 = vunpack.c.h.b16 %v2223
    %v3160 = vunpack.c.l.b16 %v2224
    %v3161 = vunpack.c.h.b16 %v2224
    %v3162 = vunpack.c.l.b16 %v2225
    %v3163 = vunpack.c.h.b16 %v2225
    %v3164 = vunpack.c.l.b16 %v2226
    %v3165 = vunpack.c.h.b16 %v2226
    %v3166 = vunpack.c.l.b16 %v2227
    %v3167 = vunpack.c.h.b16 %v2227
    %v3168 = vunpack.c.l.b16 %v2228
    %v3169 = vunpack.c.h.b16 %v2228
    %v3170 = vunpack.c.l.b16 %v2229
    %v3171 = vunpack.c.h.b16 %v2229
    %v3172 = vunpack.c.l.b16 %v2230
    %v3173 = vunpack.c.h.b16 %v2230
    %v3174 = vunpack.c.l.b16 %v2231
    %v3175 = vunpack.c.h.b16 %v2231
    %v3176 = vunpack.c.l.b16 %v2232
    %v3177 = vunpack.c.h.b16 %v2232
    %v3178 = vunpack.c.l.b16 %v2233
    %v3179 = vunpack.c.h.b16 %v2233
    %v3180 = vunpack.c.l.b16 %v2234
    %v3181 = vunpack.c.h.b16 %v2234
    %v3182 = vunpack.c.l.b16 %v2235
    %v3183 = vunpack.c.h.b16 %v2235
    %v3184 = vunpack.c.l.b16 %v2236
    %v3185 = vunpack.c.h.b16 %v2236
    %v3186 = vunpack.c.l.b16 %v2237
    %v3187 = vunpack.c.h.b16 %v2237
    %v3188 = vunpack.c.l.b16 %v2238
    %v3189 = vunpack.c.h.b16 %v2238
    %v3190 = vunpack.c.l.b16 %v2239
    %v3191 = vunpack.c.h.b16 %v2239
    %v3192 = vunpack.c.l.b16 %v2240
    %v3193 = vunpack.c.h.b16 %v2240
    %v3194 = vunpack.c.l.b16 %v2241
    %v3195 = vunpack.c.h.b16 %v2241
    %v3196 = vunpack.c.l.b16 %v2242
    %v3197 = vunpack.c.h.b16 %v2242
    %v3198 = vunpack.c.l.b16 %v2243
    %v3199 = vunpack.c.h.b16 %v2243
    %v3200 = vunpack.c.l.b16 %v2244
    %v3201 = vunpack.c.h.b16 %v2244
    %v3202 = vunpack.c.l.b16 %v2245
    %v3203 = vunpack.c.h.b16 %v2245
    %v3204 = vunpack.c.l.b16 %v2246
    %v3205 = vunpack.c.h.b16 %v2246
    %v3206 = vunpack.c.l.b16 %v2247
    %v3207 = vunpack.c.h.b16 %v2247
    %v3208 = vunpack.c.l.b16 %v2248
    %v3209 = vunpack.c.h.b16 %v2248
    %v3210 = vunpack.c.l.b16 %v2249
    %v3211 = vunpack.c.h.b16 %v2249
    %v3212 = vunpack.c.l.b16 %v2250
    %v3213 = vunpack.c.h.b16 %v2250
    %v3214 = vunpack.c.l.b16 %v2251
    %v3215 = vunpack.c.h.b16 %v2251
    %v3216 = vunpack.c.l.b16 %v2252
    %v3217 = vunpack.c.h.b16 %v2252
    %v3218 = vunpack.c.l.b16 %v2253
    %v3219 = vunpack.c.h.b16 %v2253
    %v3220 = vunpack.c.l.b16 %v2254
    %v3221 = vunpack.c.h.b16 %v2254
    %v3222 = vunpack.c.l.b16 %v2255
    %v3223 = vunpack.c.h.b16 %v2255
    %v3224 = vunpack.c.l.b16 %v2256
    %v3225 = vunpack.c.h.b16 %v2256
    %v3226 = vpack.c.b16 %v3102, %v3098
    %v3227 = vpack.c.b16 %v3103, %v3099
    %v3228 = vpack.c.b16 %v3104, %v3100
    %v3229 = vpack.c.b16 %v3105, %v3101
    %v3230 = vpack.c.b16 %v3110, %v3106
    %v3231 = vpack.c.b16 %v3111, %v3107
    %v3232 = vpack.c.b16 %v3112, %v3108
    %v3233 = vpack.c.b16 %v3113, %v3109
    %v3234 = vpack.c.b16 %v3118, %v3114
    %v3235 = vpack.c.b16 %v3119, %v3115
    %v3236 = vpack.c.b16 %v3120, %v3116
    %v3237 = vpack.c.b16 %v3121, %v3117
    %v3238 = vpack.c.b16 %v3126, %v3122
    %v3239 = vpack.c.b16 %v3127, %v3123
    %v3240 = vpack.c.b16 %v3128, %v3124
    %v3241 = vpack.c.b16 %v3129, %v3125
    %v3242 = vpack.c.b16 %v3134, %v3130
    %v3243 = vpack.c.b16 %v3135, %v3131
    %v3244 = vpack.c.b16 %v3136, %v3132
    %v3245 = vpack.c.b16 %v3137, %v3133
    %v3246 = vpack.c.b16 %v3142, %v3138
    %v3247 = vpack.c.b16 %v3143, %v3139
    %v3248 = vpack.c.b16 %v3144, %v3140
    %v3249 = vpack.c.b16 %v3145, %v3141
    %v3250 = vpack.c.b16 %v3150, %v3146
    %v3251 = vpack.c.b16 %v3151, %v3147
    %v3252 = vpack.c.b16 %v3152, %v3148
    %v3253 = vpack.c.b16 %v3153, %v3149
    %v3254 = vpack.c.b16 %v3158, %v3154
    %v3255 = vpack.c.b16 %v3159, %v3155
    %v3256 = vpack.c.b16 %v3160, %v3156
    %v3257 = vpack.c.b16 %v3161, %v3157
    %v3258 = vpack.c.b16 %v3166, %v3162
    %v3259 = vpack.c.b16 %v3167, %v3163
    %v3260 = vpack.c.b16 %v3168, %v3164
    %v3261 = vpack.c.b16 %v3169, %v3165
    %v3262 = vpack.c.b16 %v3174, %v3170
    %v3263 = vpack.c.b16 %v3175, %v3171
    %v3264 = vpack.c.b16 %v3176, %v3172
    %v3265 = vpack.c.b16 %v3177, %v3173
    %v3266 = vpack.c.b16 %v3182, %v3178
    %v3267 = vpack.c.b16 %v3183, %v3179
    %v3268 = vpack.c.b16 %v3184, %v3180
    %v3269 = vpack.c.b16 %v3185, %v3181
    %v3270 = vpack.c.b16 %v3190, %v3186
    %v3271 = vpack.c.b16 %v3191, %v3187
    %v3272 = vpack.c.b16 %v3192, %v3188
    %v3273 = vpack.c.b16 %v3193, %v3189
    %v3274 = vpack.c.b16 %v3198, %v3194
    %v3275 = vpack.c.b16 %v3199, %v3195
    %v3276 = vpack.c.b16 %v3200, %v3196
    %v3277 = vpack.c.b16 %v3201, %v3197
    %v3278 = vpack.c.b16 %v3206, %v3202
    %v3279 = vpack.c.b16 %v3207, %v3203
    %v3280 = vpack.c.b16 %v3208, %v3204
    %v3281 = vpack.c.b16 %v3209, %v3205
    %v3282 = vpack.c.b16 %v3214, %v3210
    %v3283 = vpack.c.b16 %v3215, %v3211
    %v3284 = vpack.c.b16 %v3216, %v3212
    %v3285 = vpack.c.b16 %v3217, %v3213
    %v3286 = vpack.c.b16 %v3222, %v3218
    %v3287 = vpack.c.b16 %v3223, %v3219
    %v3288 = vpack.c.b16 %v3224, %v3220
    %v3289 = vpack.c.b16 %v3225, %v3221
    %3354 = vmatpush.bf16.msra.mxu0 %v3254
    %3355 = vmatpush.bf16.msra.mxu0 %v3250
    %3356 = vmatpush.bf16.msra.mxu0 %v3246
    %3357 = vmatpush.bf16.msra.mxu0 %v3242
    %3358 = vmatpush.bf16.msra.mxu0 %v3238
    %3359 = vmatpush.bf16.msra.mxu0 %v3234
    %3360 = vmatpush.bf16.msra.mxu0 %v3230
    %3361 = vmatpush.bf16.msra.mxu0 %v3226
    %3362 = vmatmul.bf16.gmra.mxu0 0
    %v3363 = vpop.f32.mrf.mxu0
    %v3364 = vadd.f32 %v2701, %v3363
    %v3365 = vpop.f32.mrf.mxu0
    %v3366 = vadd.f32 %v2703, %v3365
    %3367 = vmatmul.bf16.gmra.mxu0 0
    %v3368 = vpop.f32.mrf.mxu0
    %v3369 = vadd.f32 %v2706, %v3368
    %v3370 = vpop.f32.mrf.mxu0
    %v3371 = vadd.f32 %v2708, %v3370
    %3372 = vmatmul.bf16.gmra.mxu0 %v2161
    %v3373 = vpop.f32.mrf.mxu0
    %v3374 = vadd.f32 %v2711, %v3373
    %v3375 = vpop.f32.mrf.mxu0
    %v3376 = vadd.f32 %v2713, %v3375
    %3377 = vmatmul.bf16.gmra.mxu0 %v2163
    %v3378 = vpop.f32.mrf.mxu0
    %v3379 = vadd.f32 %v2716, %v3378
    %v3380 = vpop.f32.mrf.mxu0
    %v3381 = vadd.f32 %v2718, %v3380
    %3382 = vmatmul.bf16.gmra.mxu0 %v2165
    %v3383 = vpop.f32.mrf.mxu0
    %v3384 = vadd.f32 %v2721, %v3383
    %v3385 = vpop.f32.mrf.mxu0
    %v3386 = vadd.f32 %v2723, %v3385
    %3387 = vmatmul.bf16.gmra.mxu0 %v2167
    %v3388 = vpop.f32.mrf.mxu0
    %v3389 = vadd.f32 %v2726, %v3388
    %v3390 = vpop.f32.mrf.mxu0
    %v3391 = vadd.f32 %v2728, %v3390
    %3392 = vmatmul.bf16.gmra.mxu0 %v2169
    %v3393 = vpop.f32.mrf.mxu0
    %v3394 = vadd.f32 %v2731, %v3393
    %v3395 = vpop.f32.mrf.mxu0
    %v3396 = vadd.f32 %v2733, %v3395
    %3397 = vmatmul.bf16.gmra.mxu0 %v2171
    %v3398 = vpop.f32.mrf.mxu0
    %v3399 = vadd.f32 %v2736, %v3398
    %v3400 = vpop.f32.mrf.mxu0
    %v3401 = vadd.f32 %v2738, %v3400
    %3402 = vdwg.mxu0
    %3403 = vmatpush.bf16.msra.mxu0 %v3286
    %3404 = vmatpush.bf16.msra.mxu0 %v3282
    %3405 = vmatpush.bf16.msra.mxu0 %v3278
    %3406 = vmatpush.bf16.msra.mxu0 %v3274
    %3407 = vmatpush.bf16.msra.mxu0 %v3270
    %3408 = vmatpush.bf16.msra.mxu0 %v3266
    %3409 = vmatpush.bf16.msra.mxu0 %v3262
    %3410 = vmatpush.bf16.msra.mxu0 %v3258
    %3411 = vmatmul.bf16.gmra.mxu0 0
    %v3412 = vpop.f32.mrf.mxu0
    %v3413 = vadd.f32 %v3364, %v3412
    %v3414 = vpop.f32.mrf.mxu0
    %v3415 = vadd.f32 %v3366, %v3414
    %3416 = vmatmul.bf16.gmra.mxu0 0
    %v3417 = vpop.f32.mrf.mxu0
    %v3418 = vadd.f32 %v3369, %v3417
    %v3419 = vpop.f32.mrf.mxu0
    %v3420 = vadd.f32 %v3371, %v3419
    %3421 = vmatmul.bf16.gmra.mxu0 %v2162
    %v3422 = vpop.f32.mrf.mxu0
    %v3423 = vadd.f32 %v3374, %v3422
    %v3424 = vpop.f32.mrf.mxu0
    %v3425 = vadd.f32 %v3376, %v3424
    %3426 = vmatmul.bf16.gmra.mxu0 %v2164
    %v3427 = vpop.f32.mrf.mxu0
    %v3428 = vadd.f32 %v3379, %v3427
    %v3429 = vpop.f32.mrf.mxu0
    %v3430 = vadd.f32 %v3381, %v3429
    %3431 = vmatmul.bf16.gmra.mxu0 %v2166
    %v3432 = vpop.f32.mrf.mxu0
    %v3433 = vadd.f32 %v3384, %v3432
    %v3434 = vpop.f32.mrf.mxu0
    %v3435 = vadd.f32 %v3386, %v3434
    %3436 = vmatmul.bf16.gmra.mxu0 %v2168
    %v3437 = vpop.f32.mrf.mxu0
    %v3438 = vadd.f32 %v3389, %v3437
    %v3439 = vpop.f32.mrf.mxu0
    %v3440 = vadd.f32 %v3391, %v3439
    %3441 = vmatmul.bf16.gmra.mxu0 %v2170
    %v3442 = vpop.f32.mrf.mxu0
    %v3443 = vadd.f32 %v3394, %v3442
    %v3444 = vpop.f32.mrf.mxu0
    %v3445 = vadd.f32 %v3396, %v3444
    %3446 = vmatmul.bf16.gmra.mxu0 %v2172
    %v3447 = vpop.f32.mrf.mxu0
    %v3448 = vadd.f32 %v3399, %v3447
    %v3449 = vpop.f32.mrf.mxu0
    %v3450 = vadd.f32 %v3401, %v3449
    %3451 = vdwg.mxu0
    %3452 = vmatpush.bf16.msra.mxu0 %v3255
    %3453 = vmatpush.bf16.msra.mxu0 %v3251
    %3454 = vmatpush.bf16.msra.mxu0 %v3247
    %3455 = vmatpush.bf16.msra.mxu0 %v3243
    %3456 = vmatpush.bf16.msra.mxu0 %v3239
    %3457 = vmatpush.bf16.msra.mxu0 %v3235
    %3458 = vmatpush.bf16.msra.mxu0 %v3231
    %3459 = vmatpush.bf16.msra.mxu0 %v3227
    %3460 = vmatmul.bf16.gmra.mxu0 0
    %v3461 = vpop.f32.mrf.mxu0
    %v3462 = vadd.f32 %v2799, %v3461
    %v3463 = vpop.f32.mrf.mxu0
    %v3464 = vadd.f32 %v2801, %v3463
    %3465 = vmatmul.bf16.gmra.mxu0 0
    %v3466 = vpop.f32.mrf.mxu0
    %v3467 = vadd.f32 %v2804, %v3466
    %v3468 = vpop.f32.mrf.mxu0
    %v3469 = vadd.f32 %v2806, %v3468
    %3470 = vmatmul.bf16.gmra.mxu0 %v2161
    %v3471 = vpop.f32.mrf.mxu0
    %v3472 = vadd.f32 %v2809, %v3471
    %v3473 = vpop.f32.mrf.mxu0
    %v3474 = vadd.f32 %v2811, %v3473
    %3475 = vmatmul.bf16.gmra.mxu0 %v2163
    %v3476 = vpop.f32.mrf.mxu0
    %v3477 = vadd.f32 %v2814, %v3476
    %v3478 = vpop.f32.mrf.mxu0
    %v3479 = vadd.f32 %v2816, %v3478
    %3480 = vmatmul.bf16.gmra.mxu0 %v2165
    %v3481 = vpop.f32.mrf.mxu0
    %v3482 = vadd.f32 %v2819, %v3481
    %v3483 = vpop.f32.mrf.mxu0
    %v3484 = vadd.f32 %v2821, %v3483
    %3485 = vmatmul.bf16.gmra.mxu0 %v2167
    %v3486 = vpop.f32.mrf.mxu0
    %v3487 = vadd.f32 %v2824, %v3486
    %v3488 = vpop.f32.mrf.mxu0
    %v3489 = vadd.f32 %v2826, %v3488
    %3490 = vmatmul.bf16.gmra.mxu0 %v2169
    %v3491 = vpop.f32.mrf.mxu0
    %v3492 = vadd.f32 %v2829, %v3491
    %v3493 = vpop.f32.mrf.mxu0
    %v3494 = vadd.f32 %v2831, %v3493
    %3495 = vmatmul.bf16.gmra.mxu0 %v2171
    %v3496 = vpop.f32.mrf.mxu0
    %v3497 = vadd.f32 %v2834, %v3496
    %v3498 = vpop.f32.mrf.mxu0
    %v3499 = vadd.f32 %v2836, %v3498
    %3500 = vdwg.mxu0
    %3501 = vmatpush.bf16.msra.mxu0 %v3287
    %3502 = vmatpush.bf16.msra.mxu0 %v3283
    %3503 = vmatpush.bf16.msra.mxu0 %v3279
    %3504 = vmatpush.bf16.msra.mxu0 %v3275
    %3505 = vmatpush.bf16.msra.mxu0 %v3271
    %3506 = vmatpush.bf16.msra.mxu0 %v3267
    %3507 = vmatpush.bf16.msra.mxu0 %v3263
    %3508 = vmatpush.bf16.msra.mxu0 %v3259
    %3509 = vmatmul.bf16.gmra.mxu0 0
    %v3510 = vpop.f32.mrf.mxu0
    %v3511 = vadd.f32 %v3462, %v3510
    %v3512 = vpop.f32.mrf.mxu0
    %v3513 = vadd.f32 %v3464, %v3512
    %3514 = vmatmul.bf16.gmra.mxu0 0
    %v3515 = vpop.f32.mrf.mxu0
    %v3516 = vadd.f32 %v3467, %v3515
    %v3517 = vpop.f32.mrf.mxu0
    %v3518 = vadd.f32 %v3469, %v3517
    %3519 = vmatmul.bf16.gmra.mxu0 %v2162
    %v3520 = vpop.f32.mrf.mxu0
    %v3521 = vadd.f32 %v3472, %v3520
    %v3522 = vpop.f32.mrf.mxu0
    %v3523 = vadd.f32 %v3474, %v3522
    %3524 = vmatmul.bf16.gmra.mxu0 %v2164
    %v3525 = vpop.f32.mrf.mxu0
    %v3526 = vadd.f32 %v3477, %v3525
    %v3527 = vpop.f32.mrf.mxu0
    %v3528 = vadd.f32 %v3479, %v3527
    %3529 = vmatmul.bf16.gmra.mxu0 %v2166
    %v3530 = vpop.f32.mrf.mxu0
    %v3531 = vadd.f32 %v3482, %v3530
    %v3532 = vpop.f32.mrf.mxu0
    %v3533 = vadd.f32 %v3484, %v3532
    %3534 = vmatmul.bf16.gmra.mxu0 %v2168
    %v3535 = vpop.f32.mrf.mxu0
    %v3536 = vadd.f32 %v3487, %v3535
    %v3537 = vpop.f32.mrf.mxu0
    %v3538 = vadd.f32 %v3489, %v3537
    %3539 = vmatmul.bf16.gmra.mxu0 %v2170
    %v3540 = vpop.f32.mrf.mxu0
    %v3541 = vadd.f32 %v3492, %v3540
    %v3542 = vpop.f32.mrf.mxu0
    %v3543 = vadd.f32 %v3494, %v3542
    %3544 = vmatmul.bf16.gmra.mxu0 %v2172
    %v3545 = vpop.f32.mrf.mxu0
    %v3546 = vadd.f32 %v3497, %v3545
    %v3547 = vpop.f32.mrf.mxu0
    %v3548 = vadd.f32 %v3499, %v3547
    %3549 = vdwg.mxu0
    %3550 = vmatpush.bf16.msra.mxu0 %v3256
    %3551 = vmatpush.bf16.msra.mxu0 %v3252
    %3552 = vmatpush.bf16.msra.mxu0 %v3248
    %3553 = vmatpush.bf16.msra.mxu0 %v3244
    %3554 = vmatpush.bf16.msra.mxu0 %v3240
    %3555 = vmatpush.bf16.msra.mxu0 %v3236
    %3556 = vmatpush.bf16.msra.mxu0 %v3232
    %3557 = vmatpush.bf16.msra.mxu0 %v3228
    %3558 = vmatmul.bf16.gmra.mxu0 0
    %v3559 = vpop.f32.mrf.mxu0
    %v3560 = vadd.f32 %v2897, %v3559
    %v3561 = vpop.f32.mrf.mxu0
    %v3562 = vadd.f32 %v2899, %v3561
    %3563 = vmatmul.bf16.gmra.mxu0 0
    %v3564 = vpop.f32.mrf.mxu0
    %v3565 = vadd.f32 %v2902, %v3564
    %v3566 = vpop.f32.mrf.mxu0
    %v3567 = vadd.f32 %v2904, %v3566
    %3568 = vmatmul.bf16.gmra.mxu0 %v2161
    %v3569 = vpop.f32.mrf.mxu0
    %v3570 = vadd.f32 %v2907, %v3569
    %v3571 = vpop.f32.mrf.mxu0
    %v3572 = vadd.f32 %v2909, %v3571
    %3573 = vmatmul.bf16.gmra.mxu0 %v2163
    %v3574 = vpop.f32.mrf.mxu0
    %v3575 = vadd.f32 %v2912, %v3574
    %v3576 = vpop.f32.mrf.mxu0
    %v3577 = vadd.f32 %v2914, %v3576
    %3578 = vmatmul.bf16.gmra.mxu0 %v2165
    %v3579 = vpop.f32.mrf.mxu0
    %v3580 = vadd.f32 %v2917, %v3579
    %v3581 = vpop.f32.mrf.mxu0
    %v3582 = vadd.f32 %v2919, %v3581
    %3583 = vmatmul.bf16.gmra.mxu0 %v2167
    %v3584 = vpop.f32.mrf.mxu0
    %v3585 = vadd.f32 %v2922, %v3584
    %v3586 = vpop.f32.mrf.mxu0
    %v3587 = vadd.f32 %v2924, %v3586
    %3588 = vmatmul.bf16.gmra.mxu0 %v2169
    %v3589 = vpop.f32.mrf.mxu0
    %v3590 = vadd.f32 %v2927, %v3589
    %v3591 = vpop.f32.mrf.mxu0
    %v3592 = vadd.f32 %v2929, %v3591
    %3593 = vmatmul.bf16.gmra.mxu0 %v2171
    %v3594 = vpop.f32.mrf.mxu0
    %v3595 = vadd.f32 %v2932, %v3594
    %v3596 = vpop.f32.mrf.mxu0
    %v3597 = vadd.f32 %v2934, %v3596
    %3598 = vdwg.mxu0
    %3599 = vmatpush.bf16.msra.mxu0 %v3288
    %3600 = vmatpush.bf16.msra.mxu0 %v3284
    %3601 = vmatpush.bf16.msra.mxu0 %v3280
    %3602 = vmatpush.bf16.msra.mxu0 %v3276
    %3603 = vmatpush.bf16.msra.mxu0 %v3272
    %3604 = vmatpush.bf16.msra.mxu0 %v3268
    %3605 = vmatpush.bf16.msra.mxu0 %v3264
    %3606 = vmatpush.bf16.msra.mxu0 %v3260
    %3607 = vmatmul.bf16.gmra.mxu0 0
    %v3608 = vpop.f32.mrf.mxu0
    %v3609 = vadd.f32 %v3560, %v3608
    %v3610 = vpop.f32.mrf.mxu0
    %v3611 = vadd.f32 %v3562, %v3610
    %3612 = vmatmul.bf16.gmra.mxu0 0
    %v3613 = vpop.f32.mrf.mxu0
    %v3614 = vadd.f32 %v3565, %v3613
    %v3615 = vpop.f32.mrf.mxu0
    %v3616 = vadd.f32 %v3567, %v3615
    %3617 = vmatmul.bf16.gmra.mxu0 %v2162
    %v3618 = vpop.f32.mrf.mxu0
    %v3619 = vadd.f32 %v3570, %v3618
    %v3620 = vpop.f32.mrf.mxu0
    %v3621 = vadd.f32 %v3572, %v3620
    %3622 = vmatmul.bf16.gmra.mxu0 %v2164
    %v3623 = vpop.f32.mrf.mxu0
    %v3624 = vadd.f32 %v3575, %v3623
    %v3625 = vpop.f32.mrf.mxu0
    %v3626 = vadd.f32 %v3577, %v3625
    %3627 = vmatmul.bf16.gmra.mxu0 %v2166
    %v3628 = vpop.f32.mrf.mxu0
    %v3629 = vadd.f32 %v3580, %v3628
    %v3630 = vpop.f32.mrf.mxu0
    %v3631 = vadd.f32 %v3582, %v3630
    %3632 = vmatmul.bf16.gmra.mxu0 %v2168
    %v3633 = vpop.f32.mrf.mxu0
    %v3634 = vadd.f32 %v3585, %v3633
    %v3635 = vpop.f32.mrf.mxu0
    %v3636 = vadd.f32 %v3587, %v3635
    %3637 = vmatmul.bf16.gmra.mxu0 %v2170
    %v3638 = vpop.f32.mrf.mxu0
    %v3639 = vadd.f32 %v3590, %v3638
    %v3640 = vpop.f32.mrf.mxu0
    %v3641 = vadd.f32 %v3592, %v3640
    %3642 = vmatmul.bf16.gmra.mxu0 %v2172
    %v3643 = vpop.f32.mrf.mxu0
    %v3644 = vadd.f32 %v3595, %v3643
    %v3645 = vpop.f32.mrf.mxu0
    %v3646 = vadd.f32 %v3597, %v3645
    %3647 = vdwg.mxu0
    %3648 = vmatpush.bf16.msra.mxu0 %v3257
    %3649 = vmatpush.bf16.msra.mxu0 %v3253
    %3650 = vmatpush.bf16.msra.mxu0 %v3249
    %3651 = vmatpush.bf16.msra.mxu0 %v3245
    %3652 = vmatpush.bf16.msra.mxu0 %v3241
    %3653 = vmatpush.bf16.msra.mxu0 %v3237
    %3654 = vmatpush.bf16.msra.mxu0 %v3233
    %3655 = vmatpush.bf16.msra.mxu0 %v3229
    %3656 = vmatmul.bf16.gmra.mxu0 0
    %v3657 = vpop.f32.mrf.mxu0
    %v3658 = vadd.f32 %v2995, %v3657
    %v3659 = vpop.f32.mrf.mxu0
    %v3660 = vadd.f32 %v2997, %v3659
    %3661 = vmatmul.bf16.gmra.mxu0 0
    %v3662 = vpop.f32.mrf.mxu0
    %v3663 = vadd.f32 %v3000, %v3662
    %v3664 = vpop.f32.mrf.mxu0
    %v3665 = vadd.f32 %v3002, %v3664
    %3666 = vmatmul.bf16.gmra.mxu0 %v2161
    %v3667 = vpop.f32.mrf.mxu0
    %v3668 = vadd.f32 %v3005, %v3667
    %v3669 = vpop.f32.mrf.mxu0
    %v3670 = vadd.f32 %v3007, %v3669
    %3671 = vmatmul.bf16.gmra.mxu0 %v2163
    %v3672 = vpop.f32.mrf.mxu0
    %v3673 = vadd.f32 %v3010, %v3672
    %v3674 = vpop.f32.mrf.mxu0
    %v3675 = vadd.f32 %v3012, %v3674
    %3676 = vmatmul.bf16.gmra.mxu0 %v2165
    %v3677 = vpop.f32.mrf.mxu0
    %v3678 = vadd.f32 %v3015, %v3677
    %v3679 = vpop.f32.mrf.mxu0
    %v3680 = vadd.f32 %v3017, %v3679
    %3681 = vmatmul.bf16.gmra.mxu0 %v2167
    %v3682 = vpop.f32.mrf.mxu0
    %v3683 = vadd.f32 %v3020, %v3682
    %v3684 = vpop.f32.mrf.mxu0
    %v3685 = vadd.f32 %v3022, %v3684
    %3686 = vmatmul.bf16.gmra.mxu0 %v2169
    %v3687 = vpop.f32.mrf.mxu0
    %v3688 = vadd.f32 %v3025, %v3687
    %v3689 = vpop.f32.mrf.mxu0
    %v3690 = vadd.f32 %v3027, %v3689
    %3691 = vmatmul.bf16.gmra.mxu0 %v2171
    %v3692 = vpop.f32.mrf.mxu0
    %v3693 = vadd.f32 %v3030, %v3692
    %v3694 = vpop.f32.mrf.mxu0
    %v3695 = vadd.f32 %v3032, %v3694
    %3696 = vdwg.mxu0
    %3697 = vmatpush.bf16.msra.mxu0 %v3289
    %3698 = vmatpush.bf16.msra.mxu0 %v3285
    %3699 = vmatpush.bf16.msra.mxu0 %v3281
    %3700 = vmatpush.bf16.msra.mxu0 %v3277
    %3701 = vmatpush.bf16.msra.mxu0 %v3273
    %3702 = vmatpush.bf16.msra.mxu0 %v3269
    %3703 = vmatpush.bf16.msra.mxu0 %v3265
    %3704 = vmatpush.bf16.msra.mxu0 %v3261
    %3705 = vmatmul.bf16.gmra.mxu0 0
    %v3706 = vpop.f32.mrf.mxu0
    %v3707 = vadd.f32 %v3658, %v3706
    %v3708 = vpop.f32.mrf.mxu0
    %v3709 = vadd.f32 %v3660, %v3708
    %3710 = vmatmul.bf16.gmra.mxu0 0
    %v3711 = vpop.f32.mrf.mxu0
    %v3712 = vadd.f32 %v3663, %v3711
    %v3713 = vpop.f32.mrf.mxu0
    %v3714 = vadd.f32 %v3665, %v3713
    %3715 = vmatmul.bf16.gmra.mxu0 %v2162
    %v3716 = vpop.f32.mrf.mxu0
    %v3717 = vadd.f32 %v3668, %v3716
    %v3718 = vpop.f32.mrf.mxu0
    %v3719 = vadd.f32 %v3670, %v3718
    %3720 = vmatmul.bf16.gmra.mxu0 %v2164
    %v3721 = vpop.f32.mrf.mxu0
    %v3722 = vadd.f32 %v3673, %v3721
    %v3723 = vpop.f32.mrf.mxu0
    %v3724 = vadd.f32 %v3675, %v3723
    %3725 = vmatmul.bf16.gmra.mxu0 %v2166
    %v3726 = vpop.f32.mrf.mxu0
    %v3727 = vadd.f32 %v3678, %v3726
    %v3728 = vpop.f32.mrf.mxu0
    %v3729 = vadd.f32 %v3680, %v3728
    %3730 = vmatmul.bf16.gmra.mxu0 %v2168
    %v3731 = vpop.f32.mrf.mxu0
    %v3732 = vadd.f32 %v3683, %v3731
    %v3733 = vpop.f32.mrf.mxu0
    %v3734 = vadd.f32 %v3685, %v3733
    %3735 = vmatmul.bf16.gmra.mxu0 %v2170
    %v3736 = vpop.f32.mrf.mxu0
    %v3737 = vadd.f32 %v3688, %v3736
    %v3738 = vpop.f32.mrf.mxu0
    %v3739 = vadd.f32 %v3690, %v3738
    %3740 = vmatmul.bf16.gmra.mxu0 %v2172
    %v3741 = vpop.f32.mrf.mxu0
    %v3742 = vadd.f32 %v3693, %v3741
    %v3743 = vpop.f32.mrf.mxu0
    %v3744 = vadd.f32 %v3695, %v3743
    %3745 = vdwg.mxu0
    %s3746 = scalar_lea.vmem %s9, 1024
    %v3747 = vld [vmem:[%s3746] sm:$0xff]
    %v3748 = vld [vmem:[%s3746 + $0x8] sm:$0xff]
    %v3749 = vld [vmem:[%s3746 + $0x10] sm:$0xff]
    %v3750 = vld [vmem:[%s3746 + $0x18] sm:$0xff]
    %v3751 = vld [vmem:[%s3746 + $0x20] sm:$0xff]
    %v3752 = vld [vmem:[%s3746 + $0x28] sm:$0xff]
    %v3753 = vld [vmem:[%s3746 + $0x30] sm:$0xff]
    %v3754 = vld [vmem:[%s3746 + $0x38] sm:$0xff]
    %v3755 = vld [vmem:[%s3746 + $0x40] sm:$0xff]
    %v3756 = vld [vmem:[%s3746 + $0x48] sm:$0xff]
    %v3757 = vld [vmem:[%s3746 + $0x50] sm:$0xff]
    %v3758 = vld [vmem:[%s3746 + $0x58] sm:$0xff]
    %v3759 = vld [vmem:[%s3746 + $0x60] sm:$0xff]
    %v3760 = vld [vmem:[%s3746 + $0x68] sm:$0xff]
    %v3761 = vld [vmem:[%s3746 + $0x70] sm:$0xff]
    %v3762 = vld [vmem:[%s3746 + $0x78] sm:$0xff]
    %v3763 = vld [vmem:[%s3746 + $0x80] sm:$0xff]
    %v3764 = vld [vmem:[%s3746 + $0x88] sm:$0xff]
    %v3765 = vld [vmem:[%s3746 + $0x90] sm:$0xff]
    %v3766 = vld [vmem:[%s3746 + $0x98] sm:$0xff]
    %v3767 = vld [vmem:[%s3746 + $0xa0] sm:$0xff]
    %v3768 = vld [vmem:[%s3746 + $0xa8] sm:$0xff]
    %v3769 = vld [vmem:[%s3746 + $0xb0] sm:$0xff]
    %v3770 = vld [vmem:[%s3746 + $0xb8] sm:$0xff]
    %v3771 = vld [vmem:[%s3746 + $0xc0] sm:$0xff]
    %v3772 = vld [vmem:[%s3746 + $0xc8] sm:$0xff]
    %v3773 = vld [vmem:[%s3746 + $0xd0] sm:$0xff]
    %v3774 = vld [vmem:[%s3746 + $0xd8] sm:$0xff]
    %v3775 = vld [vmem:[%s3746 + $0xe0] sm:$0xff]
    %v3776 = vld [vmem:[%s3746 + $0xe8] sm:$0xff]
    %v3777 = vld [vmem:[%s3746 + $0xf0] sm:$0xff]
    %v3778 = vld [vmem:[%s3746 + $0xf8] sm:$0xff]
    %v3779 = vld [vmem:[%s3746 + $0x100] sm:$0xff]
    %v3780 = vld [vmem:[%s3746 + $0x108] sm:$0xff]
    %v3781 = vld [vmem:[%s3746 + $0x110] sm:$0xff]
    %v3782 = vld [vmem:[%s3746 + $0x118] sm:$0xff]
    %v3783 = vld [vmem:[%s3746 + $0x120] sm:$0xff]
    %v3784 = vld [vmem:[%s3746 + $0x128] sm:$0xff]
    %v3785 = vld [vmem:[%s3746 + $0x130] sm:$0xff]
    %v3786 = vld [vmem:[%s3746 + $0x138] sm:$0xff]
    %v3787 = vld [vmem:[%s3746 + $0x140] sm:$0xff]
    %v3788 = vld [vmem:[%s3746 + $0x148] sm:$0xff]
    %v3789 = vld [vmem:[%s3746 + $0x150] sm:$0xff]
    %v3790 = vld [vmem:[%s3746 + $0x158] sm:$0xff]
    %v3791 = vld [vmem:[%s3746 + $0x160] sm:$0xff]
    %v3792 = vld [vmem:[%s3746 + $0x168] sm:$0xff]
    %v3793 = vld [vmem:[%s3746 + $0x170] sm:$0xff]
    %v3794 = vld [vmem:[%s3746 + $0x178] sm:$0xff]
    %v3795 = vld [vmem:[%s3746 + $0x180] sm:$0xff]
    %v3796 = vld [vmem:[%s3746 + $0x188] sm:$0xff]
    %v3797 = vld [vmem:[%s3746 + $0x190] sm:$0xff]
    %v3798 = vld [vmem:[%s3746 + $0x198] sm:$0xff]
    %v3799 = vld [vmem:[%s3746 + $0x1a0] sm:$0xff]
    %v3800 = vld [vmem:[%s3746 + $0x1a8] sm:$0xff]
    %v3801 = vld [vmem:[%s3746 + $0x1b0] sm:$0xff]
    %v3802 = vld [vmem:[%s3746 + $0x1b8] sm:$0xff]
    %v3803 = vld [vmem:[%s3746 + $0x1c0] sm:$0xff]
    %v3804 = vld [vmem:[%s3746 + $0x1c8] sm:$0xff]
    %v3805 = vld [vmem:[%s3746 + $0x1d0] sm:$0xff]
    %v3806 = vld [vmem:[%s3746 + $0x1d8] sm:$0xff]
    %v3807 = vld [vmem:[%s3746 + $0x1e0] sm:$0xff]
    %v3808 = vld [vmem:[%s3746 + $0x1e8] sm:$0xff]
    %v3809 = vld [vmem:[%s3746 + $0x1f0] sm:$0xff]
    %v3810 = vld [vmem:[%s3746 + $0x1f8] sm:$0xff]
    %v3875 = vunpack.c.l.b16 %v3747
    %v3876 = vunpack.c.h.b16 %v3747
    %v3877 = vunpack.c.l.b16 %v3748
    %v3878 = vunpack.c.h.b16 %v3748
    %v3879 = vunpack.c.l.b16 %v3749
    %v3880 = vunpack.c.h.b16 %v3749
    %v3881 = vunpack.c.l.b16 %v3750
    %v3882 = vunpack.c.h.b16 %v3750
    %v3883 = vunpack.c.l.b16 %v3751
    %v3884 = vunpack.c.h.b16 %v3751
    %v3885 = vunpack.c.l.b16 %v3752
    %v3886 = vunpack.c.h.b16 %v3752
    %v3887 = vunpack.c.l.b16 %v3753
    %v3888 = vunpack.c.h.b16 %v3753
    %v3889 = vunpack.c.l.b16 %v3754
    %v3890 = vunpack.c.h.b16 %v3754
    %v3891 = vunpack.c.l.b16 %v3755
    %v3892 = vunpack.c.h.b16 %v3755
    %v3893 = vunpack.c.l.b16 %v3756
    %v3894 = vunpack.c.h.b16 %v3756
    %v3895 = vunpack.c.l.b16 %v3757
    %v3896 = vunpack.c.h.b16 %v3757
    %v3897 = vunpack.c.l.b16 %v3758
    %v3898 = vunpack.c.h.b16 %v3758
    %v3899 = vunpack.c.l.b16 %v3759
    %v3900 = vunpack.c.h.b16 %v3759
    %v3901 = vunpack.c.l.b16 %v3760
    %v3902 = vunpack.c.h.b16 %v3760
    %v3903 = vunpack.c.l.b16 %v3761
    %v3904 = vunpack.c.h.b16 %v3761
    %v3905 = vunpack.c.l.b16 %v3762
    %v3906 = vunpack.c.h.b16 %v3762
    %v3907 = vunpack.c.l.b16 %v3763
    %v3908 = vunpack.c.h.b16 %v3763
    %v3909 = vunpack.c.l.b16 %v3764
    %v3910 = vunpack.c.h.b16 %v3764
    %v3911 = vunpack.c.l.b16 %v3765
    %v3912 = vunpack.c.h.b16 %v3765
    %v3913 = vunpack.c.l.b16 %v3766
    %v3914 = vunpack.c.h.b16 %v3766
    %v3915 = vunpack.c.l.b16 %v3767
    %v3916 = vunpack.c.h.b16 %v3767
    %v3917 = vunpack.c.l.b16 %v3768
    %v3918 = vunpack.c.h.b16 %v3768
    %v3919 = vunpack.c.l.b16 %v3769
    %v3920 = vunpack.c.h.b16 %v3769
    %v3921 = vunpack.c.l.b16 %v3770
    %v3922 = vunpack.c.h.b16 %v3770
    %v3923 = vunpack.c.l.b16 %v3771
    %v3924 = vunpack.c.h.b16 %v3771
    %v3925 = vunpack.c.l.b16 %v3772
    %v3926 = vunpack.c.h.b16 %v3772
    %v3927 = vunpack.c.l.b16 %v3773
    %v3928 = vunpack.c.h.b16 %v3773
    %v3929 = vunpack.c.l.b16 %v3774
    %v3930 = vunpack.c.h.b16 %v3774
    %v3931 = vunpack.c.l.b16 %v3775
    %v3932 = vunpack.c.h.b16 %v3775
    %v3933 = vunpack.c.l.b16 %v3776
    %v3934 = vunpack.c.h.b16 %v3776
    %v3935 = vunpack.c.l.b16 %v3777
    %v3936 = vunpack.c.h.b16 %v3777
    %v3937 = vunpack.c.l.b16 %v3778
    %v3938 = vunpack.c.h.b16 %v3778
    %v3939 = vunpack.c.l.b16 %v3779
    %v3940 = vunpack.c.h.b16 %v3779
    %v3941 = vunpack.c.l.b16 %v3780
    %v3942 = vunpack.c.h.b16 %v3780
    %v3943 = vunpack.c.l.b16 %v3781
    %v3944 = vunpack.c.h.b16 %v3781
    %v3945 = vunpack.c.l.b16 %v3782
    %v3946 = vunpack.c.h.b16 %v3782
    %v3947 = vunpack.c.l.b16 %v3783
    %v3948 = vunpack.c.h.b16 %v3783
    %v3949 = vunpack.c.l.b16 %v3784
    %v3950 = vunpack.c.h.b16 %v3784
    %v3951 = vunpack.c.l.b16 %v3785
    %v3952 = vunpack.c.h.b16 %v3785
    %v3953 = vunpack.c.l.b16 %v3786
    %v3954 = vunpack.c.h.b16 %v3786
    %v3955 = vunpack.c.l.b16 %v3787
    %v3956 = vunpack.c.h.b16 %v3787
    %v3957 = vunpack.c.l.b16 %v3788
    %v3958 = vunpack.c.h.b16 %v3788
    %v3959 = vunpack.c.l.b16 %v3789
    %v3960 = vunpack.c.h.b16 %v3789
    %v3961 = vunpack.c.l.b16 %v3790
    %v3962 = vunpack.c.h.b16 %v3790
    %v3963 = vunpack.c.l.b16 %v3791
    %v3964 = vunpack.c.h.b16 %v3791
    %v3965 = vunpack.c.l.b16 %v3792
    %v3966 = vunpack.c.h.b16 %v3792
    %v3967 = vunpack.c.l.b16 %v3793
    %v3968 = vunpack.c.h.b16 %v3793
    %v3969 = vunpack.c.l.b16 %v3794
    %v3970 = vunpack.c.h.b16 %v3794
    %v3971 = vunpack.c.l.b16 %v3795
    %v3972 = vunpack.c.h.b16 %v3795
    %v3973 = vunpack.c.l.b16 %v3796
    %v3974 = vunpack.c.h.b16 %v3796
    %v3975 = vunpack.c.l.b16 %v3797
    %v3976 = vunpack.c.h.b16 %v3797
    %v3977 = vunpack.c.l.b16 %v3798
    %v3978 = vunpack.c.h.b16 %v3798
    %v3979 = vunpack.c.l.b16 %v3799
    %v3980 = vunpack.c.h.b16 %v3799
    %v3981 = vunpack.c.l.b16 %v3800
    %v3982 = vunpack.c.h.b16 %v3800
    %v3983 = vunpack.c.l.b16 %v3801
    %v3984 = vunpack.c.h.b16 %v3801
    %v3985 = vunpack.c.l.b16 %v3802
    %v3986 = vunpack.c.h.b16 %v3802
    %v3987 = vunpack.c.l.b16 %v3803
    %v3988 = vunpack.c.h.b16 %v3803
    %v3989 = vunpack.c.l.b16 %v3804
    %v3990 = vunpack.c.h.b16 %v3804
    %v3991 = vunpack.c.l.b16 %v3805
    %v3992 = vunpack.c.h.b16 %v3805
    %v3993 = vunpack.c.l.b16 %v3806
    %v3994 = vunpack.c.h.b16 %v3806
    %v3995 = vunpack.c.l.b16 %v3807
    %v3996 = vunpack.c.h.b16 %v3807
    %v3997 = vunpack.c.l.b16 %v3808
    %v3998 = vunpack.c.h.b16 %v3808
    %v3999 = vunpack.c.l.b16 %v3809
    %v4000 = vunpack.c.h.b16 %v3809
    %v4001 = vunpack.c.l.b16 %v3810
    %v4002 = vunpack.c.h.b16 %v3810
    %v4003 = vpack.c.b16 %v3879, %v3875
    %v4004 = vpack.c.b16 %v3880, %v3876
    %v4005 = vpack.c.b16 %v3881, %v3877
    %v4006 = vpack.c.b16 %v3882, %v3878
    %v4007 = vpack.c.b16 %v3887, %v3883
    %v4008 = vpack.c.b16 %v3888, %v3884
    %v4009 = vpack.c.b16 %v3889, %v3885
    %v4010 = vpack.c.b16 %v3890, %v3886
    %v4011 = vpack.c.b16 %v3895, %v3891
    %v4012 = vpack.c.b16 %v3896, %v3892
    %v4013 = vpack.c.b16 %v3897, %v3893
    %v4014 = vpack.c.b16 %v3898, %v3894
    %v4015 = vpack.c.b16 %v3903, %v3899
    %v4016 = vpack.c.b16 %v3904, %v3900
    %v4017 = vpack.c.b16 %v3905, %v3901
    %v4018 = vpack.c.b16 %v3906, %v3902
    %v4019 = vpack.c.b16 %v3911, %v3907
    %v4020 = vpack.c.b16 %v3912, %v3908
    %v4021 = vpack.c.b16 %v3913, %v3909
    %v4022 = vpack.c.b16 %v3914, %v3910
    %v4023 = vpack.c.b16 %v3919, %v3915
    %v4024 = vpack.c.b16 %v3920, %v3916
    %v4025 = vpack.c.b16 %v3921, %v3917
    %v4026 = vpack.c.b16 %v3922, %v3918
    %v4027 = vpack.c.b16 %v3927, %v3923
    %v4028 = vpack.c.b16 %v3928, %v3924
    %v4029 = vpack.c.b16 %v3929, %v3925
    %v4030 = vpack.c.b16 %v3930, %v3926
    %v4031 = vpack.c.b16 %v3935, %v3931
    %v4032 = vpack.c.b16 %v3936, %v3932
    %v4033 = vpack.c.b16 %v3937, %v3933
    %v4034 = vpack.c.b16 %v3938, %v3934
    %v4035 = vpack.c.b16 %v3943, %v3939
    %v4036 = vpack.c.b16 %v3944, %v3940
    %v4037 = vpack.c.b16 %v3945, %v3941
    %v4038 = vpack.c.b16 %v3946, %v3942
    %v4039 = vpack.c.b16 %v3951, %v3947
    %v4040 = vpack.c.b16 %v3952, %v3948
    %v4041 = vpack.c.b16 %v3953, %v3949
    %v4042 = vpack.c.b16 %v3954, %v3950
    %v4043 = vpack.c.b16 %v3959, %v3955
    %v4044 = vpack.c.b16 %v3960, %v3956
    %v4045 = vpack.c.b16 %v3961, %v3957
    %v4046 = vpack.c.b16 %v3962, %v3958
    %v4047 = vpack.c.b16 %v3967, %v3963
    %v4048 = vpack.c.b16 %v3968, %v3964
    %v4049 = vpack.c.b16 %v3969, %v3965
    %v4050 = vpack.c.b16 %v3970, %v3966
    %v4051 = vpack.c.b16 %v3975, %v3971
    %v4052 = vpack.c.b16 %v3976, %v3972
    %v4053 = vpack.c.b16 %v3977, %v3973
    %v4054 = vpack.c.b16 %v3978, %v3974
    %v4055 = vpack.c.b16 %v3983, %v3979
    %v4056 = vpack.c.b16 %v3984, %v3980
    %v4057 = vpack.c.b16 %v3985, %v3981
    %v4058 = vpack.c.b16 %v3986, %v3982
    %v4059 = vpack.c.b16 %v3991, %v3987
    %v4060 = vpack.c.b16 %v3992, %v3988
    %v4061 = vpack.c.b16 %v3993, %v3989
    %v4062 = vpack.c.b16 %v3994, %v3990
    %v4063 = vpack.c.b16 %v3999, %v3995
    %v4064 = vpack.c.b16 %v4000, %v3996
    %v4065 = vpack.c.b16 %v4001, %v3997
    %v4066 = vpack.c.b16 %v4002, %v3998
    %4131 = vmatpush.bf16.msra.mxu0 %v4031
    %4132 = vmatpush.bf16.msra.mxu0 %v4027
    %4133 = vmatpush.bf16.msra.mxu0 %v4023
    %4134 = vmatpush.bf16.msra.mxu0 %v4019
    %4135 = vmatpush.bf16.msra.mxu0 %v4015
    %4136 = vmatpush.bf16.msra.mxu0 %v4011
    %4137 = vmatpush.bf16.msra.mxu0 %v4007
    %4138 = vmatpush.bf16.msra.mxu0 %v4003
    %4139 = vmatmul.bf16.gmra.mxu0 %v2161
    %v4140 = vpop.f32.mrf.mxu0
    %v4141 = vadd.f32 0.0, %v4140
    %v4142 = vpop.f32.mrf.mxu0
    %v4143 = vadd.f32 0.0, %v4142
    %4144 = vmatmul.bf16.gmra.mxu0 %v2163
    %v4145 = vpop.f32.mrf.mxu0
    %v4146 = vadd.f32 0.0, %v4145
    %v4147 = vpop.f32.mrf.mxu0
    %v4148 = vadd.f32 0.0, %v4147
    %4149 = vmatmul.bf16.gmra.mxu0 %v2165
    %v4150 = vpop.f32.mrf.mxu0
    %v4151 = vadd.f32 0.0, %v4150
    %v4152 = vpop.f32.mrf.mxu0
    %v4153 = vadd.f32 0.0, %v4152
    %4154 = vmatmul.bf16.gmra.mxu0 %v2167
    %v4155 = vpop.f32.mrf.mxu0
    %v4156 = vadd.f32 0.0, %v4155
    %v4157 = vpop.f32.mrf.mxu0
    %v4158 = vadd.f32 0.0, %v4157
    %4159 = vmatmul.bf16.gmra.mxu0 %v2169
    %v4160 = vpop.f32.mrf.mxu0
    %v4161 = vadd.f32 0.0, %v4160
    %v4162 = vpop.f32.mrf.mxu0
    %v4163 = vadd.f32 0.0, %v4162
    %4164 = vmatmul.bf16.gmra.mxu0 %v2171
    %v4165 = vpop.f32.mrf.mxu0
    %v4166 = vadd.f32 0.0, %v4165
    %v4167 = vpop.f32.mrf.mxu0
    %v4168 = vadd.f32 0.0, %v4167
    %4169 = vmatmul.bf16.gmra.mxu0 %v2173
    %v4170 = vpop.f32.mrf.mxu0
    %v4171 = vadd.f32 0.0, %v4170
    %v4172 = vpop.f32.mrf.mxu0
    %v4173 = vadd.f32 0.0, %v4172
    %4174 = vmatmul.bf16.gmra.mxu0 %v2175
    %v4175 = vpop.f32.mrf.mxu0
    %v4176 = vadd.f32 0.0, %v4175
    %v4177 = vpop.f32.mrf.mxu0
    %v4178 = vadd.f32 0.0, %v4177
    %4179 = vdwg.mxu0
    %4180 = vmatpush.bf16.msra.mxu0 %v4063
    %4181 = vmatpush.bf16.msra.mxu0 %v4059
    %4182 = vmatpush.bf16.msra.mxu0 %v4055
    %4183 = vmatpush.bf16.msra.mxu0 %v4051
    %4184 = vmatpush.bf16.msra.mxu0 %v4047
    %4185 = vmatpush.bf16.msra.mxu0 %v4043
    %4186 = vmatpush.bf16.msra.mxu0 %v4039
    %4187 = vmatpush.bf16.msra.mxu0 %v4035
    %4188 = vmatmul.bf16.gmra.mxu0 %v2162
    %v4189 = vpop.f32.mrf.mxu0
    %v4190 = vadd.f32 %v4141, %v4189
    %v4191 = vpop.f32.mrf.mxu0
    %v4192 = vadd.f32 %v4143, %v4191
    %4193 = vmatmul.bf16.gmra.mxu0 %v2164
    %v4194 = vpop.f32.mrf.mxu0
    %v4195 = vadd.f32 %v4146, %v4194
    %v4196 = vpop.f32.mrf.mxu0
    %v4197 = vadd.f32 %v4148, %v4196
    %4198 = vmatmul.bf16.gmra.mxu0 %v2166
    %v4199 = vpop.f32.mrf.mxu0
    %v4200 = vadd.f32 %v4151, %v4199
    %v4201 = vpop.f32.mrf.mxu0
    %v4202 = vadd.f32 %v4153, %v4201
    %4203 = vmatmul.bf16.gmra.mxu0 %v2168
    %v4204 = vpop.f32.mrf.mxu0
    %v4205 = vadd.f32 %v4156, %v4204
    %v4206 = vpop.f32.mrf.mxu0
    %v4207 = vadd.f32 %v4158, %v4206
    %4208 = vmatmul.bf16.gmra.mxu0 %v2170
    %v4209 = vpop.f32.mrf.mxu0
    %v4210 = vadd.f32 %v4161, %v4209
    %v4211 = vpop.f32.mrf.mxu0
    %v4212 = vadd.f32 %v4163, %v4211
    %4213 = vmatmul.bf16.gmra.mxu0 %v2172
    %v4214 = vpop.f32.mrf.mxu0
    %v4215 = vadd.f32 %v4166, %v4214
    %v4216 = vpop.f32.mrf.mxu0
    %v4217 = vadd.f32 %v4168, %v4216
    %4218 = vmatmul.bf16.gmra.mxu0 %v2174
    %v4219 = vpop.f32.mrf.mxu0
    %v4220 = vadd.f32 %v4171, %v4219
    %v4221 = vpop.f32.mrf.mxu0
    %v4222 = vadd.f32 %v4173, %v4221
    %4223 = vmatmul.bf16.gmra.mxu0 %v2176
    %v4224 = vpop.f32.mrf.mxu0
    %v4225 = vadd.f32 %v4176, %v4224
    %v4226 = vpop.f32.mrf.mxu0
    %v4227 = vadd.f32 %v4178, %v4226
    %4228 = vdwg.mxu0
    %4229 = vmatpush.bf16.msra.mxu0 %v4032
    %4230 = vmatpush.bf16.msra.mxu0 %v4028
    %4231 = vmatpush.bf16.msra.mxu0 %v4024
    %4232 = vmatpush.bf16.msra.mxu0 %v4020
    %4233 = vmatpush.bf16.msra.mxu0 %v4016
    %4234 = vmatpush.bf16.msra.mxu0 %v4012
    %4235 = vmatpush.bf16.msra.mxu0 %v4008
    %4236 = vmatpush.bf16.msra.mxu0 %v4004
    %4237 = vmatmul.bf16.gmra.mxu0 %v2161
    %v4238 = vpop.f32.mrf.mxu0
    %v4239 = vadd.f32 0.0, %v4238
    %v4240 = vpop.f32.mrf.mxu0
    %v4241 = vadd.f32 0.0, %v4240
    %4242 = vmatmul.bf16.gmra.mxu0 %v2163
    %v4243 = vpop.f32.mrf.mxu0
    %v4244 = vadd.f32 0.0, %v4243
    %v4245 = vpop.f32.mrf.mxu0
    %v4246 = vadd.f32 0.0, %v4245
    %4247 = vmatmul.bf16.gmra.mxu0 %v2165
    %v4248 = vpop.f32.mrf.mxu0
    %v4249 = vadd.f32 0.0, %v4248
    %v4250 = vpop.f32.mrf.mxu0
    %v4251 = vadd.f32 0.0, %v4250
    %4252 = vmatmul.bf16.gmra.mxu0 %v2167
    %v4253 = vpop.f32.mrf.mxu0
    %v4254 = vadd.f32 0.0, %v4253
    %v4255 = vpop.f32.mrf.mxu0
    %v4256 = vadd.f32 0.0, %v4255
    %4257 = vmatmul.bf16.gmra.mxu0 %v2169
    %v4258 = vpop.f32.mrf.mxu0
    %v4259 = vadd.f32 0.0, %v4258
    %v4260 = vpop.f32.mrf.mxu0
    %v4261 = vadd.f32 0.0, %v4260
    %4262 = vmatmul.bf16.gmra.mxu0 %v2171
    %v4263 = vpop.f32.mrf.mxu0
    %v4264 = vadd.f32 0.0, %v4263
    %v4265 = vpop.f32.mrf.mxu0
    %v4266 = vadd.f32 0.0, %v4265
    %4267 = vmatmul.bf16.gmra.mxu0 %v2173
    %v4268 = vpop.f32.mrf.mxu0
    %v4269 = vadd.f32 0.0, %v4268
    %v4270 = vpop.f32.mrf.mxu0
    %v4271 = vadd.f32 0.0, %v4270
    %4272 = vmatmul.bf16.gmra.mxu0 %v2175
    %v4273 = vpop.f32.mrf.mxu0
    %v4274 = vadd.f32 0.0, %v4273
    %v4275 = vpop.f32.mrf.mxu0
    %v4276 = vadd.f32 0.0, %v4275
    %4277 = vdwg.mxu0
    %4278 = vmatpush.bf16.msra.mxu0 %v4064
    %4279 = vmatpush.bf16.msra.mxu0 %v4060
    %4280 = vmatpush.bf16.msra.mxu0 %v4056
    %4281 = vmatpush.bf16.msra.mxu0 %v4052
    %4282 = vmatpush.bf16.msra.mxu0 %v4048
    %4283 = vmatpush.bf16.msra.mxu0 %v4044
    %4284 = vmatpush.bf16.msra.mxu0 %v4040
    %4285 = vmatpush.bf16.msra.mxu0 %v4036
    %4286 = vmatmul.bf16.gmra.mxu0 %v2162
    %v4287 = vpop.f32.mrf.mxu0
    %v4288 = vadd.f32 %v4239, %v4287
    %v4289 = vpop.f32.mrf.mxu0
    %v4290 = vadd.f32 %v4241, %v4289
    %4291 = vmatmul.bf16.gmra.mxu0 %v2164
    %v4292 = vpop.f32.mrf.mxu0
    %v4293 = vadd.f32 %v4244, %v4292
    %v4294 = vpop.f32.mrf.mxu0
    %v4295 = vadd.f32 %v4246, %v4294
    %4296 = vmatmul.bf16.gmra.mxu0 %v2166
    %v4297 = vpop.f32.mrf.mxu0
    %v4298 = vadd.f32 %v4249, %v4297
    %v4299 = vpop.f32.mrf.mxu0
    %v4300 = vadd.f32 %v4251, %v4299
    %4301 = vmatmul.bf16.gmra.mxu0 %v2168
    %v4302 = vpop.f32.mrf.mxu0
    %v4303 = vadd.f32 %v4254, %v4302
    %v4304 = vpop.f32.mrf.mxu0
    %v4305 = vadd.f32 %v4256, %v4304
    %4306 = vmatmul.bf16.gmra.mxu0 %v2170
    %v4307 = vpop.f32.mrf.mxu0
    %v4308 = vadd.f32 %v4259, %v4307
    %v4309 = vpop.f32.mrf.mxu0
    %v4310 = vadd.f32 %v4261, %v4309
    %4311 = vmatmul.bf16.gmra.mxu0 %v2172
    %v4312 = vpop.f32.mrf.mxu0
    %v4313 = vadd.f32 %v4264, %v4312
    %v4314 = vpop.f32.mrf.mxu0
    %v4315 = vadd.f32 %v4266, %v4314
    %4316 = vmatmul.bf16.gmra.mxu0 %v2174
    %v4317 = vpop.f32.mrf.mxu0
    %v4318 = vadd.f32 %v4269, %v4317
    %v4319 = vpop.f32.mrf.mxu0
    %v4320 = vadd.f32 %v4271, %v4319
    %4321 = vmatmul.bf16.gmra.mxu0 %v2176
    %v4322 = vpop.f32.mrf.mxu0
    %v4323 = vadd.f32 %v4274, %v4322
    %v4324 = vpop.f32.mrf.mxu0
    %v4325 = vadd.f32 %v4276, %v4324
    %4326 = vdwg.mxu0
    %4327 = vmatpush.bf16.msra.mxu0 %v4033
    %4328 = vmatpush.bf16.msra.mxu0 %v4029
    %4329 = vmatpush.bf16.msra.mxu0 %v4025
    %4330 = vmatpush.bf16.msra.mxu0 %v4021
    %4331 = vmatpush.bf16.msra.mxu0 %v4017
    %4332 = vmatpush.bf16.msra.mxu0 %v4013
    %4333 = vmatpush.bf16.msra.mxu0 %v4009
    %4334 = vmatpush.bf16.msra.mxu0 %v4005
    %4335 = vmatmul.bf16.gmra.mxu0 %v2161
    %v4336 = vpop.f32.mrf.mxu0
    %v4337 = vadd.f32 0.0, %v4336
    %v4338 = vpop.f32.mrf.mxu0
    %v4339 = vadd.f32 0.0, %v4338
    %4340 = vmatmul.bf16.gmra.mxu0 %v2163
    %v4341 = vpop.f32.mrf.mxu0
    %v4342 = vadd.f32 0.0, %v4341
    %v4343 = vpop.f32.mrf.mxu0
    %v4344 = vadd.f32 0.0, %v4343
    %4345 = vmatmul.bf16.gmra.mxu0 %v2165
    %v4346 = vpop.f32.mrf.mxu0
    %v4347 = vadd.f32 0.0, %v4346
    %v4348 = vpop.f32.mrf.mxu0
    %v4349 = vadd.f32 0.0, %v4348
    %4350 = vmatmul.bf16.gmra.mxu0 %v2167
    %v4351 = vpop.f32.mrf.mxu0
    %v4352 = vadd.f32 0.0, %v4351
    %v4353 = vpop.f32.mrf.mxu0
    %v4354 = vadd.f32 0.0, %v4353
    %4355 = vmatmul.bf16.gmra.mxu0 %v2169
    %v4356 = vpop.f32.mrf.mxu0
    %v4357 = vadd.f32 0.0, %v4356
    %v4358 = vpop.f32.mrf.mxu0
    %v4359 = vadd.f32 0.0, %v4358
    %4360 = vmatmul.bf16.gmra.mxu0 %v2171
    %v4361 = vpop.f32.mrf.mxu0
    %v4362 = vadd.f32 0.0, %v4361
    %v4363 = vpop.f32.mrf.mxu0
    %v4364 = vadd.f32 0.0, %v4363
    %4365 = vmatmul.bf16.gmra.mxu0 %v2173
    %v4366 = vpop.f32.mrf.mxu0
    %v4367 = vadd.f32 0.0, %v4366
    %v4368 = vpop.f32.mrf.mxu0
    %v4369 = vadd.f32 0.0, %v4368
    %4370 = vmatmul.bf16.gmra.mxu0 %v2175
    %v4371 = vpop.f32.mrf.mxu0
    %v4372 = vadd.f32 0.0, %v4371
    %v4373 = vpop.f32.mrf.mxu0
    %v4374 = vadd.f32 0.0, %v4373
    %4375 = vdwg.mxu0
    %4376 = vmatpush.bf16.msra.mxu0 %v4065
    %4377 = vmatpush.bf16.msra.mxu0 %v4061
    %4378 = vmatpush.bf16.msra.mxu0 %v4057
    %4379 = vmatpush.bf16.msra.mxu0 %v4053
    %4380 = vmatpush.bf16.msra.mxu0 %v4049
    %4381 = vmatpush.bf16.msra.mxu0 %v4045
    %4382 = vmatpush.bf16.msra.mxu0 %v4041
    %4383 = vmatpush.bf16.msra.mxu0 %v4037
    %4384 = vmatmul.bf16.gmra.mxu0 %v2162
    %v4385 = vpop.f32.mrf.mxu0
    %v4386 = vadd.f32 %v4337, %v4385
    %v4387 = vpop.f32.mrf.mxu0
    %v4388 = vadd.f32 %v4339, %v4387
    %4389 = vmatmul.bf16.gmra.mxu0 %v2164
    %v4390 = vpop.f32.mrf.mxu0
    %v4391 = vadd.f32 %v4342, %v4390
    %v4392 = vpop.f32.mrf.mxu0
    %v4393 = vadd.f32 %v4344, %v4392
    %4394 = vmatmul.bf16.gmra.mxu0 %v2166
    %v4395 = vpop.f32.mrf.mxu0
    %v4396 = vadd.f32 %v4347, %v4395
    %v4397 = vpop.f32.mrf.mxu0
    %v4398 = vadd.f32 %v4349, %v4397
    %4399 = vmatmul.bf16.gmra.mxu0 %v2168
    %v4400 = vpop.f32.mrf.mxu0
    %v4401 = vadd.f32 %v4352, %v4400
    %v4402 = vpop.f32.mrf.mxu0
    %v4403 = vadd.f32 %v4354, %v4402
    %4404 = vmatmul.bf16.gmra.mxu0 %v2170
    %v4405 = vpop.f32.mrf.mxu0
    %v4406 = vadd.f32 %v4357, %v4405
    %v4407 = vpop.f32.mrf.mxu0
    %v4408 = vadd.f32 %v4359, %v4407
    %4409 = vmatmul.bf16.gmra.mxu0 %v2172
    %v4410 = vpop.f32.mrf.mxu0
    %v4411 = vadd.f32 %v4362, %v4410
    %v4412 = vpop.f32.mrf.mxu0
    %v4413 = vadd.f32 %v4364, %v4412
    %4414 = vmatmul.bf16.gmra.mxu0 %v2174
    %v4415 = vpop.f32.mrf.mxu0
    %v4416 = vadd.f32 %v4367, %v4415
    %v4417 = vpop.f32.mrf.mxu0
    %v4418 = vadd.f32 %v4369, %v4417
    %4419 = vmatmul.bf16.gmra.mxu0 %v2176
    %v4420 = vpop.f32.mrf.mxu0
    %v4421 = vadd.f32 %v4372, %v4420
    %v4422 = vpop.f32.mrf.mxu0
    %v4423 = vadd.f32 %v4374, %v4422
    %4424 = vdwg.mxu0
    %4425 = vmatpush.bf16.msra.mxu0 %v4034
    %4426 = vmatpush.bf16.msra.mxu0 %v4030
    %4427 = vmatpush.bf16.msra.mxu0 %v4026
    %4428 = vmatpush.bf16.msra.mxu0 %v4022
    %4429 = vmatpush.bf16.msra.mxu0 %v4018
    %4430 = vmatpush.bf16.msra.mxu0 %v4014
    %4431 = vmatpush.bf16.msra.mxu0 %v4010
    %4432 = vmatpush.bf16.msra.mxu0 %v4006
    %4433 = vmatmul.bf16.gmra.mxu0 %v2161
    %v4434 = vpop.f32.mrf.mxu0
    %v4435 = vadd.f32 0.0, %v4434
    %v4436 = vpop.f32.mrf.mxu0
    %v4437 = vadd.f32 0.0, %v4436
    %4438 = vmatmul.bf16.gmra.mxu0 %v2163
    %v4439 = vpop.f32.mrf.mxu0
    %v4440 = vadd.f32 0.0, %v4439
    %v4441 = vpop.f32.mrf.mxu0
    %v4442 = vadd.f32 0.0, %v4441
    %4443 = vmatmul.bf16.gmra.mxu0 %v2165
    %v4444 = vpop.f32.mrf.mxu0
    %v4445 = vadd.f32 0.0, %v4444
    %v4446 = vpop.f32.mrf.mxu0
    %v4447 = vadd.f32 0.0, %v4446
    %4448 = vmatmul.bf16.gmra.mxu0 %v2167
    %v4449 = vpop.f32.mrf.mxu0
    %v4450 = vadd.f32 0.0, %v4449
    %v4451 = vpop.f32.mrf.mxu0
    %v4452 = vadd.f32 0.0, %v4451
    %4453 = vmatmul.bf16.gmra.mxu0 %v2169
    %v4454 = vpop.f32.mrf.mxu0
    %v4455 = vadd.f32 0.0, %v4454
    %v4456 = vpop.f32.mrf.mxu0
    %v4457 = vadd.f32 0.0, %v4456
    %4458 = vmatmul.bf16.gmra.mxu0 %v2171
    %v4459 = vpop.f32.mrf.mxu0
    %v4460 = vadd.f32 0.0, %v4459
    %v4461 = vpop.f32.mrf.mxu0
    %v4462 = vadd.f32 0.0, %v4461
    %4463 = vmatmul.bf16.gmra.mxu0 %v2173
    %v4464 = vpop.f32.mrf.mxu0
    %v4465 = vadd.f32 0.0, %v4464
    %v4466 = vpop.f32.mrf.mxu0
    %v4467 = vadd.f32 0.0, %v4466
    %4468 = vmatmul.bf16.gmra.mxu0 %v2175
    %v4469 = vpop.f32.mrf.mxu0
    %v4470 = vadd.f32 0.0, %v4469
    %v4471 = vpop.f32.mrf.mxu0
    %v4472 = vadd.f32 0.0, %v4471
    %4473 = vdwg.mxu0
    %4474 = vmatpush.bf16.msra.mxu0 %v4066
    %4475 = vmatpush.bf16.msra.mxu0 %v4062
    %4476 = vmatpush.bf16.msra.mxu0 %v4058
    %4477 = vmatpush.bf16.msra.mxu0 %v4054
    %4478 = vmatpush.bf16.msra.mxu0 %v4050
    %4479 = vmatpush.bf16.msra.mxu0 %v4046
    %4480 = vmatpush.bf16.msra.mxu0 %v4042
    %4481 = vmatpush.bf16.msra.mxu0 %v4038
    %4482 = vmatmul.bf16.gmra.mxu0 %v2162
    %v4483 = vpop.f32.mrf.mxu0
    %v4484 = vadd.f32 %v4435, %v4483
    %v4485 = vpop.f32.mrf.mxu0
    %v4486 = vadd.f32 %v4437, %v4485
    %4487 = vmatmul.bf16.gmra.mxu0 %v2164
    %v4488 = vpop.f32.mrf.mxu0
    %v4489 = vadd.f32 %v4440, %v4488
    %v4490 = vpop.f32.mrf.mxu0
    %v4491 = vadd.f32 %v4442, %v4490
    %4492 = vmatmul.bf16.gmra.mxu0 %v2166
    %v4493 = vpop.f32.mrf.mxu0
    %v4494 = vadd.f32 %v4445, %v4493
    %v4495 = vpop.f32.mrf.mxu0
    %v4496 = vadd.f32 %v4447, %v4495
    %4497 = vmatmul.bf16.gmra.mxu0 %v2168
    %v4498 = vpop.f32.mrf.mxu0
    %v4499 = vadd.f32 %v4450, %v4498
    %v4500 = vpop.f32.mrf.mxu0
    %v4501 = vadd.f32 %v4452, %v4500
    %4502 = vmatmul.bf16.gmra.mxu0 %v2170
    %v4503 = vpop.f32.mrf.mxu0
    %v4504 = vadd.f32 %v4455, %v4503
    %v4505 = vpop.f32.mrf.mxu0
    %v4506 = vadd.f32 %v4457, %v4505
    %4507 = vmatmul.bf16.gmra.mxu0 %v2172
    %v4508 = vpop.f32.mrf.mxu0
    %v4509 = vadd.f32 %v4460, %v4508
    %v4510 = vpop.f32.mrf.mxu0
    %v4511 = vadd.f32 %v4462, %v4510
    %4512 = vmatmul.bf16.gmra.mxu0 %v2174
    %v4513 = vpop.f32.mrf.mxu0
    %v4514 = vadd.f32 %v4465, %v4513
    %v4515 = vpop.f32.mrf.mxu0
    %v4516 = vadd.f32 %v4467, %v4515
    %4517 = vmatmul.bf16.gmra.mxu0 %v2176
    %v4518 = vpop.f32.mrf.mxu0
    %v4519 = vadd.f32 %v4470, %v4518
    %v4520 = vpop.f32.mrf.mxu0
    %v4521 = vadd.f32 %v4472, %v4520
    %4522 = vdwg.mxu0
    %v4523 = vadd.f32 %v3413, %v4190
    %v4524 = vadd.f32 %v3511, %v4288
    %v4525 = vadd.f32 %v3609, %v4386
    %v4526 = vadd.f32 %v3707, %v4484
    %v4527 = vadd.f32 %v3415, %v4192
    %v4528 = vadd.f32 %v3513, %v4290
    %v4529 = vadd.f32 %v3611, %v4388
    %v4530 = vadd.f32 %v3709, %v4486
    %v4531 = vadd.f32 %v3418, %v4195
    %v4532 = vadd.f32 %v3516, %v4293
    %v4533 = vadd.f32 %v3614, %v4391
    %v4534 = vadd.f32 %v3712, %v4489
    %v4535 = vadd.f32 %v3420, %v4197
    %v4536 = vadd.f32 %v3518, %v4295
    %v4537 = vadd.f32 %v3616, %v4393
    %v4538 = vadd.f32 %v3714, %v4491
    %v4539 = vadd.f32 %v3423, %v4200
    %v4540 = vadd.f32 %v3521, %v4298
    %v4541 = vadd.f32 %v3619, %v4396
    %v4542 = vadd.f32 %v3717, %v4494
    %v4543 = vadd.f32 %v3425, %v4202
    %v4544 = vadd.f32 %v3523, %v4300
    %v4545 = vadd.f32 %v3621, %v4398
    %v4546 = vadd.f32 %v3719, %v4496
    %v4547 = vadd.f32 %v3428, %v4205
    %v4548 = vadd.f32 %v3526, %v4303
    %v4549 = vadd.f32 %v3624, %v4401
    %v4550 = vadd.f32 %v3722, %v4499
    %v4551 = vadd.f32 %v3430, %v4207
    %v4552 = vadd.f32 %v3528, %v4305
    %v4553 = vadd.f32 %v3626, %v4403
    %v4554 = vadd.f32 %v3724, %v4501
    %v4555 = vadd.f32 %v3433, %v4210
    %v4556 = vadd.f32 %v3531, %v4308
    %v4557 = vadd.f32 %v3629, %v4406
    %v4558 = vadd.f32 %v3727, %v4504
    %v4559 = vadd.f32 %v3435, %v4212
    %v4560 = vadd.f32 %v3533, %v4310
    %v4561 = vadd.f32 %v3631, %v4408
    %v4562 = vadd.f32 %v3729, %v4506
    %v4563 = vadd.f32 %v3438, %v4215
    %v4564 = vadd.f32 %v3536, %v4313
    %v4565 = vadd.f32 %v3634, %v4411
    %v4566 = vadd.f32 %v3732, %v4509
    %v4567 = vadd.f32 %v3440, %v4217
    %v4568 = vadd.f32 %v3538, %v4315
    %v4569 = vadd.f32 %v3636, %v4413
    %v4570 = vadd.f32 %v3734, %v4511
    %v4571 = vadd.f32 %v3443, %v4220
    %v4572 = vadd.f32 %v3541, %v4318
    %v4573 = vadd.f32 %v3639, %v4416
    %v4574 = vadd.f32 %v3737, %v4514
    %v4575 = vadd.f32 %v3445, %v4222
    %v4576 = vadd.f32 %v3543, %v4320
    %v4577 = vadd.f32 %v3641, %v4418
    %v4578 = vadd.f32 %v3739, %v4516
    %v4579 = vadd.f32 %v3448, %v4225
    %v4580 = vadd.f32 %v3546, %v4323
    %v4581 = vadd.f32 %v3644, %v4421
    %v4582 = vadd.f32 %v3742, %v4519
    %v4583 = vadd.f32 %v3450, %v4227
    %v4584 = vadd.f32 %v3548, %v4325
    %v4585 = vadd.f32 %v3646, %v4423
    %v4586 = vadd.f32 %v3744, %v4521
    %s4587 = scalar_lea.vmem %s9, 1536
    %v4588 = vld [vmem:[%s4587] sm:$0xff]
    %v4589 = vld [vmem:[%s4587 + $0x8] sm:$0xff]
    %v4590 = vld [vmem:[%s4587 + $0x10] sm:$0xff]
    %v4591 = vld [vmem:[%s4587 + $0x18] sm:$0xff]
    %v4592 = vld [vmem:[%s4587 + $0x20] sm:$0xff]
    %v4593 = vld [vmem:[%s4587 + $0x28] sm:$0xff]
    %v4594 = vld [vmem:[%s4587 + $0x30] sm:$0xff]
    %v4595 = vld [vmem:[%s4587 + $0x38] sm:$0xff]
    %v4596 = vld [vmem:[%s4587 + $0x40] sm:$0xff]
    %v4597 = vld [vmem:[%s4587 + $0x48] sm:$0xff]
    %v4598 = vld [vmem:[%s4587 + $0x50] sm:$0xff]
    %v4599 = vld [vmem:[%s4587 + $0x58] sm:$0xff]
    %v4600 = vld [vmem:[%s4587 + $0x60] sm:$0xff]
    %v4601 = vld [vmem:[%s4587 + $0x68] sm:$0xff]
    %v4602 = vld [vmem:[%s4587 + $0x70] sm:$0xff]
    %v4603 = vld [vmem:[%s4587 + $0x78] sm:$0xff]
    %v4604 = vld [vmem:[%s4587 + $0x80] sm:$0xff]
    %v4605 = vld [vmem:[%s4587 + $0x88] sm:$0xff]
    %v4606 = vld [vmem:[%s4587 + $0x90] sm:$0xff]
    %v4607 = vld [vmem:[%s4587 + $0x98] sm:$0xff]
    %v4608 = vld [vmem:[%s4587 + $0xa0] sm:$0xff]
    %v4609 = vld [vmem:[%s4587 + $0xa8] sm:$0xff]
    %v4610 = vld [vmem:[%s4587 + $0xb0] sm:$0xff]
    %v4611 = vld [vmem:[%s4587 + $0xb8] sm:$0xff]
    %v4612 = vld [vmem:[%s4587 + $0xc0] sm:$0xff]
    %v4613 = vld [vmem:[%s4587 + $0xc8] sm:$0xff]
    %v4614 = vld [vmem:[%s4587 + $0xd0] sm:$0xff]
    %v4615 = vld [vmem:[%s4587 + $0xd8] sm:$0xff]
    %v4616 = vld [vmem:[%s4587 + $0xe0] sm:$0xff]
    %v4617 = vld [vmem:[%s4587 + $0xe8] sm:$0xff]
    %v4618 = vld [vmem:[%s4587 + $0xf0] sm:$0xff]
    %v4619 = vld [vmem:[%s4587 + $0xf8] sm:$0xff]
    %v4620 = vld [vmem:[%s4587 + $0x100] sm:$0xff]
    %v4621 = vld [vmem:[%s4587 + $0x108] sm:$0xff]
    %v4622 = vld [vmem:[%s4587 + $0x110] sm:$0xff]
    %v4623 = vld [vmem:[%s4587 + $0x118] sm:$0xff]
    %v4624 = vld [vmem:[%s4587 + $0x120] sm:$0xff]
    %v4625 = vld [vmem:[%s4587 + $0x128] sm:$0xff]
    %v4626 = vld [vmem:[%s4587 + $0x130] sm:$0xff]
    %v4627 = vld [vmem:[%s4587 + $0x138] sm:$0xff]
    %v4628 = vld [vmem:[%s4587 + $0x140] sm:$0xff]
    %v4629 = vld [vmem:[%s4587 + $0x148] sm:$0xff]
    %v4630 = vld [vmem:[%s4587 + $0x150] sm:$0xff]
    %v4631 = vld [vmem:[%s4587 + $0x158] sm:$0xff]
    %v4632 = vld [vmem:[%s4587 + $0x160] sm:$0xff]
    %v4633 = vld [vmem:[%s4587 + $0x168] sm:$0xff]
    %v4634 = vld [vmem:[%s4587 + $0x170] sm:$0xff]
    %v4635 = vld [vmem:[%s4587 + $0x178] sm:$0xff]
    %v4636 = vld [vmem:[%s4587 + $0x180] sm:$0xff]
    %v4637 = vld [vmem:[%s4587 + $0x188] sm:$0xff]
    %v4638 = vld [vmem:[%s4587 + $0x190] sm:$0xff]
    %v4639 = vld [vmem:[%s4587 + $0x198] sm:$0xff]
    %v4640 = vld [vmem:[%s4587 + $0x1a0] sm:$0xff]
    %v4641 = vld [vmem:[%s4587 + $0x1a8] sm:$0xff]
    %v4642 = vld [vmem:[%s4587 + $0x1b0] sm:$0xff]
    %v4643 = vld [vmem:[%s4587 + $0x1b8] sm:$0xff]
    %v4644 = vld [vmem:[%s4587 + $0x1c0] sm:$0xff]
    %v4645 = vld [vmem:[%s4587 + $0x1c8] sm:$0xff]
    %v4646 = vld [vmem:[%s4587 + $0x1d0] sm:$0xff]
    %v4647 = vld [vmem:[%s4587 + $0x1d8] sm:$0xff]
    %v4648 = vld [vmem:[%s4587 + $0x1e0] sm:$0xff]
    %v4649 = vld [vmem:[%s4587 + $0x1e8] sm:$0xff]
    %v4650 = vld [vmem:[%s4587 + $0x1f0] sm:$0xff]
    %v4651 = vld [vmem:[%s4587 + $0x1f8] sm:$0xff]
    %v4716 = vunpack.c.l.b16 %v4588
    %v4717 = vunpack.c.h.b16 %v4588
    %v4718 = vunpack.c.l.b16 %v4589
    %v4719 = vunpack.c.h.b16 %v4589
    %v4720 = vunpack.c.l.b16 %v4590
    %v4721 = vunpack.c.h.b16 %v4590
    %v4722 = vunpack.c.l.b16 %v4591
    %v4723 = vunpack.c.h.b16 %v4591
    %v4724 = vunpack.c.l.b16 %v4592
    %v4725 = vunpack.c.h.b16 %v4592
    %v4726 = vunpack.c.l.b16 %v4593
    %v4727 = vunpack.c.h.b16 %v4593
    %v4728 = vunpack.c.l.b16 %v4594
    %v4729 = vunpack.c.h.b16 %v4594
    %v4730 = vunpack.c.l.b16 %v4595
    %v4731 = vunpack.c.h.b16 %v4595
    %v4732 = vunpack.c.l.b16 %v4596
    %v4733 = vunpack.c.h.b16 %v4596
    %v4734 = vunpack.c.l.b16 %v4597
    %v4735 = vunpack.c.h.b16 %v4597
    %v4736 = vunpack.c.l.b16 %v4598
    %v4737 = vunpack.c.h.b16 %v4598
    %v4738 = vunpack.c.l.b16 %v4599
    %v4739 = vunpack.c.h.b16 %v4599
    %v4740 = vunpack.c.l.b16 %v4600
    %v4741 = vunpack.c.h.b16 %v4600
    %v4742 = vunpack.c.l.b16 %v4601
    %v4743 = vunpack.c.h.b16 %v4601
    %v4744 = vunpack.c.l.b16 %v4602
    %v4745 = vunpack.c.h.b16 %v4602
    %v4746 = vunpack.c.l.b16 %v4603
    %v4747 = vunpack.c.h.b16 %v4603
    %v4748 = vunpack.c.l.b16 %v4604
    %v4749 = vunpack.c.h.b16 %v4604
    %v4750 = vunpack.c.l.b16 %v4605
    %v4751 = vunpack.c.h.b16 %v4605
    %v4752 = vunpack.c.l.b16 %v4606
    %v4753 = vunpack.c.h.b16 %v4606
    %v4754 = vunpack.c.l.b16 %v4607
    %v4755 = vunpack.c.h.b16 %v4607
    %v4756 = vunpack.c.l.b16 %v4608
    %v4757 = vunpack.c.h.b16 %v4608
    %v4758 = vunpack.c.l.b16 %v4609
    %v4759 = vunpack.c.h.b16 %v4609
    %v4760 = vunpack.c.l.b16 %v4610
    %v4761 = vunpack.c.h.b16 %v4610
    %v4762 = vunpack.c.l.b16 %v4611
    %v4763 = vunpack.c.h.b16 %v4611
    %v4764 = vunpack.c.l.b16 %v4612
    %v4765 = vunpack.c.h.b16 %v4612
    %v4766 = vunpack.c.l.b16 %v4613
    %v4767 = vunpack.c.h.b16 %v4613
    %v4768 = vunpack.c.l.b16 %v4614
    %v4769 = vunpack.c.h.b16 %v4614
    %v4770 = vunpack.c.l.b16 %v4615
    %v4771 = vunpack.c.h.b16 %v4615
    %v4772 = vunpack.c.l.b16 %v4616
    %v4773 = vunpack.c.h.b16 %v4616
    %v4774 = vunpack.c.l.b16 %v4617
    %v4775 = vunpack.c.h.b16 %v4617
    %v4776 = vunpack.c.l.b16 %v4618
    %v4777 = vunpack.c.h.b16 %v4618
    %v4778 = vunpack.c.l.b16 %v4619
    %v4779 = vunpack.c.h.b16 %v4619
    %v4780 = vunpack.c.l.b16 %v4620
    %v4781 = vunpack.c.h.b16 %v4620
    %v4782 = vunpack.c.l.b16 %v4621
    %v4783 = vunpack.c.h.b16 %v4621
    %v4784 = vunpack.c.l.b16 %v4622
    %v4785 = vunpack.c.h.b16 %v4622
    %v4786 = vunpack.c.l.b16 %v4623
    %v4787 = vunpack.c.h.b16 %v4623
    %v4788 = vunpack.c.l.b16 %v4624
    %v4789 = vunpack.c.h.b16 %v4624
    %v4790 = vunpack.c.l.b16 %v4625
    %v4791 = vunpack.c.h.b16 %v4625
    %v4792 = vunpack.c.l.b16 %v4626
    %v4793 = vunpack.c.h.b16 %v4626
    %v4794 = vunpack.c.l.b16 %v4627
    %v4795 = vunpack.c.h.b16 %v4627
    %v4796 = vunpack.c.l.b16 %v4628
    %v4797 = vunpack.c.h.b16 %v4628
    %v4798 = vunpack.c.l.b16 %v4629
    %v4799 = vunpack.c.h.b16 %v4629
    %v4800 = vunpack.c.l.b16 %v4630
    %v4801 = vunpack.c.h.b16 %v4630
    %v4802 = vunpack.c.l.b16 %v4631
    %v4803 = vunpack.c.h.b16 %v4631
    %v4804 = vunpack.c.l.b16 %v4632
    %v4805 = vunpack.c.h.b16 %v4632
    %v4806 = vunpack.c.l.b16 %v4633
    %v4807 = vunpack.c.h.b16 %v4633
    %v4808 = vunpack.c.l.b16 %v4634
    %v4809 = vunpack.c.h.b16 %v4634
    %v4810 = vunpack.c.l.b16 %v4635
    %v4811 = vunpack.c.h.b16 %v4635
    %v4812 = vunpack.c.l.b16 %v4636
    %v4813 = vunpack.c.h.b16 %v4636
    %v4814 = vunpack.c.l.b16 %v4637
    %v4815 = vunpack.c.h.b16 %v4637
    %v4816 = vunpack.c.l.b16 %v4638
    %v4817 = vunpack.c.h.b16 %v4638
    %v4818 = vunpack.c.l.b16 %v4639
    %v4819 = vunpack.c.h.b16 %v4639
    %v4820 = vunpack.c.l.b16 %v4640
    %v4821 = vunpack.c.h.b16 %v4640
    %v4822 = vunpack.c.l.b16 %v4641
    %v4823 = vunpack.c.h.b16 %v4641
    %v4824 = vunpack.c.l.b16 %v4642
    %v4825 = vunpack.c.h.b16 %v4642
    %v4826 = vunpack.c.l.b16 %v4643
    %v4827 = vunpack.c.h.b16 %v4643
    %v4828 = vunpack.c.l.b16 %v4644
    %v4829 = vunpack.c.h.b16 %v4644
    %v4830 = vunpack.c.l.b16 %v4645
    %v4831 = vunpack.c.h.b16 %v4645
    %v4832 = vunpack.c.l.b16 %v4646
    %v4833 = vunpack.c.h.b16 %v4646
    %v4834 = vunpack.c.l.b16 %v4647
    %v4835 = vunpack.c.h.b16 %v4647
    %v4836 = vunpack.c.l.b16 %v4648
    %v4837 = vunpack.c.h.b16 %v4648
    %v4838 = vunpack.c.l.b16 %v4649
    %v4839 = vunpack.c.h.b16 %v4649
    %v4840 = vunpack.c.l.b16 %v4650
    %v4841 = vunpack.c.h.b16 %v4650
    %v4842 = vunpack.c.l.b16 %v4651
    %v4843 = vunpack.c.h.b16 %v4651
    %v4844 = vpack.c.b16 %v4720, %v4716
    %v4845 = vpack.c.b16 %v4721, %v4717
    %v4846 = vpack.c.b16 %v4722, %v4718
    %v4847 = vpack.c.b16 %v4723, %v4719
    %v4848 = vpack.c.b16 %v4728, %v4724
    %v4849 = vpack.c.b16 %v4729, %v4725
    %v4850 = vpack.c.b16 %v4730, %v4726
    %v4851 = vpack.c.b16 %v4731, %v4727
    %v4852 = vpack.c.b16 %v4736, %v4732
    %v4853 = vpack.c.b16 %v4737, %v4733
    %v4854 = vpack.c.b16 %v4738, %v4734
    %v4855 = vpack.c.b16 %v4739, %v4735
    %v4856 = vpack.c.b16 %v4744, %v4740
    %v4857 = vpack.c.b16 %v4745, %v4741
    %v4858 = vpack.c.b16 %v4746, %v4742
    %v4859 = vpack.c.b16 %v4747, %v4743
    %v4860 = vpack.c.b16 %v4752, %v4748
    %v4861 = vpack.c.b16 %v4753, %v4749
    %v4862 = vpack.c.b16 %v4754, %v4750
    %v4863 = vpack.c.b16 %v4755, %v4751
    %v4864 = vpack.c.b16 %v4760, %v4756
    %v4865 = vpack.c.b16 %v4761, %v4757
    %v4866 = vpack.c.b16 %v4762, %v4758
    %v4867 = vpack.c.b16 %v4763, %v4759
    %v4868 = vpack.c.b16 %v4768, %v4764
    %v4869 = vpack.c.b16 %v4769, %v4765
    %v4870 = vpack.c.b16 %v4770, %v4766
    %v4871 = vpack.c.b16 %v4771, %v4767
    %v4872 = vpack.c.b16 %v4776, %v4772
    %v4873 = vpack.c.b16 %v4777, %v4773
    %v4874 = vpack.c.b16 %v4778, %v4774
    %v4875 = vpack.c.b16 %v4779, %v4775
    %v4876 = vpack.c.b16 %v4784, %v4780
    %v4877 = vpack.c.b16 %v4785, %v4781
    %v4878 = vpack.c.b16 %v4786, %v4782
    %v4879 = vpack.c.b16 %v4787, %v4783
    %v4880 = vpack.c.b16 %v4792, %v4788
    %v4881 = vpack.c.b16 %v4793, %v4789
    %v4882 = vpack.c.b16 %v4794, %v4790
    %v4883 = vpack.c.b16 %v4795, %v4791
    %v4884 = vpack.c.b16 %v4800, %v4796
    %v4885 = vpack.c.b16 %v4801, %v4797
    %v4886 = vpack.c.b16 %v4802, %v4798
    %v4887 = vpack.c.b16 %v4803, %v4799
    %v4888 = vpack.c.b16 %v4808, %v4804
    %v4889 = vpack.c.b16 %v4809, %v4805
    %v4890 = vpack.c.b16 %v4810, %v4806
    %v4891 = vpack.c.b16 %v4811, %v4807
    %v4892 = vpack.c.b16 %v4816, %v4812
    %v4893 = vpack.c.b16 %v4817, %v4813
    %v4894 = vpack.c.b16 %v4818, %v4814
    %v4895 = vpack.c.b16 %v4819, %v4815
    %v4896 = vpack.c.b16 %v4824, %v4820
    %v4897 = vpack.c.b16 %v4825, %v4821
    %v4898 = vpack.c.b16 %v4826, %v4822
    %v4899 = vpack.c.b16 %v4827, %v4823
    %v4900 = vpack.c.b16 %v4832, %v4828
    %v4901 = vpack.c.b16 %v4833, %v4829
    %v4902 = vpack.c.b16 %v4834, %v4830
    %v4903 = vpack.c.b16 %v4835, %v4831
    %v4904 = vpack.c.b16 %v4840, %v4836
    %v4905 = vpack.c.b16 %v4841, %v4837
    %v4906 = vpack.c.b16 %v4842, %v4838
    %v4907 = vpack.c.b16 %v4843, %v4839
    %4972 = vmatpush.bf16.msra.mxu0 %v4872
    %4973 = vmatpush.bf16.msra.mxu0 %v4868
    %4974 = vmatpush.bf16.msra.mxu0 %v4864
    %4975 = vmatpush.bf16.msra.mxu0 %v4860
    %4976 = vmatpush.bf16.msra.mxu0 %v4856
    %4977 = vmatpush.bf16.msra.mxu0 %v4852
    %4978 = vmatpush.bf16.msra.mxu0 %v4848
    %4979 = vmatpush.bf16.msra.mxu0 %v4844
    %4980 = vmatmul.bf16.gmra.mxu0 %v2163
    %v4981 = vpop.f32.mrf.mxu0
    %v4982 = vadd.f32 0.0, %v4981
    %v4983 = vpop.f32.mrf.mxu0
    %v4984 = vadd.f32 0.0, %v4983
    %4985 = vmatmul.bf16.gmra.mxu0 %v2165
    %v4986 = vpop.f32.mrf.mxu0
    %v4987 = vadd.f32 0.0, %v4986
    %v4988 = vpop.f32.mrf.mxu0
    %v4989 = vadd.f32 0.0, %v4988
    %4990 = vmatmul.bf16.gmra.mxu0 %v2167
    %v4991 = vpop.f32.mrf.mxu0
    %v4992 = vadd.f32 0.0, %v4991
    %v4993 = vpop.f32.mrf.mxu0
    %v4994 = vadd.f32 0.0, %v4993
    %4995 = vmatmul.bf16.gmra.mxu0 %v2169
    %v4996 = vpop.f32.mrf.mxu0
    %v4997 = vadd.f32 0.0, %v4996
    %v4998 = vpop.f32.mrf.mxu0
    %v4999 = vadd.f32 0.0, %v4998
    %5000 = vmatmul.bf16.gmra.mxu0 %v2171
    %v5001 = vpop.f32.mrf.mxu0
    %v5002 = vadd.f32 0.0, %v5001
    %v5003 = vpop.f32.mrf.mxu0
    %v5004 = vadd.f32 0.0, %v5003
    %5005 = vmatmul.bf16.gmra.mxu0 %v2173
    %v5006 = vpop.f32.mrf.mxu0
    %v5007 = vadd.f32 0.0, %v5006
    %v5008 = vpop.f32.mrf.mxu0
    %v5009 = vadd.f32 0.0, %v5008
    %5010 = vmatmul.bf16.gmra.mxu0 %v2175
    %v5011 = vpop.f32.mrf.mxu0
    %v5012 = vadd.f32 0.0, %v5011
    %v5013 = vpop.f32.mrf.mxu0
    %v5014 = vadd.f32 0.0, %v5013
    %5015 = vmatmul.bf16.gmra.mxu0 0
    %v5016 = vpop.f32.mrf.mxu0
    %v5017 = vadd.f32 0.0, %v5016
    %v5018 = vpop.f32.mrf.mxu0
    %v5019 = vadd.f32 0.0, %v5018
    %5020 = vdwg.mxu0
    %5021 = vmatpush.bf16.msra.mxu0 %v4904
    %5022 = vmatpush.bf16.msra.mxu0 %v4900
    %5023 = vmatpush.bf16.msra.mxu0 %v4896
    %5024 = vmatpush.bf16.msra.mxu0 %v4892
    %5025 = vmatpush.bf16.msra.mxu0 %v4888
    %5026 = vmatpush.bf16.msra.mxu0 %v4884
    %5027 = vmatpush.bf16.msra.mxu0 %v4880
    %5028 = vmatpush.bf16.msra.mxu0 %v4876
    %5029 = vmatmul.bf16.gmra.mxu0 %v2164
    %v5030 = vpop.f32.mrf.mxu0
    %v5031 = vadd.f32 %v4982, %v5030
    %v5032 = vpop.f32.mrf.mxu0
    %v5033 = vadd.f32 %v4984, %v5032
    %5034 = vmatmul.bf16.gmra.mxu0 %v2166
    %v5035 = vpop.f32.mrf.mxu0
    %v5036 = vadd.f32 %v4987, %v5035
    %v5037 = vpop.f32.mrf.mxu0
    %v5038 = vadd.f32 %v4989, %v5037
    %5039 = vmatmul.bf16.gmra.mxu0 %v2168
    %v5040 = vpop.f32.mrf.mxu0
    %v5041 = vadd.f32 %v4992, %v5040
    %v5042 = vpop.f32.mrf.mxu0
    %v5043 = vadd.f32 %v4994, %v5042
    %5044 = vmatmul.bf16.gmra.mxu0 %v2170
    %v5045 = vpop.f32.mrf.mxu0
    %v5046 = vadd.f32 %v4997, %v5045
    %v5047 = vpop.f32.mrf.mxu0
    %v5048 = vadd.f32 %v4999, %v5047
    %5049 = vmatmul.bf16.gmra.mxu0 %v2172
    %v5050 = vpop.f32.mrf.mxu0
    %v5051 = vadd.f32 %v5002, %v5050
    %v5052 = vpop.f32.mrf.mxu0
    %v5053 = vadd.f32 %v5004, %v5052
    %5054 = vmatmul.bf16.gmra.mxu0 %v2174
    %v5055 = vpop.f32.mrf.mxu0
    %v5056 = vadd.f32 %v5007, %v5055
    %v5057 = vpop.f32.mrf.mxu0
    %v5058 = vadd.f32 %v5009, %v5057
    %5059 = vmatmul.bf16.gmra.mxu0 %v2176
    %v5060 = vpop.f32.mrf.mxu0
    %v5061 = vadd.f32 %v5012, %v5060
    %v5062 = vpop.f32.mrf.mxu0
    %v5063 = vadd.f32 %v5014, %v5062
    %5064 = vmatmul.bf16.gmra.mxu0 0
    %v5065 = vpop.f32.mrf.mxu0
    %v5066 = vadd.f32 %v5017, %v5065
    %v5067 = vpop.f32.mrf.mxu0
    %v5068 = vadd.f32 %v5019, %v5067
    %5069 = vdwg.mxu0
    %5070 = vmatpush.bf16.msra.mxu0 %v4873
    %5071 = vmatpush.bf16.msra.mxu0 %v4869
    %5072 = vmatpush.bf16.msra.mxu0 %v4865
    %5073 = vmatpush.bf16.msra.mxu0 %v4861
    %5074 = vmatpush.bf16.msra.mxu0 %v4857
    %5075 = vmatpush.bf16.msra.mxu0 %v4853
    %5076 = vmatpush.bf16.msra.mxu0 %v4849
    %5077 = vmatpush.bf16.msra.mxu0 %v4845
    %5078 = vmatmul.bf16.gmra.mxu0 %v2163
    %v5079 = vpop.f32.mrf.mxu0
    %v5080 = vadd.f32 0.0, %v5079
    %v5081 = vpop.f32.mrf.mxu0
    %v5082 = vadd.f32 0.0, %v5081
    %5083 = vmatmul.bf16.gmra.mxu0 %v2165
    %v5084 = vpop.f32.mrf.mxu0
    %v5085 = vadd.f32 0.0, %v5084
    %v5086 = vpop.f32.mrf.mxu0
    %v5087 = vadd.f32 0.0, %v5086
    %5088 = vmatmul.bf16.gmra.mxu0 %v2167
    %v5089 = vpop.f32.mrf.mxu0
    %v5090 = vadd.f32 0.0, %v5089
    %v5091 = vpop.f32.mrf.mxu0
    %v5092 = vadd.f32 0.0, %v5091
    %5093 = vmatmul.bf16.gmra.mxu0 %v2169
    %v5094 = vpop.f32.mrf.mxu0
    %v5095 = vadd.f32 0.0, %v5094
    %v5096 = vpop.f32.mrf.mxu0
    %v5097 = vadd.f32 0.0, %v5096
    %5098 = vmatmul.bf16.gmra.mxu0 %v2171
    %v5099 = vpop.f32.mrf.mxu0
    %v5100 = vadd.f32 0.0, %v5099
    %v5101 = vpop.f32.mrf.mxu0
    %v5102 = vadd.f32 0.0, %v5101
    %5103 = vmatmul.bf16.gmra.mxu0 %v2173
    %v5104 = vpop.f32.mrf.mxu0
    %v5105 = vadd.f32 0.0, %v5104
    %v5106 = vpop.f32.mrf.mxu0
    %v5107 = vadd.f32 0.0, %v5106
    %5108 = vmatmul.bf16.gmra.mxu0 %v2175
    %v5109 = vpop.f32.mrf.mxu0
    %v5110 = vadd.f32 0.0, %v5109
    %v5111 = vpop.f32.mrf.mxu0
    %v5112 = vadd.f32 0.0, %v5111
    %5113 = vmatmul.bf16.gmra.mxu0 0
    %v5114 = vpop.f32.mrf.mxu0
    %v5115 = vadd.f32 0.0, %v5114
    %v5116 = vpop.f32.mrf.mxu0
    %v5117 = vadd.f32 0.0, %v5116
    %5118 = vdwg.mxu0
    %5119 = vmatpush.bf16.msra.mxu0 %v4905
    %5120 = vmatpush.bf16.msra.mxu0 %v4901
    %5121 = vmatpush.bf16.msra.mxu0 %v4897
    %5122 = vmatpush.bf16.msra.mxu0 %v4893
    %5123 = vmatpush.bf16.msra.mxu0 %v4889
    %5124 = vmatpush.bf16.msra.mxu0 %v4885
    %5125 = vmatpush.bf16.msra.mxu0 %v4881
    %5126 = vmatpush.bf16.msra.mxu0 %v4877
    %5127 = vmatmul.bf16.gmra.mxu0 %v2164
    %v5128 = vpop.f32.mrf.mxu0
    %v5129 = vadd.f32 %v5080, %v5128
    %v5130 = vpop.f32.mrf.mxu0
    %v5131 = vadd.f32 %v5082, %v5130
    %5132 = vmatmul.bf16.gmra.mxu0 %v2166
    %v5133 = vpop.f32.mrf.mxu0
    %v5134 = vadd.f32 %v5085, %v5133
    %v5135 = vpop.f32.mrf.mxu0
    %v5136 = vadd.f32 %v5087, %v5135
    %5137 = vmatmul.bf16.gmra.mxu0 %v2168
    %v5138 = vpop.f32.mrf.mxu0
    %v5139 = vadd.f32 %v5090, %v5138
    %v5140 = vpop.f32.mrf.mxu0
    %v5141 = vadd.f32 %v5092, %v5140
    %5142 = vmatmul.bf16.gmra.mxu0 %v2170
    %v5143 = vpop.f32.mrf.mxu0
    %v5144 = vadd.f32 %v5095, %v5143
    %v5145 = vpop.f32.mrf.mxu0
    %v5146 = vadd.f32 %v5097, %v5145
    %5147 = vmatmul.bf16.gmra.mxu0 %v2172
    %v5148 = vpop.f32.mrf.mxu0
    %v5149 = vadd.f32 %v5100, %v5148
    %v5150 = vpop.f32.mrf.mxu0
    %v5151 = vadd.f32 %v5102, %v5150
    %5152 = vmatmul.bf16.gmra.mxu0 %v2174
    %v5153 = vpop.f32.mrf.mxu0
    %v5154 = vadd.f32 %v5105, %v5153
    %v5155 = vpop.f32.mrf.mxu0
    %v5156 = vadd.f32 %v5107, %v5155
    %5157 = vmatmul.bf16.gmra.mxu0 %v2176
    %v5158 = vpop.f32.mrf.mxu0
    %v5159 = vadd.f32 %v5110, %v5158
    %v5160 = vpop.f32.mrf.mxu0
    %v5161 = vadd.f32 %v5112, %v5160
    %5162 = vmatmul.bf16.gmra.mxu0 0
    %v5163 = vpop.f32.mrf.mxu0
    %v5164 = vadd.f32 %v5115, %v5163
    %v5165 = vpop.f32.mrf.mxu0
    %v5166 = vadd.f32 %v5117, %v5165
    %5167 = vdwg.mxu0
    %5168 = vmatpush.bf16.msra.mxu0 %v4874
    %5169 = vmatpush.bf16.msra.mxu0 %v4870
    %5170 = vmatpush.bf16.msra.mxu0 %v4866
    %5171 = vmatpush.bf16.msra.mxu0 %v4862
    %5172 = vmatpush.bf16.msra.mxu0 %v4858
    %5173 = vmatpush.bf16.msra.mxu0 %v4854
    %5174 = vmatpush.bf16.msra.mxu0 %v4850
    %5175 = vmatpush.bf16.msra.mxu0 %v4846
    %5176 = vmatmul.bf16.gmra.mxu0 %v2163
    %v5177 = vpop.f32.mrf.mxu0
    %v5178 = vadd.f32 0.0, %v5177
    %v5179 = vpop.f32.mrf.mxu0
    %v5180 = vadd.f32 0.0, %v5179
    %5181 = vmatmul.bf16.gmra.mxu0 %v2165
    %v5182 = vpop.f32.mrf.mxu0
    %v5183 = vadd.f32 0.0, %v5182
    %v5184 = vpop.f32.mrf.mxu0
    %v5185 = vadd.f32 0.0, %v5184
    %5186 = vmatmul.bf16.gmra.mxu0 %v2167
    %v5187 = vpop.f32.mrf.mxu0
    %v5188 = vadd.f32 0.0, %v5187
    %v5189 = vpop.f32.mrf.mxu0
    %v5190 = vadd.f32 0.0, %v5189
    %5191 = vmatmul.bf16.gmra.mxu0 %v2169
    %v5192 = vpop.f32.mrf.mxu0
    %v5193 = vadd.f32 0.0, %v5192
    %v5194 = vpop.f32.mrf.mxu0
    %v5195 = vadd.f32 0.0, %v5194
    %5196 = vmatmul.bf16.gmra.mxu0 %v2171
    %v5197 = vpop.f32.mrf.mxu0
    %v5198 = vadd.f32 0.0, %v5197
    %v5199 = vpop.f32.mrf.mxu0
    %v5200 = vadd.f32 0.0, %v5199
    %5201 = vmatmul.bf16.gmra.mxu0 %v2173
    %v5202 = vpop.f32.mrf.mxu0
    %v5203 = vadd.f32 0.0, %v5202
    %v5204 = vpop.f32.mrf.mxu0
    %v5205 = vadd.f32 0.0, %v5204
    %5206 = vmatmul.bf16.gmra.mxu0 %v2175
    %v5207 = vpop.f32.mrf.mxu0
    %v5208 = vadd.f32 0.0, %v5207
    %v5209 = vpop.f32.mrf.mxu0
    %v5210 = vadd.f32 0.0, %v5209
    %5211 = vmatmul.bf16.gmra.mxu0 0
    %v5212 = vpop.f32.mrf.mxu0
    %v5213 = vadd.f32 0.0, %v5212
    %v5214 = vpop.f32.mrf.mxu0
    %v5215 = vadd.f32 0.0, %v5214
    %5216 = vdwg.mxu0
    %5217 = vmatpush.bf16.msra.mxu0 %v4906
    %5218 = vmatpush.bf16.msra.mxu0 %v4902
    %5219 = vmatpush.bf16.msra.mxu0 %v4898
    %5220 = vmatpush.bf16.msra.mxu0 %v4894
    %5221 = vmatpush.bf16.msra.mxu0 %v4890
    %5222 = vmatpush.bf16.msra.mxu0 %v4886
    %5223 = vmatpush.bf16.msra.mxu0 %v4882
    %5224 = vmatpush.bf16.msra.mxu0 %v4878
    %5225 = vmatmul.bf16.gmra.mxu0 %v2164
    %v5226 = vpop.f32.mrf.mxu0
    %v5227 = vadd.f32 %v5178, %v5226
    %v5228 = vpop.f32.mrf.mxu0
    %v5229 = vadd.f32 %v5180, %v5228
    %5230 = vmatmul.bf16.gmra.mxu0 %v2166
    %v5231 = vpop.f32.mrf.mxu0
    %v5232 = vadd.f32 %v5183, %v5231
    %v5233 = vpop.f32.mrf.mxu0
    %v5234 = vadd.f32 %v5185, %v5233
    %5235 = vmatmul.bf16.gmra.mxu0 %v2168
    %v5236 = vpop.f32.mrf.mxu0
    %v5237 = vadd.f32 %v5188, %v5236
    %v5238 = vpop.f32.mrf.mxu0
    %v5239 = vadd.f32 %v5190, %v5238
    %5240 = vmatmul.bf16.gmra.mxu0 %v2170
    %v5241 = vpop.f32.mrf.mxu0
    %v5242 = vadd.f32 %v5193, %v5241
    %v5243 = vpop.f32.mrf.mxu0
    %v5244 = vadd.f32 %v5195, %v5243
    %5245 = vmatmul.bf16.gmra.mxu0 %v2172
    %v5246 = vpop.f32.mrf.mxu0
    %v5247 = vadd.f32 %v5198, %v5246
    %v5248 = vpop.f32.mrf.mxu0
    %v5249 = vadd.f32 %v5200, %v5248
    %5250 = vmatmul.bf16.gmra.mxu0 %v2174
    %v5251 = vpop.f32.mrf.mxu0
    %v5252 = vadd.f32 %v5203, %v5251
    %v5253 = vpop.f32.mrf.mxu0
    %v5254 = vadd.f32 %v5205, %v5253
    %5255 = vmatmul.bf16.gmra.mxu0 %v2176
    %v5256 = vpop.f32.mrf.mxu0
    %v5257 = vadd.f32 %v5208, %v5256
    %v5258 = vpop.f32.mrf.mxu0
    %v5259 = vadd.f32 %v5210, %v5258
    %5260 = vmatmul.bf16.gmra.mxu0 0
    %v5261 = vpop.f32.mrf.mxu0
    %v5262 = vadd.f32 %v5213, %v5261
    %v5263 = vpop.f32.mrf.mxu0
    %v5264 = vadd.f32 %v5215, %v5263
    %5265 = vdwg.mxu0
    %5266 = vmatpush.bf16.msra.mxu0 %v4875
    %5267 = vmatpush.bf16.msra.mxu0 %v4871
    %5268 = vmatpush.bf16.msra.mxu0 %v4867
    %5269 = vmatpush.bf16.msra.mxu0 %v4863
    %5270 = vmatpush.bf16.msra.mxu0 %v4859
    %5271 = vmatpush.bf16.msra.mxu0 %v4855
    %5272 = vmatpush.bf16.msra.mxu0 %v4851
    %5273 = vmatpush.bf16.msra.mxu0 %v4847
    %5274 = vmatmul.bf16.gmra.mxu0 %v2163
    %v5275 = vpop.f32.mrf.mxu0
    %v5276 = vadd.f32 0.0, %v5275
    %v5277 = vpop.f32.mrf.mxu0
    %v5278 = vadd.f32 0.0, %v5277
    %5279 = vmatmul.bf16.gmra.mxu0 %v2165
    %v5280 = vpop.f32.mrf.mxu0
    %v5281 = vadd.f32 0.0, %v5280
    %v5282 = vpop.f32.mrf.mxu0
    %v5283 = vadd.f32 0.0, %v5282
    %5284 = vmatmul.bf16.gmra.mxu0 %v2167
    %v5285 = vpop.f32.mrf.mxu0
    %v5286 = vadd.f32 0.0, %v5285
    %v5287 = vpop.f32.mrf.mxu0
    %v5288 = vadd.f32 0.0, %v5287
    %5289 = vmatmul.bf16.gmra.mxu0 %v2169
    %v5290 = vpop.f32.mrf.mxu0
    %v5291 = vadd.f32 0.0, %v5290
    %v5292 = vpop.f32.mrf.mxu0
    %v5293 = vadd.f32 0.0, %v5292
    %5294 = vmatmul.bf16.gmra.mxu0 %v2171
    %v5295 = vpop.f32.mrf.mxu0
    %v5296 = vadd.f32 0.0, %v5295
    %v5297 = vpop.f32.mrf.mxu0
    %v5298 = vadd.f32 0.0, %v5297
    %5299 = vmatmul.bf16.gmra.mxu0 %v2173
    %v5300 = vpop.f32.mrf.mxu0
    %v5301 = vadd.f32 0.0, %v5300
    %v5302 = vpop.f32.mrf.mxu0
    %v5303 = vadd.f32 0.0, %v5302
    %5304 = vmatmul.bf16.gmra.mxu0 %v2175
    %v5305 = vpop.f32.mrf.mxu0
    %v5306 = vadd.f32 0.0, %v5305
    %v5307 = vpop.f32.mrf.mxu0
    %v5308 = vadd.f32 0.0, %v5307
    %5309 = vmatmul.bf16.gmra.mxu0 0
    %v5310 = vpop.f32.mrf.mxu0
    %v5311 = vadd.f32 0.0, %v5310
    %v5312 = vpop.f32.mrf.mxu0
    %v5313 = vadd.f32 0.0, %v5312
    %5314 = vdwg.mxu0
    %5315 = vmatpush.bf16.msra.mxu0 %v4907
    %5316 = vmatpush.bf16.msra.mxu0 %v4903
    %5317 = vmatpush.bf16.msra.mxu0 %v4899
    %5318 = vmatpush.bf16.msra.mxu0 %v4895
    %5319 = vmatpush.bf16.msra.mxu0 %v4891
    %5320 = vmatpush.bf16.msra.mxu0 %v4887
    %5321 = vmatpush.bf16.msra.mxu0 %v4883
    %5322 = vmatpush.bf16.msra.mxu0 %v4879
    %5323 = vmatmul.bf16.gmra.mxu0 %v2164
    %v5324 = vpop.f32.mrf.mxu0
    %v5325 = vadd.f32 %v5276, %v5324
    %v5326 = vpop.f32.mrf.mxu0
    %v5327 = vadd.f32 %v5278, %v5326
    %5328 = vmatmul.bf16.gmra.mxu0 %v2166
    %v5329 = vpop.f32.mrf.mxu0
    %v5330 = vadd.f32 %v5281, %v5329
    %v5331 = vpop.f32.mrf.mxu0
    %v5332 = vadd.f32 %v5283, %v5331
    %5333 = vmatmul.bf16.gmra.mxu0 %v2168
    %v5334 = vpop.f32.mrf.mxu0
    %v5335 = vadd.f32 %v5286, %v5334
    %v5336 = vpop.f32.mrf.mxu0
    %v5337 = vadd.f32 %v5288, %v5336
    %5338 = vmatmul.bf16.gmra.mxu0 %v2170
    %v5339 = vpop.f32.mrf.mxu0
    %v5340 = vadd.f32 %v5291, %v5339
    %v5341 = vpop.f32.mrf.mxu0
    %v5342 = vadd.f32 %v5293, %v5341
    %5343 = vmatmul.bf16.gmra.mxu0 %v2172
    %v5344 = vpop.f32.mrf.mxu0
    %v5345 = vadd.f32 %v5296, %v5344
    %v5346 = vpop.f32.mrf.mxu0
    %v5347 = vadd.f32 %v5298, %v5346
    %5348 = vmatmul.bf16.gmra.mxu0 %v2174
    %v5349 = vpop.f32.mrf.mxu0
    %v5350 = vadd.f32 %v5301, %v5349
    %v5351 = vpop.f32.mrf.mxu0
    %v5352 = vadd.f32 %v5303, %v5351
    %5353 = vmatmul.bf16.gmra.mxu0 %v2176
    %v5354 = vpop.f32.mrf.mxu0
    %v5355 = vadd.f32 %v5306, %v5354
    %v5356 = vpop.f32.mrf.mxu0
    %v5357 = vadd.f32 %v5308, %v5356
    %5358 = vmatmul.bf16.gmra.mxu0 0
    %v5359 = vpop.f32.mrf.mxu0
    %v5360 = vadd.f32 %v5311, %v5359
    %v5361 = vpop.f32.mrf.mxu0
    %v5362 = vadd.f32 %v5313, %v5361
    %5363 = vdwg.mxu0
    %v5364 = vadd.f32 %v4523, %v5031
    %v5365 = vadd.f32 %v4524, %v5129
    %v5366 = vadd.f32 %v4525, %v5227
    %v5367 = vadd.f32 %v4526, %v5325
    %v5368 = vadd.f32 %v4527, %v5033
    %v5369 = vadd.f32 %v4528, %v5131
    %v5370 = vadd.f32 %v4529, %v5229
    %v5371 = vadd.f32 %v4530, %v5327
    %v5372 = vadd.f32 %v4531, %v5036
    %v5373 = vadd.f32 %v4532, %v5134
    %v5374 = vadd.f32 %v4533, %v5232
    %v5375 = vadd.f32 %v4534, %v5330
    %v5376 = vadd.f32 %v4535, %v5038
    %v5377 = vadd.f32 %v4536, %v5136
    %v5378 = vadd.f32 %v4537, %v5234
    %v5379 = vadd.f32 %v4538, %v5332
    %v5380 = vadd.f32 %v4539, %v5041
    %v5381 = vadd.f32 %v4540, %v5139
    %v5382 = vadd.f32 %v4541, %v5237
    %v5383 = vadd.f32 %v4542, %v5335
    %v5384 = vadd.f32 %v4543, %v5043
    %v5385 = vadd.f32 %v4544, %v5141
    %v5386 = vadd.f32 %v4545, %v5239
    %v5387 = vadd.f32 %v4546, %v5337
    %v5388 = vadd.f32 %v4547, %v5046
    %v5389 = vadd.f32 %v4548, %v5144
    %v5390 = vadd.f32 %v4549, %v5242
    %v5391 = vadd.f32 %v4550, %v5340
    %v5392 = vadd.f32 %v4551, %v5048
    %v5393 = vadd.f32 %v4552, %v5146
    %v5394 = vadd.f32 %v4553, %v5244
    %v5395 = vadd.f32 %v4554, %v5342
    %v5396 = vadd.f32 %v4555, %v5051
    %v5397 = vadd.f32 %v4556, %v5149
    %v5398 = vadd.f32 %v4557, %v5247
    %v5399 = vadd.f32 %v4558, %v5345
    %v5400 = vadd.f32 %v4559, %v5053
    %v5401 = vadd.f32 %v4560, %v5151
    %v5402 = vadd.f32 %v4561, %v5249
    %v5403 = vadd.f32 %v4562, %v5347
    %v5404 = vadd.f32 %v4563, %v5056
    %v5405 = vadd.f32 %v4564, %v5154
    %v5406 = vadd.f32 %v4565, %v5252
    %v5407 = vadd.f32 %v4566, %v5350
    %v5408 = vadd.f32 %v4567, %v5058
    %v5409 = vadd.f32 %v4568, %v5156
    %v5410 = vadd.f32 %v4569, %v5254
    %v5411 = vadd.f32 %v4570, %v5352
    %v5412 = vadd.f32 %v4571, %v5061
    %v5413 = vadd.f32 %v4572, %v5159
    %v5414 = vadd.f32 %v4573, %v5257
    %v5415 = vadd.f32 %v4574, %v5355
    %v5416 = vadd.f32 %v4575, %v5063
    %v5417 = vadd.f32 %v4576, %v5161
    %v5418 = vadd.f32 %v4577, %v5259
    %v5419 = vadd.f32 %v4578, %v5357
    %v5420 = vadd.f32 %v4579, %v5066
    %v5421 = vadd.f32 %v4580, %v5164
    %v5422 = vadd.f32 %v4581, %v5262
    %v5423 = vadd.f32 %v4582, %v5360
    %v5424 = vadd.f32 %v4583, %v5068
    %v5425 = vadd.f32 %v4584, %v5166
    %v5426 = vadd.f32 %v4585, %v5264
    %v5427 = vadd.f32 %v4586, %v5362
    %s5428 = scalar_lea.vmem %s9, 2048
    %v5429 = vld [vmem:[%s5428] sm:$0xff]
    %v5430 = vld [vmem:[%s5428 + $0x8] sm:$0xff]
    %v5431 = vld [vmem:[%s5428 + $0x10] sm:$0xff]
    %v5432 = vld [vmem:[%s5428 + $0x18] sm:$0xff]
    %v5433 = vld [vmem:[%s5428 + $0x20] sm:$0xff]
    %v5434 = vld [vmem:[%s5428 + $0x28] sm:$0xff]
    %v5435 = vld [vmem:[%s5428 + $0x30] sm:$0xff]
    %v5436 = vld [vmem:[%s5428 + $0x38] sm:$0xff]
    %v5437 = vld [vmem:[%s5428 + $0x40] sm:$0xff]
    %v5438 = vld [vmem:[%s5428 + $0x48] sm:$0xff]
    %v5439 = vld [vmem:[%s5428 + $0x50] sm:$0xff]
    %v5440 = vld [vmem:[%s5428 + $0x58] sm:$0xff]
    %v5441 = vld [vmem:[%s5428 + $0x60] sm:$0xff]
    %v5442 = vld [vmem:[%s5428 + $0x68] sm:$0xff]
    %v5443 = vld [vmem:[%s5428 + $0x70] sm:$0xff]
    %v5444 = vld [vmem:[%s5428 + $0x78] sm:$0xff]
    %v5445 = vld [vmem:[%s5428 + $0x80] sm:$0xff]
    %v5446 = vld [vmem:[%s5428 + $0x88] sm:$0xff]
    %v5447 = vld [vmem:[%s5428 + $0x90] sm:$0xff]
    %v5448 = vld [vmem:[%s5428 + $0x98] sm:$0xff]
    %v5449 = vld [vmem:[%s5428 + $0xa0] sm:$0xff]
    %v5450 = vld [vmem:[%s5428 + $0xa8] sm:$0xff]
    %v5451 = vld [vmem:[%s5428 + $0xb0] sm:$0xff]
    %v5452 = vld [vmem:[%s5428 + $0xb8] sm:$0xff]
    %v5453 = vld [vmem:[%s5428 + $0xc0] sm:$0xff]
    %v5454 = vld [vmem:[%s5428 + $0xc8] sm:$0xff]
    %v5455 = vld [vmem:[%s5428 + $0xd0] sm:$0xff]
    %v5456 = vld [vmem:[%s5428 + $0xd8] sm:$0xff]
    %v5457 = vld [vmem:[%s5428 + $0xe0] sm:$0xff]
    %v5458 = vld [vmem:[%s5428 + $0xe8] sm:$0xff]
    %v5459 = vld [vmem:[%s5428 + $0xf0] sm:$0xff]
    %v5460 = vld [vmem:[%s5428 + $0xf8] sm:$0xff]
    %v5461 = vld [vmem:[%s5428 + $0x100] sm:$0xff]
    %v5462 = vld [vmem:[%s5428 + $0x108] sm:$0xff]
    %v5463 = vld [vmem:[%s5428 + $0x110] sm:$0xff]
    %v5464 = vld [vmem:[%s5428 + $0x118] sm:$0xff]
    %v5465 = vld [vmem:[%s5428 + $0x120] sm:$0xff]
    %v5466 = vld [vmem:[%s5428 + $0x128] sm:$0xff]
    %v5467 = vld [vmem:[%s5428 + $0x130] sm:$0xff]
    %v5468 = vld [vmem:[%s5428 + $0x138] sm:$0xff]
    %v5469 = vld [vmem:[%s5428 + $0x140] sm:$0xff]
    %v5470 = vld [vmem:[%s5428 + $0x148] sm:$0xff]
    %v5471 = vld [vmem:[%s5428 + $0x150] sm:$0xff]
    %v5472 = vld [vmem:[%s5428 + $0x158] sm:$0xff]
    %v5473 = vld [vmem:[%s5428 + $0x160] sm:$0xff]
    %v5474 = vld [vmem:[%s5428 + $0x168] sm:$0xff]
    %v5475 = vld [vmem:[%s5428 + $0x170] sm:$0xff]
    %v5476 = vld [vmem:[%s5428 + $0x178] sm:$0xff]
    %v5477 = vld [vmem:[%s5428 + $0x180] sm:$0xff]
    %v5478 = vld [vmem:[%s5428 + $0x188] sm:$0xff]
    %v5479 = vld [vmem:[%s5428 + $0x190] sm:$0xff]
    %v5480 = vld [vmem:[%s5428 + $0x198] sm:$0xff]
    %v5481 = vld [vmem:[%s5428 + $0x1a0] sm:$0xff]
    %v5482 = vld [vmem:[%s5428 + $0x1a8] sm:$0xff]
    %v5483 = vld [vmem:[%s5428 + $0x1b0] sm:$0xff]
    %v5484 = vld [vmem:[%s5428 + $0x1b8] sm:$0xff]
    %v5485 = vld [vmem:[%s5428 + $0x1c0] sm:$0xff]
    %v5486 = vld [vmem:[%s5428 + $0x1c8] sm:$0xff]
    %v5487 = vld [vmem:[%s5428 + $0x1d0] sm:$0xff]
    %v5488 = vld [vmem:[%s5428 + $0x1d8] sm:$0xff]
    %v5489 = vld [vmem:[%s5428 + $0x1e0] sm:$0xff]
    %v5490 = vld [vmem:[%s5428 + $0x1e8] sm:$0xff]
    %v5491 = vld [vmem:[%s5428 + $0x1f0] sm:$0xff]
    %v5492 = vld [vmem:[%s5428 + $0x1f8] sm:$0xff]
    %v5557 = vunpack.c.l.b16 %v5429
    %v5558 = vunpack.c.h.b16 %v5429
    %v5559 = vunpack.c.l.b16 %v5430
    %v5560 = vunpack.c.h.b16 %v5430
    %v5561 = vunpack.c.l.b16 %v5431
    %v5562 = vunpack.c.h.b16 %v5431
    %v5563 = vunpack.c.l.b16 %v5432
    %v5564 = vunpack.c.h.b16 %v5432
    %v5565 = vunpack.c.l.b16 %v5433
    %v5566 = vunpack.c.h.b16 %v5433
    %v5567 = vunpack.c.l.b16 %v5434
    %v5568 = vunpack.c.h.b16 %v5434
    %v5569 = vunpack.c.l.b16 %v5435
    %v5570 = vunpack.c.h.b16 %v5435
    %v5571 = vunpack.c.l.b16 %v5436
    %v5572 = vunpack.c.h.b16 %v5436
    %v5573 = vunpack.c.l.b16 %v5437
    %v5574 = vunpack.c.h.b16 %v5437
    %v5575 = vunpack.c.l.b16 %v5438
    %v5576 = vunpack.c.h.b16 %v5438
    %v5577 = vunpack.c.l.b16 %v5439
    %v5578 = vunpack.c.h.b16 %v5439
    %v5579 = vunpack.c.l.b16 %v5440
    %v5580 = vunpack.c.h.b16 %v5440
    %v5581 = vunpack.c.l.b16 %v5441
    %v5582 = vunpack.c.h.b16 %v5441
    %v5583 = vunpack.c.l.b16 %v5442
    %v5584 = vunpack.c.h.b16 %v5442
    %v5585 = vunpack.c.l.b16 %v5443
    %v5586 = vunpack.c.h.b16 %v5443
    %v5587 = vunpack.c.l.b16 %v5444
    %v5588 = vunpack.c.h.b16 %v5444
    %v5589 = vunpack.c.l.b16 %v5445
    %v5590 = vunpack.c.h.b16 %v5445
    %v5591 = vunpack.c.l.b16 %v5446
    %v5592 = vunpack.c.h.b16 %v5446
    %v5593 = vunpack.c.l.b16 %v5447
    %v5594 = vunpack.c.h.b16 %v5447
    %v5595 = vunpack.c.l.b16 %v5448
    %v5596 = vunpack.c.h.b16 %v5448
    %v5597 = vunpack.c.l.b16 %v5449
    %v5598 = vunpack.c.h.b16 %v5449
    %v5599 = vunpack.c.l.b16 %v5450
    %v5600 = vunpack.c.h.b16 %v5450
    %v5601 = vunpack.c.l.b16 %v5451
    %v5602 = vunpack.c.h.b16 %v5451
    %v5603 = vunpack.c.l.b16 %v5452
    %v5604 = vunpack.c.h.b16 %v5452
    %v5605 = vunpack.c.l.b16 %v5453
    %v5606 = vunpack.c.h.b16 %v5453
    %v5607 = vunpack.c.l.b16 %v5454
    %v5608 = vunpack.c.h.b16 %v5454
    %v5609 = vunpack.c.l.b16 %v5455
    %v5610 = vunpack.c.h.b16 %v5455
    %v5611 = vunpack.c.l.b16 %v5456
    %v5612 = vunpack.c.h.b16 %v5456
    %v5613 = vunpack.c.l.b16 %v5457
    %v5614 = vunpack.c.h.b16 %v5457
    %v5615 = vunpack.c.l.b16 %v5458
    %v5616 = vunpack.c.h.b16 %v5458
    %v5617 = vunpack.c.l.b16 %v5459
    %v5618 = vunpack.c.h.b16 %v5459
    %v5619 = vunpack.c.l.b16 %v5460
    %v5620 = vunpack.c.h.b16 %v5460
    %v5621 = vunpack.c.l.b16 %v5461
    %v5622 = vunpack.c.h.b16 %v5461
    %v5623 = vunpack.c.l.b16 %v5462
    %v5624 = vunpack.c.h.b16 %v5462
    %v5625 = vunpack.c.l.b16 %v5463
    %v5626 = vunpack.c.h.b16 %v5463
    %v5627 = vunpack.c.l.b16 %v5464
    %v5628 = vunpack.c.h.b16 %v5464
    %v5629 = vunpack.c.l.b16 %v5465
    %v5630 = vunpack.c.h.b16 %v5465
    %v5631 = vunpack.c.l.b16 %v5466
    %v5632 = vunpack.c.h.b16 %v5466
    %v5633 = vunpack.c.l.b16 %v5467
    %v5634 = vunpack.c.h.b16 %v5467
    %v5635 = vunpack.c.l.b16 %v5468
    %v5636 = vunpack.c.h.b16 %v5468
    %v5637 = vunpack.c.l.b16 %v5469
    %v5638 = vunpack.c.h.b16 %v5469
    %v5639 = vunpack.c.l.b16 %v5470
    %v5640 = vunpack.c.h.b16 %v5470
    %v5641 = vunpack.c.l.b16 %v5471
    %v5642 = vunpack.c.h.b16 %v5471
    %v5643 = vunpack.c.l.b16 %v5472
    %v5644 = vunpack.c.h.b16 %v5472
    %v5645 = vunpack.c.l.b16 %v5473
    %v5646 = vunpack.c.h.b16 %v5473
    %v5647 = vunpack.c.l.b16 %v5474
    %v5648 = vunpack.c.h.b16 %v5474
    %v5649 = vunpack.c.l.b16 %v5475
    %v5650 = vunpack.c.h.b16 %v5475
    %v5651 = vunpack.c.l.b16 %v5476
    %v5652 = vunpack.c.h.b16 %v5476
    %v5653 = vunpack.c.l.b16 %v5477
    %v5654 = vunpack.c.h.b16 %v5477
    %v5655 = vunpack.c.l.b16 %v5478
    %v5656 = vunpack.c.h.b16 %v5478
    %v5657 = vunpack.c.l.b16 %v5479
    %v5658 = vunpack.c.h.b16 %v5479
    %v5659 = vunpack.c.l.b16 %v5480
    %v5660 = vunpack.c.h.b16 %v5480
    %v5661 = vunpack.c.l.b16 %v5481
    %v5662 = vunpack.c.h.b16 %v5481
    %v5663 = vunpack.c.l.b16 %v5482
    %v5664 = vunpack.c.h.b16 %v5482
    %v5665 = vunpack.c.l.b16 %v5483
    %v5666 = vunpack.c.h.b16 %v5483
    %v5667 = vunpack.c.l.b16 %v5484
    %v5668 = vunpack.c.h.b16 %v5484
    %v5669 = vunpack.c.l.b16 %v5485
    %v5670 = vunpack.c.h.b16 %v5485
    %v5671 = vunpack.c.l.b16 %v5486
    %v5672 = vunpack.c.h.b16 %v5486
    %v5673 = vunpack.c.l.b16 %v5487
    %v5674 = vunpack.c.h.b16 %v5487
    %v5675 = vunpack.c.l.b16 %v5488
    %v5676 = vunpack.c.h.b16 %v5488
    %v5677 = vunpack.c.l.b16 %v5489
    %v5678 = vunpack.c.h.b16 %v5489
    %v5679 = vunpack.c.l.b16 %v5490
    %v5680 = vunpack.c.h.b16 %v5490
    %v5681 = vunpack.c.l.b16 %v5491
    %v5682 = vunpack.c.h.b16 %v5491
    %v5683 = vunpack.c.l.b16 %v5492
    %v5684 = vunpack.c.h.b16 %v5492
    %v5685 = vpack.c.b16 %v5561, %v5557
    %v5686 = vpack.c.b16 %v5562, %v5558
    %v5687 = vpack.c.b16 %v5563, %v5559
    %v5688 = vpack.c.b16 %v5564, %v5560
    %v5689 = vpack.c.b16 %v5569, %v5565
    %v5690 = vpack.c.b16 %v5570, %v5566
    %v5691 = vpack.c.b16 %v5571, %v5567
    %v5692 = vpack.c.b16 %v5572, %v5568
    %v5693 = vpack.c.b16 %v5577, %v5573
    %v5694 = vpack.c.b16 %v5578, %v5574
    %v5695 = vpack.c.b16 %v5579, %v5575
    %v5696 = vpack.c.b16 %v5580, %v5576
    %v5697 = vpack.c.b16 %v5585, %v5581
    %v5698 = vpack.c.b16 %v5586, %v5582
    %v5699 = vpack.c.b16 %v5587, %v5583
    %v5700 = vpack.c.b16 %v5588, %v5584
    %v5701 = vpack.c.b16 %v5593, %v5589
    %v5702 = vpack.c.b16 %v5594, %v5590
    %v5703 = vpack.c.b16 %v5595, %v5591
    %v5704 = vpack.c.b16 %v5596, %v5592
    %v5705 = vpack.c.b16 %v5601, %v5597
    %v5706 = vpack.c.b16 %v5602, %v5598
    %v5707 = vpack.c.b16 %v5603, %v5599
    %v5708 = vpack.c.b16 %v5604, %v5600
    %v5709 = vpack.c.b16 %v5609, %v5605
    %v5710 = vpack.c.b16 %v5610, %v5606
    %v5711 = vpack.c.b16 %v5611, %v5607
    %v5712 = vpack.c.b16 %v5612, %v5608
    %v5713 = vpack.c.b16 %v5617, %v5613
    %v5714 = vpack.c.b16 %v5618, %v5614
    %v5715 = vpack.c.b16 %v5619, %v5615
    %v5716 = vpack.c.b16 %v5620, %v5616
    %v5717 = vpack.c.b16 %v5625, %v5621
    %v5718 = vpack.c.b16 %v5626, %v5622
    %v5719 = vpack.c.b16 %v5627, %v5623
    %v5720 = vpack.c.b16 %v5628, %v5624
    %v5721 = vpack.c.b16 %v5633, %v5629
    %v5722 = vpack.c.b16 %v5634, %v5630
    %v5723 = vpack.c.b16 %v5635, %v5631
    %v5724 = vpack.c.b16 %v5636, %v5632
    %v5725 = vpack.c.b16 %v5641, %v5637
    %v5726 = vpack.c.b16 %v5642, %v5638
    %v5727 = vpack.c.b16 %v5643, %v5639
    %v5728 = vpack.c.b16 %v5644, %v5640
    %v5729 = vpack.c.b16 %v5649, %v5645
    %v5730 = vpack.c.b16 %v5650, %v5646
    %v5731 = vpack.c.b16 %v5651, %v5647
    %v5732 = vpack.c.b16 %v5652, %v5648
    %v5733 = vpack.c.b16 %v5657, %v5653
    %v5734 = vpack.c.b16 %v5658, %v5654
    %v5735 = vpack.c.b16 %v5659, %v5655
    %v5736 = vpack.c.b16 %v5660, %v5656
    %v5737 = vpack.c.b16 %v5665, %v5661
    %v5738 = vpack.c.b16 %v5666, %v5662
    %v5739 = vpack.c.b16 %v5667, %v5663
    %v5740 = vpack.c.b16 %v5668, %v5664
    %v5741 = vpack.c.b16 %v5673, %v5669
    %v5742 = vpack.c.b16 %v5674, %v5670
    %v5743 = vpack.c.b16 %v5675, %v5671
    %v5744 = vpack.c.b16 %v5676, %v5672
    %v5745 = vpack.c.b16 %v5681, %v5677
    %v5746 = vpack.c.b16 %v5682, %v5678
    %v5747 = vpack.c.b16 %v5683, %v5679
    %v5748 = vpack.c.b16 %v5684, %v5680
    %5813 = vmatpush.bf16.msra.mxu0 %v5713
    %5814 = vmatpush.bf16.msra.mxu0 %v5709
    %5815 = vmatpush.bf16.msra.mxu0 %v5705
    %5816 = vmatpush.bf16.msra.mxu0 %v5701
    %5817 = vmatpush.bf16.msra.mxu0 %v5697
    %5818 = vmatpush.bf16.msra.mxu0 %v5693
    %5819 = vmatpush.bf16.msra.mxu0 %v5689
    %5820 = vmatpush.bf16.msra.mxu0 %v5685
    %5821 = vmatmul.bf16.gmra.mxu0 %v2165
    %v5822 = vpop.f32.mrf.mxu0
    %v5823 = vadd.f32 0.0, %v5822
    %v5824 = vpop.f32.mrf.mxu0
    %v5825 = vadd.f32 0.0, %v5824
    %5826 = vmatmul.bf16.gmra.mxu0 %v2167
    %v5827 = vpop.f32.mrf.mxu0
    %v5828 = vadd.f32 0.0, %v5827
    %v5829 = vpop.f32.mrf.mxu0
    %v5830 = vadd.f32 0.0, %v5829
    %5831 = vmatmul.bf16.gmra.mxu0 %v2169
    %v5832 = vpop.f32.mrf.mxu0
    %v5833 = vadd.f32 0.0, %v5832
    %v5834 = vpop.f32.mrf.mxu0
    %v5835 = vadd.f32 0.0, %v5834
    %5836 = vmatmul.bf16.gmra.mxu0 %v2171
    %v5837 = vpop.f32.mrf.mxu0
    %v5838 = vadd.f32 0.0, %v5837
    %v5839 = vpop.f32.mrf.mxu0
    %v5840 = vadd.f32 0.0, %v5839
    %5841 = vmatmul.bf16.gmra.mxu0 %v2173
    %v5842 = vpop.f32.mrf.mxu0
    %v5843 = vadd.f32 0.0, %v5842
    %v5844 = vpop.f32.mrf.mxu0
    %v5845 = vadd.f32 0.0, %v5844
    %5846 = vmatmul.bf16.gmra.mxu0 %v2175
    %v5847 = vpop.f32.mrf.mxu0
    %v5848 = vadd.f32 0.0, %v5847
    %v5849 = vpop.f32.mrf.mxu0
    %v5850 = vadd.f32 0.0, %v5849
    %5851 = vmatmul.bf16.gmra.mxu0 0
    %v5852 = vpop.f32.mrf.mxu0
    %v5853 = vadd.f32 0.0, %v5852
    %v5854 = vpop.f32.mrf.mxu0
    %v5855 = vadd.f32 0.0, %v5854
    %5856 = vmatmul.bf16.gmra.mxu0 0
    %v5857 = vpop.f32.mrf.mxu0
    %v5858 = vadd.f32 0.0, %v5857
    %v5859 = vpop.f32.mrf.mxu0
    %v5860 = vadd.f32 0.0, %v5859
    %5861 = vdwg.mxu0
    %5862 = vmatpush.bf16.msra.mxu0 %v5745
    %5863 = vmatpush.bf16.msra.mxu0 %v5741
    %5864 = vmatpush.bf16.msra.mxu0 %v5737
    %5865 = vmatpush.bf16.msra.mxu0 %v5733
    %5866 = vmatpush.bf16.msra.mxu0 %v5729
    %5867 = vmatpush.bf16.msra.mxu0 %v5725
    %5868 = vmatpush.bf16.msra.mxu0 %v5721
    %5869 = vmatpush.bf16.msra.mxu0 %v5717
    %5870 = vmatmul.bf16.gmra.mxu0 %v2166
    %v5871 = vpop.f32.mrf.mxu0
    %v5872 = vadd.f32 %v5823, %v5871
    %v5873 = vpop.f32.mrf.mxu0
    %v5874 = vadd.f32 %v5825, %v5873
    %5875 = vmatmul.bf16.gmra.mxu0 %v2168
    %v5876 = vpop.f32.mrf.mxu0
    %v5877 = vadd.f32 %v5828, %v5876
    %v5878 = vpop.f32.mrf.mxu0
    %v5879 = vadd.f32 %v5830, %v5878
    %5880 = vmatmul.bf16.gmra.mxu0 %v2170
    %v5881 = vpop.f32.mrf.mxu0
    %v5882 = vadd.f32 %v5833, %v5881
    %v5883 = vpop.f32.mrf.mxu0
    %v5884 = vadd.f32 %v5835, %v5883
    %5885 = vmatmul.bf16.gmra.mxu0 %v2172
    %v5886 = vpop.f32.mrf.mxu0
    %v5887 = vadd.f32 %v5838, %v5886
    %v5888 = vpop.f32.mrf.mxu0
    %v5889 = vadd.f32 %v5840, %v5888
    %5890 = vmatmul.bf16.gmra.mxu0 %v2174
    %v5891 = vpop.f32.mrf.mxu0
    %v5892 = vadd.f32 %v5843, %v5891
    %v5893 = vpop.f32.mrf.mxu0
    %v5894 = vadd.f32 %v5845, %v5893
    %5895 = vmatmul.bf16.gmra.mxu0 %v2176
    %v5896 = vpop.f32.mrf.mxu0
    %v5897 = vadd.f32 %v5848, %v5896
    %v5898 = vpop.f32.mrf.mxu0
    %v5899 = vadd.f32 %v5850, %v5898
    %5900 = vmatmul.bf16.gmra.mxu0 0
    %v5901 = vpop.f32.mrf.mxu0
    %v5902 = vadd.f32 %v5853, %v5901
    %v5903 = vpop.f32.mrf.mxu0
    %v5904 = vadd.f32 %v5855, %v5903
    %5905 = vmatmul.bf16.gmra.mxu0 0
    %v5906 = vpop.f32.mrf.mxu0
    %v5907 = vadd.f32 %v5858, %v5906
    %v5908 = vpop.f32.mrf.mxu0
    %v5909 = vadd.f32 %v5860, %v5908
    %5910 = vdwg.mxu0
    %5911 = vmatpush.bf16.msra.mxu0 %v5714
    %5912 = vmatpush.bf16.msra.mxu0 %v5710
    %5913 = vmatpush.bf16.msra.mxu0 %v5706
    %5914 = vmatpush.bf16.msra.mxu0 %v5702
    %5915 = vmatpush.bf16.msra.mxu0 %v5698
    %5916 = vmatpush.bf16.msra.mxu0 %v5694
    %5917 = vmatpush.bf16.msra.mxu0 %v5690
    %5918 = vmatpush.bf16.msra.mxu0 %v5686
    %5919 = vmatmul.bf16.gmra.mxu0 %v2165
    %v5920 = vpop.f32.mrf.mxu0
    %v5921 = vadd.f32 0.0, %v5920
    %v5922 = vpop.f32.mrf.mxu0
    %v5923 = vadd.f32 0.0, %v5922
    %5924 = vmatmul.bf16.gmra.mxu0 %v2167
    %v5925 = vpop.f32.mrf.mxu0
    %v5926 = vadd.f32 0.0, %v5925
    %v5927 = vpop.f32.mrf.mxu0
    %v5928 = vadd.f32 0.0, %v5927
    %5929 = vmatmul.bf16.gmra.mxu0 %v2169
    %v5930 = vpop.f32.mrf.mxu0
    %v5931 = vadd.f32 0.0, %v5930
    %v5932 = vpop.f32.mrf.mxu0
    %v5933 = vadd.f32 0.0, %v5932
    %5934 = vmatmul.bf16.gmra.mxu0 %v2171
    %v5935 = vpop.f32.mrf.mxu0
    %v5936 = vadd.f32 0.0, %v5935
    %v5937 = vpop.f32.mrf.mxu0
    %v5938 = vadd.f32 0.0, %v5937
    %5939 = vmatmul.bf16.gmra.mxu0 %v2173
    %v5940 = vpop.f32.mrf.mxu0
    %v5941 = vadd.f32 0.0, %v5940
    %v5942 = vpop.f32.mrf.mxu0
    %v5943 = vadd.f32 0.0, %v5942
    %5944 = vmatmul.bf16.gmra.mxu0 %v2175
    %v5945 = vpop.f32.mrf.mxu0
    %v5946 = vadd.f32 0.0, %v5945
    %v5947 = vpop.f32.mrf.mxu0
    %v5948 = vadd.f32 0.0, %v5947
    %5949 = vmatmul.bf16.gmra.mxu0 0
    %v5950 = vpop.f32.mrf.mxu0
    %v5951 = vadd.f32 0.0, %v5950
    %v5952 = vpop.f32.mrf.mxu0
    %v5953 = vadd.f32 0.0, %v5952
    %5954 = vmatmul.bf16.gmra.mxu0 0
    %v5955 = vpop.f32.mrf.mxu0
    %v5956 = vadd.f32 0.0, %v5955
    %v5957 = vpop.f32.mrf.mxu0
    %v5958 = vadd.f32 0.0, %v5957
    %5959 = vdwg.mxu0
    %5960 = vmatpush.bf16.msra.mxu0 %v5746
    %5961 = vmatpush.bf16.msra.mxu0 %v5742
    %5962 = vmatpush.bf16.msra.mxu0 %v5738
    %5963 = vmatpush.bf16.msra.mxu0 %v5734
    %5964 = vmatpush.bf16.msra.mxu0 %v5730
    %5965 = vmatpush.bf16.msra.mxu0 %v5726
    %5966 = vmatpush.bf16.msra.mxu0 %v5722
    %5967 = vmatpush.bf16.msra.mxu0 %v5718
    %5968 = vmatmul.bf16.gmra.mxu0 %v2166
    %v5969 = vpop.f32.mrf.mxu0
    %v5970 = vadd.f32 %v5921, %v5969
    %v5971 = vpop.f32.mrf.mxu0
    %v5972 = vadd.f32 %v5923, %v5971
    %5973 = vmatmul.bf16.gmra.mxu0 %v2168
    %v5974 = vpop.f32.mrf.mxu0
    %v5975 = vadd.f32 %v5926, %v5974
    %v5976 = vpop.f32.mrf.mxu0
    %v5977 = vadd.f32 %v5928, %v5976
    %5978 = vmatmul.bf16.gmra.mxu0 %v2170
    %v5979 = vpop.f32.mrf.mxu0
    %v5980 = vadd.f32 %v5931, %v5979
    %v5981 = vpop.f32.mrf.mxu0
    %v5982 = vadd.f32 %v5933, %v5981
    %5983 = vmatmul.bf16.gmra.mxu0 %v2172
    %v5984 = vpop.f32.mrf.mxu0
    %v5985 = vadd.f32 %v5936, %v5984
    %v5986 = vpop.f32.mrf.mxu0
    %v5987 = vadd.f32 %v5938, %v5986
    %5988 = vmatmul.bf16.gmra.mxu0 %v2174
    %v5989 = vpop.f32.mrf.mxu0
    %v5990 = vadd.f32 %v5941, %v5989
    %v5991 = vpop.f32.mrf.mxu0
    %v5992 = vadd.f32 %v5943, %v5991
    %5993 = vmatmul.bf16.gmra.mxu0 %v2176
    %v5994 = vpop.f32.mrf.mxu0
    %v5995 = vadd.f32 %v5946, %v5994
    %v5996 = vpop.f32.mrf.mxu0
    %v5997 = vadd.f32 %v5948, %v5996
    %5998 = vmatmul.bf16.gmra.mxu0 0
    %v5999 = vpop.f32.mrf.mxu0
    %v6000 = vadd.f32 %v5951, %v5999
    %v6001 = vpop.f32.mrf.mxu0
    %v6002 = vadd.f32 %v5953, %v6001
    %6003 = vmatmul.bf16.gmra.mxu0 0
    %v6004 = vpop.f32.mrf.mxu0
    %v6005 = vadd.f32 %v5956, %v6004
    %v6006 = vpop.f32.mrf.mxu0
    %v6007 = vadd.f32 %v5958, %v6006
    %6008 = vdwg.mxu0
    %6009 = vmatpush.bf16.msra.mxu0 %v5715
    %6010 = vmatpush.bf16.msra.mxu0 %v5711
    %6011 = vmatpush.bf16.msra.mxu0 %v5707
    %6012 = vmatpush.bf16.msra.mxu0 %v5703
    %6013 = vmatpush.bf16.msra.mxu0 %v5699
    %6014 = vmatpush.bf16.msra.mxu0 %v5695
    %6015 = vmatpush.bf16.msra.mxu0 %v5691
    %6016 = vmatpush.bf16.msra.mxu0 %v5687
    %6017 = vmatmul.bf16.gmra.mxu0 %v2165
    %v6018 = vpop.f32.mrf.mxu0
    %v6019 = vadd.f32 0.0, %v6018
    %v6020 = vpop.f32.mrf.mxu0
    %v6021 = vadd.f32 0.0, %v6020
    %6022 = vmatmul.bf16.gmra.mxu0 %v2167
    %v6023 = vpop.f32.mrf.mxu0
    %v6024 = vadd.f32 0.0, %v6023
    %v6025 = vpop.f32.mrf.mxu0
    %v6026 = vadd.f32 0.0, %v6025
    %6027 = vmatmul.bf16.gmra.mxu0 %v2169
    %v6028 = vpop.f32.mrf.mxu0
    %v6029 = vadd.f32 0.0, %v6028
    %v6030 = vpop.f32.mrf.mxu0
    %v6031 = vadd.f32 0.0, %v6030
    %6032 = vmatmul.bf16.gmra.mxu0 %v2171
    %v6033 = vpop.f32.mrf.mxu0
    %v6034 = vadd.f32 0.0, %v6033
    %v6035 = vpop.f32.mrf.mxu0
    %v6036 = vadd.f32 0.0, %v6035
    %6037 = vmatmul.bf16.gmra.mxu0 %v2173
    %v6038 = vpop.f32.mrf.mxu0
    %v6039 = vadd.f32 0.0, %v6038
    %v6040 = vpop.f32.mrf.mxu0
    %v6041 = vadd.f32 0.0, %v6040
    %6042 = vmatmul.bf16.gmra.mxu0 %v2175
    %v6043 = vpop.f32.mrf.mxu0
    %v6044 = vadd.f32 0.0, %v6043
    %v6045 = vpop.f32.mrf.mxu0
    %v6046 = vadd.f32 0.0, %v6045
    %6047 = vmatmul.bf16.gmra.mxu0 0
    %v6048 = vpop.f32.mrf.mxu0
    %v6049 = vadd.f32 0.0, %v6048
    %v6050 = vpop.f32.mrf.mxu0
    %v6051 = vadd.f32 0.0, %v6050
    %6052 = vmatmul.bf16.gmra.mxu0 0
    %v6053 = vpop.f32.mrf.mxu0
    %v6054 = vadd.f32 0.0, %v6053
    %v6055 = vpop.f32.mrf.mxu0
    %v6056 = vadd.f32 0.0, %v6055
    %6057 = vdwg.mxu0
    %6058 = vmatpush.bf16.msra.mxu0 %v5747
    %6059 = vmatpush.bf16.msra.mxu0 %v5743
    %6060 = vmatpush.bf16.msra.mxu0 %v5739
    %6061 = vmatpush.bf16.msra.mxu0 %v5735
    %6062 = vmatpush.bf16.msra.mxu0 %v5731
    %6063 = vmatpush.bf16.msra.mxu0 %v5727
    %6064 = vmatpush.bf16.msra.mxu0 %v5723
    %6065 = vmatpush.bf16.msra.mxu0 %v5719
    %6066 = vmatmul.bf16.gmra.mxu0 %v2166
    %v6067 = vpop.f32.mrf.mxu0
    %v6068 = vadd.f32 %v6019, %v6067
    %v6069 = vpop.f32.mrf.mxu0
    %v6070 = vadd.f32 %v6021, %v6069
    %6071 = vmatmul.bf16.gmra.mxu0 %v2168
    %v6072 = vpop.f32.mrf.mxu0
    %v6073 = vadd.f32 %v6024, %v6072
    %v6074 = vpop.f32.mrf.mxu0
    %v6075 = vadd.f32 %v6026, %v6074
    %6076 = vmatmul.bf16.gmra.mxu0 %v2170
    %v6077 = vpop.f32.mrf.mxu0
    %v6078 = vadd.f32 %v6029, %v6077
    %v6079 = vpop.f32.mrf.mxu0
    %v6080 = vadd.f32 %v6031, %v6079
    %6081 = vmatmul.bf16.gmra.mxu0 %v2172
    %v6082 = vpop.f32.mrf.mxu0
    %v6083 = vadd.f32 %v6034, %v6082
    %v6084 = vpop.f32.mrf.mxu0
    %v6085 = vadd.f32 %v6036, %v6084
    %6086 = vmatmul.bf16.gmra.mxu0 %v2174
    %v6087 = vpop.f32.mrf.mxu0
    %v6088 = vadd.f32 %v6039, %v6087
    %v6089 = vpop.f32.mrf.mxu0
    %v6090 = vadd.f32 %v6041, %v6089
    %6091 = vmatmul.bf16.gmra.mxu0 %v2176
    %v6092 = vpop.f32.mrf.mxu0
    %v6093 = vadd.f32 %v6044, %v6092
    %v6094 = vpop.f32.mrf.mxu0
    %v6095 = vadd.f32 %v6046, %v6094
    %6096 = vmatmul.bf16.gmra.mxu0 0
    %v6097 = vpop.f32.mrf.mxu0
    %v6098 = vadd.f32 %v6049, %v6097
    %v6099 = vpop.f32.mrf.mxu0
    %v6100 = vadd.f32 %v6051, %v6099
    %6101 = vmatmul.bf16.gmra.mxu0 0
    %v6102 = vpop.f32.mrf.mxu0
    %v6103 = vadd.f32 %v6054, %v6102
    %v6104 = vpop.f32.mrf.mxu0
    %v6105 = vadd.f32 %v6056, %v6104
    %6106 = vdwg.mxu0
    %6107 = vmatpush.bf16.msra.mxu0 %v5716
    %6108 = vmatpush.bf16.msra.mxu0 %v5712
    %6109 = vmatpush.bf16.msra.mxu0 %v5708
    %6110 = vmatpush.bf16.msra.mxu0 %v5704
    %6111 = vmatpush.bf16.msra.mxu0 %v5700
    %6112 = vmatpush.bf16.msra.mxu0 %v5696
    %6113 = vmatpush.bf16.msra.mxu0 %v5692
    %6114 = vmatpush.bf16.msra.mxu0 %v5688
    %6115 = vmatmul.bf16.gmra.mxu0 %v2165
    %v6116 = vpop.f32.mrf.mxu0
    %v6117 = vadd.f32 0.0, %v6116
    %v6118 = vpop.f32.mrf.mxu0
    %v6119 = vadd.f32 0.0, %v6118
    %6120 = vmatmul.bf16.gmra.mxu0 %v2167
    %v6121 = vpop.f32.mrf.mxu0
    %v6122 = vadd.f32 0.0, %v6121
    %v6123 = vpop.f32.mrf.mxu0
    %v6124 = vadd.f32 0.0, %v6123
    %6125 = vmatmul.bf16.gmra.mxu0 %v2169
    %v6126 = vpop.f32.mrf.mxu0
    %v6127 = vadd.f32 0.0, %v6126
    %v6128 = vpop.f32.mrf.mxu0
    %v6129 = vadd.f32 0.0, %v6128
    %6130 = vmatmul.bf16.gmra.mxu0 %v2171
    %v6131 = vpop.f32.mrf.mxu0
    %v6132 = vadd.f32 0.0, %v6131
    %v6133 = vpop.f32.mrf.mxu0
    %v6134 = vadd.f32 0.0, %v6133
    %6135 = vmatmul.bf16.gmra.mxu0 %v2173
    %v6136 = vpop.f32.mrf.mxu0
    %v6137 = vadd.f32 0.0, %v6136
    %v6138 = vpop.f32.mrf.mxu0
    %v6139 = vadd.f32 0.0, %v6138
    %6140 = vmatmul.bf16.gmra.mxu0 %v2175
    %v6141 = vpop.f32.mrf.mxu0
    %v6142 = vadd.f32 0.0, %v6141
    %v6143 = vpop.f32.mrf.mxu0
    %v6144 = vadd.f32 0.0, %v6143
    %6145 = vmatmul.bf16.gmra.mxu0 0
    %v6146 = vpop.f32.mrf.mxu0
    %v6147 = vadd.f32 0.0, %v6146
    %v6148 = vpop.f32.mrf.mxu0
    %v6149 = vadd.f32 0.0, %v6148
    %6150 = vmatmul.bf16.gmra.mxu0 0
    %v6151 = vpop.f32.mrf.mxu0
    %v6152 = vadd.f32 0.0, %v6151
    %v6153 = vpop.f32.mrf.mxu0
    %v6154 = vadd.f32 0.0, %v6153
    %6155 = vdwg.mxu0
    %6156 = vmatpush.bf16.msra.mxu0 %v5748
    %6157 = vmatpush.bf16.msra.mxu0 %v5744
    %6158 = vmatpush.bf16.msra.mxu0 %v5740
    %6159 = vmatpush.bf16.msra.mxu0 %v5736
    %6160 = vmatpush.bf16.msra.mxu0 %v5732
    %6161 = vmatpush.bf16.msra.mxu0 %v5728
    %6162 = vmatpush.bf16.msra.mxu0 %v5724
    %6163 = vmatpush.bf16.msra.mxu0 %v5720
    %6164 = vmatmul.bf16.gmra.mxu0 %v2166
    %v6165 = vpop.f32.mrf.mxu0
    %v6166 = vadd.f32 %v6117, %v6165
    %v6167 = vpop.f32.mrf.mxu0
    %v6168 = vadd.f32 %v6119, %v6167
    %6169 = vmatmul.bf16.gmra.mxu0 %v2168
    %v6170 = vpop.f32.mrf.mxu0
    %v6171 = vadd.f32 %v6122, %v6170
    %v6172 = vpop.f32.mrf.mxu0
    %v6173 = vadd.f32 %v6124, %v6172
    %6174 = vmatmul.bf16.gmra.mxu0 %v2170
    %v6175 = vpop.f32.mrf.mxu0
    %v6176 = vadd.f32 %v6127, %v6175
    %v6177 = vpop.f32.mrf.mxu0
    %v6178 = vadd.f32 %v6129, %v6177
    %6179 = vmatmul.bf16.gmra.mxu0 %v2172
    %v6180 = vpop.f32.mrf.mxu0
    %v6181 = vadd.f32 %v6132, %v6180
    %v6182 = vpop.f32.mrf.mxu0
    %v6183 = vadd.f32 %v6134, %v6182
    %6184 = vmatmul.bf16.gmra.mxu0 %v2174
    %v6185 = vpop.f32.mrf.mxu0
    %v6186 = vadd.f32 %v6137, %v6185
    %v6187 = vpop.f32.mrf.mxu0
    %v6188 = vadd.f32 %v6139, %v6187
    %6189 = vmatmul.bf16.gmra.mxu0 %v2176
    %v6190 = vpop.f32.mrf.mxu0
    %v6191 = vadd.f32 %v6142, %v6190
    %v6192 = vpop.f32.mrf.mxu0
    %v6193 = vadd.f32 %v6144, %v6192
    %6194 = vmatmul.bf16.gmra.mxu0 0
    %v6195 = vpop.f32.mrf.mxu0
    %v6196 = vadd.f32 %v6147, %v6195
    %v6197 = vpop.f32.mrf.mxu0
    %v6198 = vadd.f32 %v6149, %v6197
    %6199 = vmatmul.bf16.gmra.mxu0 0
    %v6200 = vpop.f32.mrf.mxu0
    %v6201 = vadd.f32 %v6152, %v6200
    %v6202 = vpop.f32.mrf.mxu0
    %v6203 = vadd.f32 %v6154, %v6202
    %6204 = vdwg.mxu0
    %v6205 = vadd.f32 %v5364, %v5872
    %v6206 = vadd.f32 %v5365, %v5970
    %v6207 = vadd.f32 %v5366, %v6068
    %v6208 = vadd.f32 %v5367, %v6166
    %v6209 = vadd.f32 %v5368, %v5874
    %v6210 = vadd.f32 %v5369, %v5972
    %v6211 = vadd.f32 %v5370, %v6070
    %v6212 = vadd.f32 %v5371, %v6168
    %v6213 = vadd.f32 %v5372, %v5877
    %v6214 = vadd.f32 %v5373, %v5975
    %v6215 = vadd.f32 %v5374, %v6073
    %v6216 = vadd.f32 %v5375, %v6171
    %v6217 = vadd.f32 %v5376, %v5879
    %v6218 = vadd.f32 %v5377, %v5977
    %v6219 = vadd.f32 %v5378, %v6075
    %v6220 = vadd.f32 %v5379, %v6173
    %v6221 = vadd.f32 %v5380, %v5882
    %v6222 = vadd.f32 %v5381, %v5980
    %v6223 = vadd.f32 %v5382, %v6078
    %v6224 = vadd.f32 %v5383, %v6176
    %v6225 = vadd.f32 %v5384, %v5884
    %v6226 = vadd.f32 %v5385, %v5982
    %v6227 = vadd.f32 %v5386, %v6080
    %v6228 = vadd.f32 %v5387, %v6178
    %v6229 = vadd.f32 %v5388, %v5887
    %v6230 = vadd.f32 %v5389, %v5985
    %v6231 = vadd.f32 %v5390, %v6083
    %v6232 = vadd.f32 %v5391, %v6181
    %v6233 = vadd.f32 %v5392, %v5889
    %v6234 = vadd.f32 %v5393, %v5987
    %v6235 = vadd.f32 %v5394, %v6085
    %v6236 = vadd.f32 %v5395, %v6183
    %v6237 = vadd.f32 %v5396, %v5892
    %v6238 = vadd.f32 %v5397, %v5990
    %v6239 = vadd.f32 %v5398, %v6088
    %v6240 = vadd.f32 %v5399, %v6186
    %v6241 = vadd.f32 %v5400, %v5894
    %v6242 = vadd.f32 %v5401, %v5992
    %v6243 = vadd.f32 %v5402, %v6090
    %v6244 = vadd.f32 %v5403, %v6188
    %v6245 = vadd.f32 %v5404, %v5897
    %v6246 = vadd.f32 %v5405, %v5995
    %v6247 = vadd.f32 %v5406, %v6093
    %v6248 = vadd.f32 %v5407, %v6191
    %v6249 = vadd.f32 %v5408, %v5899
    %v6250 = vadd.f32 %v5409, %v5997
    %v6251 = vadd.f32 %v5410, %v6095
    %v6252 = vadd.f32 %v5411, %v6193
    %v6253 = vadd.f32 %v5412, %v5902
    %v6254 = vadd.f32 %v5413, %v6000
    %v6255 = vadd.f32 %v5414, %v6098
    %v6256 = vadd.f32 %v5415, %v6196
    %v6257 = vadd.f32 %v5416, %v5904
    %v6258 = vadd.f32 %v5417, %v6002
    %v6259 = vadd.f32 %v5418, %v6100
    %v6260 = vadd.f32 %v5419, %v6198
    %v6261 = vadd.f32 %v5420, %v5907
    %v6262 = vadd.f32 %v5421, %v6005
    %v6263 = vadd.f32 %v5422, %v6103
    %v6264 = vadd.f32 %v5423, %v6201
    %v6265 = vadd.f32 %v5424, %v5909
    %v6266 = vadd.f32 %v5425, %v6007
    %v6267 = vadd.f32 %v5426, %v6105
    %v6268 = vadd.f32 %v5427, %v6203
    %v6270 = vperm.slane %v2095, 0
    %v6271 = vperm.slane %v2095, 1
    %v6272 = vperm.slane %v2095, 2
    %v6273 = vperm.slane %v2095, 3
    %v6278 = vmul.f32 %v6205, %v6270
    %v6279 = vmul.f32 %v6206, %v6271
    %v6280 = vmul.f32 %v6207, %v6272
    %v6281 = vmul.f32 %v6208, %v6273
    %v6282 = vmul.f32 %v6209, %v6270
    %v6283 = vmul.f32 %v6210, %v6271
    %v6284 = vmul.f32 %v6211, %v6272
    %v6285 = vmul.f32 %v6212, %v6273
    %v6286 = vmul.f32 %v6213, %v6270
    %v6287 = vmul.f32 %v6214, %v6271
    %v6288 = vmul.f32 %v6215, %v6272
    %v6289 = vmul.f32 %v6216, %v6273
    %v6290 = vmul.f32 %v6217, %v6270
    %v6291 = vmul.f32 %v6218, %v6271
    %v6292 = vmul.f32 %v6219, %v6272
    %v6293 = vmul.f32 %v6220, %v6273
    %v6294 = vmul.f32 %v6221, %v6270
    %v6295 = vmul.f32 %v6222, %v6271
    %v6296 = vmul.f32 %v6223, %v6272
    %v6297 = vmul.f32 %v6224, %v6273
    %v6298 = vmul.f32 %v6225, %v6270
    %v6299 = vmul.f32 %v6226, %v6271
    %v6300 = vmul.f32 %v6227, %v6272
    %v6301 = vmul.f32 %v6228, %v6273
    %v6302 = vmul.f32 %v6229, %v6270
    %v6303 = vmul.f32 %v6230, %v6271
    %v6304 = vmul.f32 %v6231, %v6272
    %v6305 = vmul.f32 %v6232, %v6273
    %v6306 = vmul.f32 %v6233, %v6270
    %v6307 = vmul.f32 %v6234, %v6271
    %v6308 = vmul.f32 %v6235, %v6272
    %v6309 = vmul.f32 %v6236, %v6273
    %v6310 = vmul.f32 %v6237, %v6270
    %v6311 = vmul.f32 %v6238, %v6271
    %v6312 = vmul.f32 %v6239, %v6272
    %v6313 = vmul.f32 %v6240, %v6273
    %v6314 = vmul.f32 %v6241, %v6270
    %v6315 = vmul.f32 %v6242, %v6271
    %v6316 = vmul.f32 %v6243, %v6272
    %v6317 = vmul.f32 %v6244, %v6273
    %v6318 = vmul.f32 %v6245, %v6270
    %v6319 = vmul.f32 %v6246, %v6271
    %v6320 = vmul.f32 %v6247, %v6272
    %v6321 = vmul.f32 %v6248, %v6273
    %v6322 = vmul.f32 %v6249, %v6270
    %v6323 = vmul.f32 %v6250, %v6271
    %v6324 = vmul.f32 %v6251, %v6272
    %v6325 = vmul.f32 %v6252, %v6273
    %v6326 = vmul.f32 %v6253, %v6270
    %v6327 = vmul.f32 %v6254, %v6271
    %v6328 = vmul.f32 %v6255, %v6272
    %v6329 = vmul.f32 %v6256, %v6273
    %v6330 = vmul.f32 %v6257, %v6270
    %v6331 = vmul.f32 %v6258, %v6271
    %v6332 = vmul.f32 %v6259, %v6272
    %v6333 = vmul.f32 %v6260, %v6273
    %v6334 = vmul.f32 %v6261, %v6270
    %v6335 = vmul.f32 %v6262, %v6271
    %v6336 = vmul.f32 %v6263, %v6272
    %v6337 = vmul.f32 %v6264, %v6273
    %v6338 = vmul.f32 %v6265, %v6270
    %v6339 = vmul.f32 %v6266, %v6271
    %v6340 = vmul.f32 %v6267, %v6272
    %v6341 = vmul.f32 %v6268, %v6273
    %v6343 = vperm.slane %v2096, 0
    %v6344 = vperm.slane %v2096, 1
    %v6345 = vperm.slane %v2096, 2
    %v6346 = vperm.slane %v2096, 3
    %v6351 = vadd.f32 %v6278, %v6343
    %v6352 = vadd.f32 %v6279, %v6344
    %v6353 = vadd.f32 %v6280, %v6345
    %v6354 = vadd.f32 %v6281, %v6346
    %v6355 = vadd.f32 %v6282, %v6343
    %v6356 = vadd.f32 %v6283, %v6344
    %v6357 = vadd.f32 %v6284, %v6345
    %v6358 = vadd.f32 %v6285, %v6346
    %v6359 = vadd.f32 %v6286, %v6343
    %v6360 = vadd.f32 %v6287, %v6344
    %v6361 = vadd.f32 %v6288, %v6345
    %v6362 = vadd.f32 %v6289, %v6346
    %v6363 = vadd.f32 %v6290, %v6343
    %v6364 = vadd.f32 %v6291, %v6344
    %v6365 = vadd.f32 %v6292, %v6345
    %v6366 = vadd.f32 %v6293, %v6346
    %v6367 = vadd.f32 %v6294, %v6343
    %v6368 = vadd.f32 %v6295, %v6344
    %v6369 = vadd.f32 %v6296, %v6345
    %v6370 = vadd.f32 %v6297, %v6346
    %v6371 = vadd.f32 %v6298, %v6343
    %v6372 = vadd.f32 %v6299, %v6344
    %v6373 = vadd.f32 %v6300, %v6345
    %v6374 = vadd.f32 %v6301, %v6346
    %v6375 = vadd.f32 %v6302, %v6343
    %v6376 = vadd.f32 %v6303, %v6344
    %v6377 = vadd.f32 %v6304, %v6345
    %v6378 = vadd.f32 %v6305, %v6346
    %v6379 = vadd.f32 %v6306, %v6343
    %v6380 = vadd.f32 %v6307, %v6344
    %v6381 = vadd.f32 %v6308, %v6345
    %v6382 = vadd.f32 %v6309, %v6346
    %v6383 = vadd.f32 %v6310, %v6343
    %v6384 = vadd.f32 %v6311, %v6344
    %v6385 = vadd.f32 %v6312, %v6345
    %v6386 = vadd.f32 %v6313, %v6346
    %v6387 = vadd.f32 %v6314, %v6343
    %v6388 = vadd.f32 %v6315, %v6344
    %v6389 = vadd.f32 %v6316, %v6345
    %v6390 = vadd.f32 %v6317, %v6346
    %v6391 = vadd.f32 %v6318, %v6343
    %v6392 = vadd.f32 %v6319, %v6344
    %v6393 = vadd.f32 %v6320, %v6345
    %v6394 = vadd.f32 %v6321, %v6346
    %v6395 = vadd.f32 %v6322, %v6343
    %v6396 = vadd.f32 %v6323, %v6344
    %v6397 = vadd.f32 %v6324, %v6345
    %v6398 = vadd.f32 %v6325, %v6346
    %v6399 = vadd.f32 %v6326, %v6343
    %v6400 = vadd.f32 %v6327, %v6344
    %v6401 = vadd.f32 %v6328, %v6345
    %v6402 = vadd.f32 %v6329, %v6346
    %v6403 = vadd.f32 %v6330, %v6343
    %v6404 = vadd.f32 %v6331, %v6344
    %v6405 = vadd.f32 %v6332, %v6345
    %v6406 = vadd.f32 %v6333, %v6346
    %v6407 = vadd.f32 %v6334, %v6343
    %v6408 = vadd.f32 %v6335, %v6344
    %v6409 = vadd.f32 %v6336, %v6345
    %v6410 = vadd.f32 %v6337, %v6346
    %v6411 = vadd.f32 %v6338, %v6343
    %v6412 = vadd.f32 %v6339, %v6344
    %v6413 = vadd.f32 %v6340, %v6345
    %v6414 = vadd.f32 %v6341, %v6346
    %v6415 = vmax.f32 %v6351, 0.0
    %v6416 = vmax.f32 %v6352, 0.0
    %v6417 = vmax.f32 %v6353, 0.0
    %v6418 = vmax.f32 %v6354, 0.0
    %v6419 = vmax.f32 %v6355, 0.0
    %v6420 = vmax.f32 %v6356, 0.0
    %v6421 = vmax.f32 %v6357, 0.0
    %v6422 = vmax.f32 %v6358, 0.0
    %v6423 = vmax.f32 %v6359, 0.0
    %v6424 = vmax.f32 %v6360, 0.0
    %v6425 = vmax.f32 %v6361, 0.0
    %v6426 = vmax.f32 %v6362, 0.0
    %v6427 = vmax.f32 %v6363, 0.0
    %v6428 = vmax.f32 %v6364, 0.0
    %v6429 = vmax.f32 %v6365, 0.0
    %v6430 = vmax.f32 %v6366, 0.0
    %v6431 = vmax.f32 %v6367, 0.0
    %v6432 = vmax.f32 %v6368, 0.0
    %v6433 = vmax.f32 %v6369, 0.0
    %v6434 = vmax.f32 %v6370, 0.0
    %v6435 = vmax.f32 %v6371, 0.0
    %v6436 = vmax.f32 %v6372, 0.0
    %v6437 = vmax.f32 %v6373, 0.0
    %v6438 = vmax.f32 %v6374, 0.0
    %v6439 = vmax.f32 %v6375, 0.0
    %v6440 = vmax.f32 %v6376, 0.0
    %v6441 = vmax.f32 %v6377, 0.0
    %v6442 = vmax.f32 %v6378, 0.0
    %v6443 = vmax.f32 %v6379, 0.0
    %v6444 = vmax.f32 %v6380, 0.0
    %v6445 = vmax.f32 %v6381, 0.0
    %v6446 = vmax.f32 %v6382, 0.0
    %v6447 = vmax.f32 %v6383, 0.0
    %v6448 = vmax.f32 %v6384, 0.0
    %v6449 = vmax.f32 %v6385, 0.0
    %v6450 = vmax.f32 %v6386, 0.0
    %v6451 = vmax.f32 %v6387, 0.0
    %v6452 = vmax.f32 %v6388, 0.0
    %v6453 = vmax.f32 %v6389, 0.0
    %v6454 = vmax.f32 %v6390, 0.0
    %v6455 = vmax.f32 %v6391, 0.0
    %v6456 = vmax.f32 %v6392, 0.0
    %v6457 = vmax.f32 %v6393, 0.0
    %v6458 = vmax.f32 %v6394, 0.0
    %v6459 = vmax.f32 %v6395, 0.0
    %v6460 = vmax.f32 %v6396, 0.0
    %v6461 = vmax.f32 %v6397, 0.0
    %v6462 = vmax.f32 %v6398, 0.0
    %v6463 = vmax.f32 %v6399, 0.0
    %v6464 = vmax.f32 %v6400, 0.0
    %v6465 = vmax.f32 %v6401, 0.0
    %v6466 = vmax.f32 %v6402, 0.0
    %v6467 = vmax.f32 %v6403, 0.0
    %v6468 = vmax.f32 %v6404, 0.0
    %v6469 = vmax.f32 %v6405, 0.0
    %v6470 = vmax.f32 %v6406, 0.0
    %v6471 = vmax.f32 %v6407, 0.0
    %v6472 = vmax.f32 %v6408, 0.0
    %v6473 = vmax.f32 %v6409, 0.0
    %v6474 = vmax.f32 %v6410, 0.0
    %v6475 = vmax.f32 %v6411, 0.0
    %v6476 = vmax.f32 %v6412, 0.0
    %v6477 = vmax.f32 %v6413, 0.0
    %v6478 = vmax.f32 %v6414, 0.0
    %v6479 = vpack.c.bf16 %v6416, %v6415
    %v6480 = vpack.c.bf16 %v6418, %v6417
    %v6481 = vpack.c.bf16 %v6420, %v6419
    %v6482 = vpack.c.bf16 %v6422, %v6421
    %v6483 = vpack.c.bf16 %v6424, %v6423
    %v6484 = vpack.c.bf16 %v6426, %v6425
    %v6485 = vpack.c.bf16 %v6428, %v6427
    %v6486 = vpack.c.bf16 %v6430, %v6429
    %v6487 = vpack.c.bf16 %v6432, %v6431
    %v6488 = vpack.c.bf16 %v6434, %v6433
    %v6489 = vpack.c.bf16 %v6436, %v6435
    %v6490 = vpack.c.bf16 %v6438, %v6437
    %v6491 = vpack.c.bf16 %v6440, %v6439
    %v6492 = vpack.c.bf16 %v6442, %v6441
    %v6493 = vpack.c.bf16 %v6444, %v6443
    %v6494 = vpack.c.bf16 %v6446, %v6445
    %v6495 = vpack.c.bf16 %v6448, %v6447
    %v6496 = vpack.c.bf16 %v6450, %v6449
    %v6497 = vpack.c.bf16 %v6452, %v6451
    %v6498 = vpack.c.bf16 %v6454, %v6453
    %v6499 = vpack.c.bf16 %v6456, %v6455
    %v6500 = vpack.c.bf16 %v6458, %v6457
    %v6501 = vpack.c.bf16 %v6460, %v6459
    %v6502 = vpack.c.bf16 %v6462, %v6461
    %v6503 = vpack.c.bf16 %v6464, %v6463
    %v6504 = vpack.c.bf16 %v6466, %v6465
    %v6505 = vpack.c.bf16 %v6468, %v6467
    %v6506 = vpack.c.bf16 %v6470, %v6469
    %v6507 = vpack.c.bf16 %v6472, %v6471
    %v6508 = vpack.c.bf16 %v6474, %v6473
    %v6509 = vpack.c.bf16 %v6476, %v6475
    %v6510 = vpack.c.bf16 %v6478, %v6477
    %v6511 = vld [vmem:[%s12] sm:$0xf]
    %v6512 = vld [vmem:[%s12 + $0x4] sm:$0xf]
    %v6513 = vld [vmem:[%s12 + $0x8] sm:$0xf]
    %v6514 = vld [vmem:[%s12 + $0xc] sm:$0xf]
    %v6515 = vld [vmem:[%s12 + $0x10] sm:$0xf]
    %v6516 = vld [vmem:[%s12 + $0x14] sm:$0xf]
    %v6517 = vld [vmem:[%s12 + $0x18] sm:$0xf]
    %v6518 = vld [vmem:[%s12 + $0x1c] sm:$0xf]
    %v6519 = vld [vmem:[%s12 + $0x20] sm:$0xf]
    %v6520 = vld [vmem:[%s12 + $0x24] sm:$0xf]
    %v6521 = vld [vmem:[%s12 + $0x28] sm:$0xf]
    %v6522 = vld [vmem:[%s12 + $0x2c] sm:$0xf]
    %v6523 = vld [vmem:[%s12 + $0x30] sm:$0xf]
    %v6524 = vld [vmem:[%s12 + $0x34] sm:$0xf]
    %v6525 = vld [vmem:[%s12 + $0x38] sm:$0xf]
    %v6526 = vld [vmem:[%s12 + $0x3c] sm:$0xf]
    %v6527 = vld [vmem:[%s12 + $0x40] sm:$0xf]
    %v6528 = vld [vmem:[%s12 + $0x44] sm:$0xf]
    %v6529 = vld [vmem:[%s12 + $0x48] sm:$0xf]
    %v6530 = vld [vmem:[%s12 + $0x4c] sm:$0xf]
    %v6531 = vld [vmem:[%s12 + $0x50] sm:$0xf]
    %v6532 = vld [vmem:[%s12 + $0x54] sm:$0xf]
    %v6533 = vld [vmem:[%s12 + $0x58] sm:$0xf]
    %v6534 = vld [vmem:[%s12 + $0x5c] sm:$0xf]
    %v6535 = vld [vmem:[%s12 + $0x60] sm:$0xf]
    %v6536 = vld [vmem:[%s12 + $0x64] sm:$0xf]
    %v6537 = vld [vmem:[%s12 + $0x68] sm:$0xf]
    %v6538 = vld [vmem:[%s12 + $0x6c] sm:$0xf]
    %v6539 = vld [vmem:[%s12 + $0x70] sm:$0xf]
    %v6540 = vld [vmem:[%s12 + $0x74] sm:$0xf]
    %v6541 = vld [vmem:[%s12 + $0x78] sm:$0xf]
    %v6542 = vld [vmem:[%s12 + $0x7c] sm:$0xf]
    %v6543 = vld [vmem:[%s12 + $0x80] sm:$0xf]
    %v6544 = vld [vmem:[%s12 + $0x84] sm:$0xf]
    %v6545 = vld [vmem:[%s12 + $0x88] sm:$0xf]
    %v6546 = vld [vmem:[%s12 + $0x8c] sm:$0xf]
    %v6547 = vld [vmem:[%s12 + $0x90] sm:$0xf]
    %v6548 = vld [vmem:[%s12 + $0x94] sm:$0xf]
    %v6549 = vld [vmem:[%s12 + $0x98] sm:$0xf]
    %v6550 = vld [vmem:[%s12 + $0x9c] sm:$0xf]
    %v6551 = vld [vmem:[%s12 + $0xa0] sm:$0xf]
    %v6552 = vld [vmem:[%s12 + $0xa4] sm:$0xf]
    %v6553 = vld [vmem:[%s12 + $0xa8] sm:$0xf]
    %v6554 = vld [vmem:[%s12 + $0xac] sm:$0xf]
    %v6555 = vld [vmem:[%s12 + $0xb0] sm:$0xf]
    %v6556 = vld [vmem:[%s12 + $0xb4] sm:$0xf]
    %v6557 = vld [vmem:[%s12 + $0xb8] sm:$0xf]
    %v6558 = vld [vmem:[%s12 + $0xbc] sm:$0xf]
    %v6559 = vld [vmem:[%s12 + $0xc0] sm:$0xf]
    %v6560 = vld [vmem:[%s12 + $0xc4] sm:$0xf]
    %v6561 = vld [vmem:[%s12 + $0xc8] sm:$0xf]
    %v6562 = vld [vmem:[%s12 + $0xcc] sm:$0xf]
    %v6563 = vld [vmem:[%s12 + $0xd0] sm:$0xf]
    %v6564 = vld [vmem:[%s12 + $0xd4] sm:$0xf]
    %v6565 = vld [vmem:[%s12 + $0xd8] sm:$0xf]
    %v6566 = vld [vmem:[%s12 + $0xdc] sm:$0xf]
    %v6567 = vld [vmem:[%s12 + $0xe0] sm:$0xf]
    %v6568 = vld [vmem:[%s12 + $0xe4] sm:$0xf]
    %v6569 = vld [vmem:[%s12 + $0xe8] sm:$0xf]
    %v6570 = vld [vmem:[%s12 + $0xec] sm:$0xf]
    %v6571 = vld [vmem:[%s12 + $0xf0] sm:$0xf]
    %v6572 = vld [vmem:[%s12 + $0xf4] sm:$0xf]
    %v6573 = vld [vmem:[%s12 + $0xf8] sm:$0xf]
    %v6574 = vld [vmem:[%s12 + $0xfc] sm:$0xf]
    %v6575 = vld [vmem:[%s12 + $0x100] sm:$0xf]
    %v6576 = vld [vmem:[%s12 + $0x104] sm:$0xf]
    %v6577 = vld [vmem:[%s12 + $0x108] sm:$0xf]
    %v6578 = vld [vmem:[%s12 + $0x10c] sm:$0xf]
    %v6579 = vld [vmem:[%s12 + $0x110] sm:$0xf]
    %v6580 = vld [vmem:[%s12 + $0x114] sm:$0xf]
    %v6581 = vld [vmem:[%s12 + $0x118] sm:$0xf]
    %v6582 = vld [vmem:[%s12 + $0x11c] sm:$0xf]
    %v6583 = vld [vmem:[%s12 + $0x120] sm:$0xf]
    %v6584 = vld [vmem:[%s12 + $0x124] sm:$0xf]
    %v6585 = vld [vmem:[%s12 + $0x128] sm:$0xf]
    %v6586 = vld [vmem:[%s12 + $0x12c] sm:$0xf]
    %v6587 = vld [vmem:[%s12 + $0x130] sm:$0xf]
    %v6588 = vld [vmem:[%s12 + $0x134] sm:$0xf]
    %v6589 = vld [vmem:[%s12 + $0x138] sm:$0xf]
    %v6590 = vld [vmem:[%s12 + $0x13c] sm:$0xf]
    %v6591 = vld [vmem:[%s12 + $0x140] sm:$0xf]
    %v6592 = vld [vmem:[%s12 + $0x144] sm:$0xf]
    %v6593 = vld [vmem:[%s12 + $0x148] sm:$0xf]
    %v6594 = vld [vmem:[%s12 + $0x14c] sm:$0xf]
    %v6595 = vld [vmem:[%s12 + $0x150] sm:$0xf]
    %v6596 = vld [vmem:[%s12 + $0x154] sm:$0xf]
    %v6597 = vld [vmem:[%s12 + $0x158] sm:$0xf]
    %v6598 = vld [vmem:[%s12 + $0x15c] sm:$0xf]
    %v6599 = vld [vmem:[%s12 + $0x160] sm:$0xf]
    %v6600 = vld [vmem:[%s12 + $0x164] sm:$0xf]
    %v6601 = vld [vmem:[%s12 + $0x168] sm:$0xf]
    %v6602 = vld [vmem:[%s12 + $0x16c] sm:$0xf]
    %v6603 = vld [vmem:[%s12 + $0x170] sm:$0xf]
    %v6604 = vld [vmem:[%s12 + $0x174] sm:$0xf]
    %v6605 = vld [vmem:[%s12 + $0x178] sm:$0xf]
    %v6606 = vld [vmem:[%s12 + $0x17c] sm:$0xf]
    %v6607 = vld [vmem:[%s12 + $0x180] sm:$0xf]
    %v6608 = vld [vmem:[%s12 + $0x184] sm:$0xf]
    %v6609 = vld [vmem:[%s12 + $0x188] sm:$0xf]
    %v6610 = vld [vmem:[%s12 + $0x18c] sm:$0xf]
    %v6611 = vld [vmem:[%s12 + $0x190] sm:$0xf]
    %v6612 = vld [vmem:[%s12 + $0x194] sm:$0xf]
    %v6613 = vld [vmem:[%s12 + $0x198] sm:$0xf]
    %v6614 = vld [vmem:[%s12 + $0x19c] sm:$0xf]
    %v6615 = vld [vmem:[%s12 + $0x1a0] sm:$0xf]
    %v6616 = vld [vmem:[%s12 + $0x1a4] sm:$0xf]
    %v6617 = vld [vmem:[%s12 + $0x1a8] sm:$0xf]
    %v6618 = vld [vmem:[%s12 + $0x1ac] sm:$0xf]
    %v6619 = vld [vmem:[%s12 + $0x1b0] sm:$0xf]
    %v6620 = vld [vmem:[%s12 + $0x1b4] sm:$0xf]
    %v6621 = vld [vmem:[%s12 + $0x1b8] sm:$0xf]
    %v6622 = vld [vmem:[%s12 + $0x1bc] sm:$0xf]
    %v6623 = vld [vmem:[%s12 + $0x1c0] sm:$0xf]
    %v6624 = vld [vmem:[%s12 + $0x1c4] sm:$0xf]
    %v6625 = vld [vmem:[%s12 + $0x1c8] sm:$0xf]
    %v6626 = vld [vmem:[%s12 + $0x1cc] sm:$0xf]
    %v6627 = vld [vmem:[%s12 + $0x1d0] sm:$0xf]
    %v6628 = vld [vmem:[%s12 + $0x1d4] sm:$0xf]
    %v6629 = vld [vmem:[%s12 + $0x1d8] sm:$0xf]
    %v6630 = vld [vmem:[%s12 + $0x1dc] sm:$0xf]
    %v6631 = vld [vmem:[%s12 + $0x1e0] sm:$0xf]
    %v6632 = vld [vmem:[%s12 + $0x1e4] sm:$0xf]
    %v6633 = vld [vmem:[%s12 + $0x1e8] sm:$0xf]
    %v6634 = vld [vmem:[%s12 + $0x1ec] sm:$0xf]
    %v6635 = vld [vmem:[%s12 + $0x1f0] sm:$0xf]
    %v6636 = vld [vmem:[%s12 + $0x1f4] sm:$0xf]
    %v6637 = vld [vmem:[%s12 + $0x1f8] sm:$0xf]
    %v6638 = vld [vmem:[%s12 + $0x1fc] sm:$0xf]
    %v6639 = vld [vmem:[%s12 + $0x200] sm:$0xf]
    %v6640 = vld [vmem:[%s12 + $0x204] sm:$0xf]
    %v6641 = vld [vmem:[%s12 + $0x208] sm:$0xf]
    %v6642 = vld [vmem:[%s12 + $0x20c] sm:$0xf]
    %v6643 = vld [vmem:[%s12 + $0x210] sm:$0xf]
    %v6644 = vld [vmem:[%s12 + $0x214] sm:$0xf]
    %v6645 = vld [vmem:[%s12 + $0x218] sm:$0xf]
    %v6646 = vld [vmem:[%s12 + $0x21c] sm:$0xf]
    %v6647 = vld [vmem:[%s12 + $0x220] sm:$0xf]
    %v6648 = vld [vmem:[%s12 + $0x224] sm:$0xf]
    %v6649 = vld [vmem:[%s12 + $0x228] sm:$0xf]
    %v6650 = vld [vmem:[%s12 + $0x22c] sm:$0xf]
    %v6651 = vld [vmem:[%s12 + $0x230] sm:$0xf]
    %v6652 = vld [vmem:[%s12 + $0x234] sm:$0xf]
    %v6653 = vld [vmem:[%s12 + $0x238] sm:$0xf]
    %v6654 = vld [vmem:[%s12 + $0x23c] sm:$0xf]
    %v6655 = vld [vmem:[%s12 + $0x240] sm:$0xf]
    %v6656 = vld [vmem:[%s12 + $0x244] sm:$0xf]
    %v6657 = vld [vmem:[%s12 + $0x248] sm:$0xf]
    %v6658 = vld [vmem:[%s12 + $0x24c] sm:$0xf]
    %v6659 = vld [vmem:[%s12 + $0x250] sm:$0xf]
    %v6660 = vld [vmem:[%s12 + $0x254] sm:$0xf]
    %v6661 = vld [vmem:[%s12 + $0x258] sm:$0xf]
    %v6662 = vld [vmem:[%s12 + $0x25c] sm:$0xf]
    %v6663 = vld [vmem:[%s12 + $0x260] sm:$0xf]
    %v6664 = vld [vmem:[%s12 + $0x264] sm:$0xf]
    %v6665 = vld [vmem:[%s12 + $0x268] sm:$0xf]
    %v6666 = vld [vmem:[%s12 + $0x26c] sm:$0xf]
    %v6667 = vld [vmem:[%s12 + $0x270] sm:$0xf]
    %v6668 = vld [vmem:[%s12 + $0x274] sm:$0xf]
    %v6669 = vld [vmem:[%s12 + $0x278] sm:$0xf]
    %v6670 = vld [vmem:[%s12 + $0x27c] sm:$0xf]
    %v6671 = vld [vmem:[%s12 + $0x280] sm:$0xf]
    %v6672 = vld [vmem:[%s12 + $0x284] sm:$0xf]
    %v6673 = vld [vmem:[%s12 + $0x288] sm:$0xf]
    %v6674 = vld [vmem:[%s12 + $0x28c] sm:$0xf]
    %v6675 = vld [vmem:[%s12 + $0x290] sm:$0xf]
    %v6676 = vld [vmem:[%s12 + $0x294] sm:$0xf]
    %v6677 = vld [vmem:[%s12 + $0x298] sm:$0xf]
    %v6678 = vld [vmem:[%s12 + $0x29c] sm:$0xf]
    %v6679 = vld [vmem:[%s12 + $0x2a0] sm:$0xf]
    %v6680 = vld [vmem:[%s12 + $0x2a4] sm:$0xf]
    %v6681 = vld [vmem:[%s12 + $0x2a8] sm:$0xf]
    %v6682 = vld [vmem:[%s12 + $0x2ac] sm:$0xf]
    %v6683 = vld [vmem:[%s12 + $0x2b0] sm:$0xf]
    %v6684 = vld [vmem:[%s12 + $0x2b4] sm:$0xf]
    %v6685 = vld [vmem:[%s12 + $0x2b8] sm:$0xf]
    %v6686 = vld [vmem:[%s12 + $0x2bc] sm:$0xf]
    %v6687 = vld [vmem:[%s12 + $0x2c0] sm:$0xf]
    %v6688 = vld [vmem:[%s12 + $0x2c4] sm:$0xf]
    %v6689 = vld [vmem:[%s12 + $0x2c8] sm:$0xf]
    %v6690 = vld [vmem:[%s12 + $0x2cc] sm:$0xf]
    %v6691 = vld [vmem:[%s12 + $0x2d0] sm:$0xf]
    %v6692 = vld [vmem:[%s12 + $0x2d4] sm:$0xf]
    %v6693 = vld [vmem:[%s12 + $0x2d8] sm:$0xf]
    %v6694 = vld [vmem:[%s12 + $0x2dc] sm:$0xf]
    %v6695 = vld [vmem:[%s12 + $0x2e0] sm:$0xf]
    %v6696 = vld [vmem:[%s12 + $0x2e4] sm:$0xf]
    %v6697 = vld [vmem:[%s12 + $0x2e8] sm:$0xf]
    %v6698 = vld [vmem:[%s12 + $0x2ec] sm:$0xf]
    %v6699 = vld [vmem:[%s12 + $0x2f0] sm:$0xf]
    %v6700 = vld [vmem:[%s12 + $0x2f4] sm:$0xf]
    %v6701 = vld [vmem:[%s12 + $0x2f8] sm:$0xf]
    %v6702 = vld [vmem:[%s12 + $0x2fc] sm:$0xf]
    %v6703 = vld [vmem:[%s12 + $0x300] sm:$0xf]
    %v6704 = vld [vmem:[%s12 + $0x304] sm:$0xf]
    %v6705 = vld [vmem:[%s12 + $0x308] sm:$0xf]
    %v6706 = vld [vmem:[%s12 + $0x30c] sm:$0xf]
    %v6707 = vld [vmem:[%s12 + $0x310] sm:$0xf]
    %v6708 = vld [vmem:[%s12 + $0x314] sm:$0xf]
    %v6709 = vld [vmem:[%s12 + $0x318] sm:$0xf]
    %v6710 = vld [vmem:[%s12 + $0x31c] sm:$0xf]
    %v6711 = vld [vmem:[%s12 + $0x320] sm:$0xf]
    %v6712 = vld [vmem:[%s12 + $0x324] sm:$0xf]
    %v6713 = vld [vmem:[%s12 + $0x328] sm:$0xf]
    %v6714 = vld [vmem:[%s12 + $0x32c] sm:$0xf]
    %v6715 = vld [vmem:[%s12 + $0x330] sm:$0xf]
    %v6716 = vld [vmem:[%s12 + $0x334] sm:$0xf]
    %v6717 = vld [vmem:[%s12 + $0x338] sm:$0xf]
    %v6718 = vld [vmem:[%s12 + $0x33c] sm:$0xf]
    %v6719 = vld [vmem:[%s12 + $0x340] sm:$0xf]
    %v6720 = vld [vmem:[%s12 + $0x344] sm:$0xf]
    %v6721 = vld [vmem:[%s12 + $0x348] sm:$0xf]
    %v6722 = vld [vmem:[%s12 + $0x34c] sm:$0xf]
    %v6723 = vld [vmem:[%s12 + $0x350] sm:$0xf]
    %v6724 = vld [vmem:[%s12 + $0x354] sm:$0xf]
    %v6725 = vld [vmem:[%s12 + $0x358] sm:$0xf]
    %v6726 = vld [vmem:[%s12 + $0x35c] sm:$0xf]
    %v6727 = vld [vmem:[%s12 + $0x360] sm:$0xf]
    %v6728 = vld [vmem:[%s12 + $0x364] sm:$0xf]
    %v6729 = vld [vmem:[%s12 + $0x368] sm:$0xf]
    %v6730 = vld [vmem:[%s12 + $0x36c] sm:$0xf]
    %v6731 = vld [vmem:[%s12 + $0x370] sm:$0xf]
    %v6732 = vld [vmem:[%s12 + $0x374] sm:$0xf]
    %v6733 = vld [vmem:[%s12 + $0x378] sm:$0xf]
    %v6734 = vld [vmem:[%s12 + $0x37c] sm:$0xf]
    %v6735 = vld [vmem:[%s12 + $0x380] sm:$0xf]
    %v6736 = vld [vmem:[%s12 + $0x384] sm:$0xf]
    %v6737 = vld [vmem:[%s12 + $0x388] sm:$0xf]
    %v6738 = vld [vmem:[%s12 + $0x38c] sm:$0xf]
    %v6739 = vld [vmem:[%s12 + $0x390] sm:$0xf]
    %v6740 = vld [vmem:[%s12 + $0x394] sm:$0xf]
    %v6741 = vld [vmem:[%s12 + $0x398] sm:$0xf]
    %v6742 = vld [vmem:[%s12 + $0x39c] sm:$0xf]
    %v6743 = vld [vmem:[%s12 + $0x3a0] sm:$0xf]
    %v6744 = vld [vmem:[%s12 + $0x3a4] sm:$0xf]
    %v6745 = vld [vmem:[%s12 + $0x3a8] sm:$0xf]
    %v6746 = vld [vmem:[%s12 + $0x3ac] sm:$0xf]
    %v6747 = vld [vmem:[%s12 + $0x3b0] sm:$0xf]
    %v6748 = vld [vmem:[%s12 + $0x3b4] sm:$0xf]
    %v6749 = vld [vmem:[%s12 + $0x3b8] sm:$0xf]
    %v6750 = vld [vmem:[%s12 + $0x3bc] sm:$0xf]
    %v6751 = vld [vmem:[%s12 + $0x3c0] sm:$0xf]
    %v6752 = vld [vmem:[%s12 + $0x3c4] sm:$0xf]
    %v6753 = vld [vmem:[%s12 + $0x3c8] sm:$0xf]
    %v6754 = vld [vmem:[%s12 + $0x3cc] sm:$0xf]
    %v6755 = vld [vmem:[%s12 + $0x3d0] sm:$0xf]
    %v6756 = vld [vmem:[%s12 + $0x3d4] sm:$0xf]
    %v6757 = vld [vmem:[%s12 + $0x3d8] sm:$0xf]
    %v6758 = vld [vmem:[%s12 + $0x3dc] sm:$0xf]
    %v6759 = vld [vmem:[%s12 + $0x3e0] sm:$0xf]
    %v6760 = vld [vmem:[%s12 + $0x3e4] sm:$0xf]
    %v6761 = vld [vmem:[%s12 + $0x3e8] sm:$0xf]
    %v6762 = vld [vmem:[%s12 + $0x3ec] sm:$0xf]
    %v6763 = vld [vmem:[%s12 + $0x3f0] sm:$0xf]
    %v6764 = vld [vmem:[%s12 + $0x3f4] sm:$0xf]
    %v6765 = vld [vmem:[%s12 + $0x3f8] sm:$0xf]
    %v6766 = vld [vmem:[%s12 + $0x3fc] sm:$0xf]
    %v6767 = vld [vmem:[%s12 + $0x400] sm:$0xf]
    %v6768 = vld [vmem:[%s12 + $0x404] sm:$0xf]
    %v6769 = vld [vmem:[%s12 + $0x408] sm:$0xf]
    %v6770 = vld [vmem:[%s12 + $0x40c] sm:$0xf]
    %v6771 = vld [vmem:[%s12 + $0x410] sm:$0xf]
    %v6772 = vld [vmem:[%s12 + $0x414] sm:$0xf]
    %v6773 = vld [vmem:[%s12 + $0x418] sm:$0xf]
    %v6774 = vld [vmem:[%s12 + $0x41c] sm:$0xf]
    %v6775 = vld [vmem:[%s12 + $0x420] sm:$0xf]
    %v6776 = vld [vmem:[%s12 + $0x424] sm:$0xf]
    %v6777 = vld [vmem:[%s12 + $0x428] sm:$0xf]
    %v6778 = vld [vmem:[%s12 + $0x42c] sm:$0xf]
    %v6779 = vld [vmem:[%s12 + $0x430] sm:$0xf]
    %v6780 = vld [vmem:[%s12 + $0x434] sm:$0xf]
    %v6781 = vld [vmem:[%s12 + $0x438] sm:$0xf]
    %v6782 = vld [vmem:[%s12 + $0x43c] sm:$0xf]
    %v6783 = vld [vmem:[%s12 + $0x440] sm:$0xf]
    %v6784 = vld [vmem:[%s12 + $0x444] sm:$0xf]
    %v6785 = vld [vmem:[%s12 + $0x448] sm:$0xf]
    %v6786 = vld [vmem:[%s12 + $0x44c] sm:$0xf]
    %v6787 = vld [vmem:[%s12 + $0x450] sm:$0xf]
    %v6788 = vld [vmem:[%s12 + $0x454] sm:$0xf]
    %v6789 = vld [vmem:[%s12 + $0x458] sm:$0xf]
    %v6790 = vld [vmem:[%s12 + $0x45c] sm:$0xf]
    %v6791 = vld [vmem:[%s12 + $0x460] sm:$0xf]
    %v6792 = vld [vmem:[%s12 + $0x464] sm:$0xf]
    %v6793 = vld [vmem:[%s12 + $0x468] sm:$0xf]
    %v6794 = vld [vmem:[%s12 + $0x46c] sm:$0xf]
    %v6795 = vld [vmem:[%s12 + $0x470] sm:$0xf]
    %v6796 = vld [vmem:[%s12 + $0x474] sm:$0xf]
    %v6797 = vld [vmem:[%s12 + $0x478] sm:$0xf]
    %v6798 = vld [vmem:[%s12 + $0x47c] sm:$0xf]
    %v6799 = vld [vmem:[%s12 + $0x480] sm:$0xf]
    %v6800 = vld [vmem:[%s12 + $0x484] sm:$0xf]
    %v6801 = vld [vmem:[%s12 + $0x488] sm:$0xf]
    %v6802 = vld [vmem:[%s12 + $0x48c] sm:$0xf]
    %v6803 = vld [vmem:[%s12 + $0x490] sm:$0xf]
    %v6804 = vld [vmem:[%s12 + $0x494] sm:$0xf]
    %v6805 = vld [vmem:[%s12 + $0x498] sm:$0xf]
    %v6806 = vld [vmem:[%s12 + $0x49c] sm:$0xf]
    %v6807 = vld [vmem:[%s12 + $0x4a0] sm:$0xf]
    %v6808 = vld [vmem:[%s12 + $0x4a4] sm:$0xf]
    %v6809 = vld [vmem:[%s12 + $0x4a8] sm:$0xf]
    %v6810 = vld [vmem:[%s12 + $0x4ac] sm:$0xf]
    %v6811 = vld [vmem:[%s12 + $0x4b0] sm:$0xf]
    %v6812 = vld [vmem:[%s12 + $0x4b4] sm:$0xf]
    %v6813 = vld [vmem:[%s12 + $0x4b8] sm:$0xf]
    %v6814 = vld [vmem:[%s12 + $0x4bc] sm:$0xf]
    %v6815 = vld [vmem:[%s12 + $0x4c0] sm:$0xf]
    %v6816 = vld [vmem:[%s12 + $0x4c4] sm:$0xf]
    %v6817 = vld [vmem:[%s12 + $0x4c8] sm:$0xf]
    %v6818 = vld [vmem:[%s12 + $0x4cc] sm:$0xf]
    %v6819 = vld [vmem:[%s12 + $0x4d0] sm:$0xf]
    %v6820 = vld [vmem:[%s12 + $0x4d4] sm:$0xf]
    %v6821 = vld [vmem:[%s12 + $0x4d8] sm:$0xf]
    %v6822 = vld [vmem:[%s12 + $0x4dc] sm:$0xf]
    %v6823 = vld [vmem:[%s12 + $0x4e0] sm:$0xf]
    %v6824 = vld [vmem:[%s12 + $0x4e4] sm:$0xf]
    %v6825 = vld [vmem:[%s12 + $0x4e8] sm:$0xf]
    %v6826 = vld [vmem:[%s12 + $0x4ec] sm:$0xf]
    %v6827 = vld [vmem:[%s12 + $0x4f0] sm:$0xf]
    %v6828 = vld [vmem:[%s12 + $0x4f4] sm:$0xf]
    %v6829 = vld [vmem:[%s12 + $0x4f8] sm:$0xf]
    %v6830 = vld [vmem:[%s12 + $0x4fc] sm:$0xf]
    %v6831 = vld [vmem:[%s12 + $0x500] sm:$0xf]
    %v6832 = vld [vmem:[%s12 + $0x504] sm:$0xf]
    %v6833 = vld [vmem:[%s12 + $0x508] sm:$0xf]
    %v6834 = vld [vmem:[%s12 + $0x50c] sm:$0xf]
    %v6835 = vld [vmem:[%s12 + $0x510] sm:$0xf]
    %v6836 = vld [vmem:[%s12 + $0x514] sm:$0xf]
    %v6837 = vld [vmem:[%s12 + $0x518] sm:$0xf]
    %v6838 = vld [vmem:[%s12 + $0x51c] sm:$0xf]
    %v6839 = vld [vmem:[%s12 + $0x520] sm:$0xf]
    %v6840 = vld [vmem:[%s12 + $0x524] sm:$0xf]
    %v6841 = vld [vmem:[%s12 + $0x528] sm:$0xf]
    %v6842 = vld [vmem:[%s12 + $0x52c] sm:$0xf]
    %v6843 = vld [vmem:[%s12 + $0x530] sm:$0xf]
    %v6844 = vld [vmem:[%s12 + $0x534] sm:$0xf]
    %v6845 = vld [vmem:[%s12 + $0x538] sm:$0xf]
    %v6846 = vld [vmem:[%s12 + $0x53c] sm:$0xf]
    %v6847 = vld [vmem:[%s12 + $0x540] sm:$0xf]
    %v6848 = vld [vmem:[%s12 + $0x544] sm:$0xf]
    %v6849 = vld [vmem:[%s12 + $0x548] sm:$0xf]
    %v6850 = vld [vmem:[%s12 + $0x54c] sm:$0xf]
    %v6851 = vld [vmem:[%s12 + $0x550] sm:$0xf]
    %v6852 = vld [vmem:[%s12 + $0x554] sm:$0xf]
    %v6853 = vld [vmem:[%s12 + $0x558] sm:$0xf]
    %v6854 = vld [vmem:[%s12 + $0x55c] sm:$0xf]
    %v6855 = vld [vmem:[%s12 + $0x560] sm:$0xf]
    %v6856 = vld [vmem:[%s12 + $0x564] sm:$0xf]
    %v6857 = vld [vmem:[%s12 + $0x568] sm:$0xf]
    %v6858 = vld [vmem:[%s12 + $0x56c] sm:$0xf]
    %v6859 = vld [vmem:[%s12 + $0x570] sm:$0xf]
    %v6860 = vld [vmem:[%s12 + $0x574] sm:$0xf]
    %v6861 = vld [vmem:[%s12 + $0x578] sm:$0xf]
    %v6862 = vld [vmem:[%s12 + $0x57c] sm:$0xf]
    %v6863 = vld [vmem:[%s12 + $0x580] sm:$0xf]
    %v6864 = vld [vmem:[%s12 + $0x584] sm:$0xf]
    %v6865 = vld [vmem:[%s12 + $0x588] sm:$0xf]
    %v6866 = vld [vmem:[%s12 + $0x58c] sm:$0xf]
    %v6867 = vld [vmem:[%s12 + $0x590] sm:$0xf]
    %v6868 = vld [vmem:[%s12 + $0x594] sm:$0xf]
    %v6869 = vld [vmem:[%s12 + $0x598] sm:$0xf]
    %v6870 = vld [vmem:[%s12 + $0x59c] sm:$0xf]
    %v6871 = vld [vmem:[%s12 + $0x5a0] sm:$0xf]
    %v6872 = vld [vmem:[%s12 + $0x5a4] sm:$0xf]
    %v6873 = vld [vmem:[%s12 + $0x5a8] sm:$0xf]
    %v6874 = vld [vmem:[%s12 + $0x5ac] sm:$0xf]
    %v6875 = vld [vmem:[%s12 + $0x5b0] sm:$0xf]
    %v6876 = vld [vmem:[%s12 + $0x5b4] sm:$0xf]
    %v6877 = vld [vmem:[%s12 + $0x5b8] sm:$0xf]
    %v6878 = vld [vmem:[%s12 + $0x5bc] sm:$0xf]
    %v6879 = vld [vmem:[%s12 + $0x5c0] sm:$0xf]
    %v6880 = vld [vmem:[%s12 + $0x5c4] sm:$0xf]
    %v6881 = vld [vmem:[%s12 + $0x5c8] sm:$0xf]
    %v6882 = vld [vmem:[%s12 + $0x5cc] sm:$0xf]
    %v6883 = vld [vmem:[%s12 + $0x5d0] sm:$0xf]
    %v6884 = vld [vmem:[%s12 + $0x5d4] sm:$0xf]
    %v6885 = vld [vmem:[%s12 + $0x5d8] sm:$0xf]
    %v6886 = vld [vmem:[%s12 + $0x5dc] sm:$0xf]
    %v6887 = vld [vmem:[%s12 + $0x5e0] sm:$0xf]
    %v6888 = vld [vmem:[%s12 + $0x5e4] sm:$0xf]
    %v6889 = vld [vmem:[%s12 + $0x5e8] sm:$0xf]
    %v6890 = vld [vmem:[%s12 + $0x5ec] sm:$0xf]
    %v6891 = vld [vmem:[%s12 + $0x5f0] sm:$0xf]
    %v6892 = vld [vmem:[%s12 + $0x5f4] sm:$0xf]
    %v6893 = vld [vmem:[%s12 + $0x5f8] sm:$0xf]
    %v6894 = vld [vmem:[%s12 + $0x5fc] sm:$0xf]
    %v6895 = vld [vmem:[%s12 + $0x600] sm:$0xf]
    %v6896 = vld [vmem:[%s12 + $0x604] sm:$0xf]
    %v6897 = vld [vmem:[%s12 + $0x608] sm:$0xf]
    %v6898 = vld [vmem:[%s12 + $0x60c] sm:$0xf]
    %v6899 = vld [vmem:[%s12 + $0x610] sm:$0xf]
    %v6900 = vld [vmem:[%s12 + $0x614] sm:$0xf]
    %v6901 = vld [vmem:[%s12 + $0x618] sm:$0xf]
    %v6902 = vld [vmem:[%s12 + $0x61c] sm:$0xf]
    %v6903 = vld [vmem:[%s12 + $0x620] sm:$0xf]
    %v6904 = vld [vmem:[%s12 + $0x624] sm:$0xf]
    %v6905 = vld [vmem:[%s12 + $0x628] sm:$0xf]
    %v6906 = vld [vmem:[%s12 + $0x62c] sm:$0xf]
    %v6907 = vld [vmem:[%s12 + $0x630] sm:$0xf]
    %v6908 = vld [vmem:[%s12 + $0x634] sm:$0xf]
    %v6909 = vld [vmem:[%s12 + $0x638] sm:$0xf]
    %v6910 = vld [vmem:[%s12 + $0x63c] sm:$0xf]
    %v6911 = vld [vmem:[%s12 + $0x640] sm:$0xf]
    %v6912 = vld [vmem:[%s12 + $0x644] sm:$0xf]
    %v6913 = vld [vmem:[%s12 + $0x648] sm:$0xf]
    %v6914 = vld [vmem:[%s12 + $0x64c] sm:$0xf]
    %v6915 = vld [vmem:[%s12 + $0x650] sm:$0xf]
    %v6916 = vld [vmem:[%s12 + $0x654] sm:$0xf]
    %v6917 = vld [vmem:[%s12 + $0x658] sm:$0xf]
    %v6918 = vld [vmem:[%s12 + $0x65c] sm:$0xf]
    %v6919 = vld [vmem:[%s12 + $0x660] sm:$0xf]
    %v6920 = vld [vmem:[%s12 + $0x664] sm:$0xf]
    %v6921 = vld [vmem:[%s12 + $0x668] sm:$0xf]
    %v6922 = vld [vmem:[%s12 + $0x66c] sm:$0xf]
    %v6923 = vld [vmem:[%s12 + $0x670] sm:$0xf]
    %v6924 = vld [vmem:[%s12 + $0x674] sm:$0xf]
    %v6925 = vld [vmem:[%s12 + $0x678] sm:$0xf]
    %v6926 = vld [vmem:[%s12 + $0x67c] sm:$0xf]
    %v6927 = vld [vmem:[%s12 + $0x680] sm:$0xf]
    %v6928 = vld [vmem:[%s12 + $0x684] sm:$0xf]
    %v6929 = vld [vmem:[%s12 + $0x688] sm:$0xf]
    %v6930 = vld [vmem:[%s12 + $0x68c] sm:$0xf]
    %v6931 = vld [vmem:[%s12 + $0x690] sm:$0xf]
    %v6932 = vld [vmem:[%s12 + $0x694] sm:$0xf]
    %v6933 = vld [vmem:[%s12 + $0x698] sm:$0xf]
    %v6934 = vld [vmem:[%s12 + $0x69c] sm:$0xf]
    %v6935 = vld [vmem:[%s12 + $0x6a0] sm:$0xf]
    %v6936 = vld [vmem:[%s12 + $0x6a4] sm:$0xf]
    %v6937 = vld [vmem:[%s12 + $0x6a8] sm:$0xf]
    %v6938 = vld [vmem:[%s12 + $0x6ac] sm:$0xf]
    %v6939 = vld [vmem:[%s12 + $0x6b0] sm:$0xf]
    %v6940 = vld [vmem:[%s12 + $0x6b4] sm:$0xf]
    %v6941 = vld [vmem:[%s12 + $0x6b8] sm:$0xf]
    %v6942 = vld [vmem:[%s12 + $0x6bc] sm:$0xf]
    %v6943 = vld [vmem:[%s12 + $0x6c0] sm:$0xf]
    %v6944 = vld [vmem:[%s12 + $0x6c4] sm:$0xf]
    %v6945 = vld [vmem:[%s12 + $0x6c8] sm:$0xf]
    %v6946 = vld [vmem:[%s12 + $0x6cc] sm:$0xf]
    %v6947 = vld [vmem:[%s12 + $0x6d0] sm:$0xf]
    %v6948 = vld [vmem:[%s12 + $0x6d4] sm:$0xf]
    %v6949 = vld [vmem:[%s12 + $0x6d8] sm:$0xf]
    %v6950 = vld [vmem:[%s12 + $0x6dc] sm:$0xf]
    %v6951 = vld [vmem:[%s12 + $0x6e0] sm:$0xf]
    %v6952 = vld [vmem:[%s12 + $0x6e4] sm:$0xf]
    %v6953 = vld [vmem:[%s12 + $0x6e8] sm:$0xf]
    %v6954 = vld [vmem:[%s12 + $0x6ec] sm:$0xf]
    %v6955 = vld [vmem:[%s12 + $0x6f0] sm:$0xf]
    %v6956 = vld [vmem:[%s12 + $0x6f4] sm:$0xf]
    %v6957 = vld [vmem:[%s12 + $0x6f8] sm:$0xf]
    %v6958 = vld [vmem:[%s12 + $0x6fc] sm:$0xf]
    %v6959 = vld [vmem:[%s12 + $0x700] sm:$0xf]
    %v6960 = vld [vmem:[%s12 + $0x704] sm:$0xf]
    %v6961 = vld [vmem:[%s12 + $0x708] sm:$0xf]
    %v6962 = vld [vmem:[%s12 + $0x70c] sm:$0xf]
    %v6963 = vld [vmem:[%s12 + $0x710] sm:$0xf]
    %v6964 = vld [vmem:[%s12 + $0x714] sm:$0xf]
    %v6965 = vld [vmem:[%s12 + $0x718] sm:$0xf]
    %v6966 = vld [vmem:[%s12 + $0x71c] sm:$0xf]
    %v6967 = vld [vmem:[%s12 + $0x720] sm:$0xf]
    %v6968 = vld [vmem:[%s12 + $0x724] sm:$0xf]
    %v6969 = vld [vmem:[%s12 + $0x728] sm:$0xf]
    %v6970 = vld [vmem:[%s12 + $0x72c] sm:$0xf]
    %v6971 = vld [vmem:[%s12 + $0x730] sm:$0xf]
    %v6972 = vld [vmem:[%s12 + $0x734] sm:$0xf]
    %v6973 = vld [vmem:[%s12 + $0x738] sm:$0xf]
    %v6974 = vld [vmem:[%s12 + $0x73c] sm:$0xf]
    %v6975 = vld [vmem:[%s12 + $0x740] sm:$0xf]
    %v6976 = vld [vmem:[%s12 + $0x744] sm:$0xf]
    %v6977 = vld [vmem:[%s12 + $0x748] sm:$0xf]
    %v6978 = vld [vmem:[%s12 + $0x74c] sm:$0xf]
    %v6979 = vld [vmem:[%s12 + $0x750] sm:$0xf]
    %v6980 = vld [vmem:[%s12 + $0x754] sm:$0xf]
    %v6981 = vld [vmem:[%s12 + $0x758] sm:$0xf]
    %v6982 = vld [vmem:[%s12 + $0x75c] sm:$0xf]
    %v6983 = vld [vmem:[%s12 + $0x760] sm:$0xf]
    %v6984 = vld [vmem:[%s12 + $0x764] sm:$0xf]
    %v6985 = vld [vmem:[%s12 + $0x768] sm:$0xf]
    %v6986 = vld [vmem:[%s12 + $0x76c] sm:$0xf]
    %v6987 = vld [vmem:[%s12 + $0x770] sm:$0xf]
    %v6988 = vld [vmem:[%s12 + $0x774] sm:$0xf]
    %v6989 = vld [vmem:[%s12 + $0x778] sm:$0xf]
    %v6990 = vld [vmem:[%s12 + $0x77c] sm:$0xf]
    %v6991 = vld [vmem:[%s12 + $0x780] sm:$0xf]
    %v6992 = vld [vmem:[%s12 + $0x784] sm:$0xf]
    %v6993 = vld [vmem:[%s12 + $0x788] sm:$0xf]
    %v6994 = vld [vmem:[%s12 + $0x78c] sm:$0xf]
    %v6995 = vld [vmem:[%s12 + $0x790] sm:$0xf]
    %v6996 = vld [vmem:[%s12 + $0x794] sm:$0xf]
    %v6997 = vld [vmem:[%s12 + $0x798] sm:$0xf]
    %v6998 = vld [vmem:[%s12 + $0x79c] sm:$0xf]
    %v6999 = vld [vmem:[%s12 + $0x7a0] sm:$0xf]
    %v7000 = vld [vmem:[%s12 + $0x7a4] sm:$0xf]
    %v7001 = vld [vmem:[%s12 + $0x7a8] sm:$0xf]
    %v7002 = vld [vmem:[%s12 + $0x7ac] sm:$0xf]
    %v7003 = vld [vmem:[%s12 + $0x7b0] sm:$0xf]
    %v7004 = vld [vmem:[%s12 + $0x7b4] sm:$0xf]
    %v7005 = vld [vmem:[%s12 + $0x7b8] sm:$0xf]
    %v7006 = vld [vmem:[%s12 + $0x7bc] sm:$0xf]
    %v7007 = vld [vmem:[%s12 + $0x7c0] sm:$0xf]
    %v7008 = vld [vmem:[%s12 + $0x7c4] sm:$0xf]
    %v7009 = vld [vmem:[%s12 + $0x7c8] sm:$0xf]
    %v7010 = vld [vmem:[%s12 + $0x7cc] sm:$0xf]
    %v7011 = vld [vmem:[%s12 + $0x7d0] sm:$0xf]
    %v7012 = vld [vmem:[%s12 + $0x7d4] sm:$0xf]
    %v7013 = vld [vmem:[%s12 + $0x7d8] sm:$0xf]
    %v7014 = vld [vmem:[%s12 + $0x7dc] sm:$0xf]
    %v7015 = vld [vmem:[%s12 + $0x7e0] sm:$0xf]
    %v7016 = vld [vmem:[%s12 + $0x7e4] sm:$0xf]
    %v7017 = vld [vmem:[%s12 + $0x7e8] sm:$0xf]
    %v7018 = vld [vmem:[%s12 + $0x7ec] sm:$0xf]
    %v7019 = vld [vmem:[%s12 + $0x7f0] sm:$0xf]
    %v7020 = vld [vmem:[%s12 + $0x7f4] sm:$0xf]
    %v7021 = vld [vmem:[%s12 + $0x7f8] sm:$0xf]
    %v7022 = vld [vmem:[%s12 + $0x7fc] sm:$0xf]
    %v7027 = vunpack.c.l.b16 %v6479
    %v7028 = vunpack.c.h.b16 %v6479
    %v7029 = vunpack.c.l.b16 %v6480
    %v7030 = vunpack.c.h.b16 %v6480
    %v7031 = vunpack.c.l.b16 %v6481
    %v7032 = vunpack.c.h.b16 %v6481
    %v7033 = vunpack.c.l.b16 %v6482
    %v7034 = vunpack.c.h.b16 %v6482
    %v7035 = vpack.c.b16 %v7031, %v7027
    %v7036 = vpack.c.b16 %v7032, %v7028
    %v7037 = vpack.c.b16 %v7033, %v7029
    %v7038 = vpack.c.b16 %v7034, %v7030
    %v7107 = vunpack.c.l.b16 %v6511
    %v7108 = vunpack.c.l.b16 %v6512
    %v7109 = vunpack.c.l.b16 %v6513
    %v7110 = vunpack.c.l.b16 %v6514
    %v7111 = vunpack.c.l.b16 %v6515
    %v7112 = vunpack.c.l.b16 %v6516
    %v7113 = vunpack.c.l.b16 %v6517
    %v7114 = vunpack.c.l.b16 %v6518
    %v7115 = vunpack.c.l.b16 %v6519
    %v7116 = vunpack.c.l.b16 %v6520
    %v7117 = vunpack.c.l.b16 %v6521
    %v7118 = vunpack.c.l.b16 %v6522
    %v7119 = vunpack.c.l.b16 %v6523
    %v7120 = vunpack.c.l.b16 %v6524
    %v7121 = vunpack.c.l.b16 %v6525
    %v7122 = vunpack.c.l.b16 %v6526
    %v7123 = vunpack.c.l.b16 %v6527
    %v7124 = vunpack.c.l.b16 %v6528
    %v7125 = vunpack.c.l.b16 %v6529
    %v7126 = vunpack.c.l.b16 %v6530
    %v7127 = vunpack.c.l.b16 %v6531
    %v7128 = vunpack.c.l.b16 %v6532
    %v7129 = vunpack.c.l.b16 %v6533
    %v7130 = vunpack.c.l.b16 %v6534
    %v7131 = vunpack.c.l.b16 %v6535
    %v7132 = vunpack.c.l.b16 %v6536
    %v7133 = vunpack.c.l.b16 %v6537
    %v7134 = vunpack.c.l.b16 %v6538
    %v7135 = vunpack.c.l.b16 %v6539
    %v7136 = vunpack.c.l.b16 %v6540
    %v7137 = vunpack.c.l.b16 %v6541
    %v7138 = vunpack.c.l.b16 %v6542
    %v7139 = vunpack.c.l.b16 %v6543
    %v7140 = vunpack.c.l.b16 %v6544
    %v7141 = vunpack.c.l.b16 %v6545
    %v7142 = vunpack.c.l.b16 %v6546
    %v7143 = vunpack.c.l.b16 %v6547
    %v7144 = vunpack.c.l.b16 %v6548
    %v7145 = vunpack.c.l.b16 %v6549
    %v7146 = vunpack.c.l.b16 %v6550
    %v7147 = vunpack.c.l.b16 %v6551
    %v7148 = vunpack.c.l.b16 %v6552
    %v7149 = vunpack.c.l.b16 %v6553
    %v7150 = vunpack.c.l.b16 %v6554
    %v7151 = vunpack.c.l.b16 %v6555
    %v7152 = vunpack.c.l.b16 %v6556
    %v7153 = vunpack.c.l.b16 %v6557
    %v7154 = vunpack.c.l.b16 %v6558
    %v7155 = vunpack.c.l.b16 %v6559
    %v7156 = vunpack.c.l.b16 %v6560
    %v7157 = vunpack.c.l.b16 %v6561
    %v7158 = vunpack.c.l.b16 %v6562
    %v7159 = vunpack.c.l.b16 %v6563
    %v7160 = vunpack.c.l.b16 %v6564
    %v7161 = vunpack.c.l.b16 %v6565
    %v7162 = vunpack.c.l.b16 %v6566
    %v7163 = vunpack.c.l.b16 %v6567
    %v7164 = vunpack.c.l.b16 %v6568
    %v7165 = vunpack.c.l.b16 %v6569
    %v7166 = vunpack.c.l.b16 %v6570
    %v7167 = vunpack.c.l.b16 %v6571
    %v7168 = vunpack.c.l.b16 %v6572
    %v7169 = vunpack.c.l.b16 %v6573
    %v7170 = vunpack.c.l.b16 %v6574
    %v7171 = vpack.c.b16 %v7108, %v7107
    %v7172 = vpack.c.b16 %v7110, %v7109
    %v7173 = vpack.c.b16 %v7112, %v7111
    %v7174 = vpack.c.b16 %v7114, %v7113
    %v7175 = vpack.c.b16 %v7116, %v7115
    %v7176 = vpack.c.b16 %v7118, %v7117
    %v7177 = vpack.c.b16 %v7120, %v7119
    %v7178 = vpack.c.b16 %v7122, %v7121
    %v7179 = vpack.c.b16 %v7124, %v7123
    %v7180 = vpack.c.b16 %v7126, %v7125
    %v7181 = vpack.c.b16 %v7128, %v7127
    %v7182 = vpack.c.b16 %v7130, %v7129
    %v7183 = vpack.c.b16 %v7132, %v7131
    %v7184 = vpack.c.b16 %v7134, %v7133
    %v7185 = vpack.c.b16 %v7136, %v7135
    %v7186 = vpack.c.b16 %v7138, %v7137
    %v7187 = vpack.c.b16 %v7140, %v7139
    %v7188 = vpack.c.b16 %v7142, %v7141
    %v7189 = vpack.c.b16 %v7144, %v7143
    %v7190 = vpack.c.b16 %v7146, %v7145
    %v7191 = vpack.c.b16 %v7148, %v7147
    %v7192 = vpack.c.b16 %v7150, %v7149
    %v7193 = vpack.c.b16 %v7152, %v7151
    %v7194 = vpack.c.b16 %v7154, %v7153
    %v7195 = vpack.c.b16 %v7156, %v7155
    %v7196 = vpack.c.b16 %v7158, %v7157
    %v7197 = vpack.c.b16 %v7160, %v7159
    %v7198 = vpack.c.b16 %v7162, %v7161
    %v7199 = vpack.c.b16 %v7164, %v7163
    %v7200 = vpack.c.b16 %v7166, %v7165
    %v7201 = vpack.c.b16 %v7168, %v7167
    %v7202 = vpack.c.b16 %v7170, %v7169
    %7235 = vmatpush.bf16.msra.mxu0 %v7178
    %7236 = vmatpush.bf16.msra.mxu0 %v7177
    %7237 = vmatpush.bf16.msra.mxu0 %v7176
    %7238 = vmatpush.bf16.msra.mxu0 %v7175
    %7239 = vmatpush.bf16.msra.mxu0 %v7174
    %7240 = vmatpush.bf16.msra.mxu0 %v7173
    %7241 = vmatpush.bf16.msra.mxu0 %v7172
    %7242 = vmatpush.bf16.msra.mxu0 %v7171
    %7243 = vmatmul.bf16.gmra.mxu0 %v7035
    %v7244 = vpop.f32.mrf.mxu0
    %v7245 = vadd.f32 0.0, %v7244
    %v7246 = vpop.f32.mrf.mxu0
    %v7247 = vadd.f32 0.0, %v7246
    %7248 = vdwg.mxu0
    %7249 = vmatpush.bf16.msra.mxu0 %v7186
    %7250 = vmatpush.bf16.msra.mxu0 %v7185
    %7251 = vmatpush.bf16.msra.mxu0 %v7184
    %7252 = vmatpush.bf16.msra.mxu0 %v7183
    %7253 = vmatpush.bf16.msra.mxu0 %v7182
    %7254 = vmatpush.bf16.msra.mxu0 %v7181
    %7255 = vmatpush.bf16.msra.mxu0 %v7180
    %7256 = vmatpush.bf16.msra.mxu0 %v7179
    %7257 = vmatmul.bf16.gmra.mxu0 %v7036
    %v7258 = vpop.f32.mrf.mxu0
    %v7259 = vadd.f32 %v7245, %v7258
    %v7260 = vpop.f32.mrf.mxu0
    %v7261 = vadd.f32 %v7247, %v7260
    %7262 = vdwg.mxu0
    %7263 = vmatpush.bf16.msra.mxu0 %v7194
    %7264 = vmatpush.bf16.msra.mxu0 %v7193
    %7265 = vmatpush.bf16.msra.mxu0 %v7192
    %7266 = vmatpush.bf16.msra.mxu0 %v7191
    %7267 = vmatpush.bf16.msra.mxu0 %v7190
    %7268 = vmatpush.bf16.msra.mxu0 %v7189
    %7269 = vmatpush.bf16.msra.mxu0 %v7188
    %7270 = vmatpush.bf16.msra.mxu0 %v7187
    %7271 = vmatmul.bf16.gmra.mxu0 %v7037
    %v7272 = vpop.f32.mrf.mxu0
    %v7273 = vadd.f32 %v7259, %v7272
    %v7274 = vpop.f32.mrf.mxu0
    %v7275 = vadd.f32 %v7261, %v7274
    %7276 = vdwg.mxu0
    %7277 = vmatpush.bf16.msra.mxu0 %v7202
    %7278 = vmatpush.bf16.msra.mxu0 %v7201
    %7279 = vmatpush.bf16.msra.mxu0 %v7200
    %7280 = vmatpush.bf16.msra.mxu0 %v7199
    %7281 = vmatpush.bf16.msra.mxu0 %v7198
    %7282 = vmatpush.bf16.msra.mxu0 %v7197
    %7283 = vmatpush.bf16.msra.mxu0 %v7196
    %7284 = vmatpush.bf16.msra.mxu0 %v7195
    %7285 = vmatmul.bf16.gmra.mxu0 %v7038
    %v7286 = vpop.f32.mrf.mxu0
    %v7287 = vadd.f32 %v7273, %v7286
    %v7288 = vpop.f32.mrf.mxu0
    %v7289 = vadd.f32 %v7275, %v7288
    %7290 = vdwg.mxu0
    %v7295 = vunpack.c.l.b16 %v6483
    %v7296 = vunpack.c.h.b16 %v6483
    %v7297 = vunpack.c.l.b16 %v6484
    %v7298 = vunpack.c.h.b16 %v6484
    %v7299 = vunpack.c.l.b16 %v6485
    %v7300 = vunpack.c.h.b16 %v6485
    %v7301 = vunpack.c.l.b16 %v6486
    %v7302 = vunpack.c.h.b16 %v6486
    %v7303 = vpack.c.b16 %v7299, %v7295
    %v7304 = vpack.c.b16 %v7300, %v7296
    %v7305 = vpack.c.b16 %v7301, %v7297
    %v7306 = vpack.c.b16 %v7302, %v7298
    %v7375 = vunpack.c.l.b16 %v6575
    %v7376 = vunpack.c.l.b16 %v6576
    %v7377 = vunpack.c.l.b16 %v6577
    %v7378 = vunpack.c.l.b16 %v6578
    %v7379 = vunpack.c.l.b16 %v6579
    %v7380 = vunpack.c.l.b16 %v6580
    %v7381 = vunpack.c.l.b16 %v6581
    %v7382 = vunpack.c.l.b16 %v6582
    %v7383 = vunpack.c.l.b16 %v6583
    %v7384 = vunpack.c.l.b16 %v6584
    %v7385 = vunpack.c.l.b16 %v6585
    %v7386 = vunpack.c.l.b16 %v6586
    %v7387 = vunpack.c.l.b16 %v6587
    %v7388 = vunpack.c.l.b16 %v6588
    %v7389 = vunpack.c.l.b16 %v6589
    %v7390 = vunpack.c.l.b16 %v6590
    %v7391 = vunpack.c.l.b16 %v6591
    %v7392 = vunpack.c.l.b16 %v6592
    %v7393 = vunpack.c.l.b16 %v6593
    %v7394 = vunpack.c.l.b16 %v6594
    %v7395 = vunpack.c.l.b16 %v6595
    %v7396 = vunpack.c.l.b16 %v6596
    %v7397 = vunpack.c.l.b16 %v6597
    %v7398 = vunpack.c.l.b16 %v6598
    %v7399 = vunpack.c.l.b16 %v6599
    %v7400 = vunpack.c.l.b16 %v6600
    %v7401 = vunpack.c.l.b16 %v6601
    %v7402 = vunpack.c.l.b16 %v6602
    %v7403 = vunpack.c.l.b16 %v6603
    %v7404 = vunpack.c.l.b16 %v6604
    %v7405 = vunpack.c.l.b16 %v6605
    %v7406 = vunpack.c.l.b16 %v6606
    %v7407 = vunpack.c.l.b16 %v6607
    %v7408 = vunpack.c.l.b16 %v6608
    %v7409 = vunpack.c.l.b16 %v6609
    %v7410 = vunpack.c.l.b16 %v6610
    %v7411 = vunpack.c.l.b16 %v6611
    %v7412 = vunpack.c.l.b16 %v6612
    %v7413 = vunpack.c.l.b16 %v6613
    %v7414 = vunpack.c.l.b16 %v6614
    %v7415 = vunpack.c.l.b16 %v6615
    %v7416 = vunpack.c.l.b16 %v6616
    %v7417 = vunpack.c.l.b16 %v6617
    %v7418 = vunpack.c.l.b16 %v6618
    %v7419 = vunpack.c.l.b16 %v6619
    %v7420 = vunpack.c.l.b16 %v6620
    %v7421 = vunpack.c.l.b16 %v6621
    %v7422 = vunpack.c.l.b16 %v6622
    %v7423 = vunpack.c.l.b16 %v6623
    %v7424 = vunpack.c.l.b16 %v6624
    %v7425 = vunpack.c.l.b16 %v6625
    %v7426 = vunpack.c.l.b16 %v6626
    %v7427 = vunpack.c.l.b16 %v6627
    %v7428 = vunpack.c.l.b16 %v6628
    %v7429 = vunpack.c.l.b16 %v6629
    %v7430 = vunpack.c.l.b16 %v6630
    %v7431 = vunpack.c.l.b16 %v6631
    %v7432 = vunpack.c.l.b16 %v6632
    %v7433 = vunpack.c.l.b16 %v6633
    %v7434 = vunpack.c.l.b16 %v6634
    %v7435 = vunpack.c.l.b16 %v6635
    %v7436 = vunpack.c.l.b16 %v6636
    %v7437 = vunpack.c.l.b16 %v6637
    %v7438 = vunpack.c.l.b16 %v6638
    %v7439 = vpack.c.b16 %v7376, %v7375
    %v7440 = vpack.c.b16 %v7378, %v7377
    %v7441 = vpack.c.b16 %v7380, %v7379
    %v7442 = vpack.c.b16 %v7382, %v7381
    %v7443 = vpack.c.b16 %v7384, %v7383
    %v7444 = vpack.c.b16 %v7386, %v7385
    %v7445 = vpack.c.b16 %v7388, %v7387
    %v7446 = vpack.c.b16 %v7390, %v7389
    %v7447 = vpack.c.b16 %v7392, %v7391
    %v7448 = vpack.c.b16 %v7394, %v7393
    %v7449 = vpack.c.b16 %v7396, %v7395
    %v7450 = vpack.c.b16 %v7398, %v7397
    %v7451 = vpack.c.b16 %v7400, %v7399
    %v7452 = vpack.c.b16 %v7402, %v7401
    %v7453 = vpack.c.b16 %v7404, %v7403
    %v7454 = vpack.c.b16 %v7406, %v7405
    %v7455 = vpack.c.b16 %v7408, %v7407
    %v7456 = vpack.c.b16 %v7410, %v7409
    %v7457 = vpack.c.b16 %v7412, %v7411
    %v7458 = vpack.c.b16 %v7414, %v7413
    %v7459 = vpack.c.b16 %v7416, %v7415
    %v7460 = vpack.c.b16 %v7418, %v7417
    %v7461 = vpack.c.b16 %v7420, %v7419
    %v7462 = vpack.c.b16 %v7422, %v7421
    %v7463 = vpack.c.b16 %v7424, %v7423
    %v7464 = vpack.c.b16 %v7426, %v7425
    %v7465 = vpack.c.b16 %v7428, %v7427
    %v7466 = vpack.c.b16 %v7430, %v7429
    %v7467 = vpack.c.b16 %v7432, %v7431
    %v7468 = vpack.c.b16 %v7434, %v7433
    %v7469 = vpack.c.b16 %v7436, %v7435
    %v7470 = vpack.c.b16 %v7438, %v7437
    %7503 = vmatpush.bf16.msra.mxu0 %v7446
    %7504 = vmatpush.bf16.msra.mxu0 %v7445
    %7505 = vmatpush.bf16.msra.mxu0 %v7444
    %7506 = vmatpush.bf16.msra.mxu0 %v7443
    %7507 = vmatpush.bf16.msra.mxu0 %v7442
    %7508 = vmatpush.bf16.msra.mxu0 %v7441
    %7509 = vmatpush.bf16.msra.mxu0 %v7440
    %7510 = vmatpush.bf16.msra.mxu0 %v7439
    %7511 = vmatmul.bf16.gmra.mxu0 %v7303
    %v7512 = vpop.f32.mrf.mxu0
    %v7513 = vadd.f32 0.0, %v7512
    %v7514 = vpop.f32.mrf.mxu0
    %v7515 = vadd.f32 0.0, %v7514
    %7516 = vdwg.mxu0
    %7517 = vmatpush.bf16.msra.mxu0 %v7454
    %7518 = vmatpush.bf16.msra.mxu0 %v7453
    %7519 = vmatpush.bf16.msra.mxu0 %v7452
    %7520 = vmatpush.bf16.msra.mxu0 %v7451
    %7521 = vmatpush.bf16.msra.mxu0 %v7450
    %7522 = vmatpush.bf16.msra.mxu0 %v7449
    %7523 = vmatpush.bf16.msra.mxu0 %v7448
    %7524 = vmatpush.bf16.msra.mxu0 %v7447
    %7525 = vmatmul.bf16.gmra.mxu0 %v7304
    %v7526 = vpop.f32.mrf.mxu0
    %v7527 = vadd.f32 %v7513, %v7526
    %v7528 = vpop.f32.mrf.mxu0
    %v7529 = vadd.f32 %v7515, %v7528
    %7530 = vdwg.mxu0
    %7531 = vmatpush.bf16.msra.mxu0 %v7462
    %7532 = vmatpush.bf16.msra.mxu0 %v7461
    %7533 = vmatpush.bf16.msra.mxu0 %v7460
    %7534 = vmatpush.bf16.msra.mxu0 %v7459
    %7535 = vmatpush.bf16.msra.mxu0 %v7458
    %7536 = vmatpush.bf16.msra.mxu0 %v7457
    %7537 = vmatpush.bf16.msra.mxu0 %v7456
    %7538 = vmatpush.bf16.msra.mxu0 %v7455
    %7539 = vmatmul.bf16.gmra.mxu0 %v7305
    %v7540 = vpop.f32.mrf.mxu0
    %v7541 = vadd.f32 %v7527, %v7540
    %v7542 = vpop.f32.mrf.mxu0
    %v7543 = vadd.f32 %v7529, %v7542
    %7544 = vdwg.mxu0
    %7545 = vmatpush.bf16.msra.mxu0 %v7470
    %7546 = vmatpush.bf16.msra.mxu0 %v7469
    %7547 = vmatpush.bf16.msra.mxu0 %v7468
    %7548 = vmatpush.bf16.msra.mxu0 %v7467
    %7549 = vmatpush.bf16.msra.mxu0 %v7466
    %7550 = vmatpush.bf16.msra.mxu0 %v7465
    %7551 = vmatpush.bf16.msra.mxu0 %v7464
    %7552 = vmatpush.bf16.msra.mxu0 %v7463
    %7553 = vmatmul.bf16.gmra.mxu0 %v7306
    %v7554 = vpop.f32.mrf.mxu0
    %v7555 = vadd.f32 %v7541, %v7554
    %v7556 = vpop.f32.mrf.mxu0
    %v7557 = vadd.f32 %v7543, %v7556
    %7558 = vdwg.mxu0
    %v7563 = vunpack.c.l.b16 %v6487
    %v7564 = vunpack.c.h.b16 %v6487
    %v7565 = vunpack.c.l.b16 %v6488
    %v7566 = vunpack.c.h.b16 %v6488
    %v7567 = vunpack.c.l.b16 %v6489
    %v7568 = vunpack.c.h.b16 %v6489
    %v7569 = vunpack.c.l.b16 %v6490
    %v7570 = vunpack.c.h.b16 %v6490
    %v7571 = vpack.c.b16 %v7567, %v7563
    %v7572 = vpack.c.b16 %v7568, %v7564
    %v7573 = vpack.c.b16 %v7569, %v7565
    %v7574 = vpack.c.b16 %v7570, %v7566
    %v7643 = vunpack.c.l.b16 %v6639
    %v7644 = vunpack.c.l.b16 %v6640
    %v7645 = vunpack.c.l.b16 %v6641
    %v7646 = vunpack.c.l.b16 %v6642
    %v7647 = vunpack.c.l.b16 %v6643
    %v7648 = vunpack.c.l.b16 %v6644
    %v7649 = vunpack.c.l.b16 %v6645
    %v7650 = vunpack.c.l.b16 %v6646
    %v7651 = vunpack.c.l.b16 %v6647
    %v7652 = vunpack.c.l.b16 %v6648
    %v7653 = vunpack.c.l.b16 %v6649
    %v7654 = vunpack.c.l.b16 %v6650
    %v7655 = vunpack.c.l.b16 %v6651
    %v7656 = vunpack.c.l.b16 %v6652
    %v7657 = vunpack.c.l.b16 %v6653
    %v7658 = vunpack.c.l.b16 %v6654
    %v7659 = vunpack.c.l.b16 %v6655
    %v7660 = vunpack.c.l.b16 %v6656
    %v7661 = vunpack.c.l.b16 %v6657
    %v7662 = vunpack.c.l.b16 %v6658
    %v7663 = vunpack.c.l.b16 %v6659
    %v7664 = vunpack.c.l.b16 %v6660
    %v7665 = vunpack.c.l.b16 %v6661
    %v7666 = vunpack.c.l.b16 %v6662
    %v7667 = vunpack.c.l.b16 %v6663
    %v7668 = vunpack.c.l.b16 %v6664
    %v7669 = vunpack.c.l.b16 %v6665
    %v7670 = vunpack.c.l.b16 %v6666
    %v7671 = vunpack.c.l.b16 %v6667
    %v7672 = vunpack.c.l.b16 %v6668
    %v7673 = vunpack.c.l.b16 %v6669
    %v7674 = vunpack.c.l.b16 %v6670
    %v7675 = vunpack.c.l.b16 %v6671
    %v7676 = vunpack.c.l.b16 %v6672
    %v7677 = vunpack.c.l.b16 %v6673
    %v7678 = vunpack.c.l.b16 %v6674
    %v7679 = vunpack.c.l.b16 %v6675
    %v7680 = vunpack.c.l.b16 %v6676
    %v7681 = vunpack.c.l.b16 %v6677
    %v7682 = vunpack.c.l.b16 %v6678
    %v7683 = vunpack.c.l.b16 %v6679
    %v7684 = vunpack.c.l.b16 %v6680
    %v7685 = vunpack.c.l.b16 %v6681
    %v7686 = vunpack.c.l.b16 %v6682
    %v7687 = vunpack.c.l.b16 %v6683
    %v7688 = vunpack.c.l.b16 %v6684
    %v7689 = vunpack.c.l.b16 %v6685
    %v7690 = vunpack.c.l.b16 %v6686
    %v7691 = vunpack.c.l.b16 %v6687
    %v7692 = vunpack.c.l.b16 %v6688
    %v7693 = vunpack.c.l.b16 %v6689
    %v7694 = vunpack.c.l.b16 %v6690
    %v7695 = vunpack.c.l.b16 %v6691
    %v7696 = vunpack.c.l.b16 %v6692
    %v7697 = vunpack.c.l.b16 %v6693
    %v7698 = vunpack.c.l.b16 %v6694
    %v7699 = vunpack.c.l.b16 %v6695
    %v7700 = vunpack.c.l.b16 %v6696
    %v7701 = vunpack.c.l.b16 %v6697
    %v7702 = vunpack.c.l.b16 %v6698
    %v7703 = vunpack.c.l.b16 %v6699
    %v7704 = vunpack.c.l.b16 %v6700
    %v7705 = vunpack.c.l.b16 %v6701
    %v7706 = vunpack.c.l.b16 %v6702
    %v7707 = vpack.c.b16 %v7644, %v7643
    %v7708 = vpack.c.b16 %v7646, %v7645
    %v7709 = vpack.c.b16 %v7648, %v7647
    %v7710 = vpack.c.b16 %v7650, %v7649
    %v7711 = vpack.c.b16 %v7652, %v7651
    %v7712 = vpack.c.b16 %v7654, %v7653
    %v7713 = vpack.c.b16 %v7656, %v7655
    %v7714 = vpack.c.b16 %v7658, %v7657
    %v7715 = vpack.c.b16 %v7660, %v7659
    %v7716 = vpack.c.b16 %v7662, %v7661
    %v7717 = vpack.c.b16 %v7664, %v7663
    %v7718 = vpack.c.b16 %v7666, %v7665
    %v7719 = vpack.c.b16 %v7668, %v7667
    %v7720 = vpack.c.b16 %v7670, %v7669
    %v7721 = vpack.c.b16 %v7672, %v7671
    %v7722 = vpack.c.b16 %v7674, %v7673
    %v7723 = vpack.c.b16 %v7676, %v7675
    %v7724 = vpack.c.b16 %v7678, %v7677
    %v7725 = vpack.c.b16 %v7680, %v7679
    %v7726 = vpack.c.b16 %v7682, %v7681
    %v7727 = vpack.c.b16 %v7684, %v7683
    %v7728 = vpack.c.b16 %v7686, %v7685
    %v7729 = vpack.c.b16 %v7688, %v7687
    %v7730 = vpack.c.b16 %v7690, %v7689
    %v7731 = vpack.c.b16 %v7692, %v7691
    %v7732 = vpack.c.b16 %v7694, %v7693
    %v7733 = vpack.c.b16 %v7696, %v7695
    %v7734 = vpack.c.b16 %v7698, %v7697
    %v7735 = vpack.c.b16 %v7700, %v7699
    %v7736 = vpack.c.b16 %v7702, %v7701
    %v7737 = vpack.c.b16 %v7704, %v7703
    %v7738 = vpack.c.b16 %v7706, %v7705
    %7771 = vmatpush.bf16.msra.mxu0 %v7714
    %7772 = vmatpush.bf16.msra.mxu0 %v7713
    %7773 = vmatpush.bf16.msra.mxu0 %v7712
    %7774 = vmatpush.bf16.msra.mxu0 %v7711
    %7775 = vmatpush.bf16.msra.mxu0 %v7710
    %7776 = vmatpush.bf16.msra.mxu0 %v7709
    %7777 = vmatpush.bf16.msra.mxu0 %v7708
    %7778 = vmatpush.bf16.msra.mxu0 %v7707
    %7779 = vmatmul.bf16.gmra.mxu0 %v7571
    %v7780 = vpop.f32.mrf.mxu0
    %v7781 = vadd.f32 0.0, %v7780
    %v7782 = vpop.f32.mrf.mxu0
    %v7783 = vadd.f32 0.0, %v7782
    %7784 = vdwg.mxu0
    %7785 = vmatpush.bf16.msra.mxu0 %v7722
    %7786 = vmatpush.bf16.msra.mxu0 %v7721
    %7787 = vmatpush.bf16.msra.mxu0 %v7720
    %7788 = vmatpush.bf16.msra.mxu0 %v7719
    %7789 = vmatpush.bf16.msra.mxu0 %v7718
    %7790 = vmatpush.bf16.msra.mxu0 %v7717
    %7791 = vmatpush.bf16.msra.mxu0 %v7716
    %7792 = vmatpush.bf16.msra.mxu0 %v7715
    %7793 = vmatmul.bf16.gmra.mxu0 %v7572
    %v7794 = vpop.f32.mrf.mxu0
    %v7795 = vadd.f32 %v7781, %v7794
    %v7796 = vpop.f32.mrf.mxu0
    %v7797 = vadd.f32 %v7783, %v7796
    %7798 = vdwg.mxu0
    %7799 = vmatpush.bf16.msra.mxu0 %v7730
    %7800 = vmatpush.bf16.msra.mxu0 %v7729
    %7801 = vmatpush.bf16.msra.mxu0 %v7728
    %7802 = vmatpush.bf16.msra.mxu0 %v7727
    %7803 = vmatpush.bf16.msra.mxu0 %v7726
    %7804 = vmatpush.bf16.msra.mxu0 %v7725
    %7805 = vmatpush.bf16.msra.mxu0 %v7724
    %7806 = vmatpush.bf16.msra.mxu0 %v7723
    %7807 = vmatmul.bf16.gmra.mxu0 %v7573
    %v7808 = vpop.f32.mrf.mxu0
    %v7809 = vadd.f32 %v7795, %v7808
    %v7810 = vpop.f32.mrf.mxu0
    %v7811 = vadd.f32 %v7797, %v7810
    %7812 = vdwg.mxu0
    %7813 = vmatpush.bf16.msra.mxu0 %v7738
    %7814 = vmatpush.bf16.msra.mxu0 %v7737
    %7815 = vmatpush.bf16.msra.mxu0 %v7736
    %7816 = vmatpush.bf16.msra.mxu0 %v7735
    %7817 = vmatpush.bf16.msra.mxu0 %v7734
    %7818 = vmatpush.bf16.msra.mxu0 %v7733
    %7819 = vmatpush.bf16.msra.mxu0 %v7732
    %7820 = vmatpush.bf16.msra.mxu0 %v7731
    %7821 = vmatmul.bf16.gmra.mxu0 %v7574
    %v7822 = vpop.f32.mrf.mxu0
    %v7823 = vadd.f32 %v7809, %v7822
    %v7824 = vpop.f32.mrf.mxu0
    %v7825 = vadd.f32 %v7811, %v7824
    %7826 = vdwg.mxu0
    %v7831 = vunpack.c.l.b16 %v6491
    %v7832 = vunpack.c.h.b16 %v6491
    %v7833 = vunpack.c.l.b16 %v6492
    %v7834 = vunpack.c.h.b16 %v6492
    %v7835 = vunpack.c.l.b16 %v6493
    %v7836 = vunpack.c.h.b16 %v6493
    %v7837 = vunpack.c.l.b16 %v6494
    %v7838 = vunpack.c.h.b16 %v6494
    %v7839 = vpack.c.b16 %v7835, %v7831
    %v7840 = vpack.c.b16 %v7836, %v7832
    %v7841 = vpack.c.b16 %v7837, %v7833
    %v7842 = vpack.c.b16 %v7838, %v7834
    %v7911 = vunpack.c.l.b16 %v6703
    %v7912 = vunpack.c.l.b16 %v6704
    %v7913 = vunpack.c.l.b16 %v6705
    %v7914 = vunpack.c.l.b16 %v6706
    %v7915 = vunpack.c.l.b16 %v6707
    %v7916 = vunpack.c.l.b16 %v6708
    %v7917 = vunpack.c.l.b16 %v6709
    %v7918 = vunpack.c.l.b16 %v6710
    %v7919 = vunpack.c.l.b16 %v6711
    %v7920 = vunpack.c.l.b16 %v6712
    %v7921 = vunpack.c.l.b16 %v6713
    %v7922 = vunpack.c.l.b16 %v6714
    %v7923 = vunpack.c.l.b16 %v6715
    %v7924 = vunpack.c.l.b16 %v6716
    %v7925 = vunpack.c.l.b16 %v6717
    %v7926 = vunpack.c.l.b16 %v6718
    %v7927 = vunpack.c.l.b16 %v6719
    %v7928 = vunpack.c.l.b16 %v6720
    %v7929 = vunpack.c.l.b16 %v6721
    %v7930 = vunpack.c.l.b16 %v6722
    %v7931 = vunpack.c.l.b16 %v6723
    %v7932 = vunpack.c.l.b16 %v6724
    %v7933 = vunpack.c.l.b16 %v6725
    %v7934 = vunpack.c.l.b16 %v6726
    %v7935 = vunpack.c.l.b16 %v6727
    %v7936 = vunpack.c.l.b16 %v6728
    %v7937 = vunpack.c.l.b16 %v6729
    %v7938 = vunpack.c.l.b16 %v6730
    %v7939 = vunpack.c.l.b16 %v6731
    %v7940 = vunpack.c.l.b16 %v6732
    %v7941 = vunpack.c.l.b16 %v6733
    %v7942 = vunpack.c.l.b16 %v6734
    %v7943 = vunpack.c.l.b16 %v6735
    %v7944 = vunpack.c.l.b16 %v6736
    %v7945 = vunpack.c.l.b16 %v6737
    %v7946 = vunpack.c.l.b16 %v6738
    %v7947 = vunpack.c.l.b16 %v6739
    %v7948 = vunpack.c.l.b16 %v6740
    %v7949 = vunpack.c.l.b16 %v6741
    %v7950 = vunpack.c.l.b16 %v6742
    %v7951 = vunpack.c.l.b16 %v6743
    %v7952 = vunpack.c.l.b16 %v6744
    %v7953 = vunpack.c.l.b16 %v6745
    %v7954 = vunpack.c.l.b16 %v6746
    %v7955 = vunpack.c.l.b16 %v6747
    %v7956 = vunpack.c.l.b16 %v6748
    %v7957 = vunpack.c.l.b16 %v6749
    %v7958 = vunpack.c.l.b16 %v6750
    %v7959 = vunpack.c.l.b16 %v6751
    %v7960 = vunpack.c.l.b16 %v6752
    %v7961 = vunpack.c.l.b16 %v6753
    %v7962 = vunpack.c.l.b16 %v6754
    %v7963 = vunpack.c.l.b16 %v6755
    %v7964 = vunpack.c.l.b16 %v6756
    %v7965 = vunpack.c.l.b16 %v6757
    %v7966 = vunpack.c.l.b16 %v6758
    %v7967 = vunpack.c.l.b16 %v6759
    %v7968 = vunpack.c.l.b16 %v6760
    %v7969 = vunpack.c.l.b16 %v6761
    %v7970 = vunpack.c.l.b16 %v6762
    %v7971 = vunpack.c.l.b16 %v6763
    %v7972 = vunpack.c.l.b16 %v6764
    %v7973 = vunpack.c.l.b16 %v6765
    %v7974 = vunpack.c.l.b16 %v6766
    %v7975 = vpack.c.b16 %v7912, %v7911
    %v7976 = vpack.c.b16 %v7914, %v7913
    %v7977 = vpack.c.b16 %v7916, %v7915
    %v7978 = vpack.c.b16 %v7918, %v7917
    %v7979 = vpack.c.b16 %v7920, %v7919
    %v7980 = vpack.c.b16 %v7922, %v7921
    %v7981 = vpack.c.b16 %v7924, %v7923
    %v7982 = vpack.c.b16 %v7926, %v7925
    %v7983 = vpack.c.b16 %v7928, %v7927
    %v7984 = vpack.c.b16 %v7930, %v7929
    %v7985 = vpack.c.b16 %v7932, %v7931
    %v7986 = vpack.c.b16 %v7934, %v7933
    %v7987 = vpack.c.b16 %v7936, %v7935
    %v7988 = vpack.c.b16 %v7938, %v7937
    %v7989 = vpack.c.b16 %v7940, %v7939
    %v7990 = vpack.c.b16 %v7942, %v7941
    %v7991 = vpack.c.b16 %v7944, %v7943
    %v7992 = vpack.c.b16 %v7946, %v7945
    %v7993 = vpack.c.b16 %v7948, %v7947
    %v7994 = vpack.c.b16 %v7950, %v7949
    %v7995 = vpack.c.b16 %v7952, %v7951
    %v7996 = vpack.c.b16 %v7954, %v7953
    %v7997 = vpack.c.b16 %v7956, %v7955
    %v7998 = vpack.c.b16 %v7958, %v7957
    %v7999 = vpack.c.b16 %v7960, %v7959
    %v8000 = vpack.c.b16 %v7962, %v7961
    %v8001 = vpack.c.b16 %v7964, %v7963
    %v8002 = vpack.c.b16 %v7966, %v7965
    %v8003 = vpack.c.b16 %v7968, %v7967
    %v8004 = vpack.c.b16 %v7970, %v7969
    %v8005 = vpack.c.b16 %v7972, %v7971
    %v8006 = vpack.c.b16 %v7974, %v7973
    %8039 = vmatpush.bf16.msra.mxu0 %v7982
    %8040 = vmatpush.bf16.msra.mxu0 %v7981
    %8041 = vmatpush.bf16.msra.mxu0 %v7980
    %8042 = vmatpush.bf16.msra.mxu0 %v7979
    %8043 = vmatpush.bf16.msra.mxu0 %v7978
    %8044 = vmatpush.bf16.msra.mxu0 %v7977
    %8045 = vmatpush.bf16.msra.mxu0 %v7976
    %8046 = vmatpush.bf16.msra.mxu0 %v7975
    %8047 = vmatmul.bf16.gmra.mxu0 %v7839
    %v8048 = vpop.f32.mrf.mxu0
    %v8049 = vadd.f32 0.0, %v8048
    %v8050 = vpop.f32.mrf.mxu0
    %v8051 = vadd.f32 0.0, %v8050
    %8052 = vdwg.mxu0
    %8053 = vmatpush.bf16.msra.mxu0 %v7990
    %8054 = vmatpush.bf16.msra.mxu0 %v7989
    %8055 = vmatpush.bf16.msra.mxu0 %v7988
    %8056 = vmatpush.bf16.msra.mxu0 %v7987
    %8057 = vmatpush.bf16.msra.mxu0 %v7986
    %8058 = vmatpush.bf16.msra.mxu0 %v7985
    %8059 = vmatpush.bf16.msra.mxu0 %v7984
    %8060 = vmatpush.bf16.msra.mxu0 %v7983
    %8061 = vmatmul.bf16.gmra.mxu0 %v7840
    %v8062 = vpop.f32.mrf.mxu0
    %v8063 = vadd.f32 %v8049, %v8062
    %v8064 = vpop.f32.mrf.mxu0
    %v8065 = vadd.f32 %v8051, %v8064
    %8066 = vdwg.mxu0
    %8067 = vmatpush.bf16.msra.mxu0 %v7998
    %8068 = vmatpush.bf16.msra.mxu0 %v7997
    %8069 = vmatpush.bf16.msra.mxu0 %v7996
    %8070 = vmatpush.bf16.msra.mxu0 %v7995
    %8071 = vmatpush.bf16.msra.mxu0 %v7994
    %8072 = vmatpush.bf16.msra.mxu0 %v7993
    %8073 = vmatpush.bf16.msra.mxu0 %v7992
    %8074 = vmatpush.bf16.msra.mxu0 %v7991
    %8075 = vmatmul.bf16.gmra.mxu0 %v7841
    %v8076 = vpop.f32.mrf.mxu0
    %v8077 = vadd.f32 %v8063, %v8076
    %v8078 = vpop.f32.mrf.mxu0
    %v8079 = vadd.f32 %v8065, %v8078
    %8080 = vdwg.mxu0
    %8081 = vmatpush.bf16.msra.mxu0 %v8006
    %8082 = vmatpush.bf16.msra.mxu0 %v8005
    %8083 = vmatpush.bf16.msra.mxu0 %v8004
    %8084 = vmatpush.bf16.msra.mxu0 %v8003
    %8085 = vmatpush.bf16.msra.mxu0 %v8002
    %8086 = vmatpush.bf16.msra.mxu0 %v8001
    %8087 = vmatpush.bf16.msra.mxu0 %v8000
    %8088 = vmatpush.bf16.msra.mxu0 %v7999
    %8089 = vmatmul.bf16.gmra.mxu0 %v7842
    %v8090 = vpop.f32.mrf.mxu0
    %v8091 = vadd.f32 %v8077, %v8090
    %v8092 = vpop.f32.mrf.mxu0
    %v8093 = vadd.f32 %v8079, %v8092
    %8094 = vdwg.mxu0
    %v8099 = vunpack.c.l.b16 %v6495
    %v8100 = vunpack.c.h.b16 %v6495
    %v8101 = vunpack.c.l.b16 %v6496
    %v8102 = vunpack.c.h.b16 %v6496
    %v8103 = vunpack.c.l.b16 %v6497
    %v8104 = vunpack.c.h.b16 %v6497
    %v8105 = vunpack.c.l.b16 %v6498
    %v8106 = vunpack.c.h.b16 %v6498
    %v8107 = vpack.c.b16 %v8103, %v8099
    %v8108 = vpack.c.b16 %v8104, %v8100
    %v8109 = vpack.c.b16 %v8105, %v8101
    %v8110 = vpack.c.b16 %v8106, %v8102
    %v8179 = vunpack.c.l.b16 %v6767
    %v8180 = vunpack.c.l.b16 %v6768
    %v8181 = vunpack.c.l.b16 %v6769
    %v8182 = vunpack.c.l.b16 %v6770
    %v8183 = vunpack.c.l.b16 %v6771
    %v8184 = vunpack.c.l.b16 %v6772
    %v8185 = vunpack.c.l.b16 %v6773
    %v8186 = vunpack.c.l.b16 %v6774
    %v8187 = vunpack.c.l.b16 %v6775
    %v8188 = vunpack.c.l.b16 %v6776
    %v8189 = vunpack.c.l.b16 %v6777
    %v8190 = vunpack.c.l.b16 %v6778
    %v8191 = vunpack.c.l.b16 %v6779
    %v8192 = vunpack.c.l.b16 %v6780
    %v8193 = vunpack.c.l.b16 %v6781
    %v8194 = vunpack.c.l.b16 %v6782
    %v8195 = vunpack.c.l.b16 %v6783
    %v8196 = vunpack.c.l.b16 %v6784
    %v8197 = vunpack.c.l.b16 %v6785
    %v8198 = vunpack.c.l.b16 %v6786
    %v8199 = vunpack.c.l.b16 %v6787
    %v8200 = vunpack.c.l.b16 %v6788
    %v8201 = vunpack.c.l.b16 %v6789
    %v8202 = vunpack.c.l.b16 %v6790
    %v8203 = vunpack.c.l.b16 %v6791
    %v8204 = vunpack.c.l.b16 %v6792
    %v8205 = vunpack.c.l.b16 %v6793
    %v8206 = vunpack.c.l.b16 %v6794
    %v8207 = vunpack.c.l.b16 %v6795
    %v8208 = vunpack.c.l.b16 %v6796
    %v8209 = vunpack.c.l.b16 %v6797
    %v8210 = vunpack.c.l.b16 %v6798
    %v8211 = vunpack.c.l.b16 %v6799
    %v8212 = vunpack.c.l.b16 %v6800
    %v8213 = vunpack.c.l.b16 %v6801
    %v8214 = vunpack.c.l.b16 %v6802
    %v8215 = vunpack.c.l.b16 %v6803
    %v8216 = vunpack.c.l.b16 %v6804
    %v8217 = vunpack.c.l.b16 %v6805
    %v8218 = vunpack.c.l.b16 %v6806
    %v8219 = vunpack.c.l.b16 %v6807
    %v8220 = vunpack.c.l.b16 %v6808
    %v8221 = vunpack.c.l.b16 %v6809
    %v8222 = vunpack.c.l.b16 %v6810
    %v8223 = vunpack.c.l.b16 %v6811
    %v8224 = vunpack.c.l.b16 %v6812
    %v8225 = vunpack.c.l.b16 %v6813
    %v8226 = vunpack.c.l.b16 %v6814
    %v8227 = vunpack.c.l.b16 %v6815
    %v8228 = vunpack.c.l.b16 %v6816
    %v8229 = vunpack.c.l.b16 %v6817
    %v8230 = vunpack.c.l.b16 %v6818
    %v8231 = vunpack.c.l.b16 %v6819
    %v8232 = vunpack.c.l.b16 %v6820
    %v8233 = vunpack.c.l.b16 %v6821
    %v8234 = vunpack.c.l.b16 %v6822
    %v8235 = vunpack.c.l.b16 %v6823
    %v8236 = vunpack.c.l.b16 %v6824
    %v8237 = vunpack.c.l.b16 %v6825
    %v8238 = vunpack.c.l.b16 %v6826
    %v8239 = vunpack.c.l.b16 %v6827
    %v8240 = vunpack.c.l.b16 %v6828
    %v8241 = vunpack.c.l.b16 %v6829
    %v8242 = vunpack.c.l.b16 %v6830
    %v8243 = vpack.c.b16 %v8180, %v8179
    %v8244 = vpack.c.b16 %v8182, %v8181
    %v8245 = vpack.c.b16 %v8184, %v8183
    %v8246 = vpack.c.b16 %v8186, %v8185
    %v8247 = vpack.c.b16 %v8188, %v8187
    %v8248 = vpack.c.b16 %v8190, %v8189
    %v8249 = vpack.c.b16 %v8192, %v8191
    %v8250 = vpack.c.b16 %v8194, %v8193
    %v8251 = vpack.c.b16 %v8196, %v8195
    %v8252 = vpack.c.b16 %v8198, %v8197
    %v8253 = vpack.c.b16 %v8200, %v8199
    %v8254 = vpack.c.b16 %v8202, %v8201
    %v8255 = vpack.c.b16 %v8204, %v8203
    %v8256 = vpack.c.b16 %v8206, %v8205
    %v8257 = vpack.c.b16 %v8208, %v8207
    %v8258 = vpack.c.b16 %v8210, %v8209
    %v8259 = vpack.c.b16 %v8212, %v8211
    %v8260 = vpack.c.b16 %v8214, %v8213
    %v8261 = vpack.c.b16 %v8216, %v8215
    %v8262 = vpack.c.b16 %v8218, %v8217
    %v8263 = vpack.c.b16 %v8220, %v8219
    %v8264 = vpack.c.b16 %v8222, %v8221
    %v8265 = vpack.c.b16 %v8224, %v8223
    %v8266 = vpack.c.b16 %v8226, %v8225
    %v8267 = vpack.c.b16 %v8228, %v8227
    %v8268 = vpack.c.b16 %v8230, %v8229
    %v8269 = vpack.c.b16 %v8232, %v8231
    %v8270 = vpack.c.b16 %v8234, %v8233
    %v8271 = vpack.c.b16 %v8236, %v8235
    %v8272 = vpack.c.b16 %v8238, %v8237
    %v8273 = vpack.c.b16 %v8240, %v8239
    %v8274 = vpack.c.b16 %v8242, %v8241
    %8307 = vmatpush.bf16.msra.mxu0 %v8250
    %8308 = vmatpush.bf16.msra.mxu0 %v8249
    %8309 = vmatpush.bf16.msra.mxu0 %v8248
    %8310 = vmatpush.bf16.msra.mxu0 %v8247
    %8311 = vmatpush.bf16.msra.mxu0 %v8246
    %8312 = vmatpush.bf16.msra.mxu0 %v8245
    %8313 = vmatpush.bf16.msra.mxu0 %v8244
    %8314 = vmatpush.bf16.msra.mxu0 %v8243
    %8315 = vmatmul.bf16.gmra.mxu0 %v8107
    %v8316 = vpop.f32.mrf.mxu0
    %v8317 = vadd.f32 0.0, %v8316
    %v8318 = vpop.f32.mrf.mxu0
    %v8319 = vadd.f32 0.0, %v8318
    %8320 = vdwg.mxu0
    %8321 = vmatpush.bf16.msra.mxu0 %v8258
    %8322 = vmatpush.bf16.msra.mxu0 %v8257
    %8323 = vmatpush.bf16.msra.mxu0 %v8256
    %8324 = vmatpush.bf16.msra.mxu0 %v8255
    %8325 = vmatpush.bf16.msra.mxu0 %v8254
    %8326 = vmatpush.bf16.msra.mxu0 %v8253
    %8327 = vmatpush.bf16.msra.mxu0 %v8252
    %8328 = vmatpush.bf16.msra.mxu0 %v8251
    %8329 = vmatmul.bf16.gmra.mxu0 %v8108
    %v8330 = vpop.f32.mrf.mxu0
    %v8331 = vadd.f32 %v8317, %v8330
    %v8332 = vpop.f32.mrf.mxu0
    %v8333 = vadd.f32 %v8319, %v8332
    %8334 = vdwg.mxu0
    %8335 = vmatpush.bf16.msra.mxu0 %v8266
    %8336 = vmatpush.bf16.msra.mxu0 %v8265
    %8337 = vmatpush.bf16.msra.mxu0 %v8264
    %8338 = vmatpush.bf16.msra.mxu0 %v8263
    %8339 = vmatpush.bf16.msra.mxu0 %v8262
    %8340 = vmatpush.bf16.msra.mxu0 %v8261
    %8341 = vmatpush.bf16.msra.mxu0 %v8260
    %8342 = vmatpush.bf16.msra.mxu0 %v8259
    %8343 = vmatmul.bf16.gmra.mxu0 %v8109
    %v8344 = vpop.f32.mrf.mxu0
    %v8345 = vadd.f32 %v8331, %v8344
    %v8346 = vpop.f32.mrf.mxu0
    %v8347 = vadd.f32 %v8333, %v8346
    %8348 = vdwg.mxu0
    %8349 = vmatpush.bf16.msra.mxu0 %v8274
    %8350 = vmatpush.bf16.msra.mxu0 %v8273
    %8351 = vmatpush.bf16.msra.mxu0 %v8272
    %8352 = vmatpush.bf16.msra.mxu0 %v8271
    %8353 = vmatpush.bf16.msra.mxu0 %v8270
    %8354 = vmatpush.bf16.msra.mxu0 %v8269
    %8355 = vmatpush.bf16.msra.mxu0 %v8268
    %8356 = vmatpush.bf16.msra.mxu0 %v8267
    %8357 = vmatmul.bf16.gmra.mxu0 %v8110
    %v8358 = vpop.f32.mrf.mxu0
    %v8359 = vadd.f32 %v8345, %v8358
    %v8360 = vpop.f32.mrf.mxu0
    %v8361 = vadd.f32 %v8347, %v8360
    %8362 = vdwg.mxu0
    %v8367 = vunpack.c.l.b16 %v6499
    %v8368 = vunpack.c.h.b16 %v6499
    %v8369 = vunpack.c.l.b16 %v6500
    %v8370 = vunpack.c.h.b16 %v6500
    %v8371 = vunpack.c.l.b16 %v6501
    %v8372 = vunpack.c.h.b16 %v6501
    %v8373 = vunpack.c.l.b16 %v6502
    %v8374 = vunpack.c.h.b16 %v6502
    %v8375 = vpack.c.b16 %v8371, %v8367
    %v8376 = vpack.c.b16 %v8372, %v8368
    %v8377 = vpack.c.b16 %v8373, %v8369
    %v8378 = vpack.c.b16 %v8374, %v8370
    %v8447 = vunpack.c.l.b16 %v6831
    %v8448 = vunpack.c.l.b16 %v6832
    %v8449 = vunpack.c.l.b16 %v6833
    %v8450 = vunpack.c.l.b16 %v6834
    %v8451 = vunpack.c.l.b16 %v6835
    %v8452 = vunpack.c.l.b16 %v6836
    %v8453 = vunpack.c.l.b16 %v6837
    %v8454 = vunpack.c.l.b16 %v6838
    %v8455 = vunpack.c.l.b16 %v6839
    %v8456 = vunpack.c.l.b16 %v6840
    %v8457 = vunpack.c.l.b16 %v6841
    %v8458 = vunpack.c.l.b16 %v6842
    %v8459 = vunpack.c.l.b16 %v6843
    %v8460 = vunpack.c.l.b16 %v6844
    %v8461 = vunpack.c.l.b16 %v6845
    %v8462 = vunpack.c.l.b16 %v6846
    %v8463 = vunpack.c.l.b16 %v6847
    %v8464 = vunpack.c.l.b16 %v6848
    %v8465 = vunpack.c.l.b16 %v6849
    %v8466 = vunpack.c.l.b16 %v6850
    %v8467 = vunpack.c.l.b16 %v6851
    %v8468 = vunpack.c.l.b16 %v6852
    %v8469 = vunpack.c.l.b16 %v6853
    %v8470 = vunpack.c.l.b16 %v6854
    %v8471 = vunpack.c.l.b16 %v6855
    %v8472 = vunpack.c.l.b16 %v6856
    %v8473 = vunpack.c.l.b16 %v6857
    %v8474 = vunpack.c.l.b16 %v6858
    %v8475 = vunpack.c.l.b16 %v6859
    %v8476 = vunpack.c.l.b16 %v6860
    %v8477 = vunpack.c.l.b16 %v6861
    %v8478 = vunpack.c.l.b16 %v6862
    %v8479 = vunpack.c.l.b16 %v6863
    %v8480 = vunpack.c.l.b16 %v6864
    %v8481 = vunpack.c.l.b16 %v6865
    %v8482 = vunpack.c.l.b16 %v6866
    %v8483 = vunpack.c.l.b16 %v6867
    %v8484 = vunpack.c.l.b16 %v6868
    %v8485 = vunpack.c.l.b16 %v6869
    %v8486 = vunpack.c.l.b16 %v6870
    %v8487 = vunpack.c.l.b16 %v6871
    %v8488 = vunpack.c.l.b16 %v6872
    %v8489 = vunpack.c.l.b16 %v6873
    %v8490 = vunpack.c.l.b16 %v6874
    %v8491 = vunpack.c.l.b16 %v6875
    %v8492 = vunpack.c.l.b16 %v6876
    %v8493 = vunpack.c.l.b16 %v6877
    %v8494 = vunpack.c.l.b16 %v6878
    %v8495 = vunpack.c.l.b16 %v6879
    %v8496 = vunpack.c.l.b16 %v6880
    %v8497 = vunpack.c.l.b16 %v6881
    %v8498 = vunpack.c.l.b16 %v6882
    %v8499 = vunpack.c.l.b16 %v6883
    %v8500 = vunpack.c.l.b16 %v6884
    %v8501 = vunpack.c.l.b16 %v6885
    %v8502 = vunpack.c.l.b16 %v6886
    %v8503 = vunpack.c.l.b16 %v6887
    %v8504 = vunpack.c.l.b16 %v6888
    %v8505 = vunpack.c.l.b16 %v6889
    %v8506 = vunpack.c.l.b16 %v6890
    %v8507 = vunpack.c.l.b16 %v6891
    %v8508 = vunpack.c.l.b16 %v6892
    %v8509 = vunpack.c.l.b16 %v6893
    %v8510 = vunpack.c.l.b16 %v6894
    %v8511 = vpack.c.b16 %v8448, %v8447
    %v8512 = vpack.c.b16 %v8450, %v8449
    %v8513 = vpack.c.b16 %v8452, %v8451
    %v8514 = vpack.c.b16 %v8454, %v8453
    %v8515 = vpack.c.b16 %v8456, %v8455
    %v8516 = vpack.c.b16 %v8458, %v8457
    %v8517 = vpack.c.b16 %v8460, %v8459
    %v8518 = vpack.c.b16 %v8462, %v8461
    %v8519 = vpack.c.b16 %v8464, %v8463
    %v8520 = vpack.c.b16 %v8466, %v8465
    %v8521 = vpack.c.b16 %v8468, %v8467
    %v8522 = vpack.c.b16 %v8470, %v8469
    %v8523 = vpack.c.b16 %v8472, %v8471
    %v8524 = vpack.c.b16 %v8474, %v8473
    %v8525 = vpack.c.b16 %v8476, %v8475
    %v8526 = vpack.c.b16 %v8478, %v8477
    %v8527 = vpack.c.b16 %v8480, %v8479
    %v8528 = vpack.c.b16 %v8482, %v8481
    %v8529 = vpack.c.b16 %v8484, %v8483
    %v8530 = vpack.c.b16 %v8486, %v8485
    %v8531 = vpack.c.b16 %v8488, %v8487
    %v8532 = vpack.c.b16 %v8490, %v8489
    %v8533 = vpack.c.b16 %v8492, %v8491
    %v8534 = vpack.c.b16 %v8494, %v8493
    %v8535 = vpack.c.b16 %v8496, %v8495
    %v8536 = vpack.c.b16 %v8498, %v8497
    %v8537 = vpack.c.b16 %v8500, %v8499
    %v8538 = vpack.c.b16 %v8502, %v8501
    %v8539 = vpack.c.b16 %v8504, %v8503
    %v8540 = vpack.c.b16 %v8506, %v8505
    %v8541 = vpack.c.b16 %v8508, %v8507
    %v8542 = vpack.c.b16 %v8510, %v8509
    %8575 = vmatpush.bf16.msra.mxu0 %v8518
    %8576 = vmatpush.bf16.msra.mxu0 %v8517
    %8577 = vmatpush.bf16.msra.mxu0 %v8516
    %8578 = vmatpush.bf16.msra.mxu0 %v8515
    %8579 = vmatpush.bf16.msra.mxu0 %v8514
    %8580 = vmatpush.bf16.msra.mxu0 %v8513
    %8581 = vmatpush.bf16.msra.mxu0 %v8512
    %8582 = vmatpush.bf16.msra.mxu0 %v8511
    %8583 = vmatmul.bf16.gmra.mxu0 %v8375
    %v8584 = vpop.f32.mrf.mxu0
    %v8585 = vadd.f32 0.0, %v8584
    %v8586 = vpop.f32.mrf.mxu0
    %v8587 = vadd.f32 0.0, %v8586
    %8588 = vdwg.mxu0
    %8589 = vmatpush.bf16.msra.mxu0 %v8526
    %8590 = vmatpush.bf16.msra.mxu0 %v8525
    %8591 = vmatpush.bf16.msra.mxu0 %v8524
    %8592 = vmatpush.bf16.msra.mxu0 %v8523
    %8593 = vmatpush.bf16.msra.mxu0 %v8522
    %8594 = vmatpush.bf16.msra.mxu0 %v8521
    %8595 = vmatpush.bf16.msra.mxu0 %v8520
    %8596 = vmatpush.bf16.msra.mxu0 %v8519
    %8597 = vmatmul.bf16.gmra.mxu0 %v8376
    %v8598 = vpop.f32.mrf.mxu0
    %v8599 = vadd.f32 %v8585, %v8598
    %v8600 = vpop.f32.mrf.mxu0
    %v8601 = vadd.f32 %v8587, %v8600
    %8602 = vdwg.mxu0
    %8603 = vmatpush.bf16.msra.mxu0 %v8534
    %8604 = vmatpush.bf16.msra.mxu0 %v8533
    %8605 = vmatpush.bf16.msra.mxu0 %v8532
    %8606 = vmatpush.bf16.msra.mxu0 %v8531
    %8607 = vmatpush.bf16.msra.mxu0 %v8530
    %8608 = vmatpush.bf16.msra.mxu0 %v8529
    %8609 = vmatpush.bf16.msra.mxu0 %v8528
    %8610 = vmatpush.bf16.msra.mxu0 %v8527
    %8611 = vmatmul.bf16.gmra.mxu0 %v8377
    %v8612 = vpop.f32.mrf.mxu0
    %v8613 = vadd.f32 %v8599, %v8612
    %v8614 = vpop.f32.mrf.mxu0
    %v8615 = vadd.f32 %v8601, %v8614
    %8616 = vdwg.mxu0
    %8617 = vmatpush.bf16.msra.mxu0 %v8542
    %8618 = vmatpush.bf16.msra.mxu0 %v8541
    %8619 = vmatpush.bf16.msra.mxu0 %v8540
    %8620 = vmatpush.bf16.msra.mxu0 %v8539
    %8621 = vmatpush.bf16.msra.mxu0 %v8538
    %8622 = vmatpush.bf16.msra.mxu0 %v8537
    %8623 = vmatpush.bf16.msra.mxu0 %v8536
    %8624 = vmatpush.bf16.msra.mxu0 %v8535
    %8625 = vmatmul.bf16.gmra.mxu0 %v8378
    %v8626 = vpop.f32.mrf.mxu0
    %v8627 = vadd.f32 %v8613, %v8626
    %v8628 = vpop.f32.mrf.mxu0
    %v8629 = vadd.f32 %v8615, %v8628
    %8630 = vdwg.mxu0
    %v8635 = vunpack.c.l.b16 %v6503
    %v8636 = vunpack.c.h.b16 %v6503
    %v8637 = vunpack.c.l.b16 %v6504
    %v8638 = vunpack.c.h.b16 %v6504
    %v8639 = vunpack.c.l.b16 %v6505
    %v8640 = vunpack.c.h.b16 %v6505
    %v8641 = vunpack.c.l.b16 %v6506
    %v8642 = vunpack.c.h.b16 %v6506
    %v8643 = vpack.c.b16 %v8639, %v8635
    %v8644 = vpack.c.b16 %v8640, %v8636
    %v8645 = vpack.c.b16 %v8641, %v8637
    %v8646 = vpack.c.b16 %v8642, %v8638
    %v8715 = vunpack.c.l.b16 %v6895
    %v8716 = vunpack.c.l.b16 %v6896
    %v8717 = vunpack.c.l.b16 %v6897
    %v8718 = vunpack.c.l.b16 %v6898
    %v8719 = vunpack.c.l.b16 %v6899
    %v8720 = vunpack.c.l.b16 %v6900
    %v8721 = vunpack.c.l.b16 %v6901
    %v8722 = vunpack.c.l.b16 %v6902
    %v8723 = vunpack.c.l.b16 %v6903
    %v8724 = vunpack.c.l.b16 %v6904
    %v8725 = vunpack.c.l.b16 %v6905
    %v8726 = vunpack.c.l.b16 %v6906
    %v8727 = vunpack.c.l.b16 %v6907
    %v8728 = vunpack.c.l.b16 %v6908
    %v8729 = vunpack.c.l.b16 %v6909
    %v8730 = vunpack.c.l.b16 %v6910
    %v8731 = vunpack.c.l.b16 %v6911
    %v8732 = vunpack.c.l.b16 %v6912
    %v8733 = vunpack.c.l.b16 %v6913
    %v8734 = vunpack.c.l.b16 %v6914
    %v8735 = vunpack.c.l.b16 %v6915
    %v8736 = vunpack.c.l.b16 %v6916
    %v8737 = vunpack.c.l.b16 %v6917
    %v8738 = vunpack.c.l.b16 %v6918
    %v8739 = vunpack.c.l.b16 %v6919
    %v8740 = vunpack.c.l.b16 %v6920
    %v8741 = vunpack.c.l.b16 %v6921
    %v8742 = vunpack.c.l.b16 %v6922
    %v8743 = vunpack.c.l.b16 %v6923
    %v8744 = vunpack.c.l.b16 %v6924
    %v8745 = vunpack.c.l.b16 %v6925
    %v8746 = vunpack.c.l.b16 %v6926
    %v8747 = vunpack.c.l.b16 %v6927
    %v8748 = vunpack.c.l.b16 %v6928
    %v8749 = vunpack.c.l.b16 %v6929
    %v8750 = vunpack.c.l.b16 %v6930
    %v8751 = vunpack.c.l.b16 %v6931
    %v8752 = vunpack.c.l.b16 %v6932
    %v8753 = vunpack.c.l.b16 %v6933
    %v8754 = vunpack.c.l.b16 %v6934
    %v8755 = vunpack.c.l.b16 %v6935
    %v8756 = vunpack.c.l.b16 %v6936
    %v8757 = vunpack.c.l.b16 %v6937
    %v8758 = vunpack.c.l.b16 %v6938
    %v8759 = vunpack.c.l.b16 %v6939
    %v8760 = vunpack.c.l.b16 %v6940
    %v8761 = vunpack.c.l.b16 %v6941
    %v8762 = vunpack.c.l.b16 %v6942
    %v8763 = vunpack.c.l.b16 %v6943
    %v8764 = vunpack.c.l.b16 %v6944
    %v8765 = vunpack.c.l.b16 %v6945
    %v8766 = vunpack.c.l.b16 %v6946
    %v8767 = vunpack.c.l.b16 %v6947
    %v8768 = vunpack.c.l.b16 %v6948
    %v8769 = vunpack.c.l.b16 %v6949
    %v8770 = vunpack.c.l.b16 %v6950
    %v8771 = vunpack.c.l.b16 %v6951
    %v8772 = vunpack.c.l.b16 %v6952
    %v8773 = vunpack.c.l.b16 %v6953
    %v8774 = vunpack.c.l.b16 %v6954
    %v8775 = vunpack.c.l.b16 %v6955
    %v8776 = vunpack.c.l.b16 %v6956
    %v8777 = vunpack.c.l.b16 %v6957
    %v8778 = vunpack.c.l.b16 %v6958
    %v8779 = vpack.c.b16 %v8716, %v8715
    %v8780 = vpack.c.b16 %v8718, %v8717
    %v8781 = vpack.c.b16 %v8720, %v8719
    %v8782 = vpack.c.b16 %v8722, %v8721
    %v8783 = vpack.c.b16 %v8724, %v8723
    %v8784 = vpack.c.b16 %v8726, %v8725
    %v8785 = vpack.c.b16 %v8728, %v8727
    %v8786 = vpack.c.b16 %v8730, %v8729
    %v8787 = vpack.c.b16 %v8732, %v8731
    %v8788 = vpack.c.b16 %v8734, %v8733
    %v8789 = vpack.c.b16 %v8736, %v8735
    %v8790 = vpack.c.b16 %v8738, %v8737
    %v8791 = vpack.c.b16 %v8740, %v8739
    %v8792 = vpack.c.b16 %v8742, %v8741
    %v8793 = vpack.c.b16 %v8744, %v8743
    %v8794 = vpack.c.b16 %v8746, %v8745
    %v8795 = vpack.c.b16 %v8748, %v8747
    %v8796 = vpack.c.b16 %v8750, %v8749
    %v8797 = vpack.c.b16 %v8752, %v8751
    %v8798 = vpack.c.b16 %v8754, %v8753
    %v8799 = vpack.c.b16 %v8756, %v8755
    %v8800 = vpack.c.b16 %v8758, %v8757
    %v8801 = vpack.c.b16 %v8760, %v8759
    %v8802 = vpack.c.b16 %v8762, %v8761
    %v8803 = vpack.c.b16 %v8764, %v8763
    %v8804 = vpack.c.b16 %v8766, %v8765
    %v8805 = vpack.c.b16 %v8768, %v8767
    %v8806 = vpack.c.b16 %v8770, %v8769
    %v8807 = vpack.c.b16 %v8772, %v8771
    %v8808 = vpack.c.b16 %v8774, %v8773
    %v8809 = vpack.c.b16 %v8776, %v8775
    %v8810 = vpack.c.b16 %v8778, %v8777
    %8843 = vmatpush.bf16.msra.mxu0 %v8786
    %8844 = vmatpush.bf16.msra.mxu0 %v8785
    %8845 = vmatpush.bf16.msra.mxu0 %v8784
    %8846 = vmatpush.bf16.msra.mxu0 %v8783
    %8847 = vmatpush.bf16.msra.mxu0 %v8782
    %8848 = vmatpush.bf16.msra.mxu0 %v8781
    %8849 = vmatpush.bf16.msra.mxu0 %v8780
    %8850 = vmatpush.bf16.msra.mxu0 %v8779
    %8851 = vmatmul.bf16.gmra.mxu0 %v8643
    %v8852 = vpop.f32.mrf.mxu0
    %v8853 = vadd.f32 0.0, %v8852
    %v8854 = vpop.f32.mrf.mxu0
    %v8855 = vadd.f32 0.0, %v8854
    %8856 = vdwg.mxu0
    %8857 = vmatpush.bf16.msra.mxu0 %v8794
    %8858 = vmatpush.bf16.msra.mxu0 %v8793
    %8859 = vmatpush.bf16.msra.mxu0 %v8792
    %8860 = vmatpush.bf16.msra.mxu0 %v8791
    %8861 = vmatpush.bf16.msra.mxu0 %v8790
    %8862 = vmatpush.bf16.msra.mxu0 %v8789
    %8863 = vmatpush.bf16.msra.mxu0 %v8788
    %8864 = vmatpush.bf16.msra.mxu0 %v8787
    %8865 = vmatmul.bf16.gmra.mxu0 %v8644
    %v8866 = vpop.f32.mrf.mxu0
    %v8867 = vadd.f32 %v8853, %v8866
    %v8868 = vpop.f32.mrf.mxu0
    %v8869 = vadd.f32 %v8855, %v8868
    %8870 = vdwg.mxu0
    %8871 = vmatpush.bf16.msra.mxu0 %v8802
    %8872 = vmatpush.bf16.msra.mxu0 %v8801
    %8873 = vmatpush.bf16.msra.mxu0 %v8800
    %8874 = vmatpush.bf16.msra.mxu0 %v8799
    %8875 = vmatpush.bf16.msra.mxu0 %v8798
    %8876 = vmatpush.bf16.msra.mxu0 %v8797
    %8877 = vmatpush.bf16.msra.mxu0 %v8796
    %8878 = vmatpush.bf16.msra.mxu0 %v8795
    %8879 = vmatmul.bf16.gmra.mxu0 %v8645
    %v8880 = vpop.f32.mrf.mxu0
    %v8881 = vadd.f32 %v8867, %v8880
    %v8882 = vpop.f32.mrf.mxu0
    %v8883 = vadd.f32 %v8869, %v8882
    %8884 = vdwg.mxu0
    %8885 = vmatpush.bf16.msra.mxu0 %v8810
    %8886 = vmatpush.bf16.msra.mxu0 %v8809
    %8887 = vmatpush.bf16.msra.mxu0 %v8808
    %8888 = vmatpush.bf16.msra.mxu0 %v8807
    %8889 = vmatpush.bf16.msra.mxu0 %v8806
    %8890 = vmatpush.bf16.msra.mxu0 %v8805
    %8891 = vmatpush.bf16.msra.mxu0 %v8804
    %8892 = vmatpush.bf16.msra.mxu0 %v8803
    %8893 = vmatmul.bf16.gmra.mxu0 %v8646
    %v8894 = vpop.f32.mrf.mxu0
    %v8895 = vadd.f32 %v8881, %v8894
    %v8896 = vpop.f32.mrf.mxu0
    %v8897 = vadd.f32 %v8883, %v8896
    %8898 = vdwg.mxu0
    %v8903 = vunpack.c.l.b16 %v6507
    %v8904 = vunpack.c.h.b16 %v6507
    %v8905 = vunpack.c.l.b16 %v6508
    %v8906 = vunpack.c.h.b16 %v6508
    %v8907 = vunpack.c.l.b16 %v6509
    %v8908 = vunpack.c.h.b16 %v6509
    %v8909 = vunpack.c.l.b16 %v6510
    %v8910 = vunpack.c.h.b16 %v6510
    %v8911 = vpack.c.b16 %v8907, %v8903
    %v8912 = vpack.c.b16 %v8908, %v8904
    %v8913 = vpack.c.b16 %v8909, %v8905
    %v8914 = vpack.c.b16 %v8910, %v8906
    %v8983 = vunpack.c.l.b16 %v6959
    %v8984 = vunpack.c.l.b16 %v6960
    %v8985 = vunpack.c.l.b16 %v6961
    %v8986 = vunpack.c.l.b16 %v6962
    %v8987 = vunpack.c.l.b16 %v6963
    %v8988 = vunpack.c.l.b16 %v6964
    %v8989 = vunpack.c.l.b16 %v6965
    %v8990 = vunpack.c.l.b16 %v6966
    %v8991 = vunpack.c.l.b16 %v6967
    %v8992 = vunpack.c.l.b16 %v6968
    %v8993 = vunpack.c.l.b16 %v6969
    %v8994 = vunpack.c.l.b16 %v6970
    %v8995 = vunpack.c.l.b16 %v6971
    %v8996 = vunpack.c.l.b16 %v6972
    %v8997 = vunpack.c.l.b16 %v6973
    %v8998 = vunpack.c.l.b16 %v6974
    %v8999 = vunpack.c.l.b16 %v6975
    %v9000 = vunpack.c.l.b16 %v6976
    %v9001 = vunpack.c.l.b16 %v6977
    %v9002 = vunpack.c.l.b16 %v6978
    %v9003 = vunpack.c.l.b16 %v6979
    %v9004 = vunpack.c.l.b16 %v6980
    %v9005 = vunpack.c.l.b16 %v6981
    %v9006 = vunpack.c.l.b16 %v6982
    %v9007 = vunpack.c.l.b16 %v6983
    %v9008 = vunpack.c.l.b16 %v6984
    %v9009 = vunpack.c.l.b16 %v6985
    %v9010 = vunpack.c.l.b16 %v6986
    %v9011 = vunpack.c.l.b16 %v6987
    %v9012 = vunpack.c.l.b16 %v6988
    %v9013 = vunpack.c.l.b16 %v6989
    %v9014 = vunpack.c.l.b16 %v6990
    %v9015 = vunpack.c.l.b16 %v6991
    %v9016 = vunpack.c.l.b16 %v6992
    %v9017 = vunpack.c.l.b16 %v6993
    %v9018 = vunpack.c.l.b16 %v6994
    %v9019 = vunpack.c.l.b16 %v6995
    %v9020 = vunpack.c.l.b16 %v6996
    %v9021 = vunpack.c.l.b16 %v6997
    %v9022 = vunpack.c.l.b16 %v6998
    %v9023 = vunpack.c.l.b16 %v6999
    %v9024 = vunpack.c.l.b16 %v7000
    %v9025 = vunpack.c.l.b16 %v7001
    %v9026 = vunpack.c.l.b16 %v7002
    %v9027 = vunpack.c.l.b16 %v7003
    %v9028 = vunpack.c.l.b16 %v7004
    %v9029 = vunpack.c.l.b16 %v7005
    %v9030 = vunpack.c.l.b16 %v7006
    %v9031 = vunpack.c.l.b16 %v7007
    %v9032 = vunpack.c.l.b16 %v7008
    %v9033 = vunpack.c.l.b16 %v7009
    %v9034 = vunpack.c.l.b16 %v7010
    %v9035 = vunpack.c.l.b16 %v7011
    %v9036 = vunpack.c.l.b16 %v7012
    %v9037 = vunpack.c.l.b16 %v7013
    %v9038 = vunpack.c.l.b16 %v7014
    %v9039 = vunpack.c.l.b16 %v7015
    %v9040 = vunpack.c.l.b16 %v7016
    %v9041 = vunpack.c.l.b16 %v7017
    %v9042 = vunpack.c.l.b16 %v7018
    %v9043 = vunpack.c.l.b16 %v7019
    %v9044 = vunpack.c.l.b16 %v7020
    %v9045 = vunpack.c.l.b16 %v7021
    %v9046 = vunpack.c.l.b16 %v7022
    %v9047 = vpack.c.b16 %v8984, %v8983
    %v9048 = vpack.c.b16 %v8986, %v8985
    %v9049 = vpack.c.b16 %v8988, %v8987
    %v9050 = vpack.c.b16 %v8990, %v8989
    %v9051 = vpack.c.b16 %v8992, %v8991
    %v9052 = vpack.c.b16 %v8994, %v8993
    %v9053 = vpack.c.b16 %v8996, %v8995
    %v9054 = vpack.c.b16 %v8998, %v8997
    %v9055 = vpack.c.b16 %v9000, %v8999
    %v9056 = vpack.c.b16 %v9002, %v9001
    %v9057 = vpack.c.b16 %v9004, %v9003
    %v9058 = vpack.c.b16 %v9006, %v9005
    %v9059 = vpack.c.b16 %v9008, %v9007
    %v9060 = vpack.c.b16 %v9010, %v9009
    %v9061 = vpack.c.b16 %v9012, %v9011
    %v9062 = vpack.c.b16 %v9014, %v9013
    %v9063 = vpack.c.b16 %v9016, %v9015
    %v9064 = vpack.c.b16 %v9018, %v9017
    %v9065 = vpack.c.b16 %v9020, %v9019
    %v9066 = vpack.c.b16 %v9022, %v9021
    %v9067 = vpack.c.b16 %v9024, %v9023
    %v9068 = vpack.c.b16 %v9026, %v9025
    %v9069 = vpack.c.b16 %v9028, %v9027
    %v9070 = vpack.c.b16 %v9030, %v9029
    %v9071 = vpack.c.b16 %v9032, %v9031
    %v9072 = vpack.c.b16 %v9034, %v9033
    %v9073 = vpack.c.b16 %v9036, %v9035
    %v9074 = vpack.c.b16 %v9038, %v9037
    %v9075 = vpack.c.b16 %v9040, %v9039
    %v9076 = vpack.c.b16 %v9042, %v9041
    %v9077 = vpack.c.b16 %v9044, %v9043
    %v9078 = vpack.c.b16 %v9046, %v9045
    %9111 = vmatpush.bf16.msra.mxu0 %v9054
    %9112 = vmatpush.bf16.msra.mxu0 %v9053
    %9113 = vmatpush.bf16.msra.mxu0 %v9052
    %9114 = vmatpush.bf16.msra.mxu0 %v9051
    %9115 = vmatpush.bf16.msra.mxu0 %v9050
    %9116 = vmatpush.bf16.msra.mxu0 %v9049
    %9117 = vmatpush.bf16.msra.mxu0 %v9048
    %9118 = vmatpush.bf16.msra.mxu0 %v9047
    %9119 = vmatmul.bf16.gmra.mxu0 %v8911
    %v9120 = vpop.f32.mrf.mxu0
    %v9121 = vadd.f32 0.0, %v9120
    %v9122 = vpop.f32.mrf.mxu0
    %v9123 = vadd.f32 0.0, %v9122
    %9124 = vdwg.mxu0
    %9125 = vmatpush.bf16.msra.mxu0 %v9062
    %9126 = vmatpush.bf16.msra.mxu0 %v9061
    %9127 = vmatpush.bf16.msra.mxu0 %v9060
    %9128 = vmatpush.bf16.msra.mxu0 %v9059
    %9129 = vmatpush.bf16.msra.mxu0 %v9058
    %9130 = vmatpush.bf16.msra.mxu0 %v9057
    %9131 = vmatpush.bf16.msra.mxu0 %v9056
    %9132 = vmatpush.bf16.msra.mxu0 %v9055
    %9133 = vmatmul.bf16.gmra.mxu0 %v8912
    %v9134 = vpop.f32.mrf.mxu0
    %v9135 = vadd.f32 %v9121, %v9134
    %v9136 = vpop.f32.mrf.mxu0
    %v9137 = vadd.f32 %v9123, %v9136
    %9138 = vdwg.mxu0
    %9139 = vmatpush.bf16.msra.mxu0 %v9070
    %9140 = vmatpush.bf16.msra.mxu0 %v9069
    %9141 = vmatpush.bf16.msra.mxu0 %v9068
    %9142 = vmatpush.bf16.msra.mxu0 %v9067
    %9143 = vmatpush.bf16.msra.mxu0 %v9066
    %9144 = vmatpush.bf16.msra.mxu0 %v9065
    %9145 = vmatpush.bf16.msra.mxu0 %v9064
    %9146 = vmatpush.bf16.msra.mxu0 %v9063
    %9147 = vmatmul.bf16.gmra.mxu0 %v8913
    %v9148 = vpop.f32.mrf.mxu0
    %v9149 = vadd.f32 %v9135, %v9148
    %v9150 = vpop.f32.mrf.mxu0
    %v9151 = vadd.f32 %v9137, %v9150
    %9152 = vdwg.mxu0
    %9153 = vmatpush.bf16.msra.mxu0 %v9078
    %9154 = vmatpush.bf16.msra.mxu0 %v9077
    %9155 = vmatpush.bf16.msra.mxu0 %v9076
    %9156 = vmatpush.bf16.msra.mxu0 %v9075
    %9157 = vmatpush.bf16.msra.mxu0 %v9074
    %9158 = vmatpush.bf16.msra.mxu0 %v9073
    %9159 = vmatpush.bf16.msra.mxu0 %v9072
    %9160 = vmatpush.bf16.msra.mxu0 %v9071
    %9161 = vmatmul.bf16.gmra.mxu0 %v8914
    %v9162 = vpop.f32.mrf.mxu0
    %v9163 = vadd.f32 %v9149, %v9162
    %v9164 = vpop.f32.mrf.mxu0
    %v9165 = vadd.f32 %v9151, %v9164
    %9166 = vdwg.mxu0
    %v9167 = vsel %vm339, %v7287, 0.0
    %v9168 = vsel %vm339, %v7555, 0.0
    %v9169 = vadd.f32 %v9167, %v9168
    %v9170 = vsel %vm339, %v7823, 0.0
    %v9171 = vadd.f32 %v9169, %v9170
    %v9172 = vsel %vm339, %v8091, 0.0
    %v9173 = vadd.f32 %v9171, %v9172
    %v9174 = vsel %vm339, %v8359, 0.0
    %v9175 = vadd.f32 %v9173, %v9174
    %v9176 = vsel %vm339, %v8627, 0.0
    %v9177 = vadd.f32 %v9175, %v9176
    %v9178 = vsel %vm339, %v8895, 0.0
    %v9179 = vadd.f32 %v9177, %v9178
    %v9180 = vsel %vm339, %v9163, 0.0
    %v9181 = vadd.f32 %v9179, %v9180
    %v9182 = vsel %vm339, %v7289, 0.0
    %v9183 = vsel %vm339, %v7557, 0.0
    %v9184 = vadd.f32 %v9182, %v9183
    %v9185 = vsel %vm339, %v7825, 0.0
    %v9186 = vadd.f32 %v9184, %v9185
    %v9187 = vsel %vm339, %v8093, 0.0
    %v9188 = vadd.f32 %v9186, %v9187
    %v9189 = vsel %vm339, %v8361, 0.0
    %v9190 = vadd.f32 %v9188, %v9189
    %v9191 = vsel %vm339, %v8629, 0.0
    %v9192 = vadd.f32 %v9190, %v9191
    %v9193 = vsel %vm339, %v8897, 0.0
    %v9194 = vadd.f32 %v9192, %v9193
    %v9195 = vsel %vm339, %v9165, 0.0
    %v9196 = vadd.f32 %v9194, %v9195
    %v9197 = vld [vmem:[%s13] sm:$0x1]
    %v9199 = vperm.slane %v9197, 0
    %v9201 = vadd.f32 %v9181, %v9199
    %v9202 = vadd.f32 %v9196, %v9199
    %9203 = vst.msk [vmem:[#allocation6] sm:$0xff] %vm339, %v9201
    %9204 = vst.msk [vmem:[#allocation6 + $0x8] sm:$0xff] %vm339, %v9202
    %v9205 = vld [vmem:[%s14] sm:$0xff]
    %v9206 = vld [vmem:[%s14 + $0x8] sm:$0xff]
    %v9207 = vld [vmem:[%s14 + $0x10] sm:$0xff]
    %v9208 = vld [vmem:[%s14 + $0x18] sm:$0xff]
    %v9209 = vld [vmem:[%s14 + $0x20] sm:$0xff]
    %v9210 = vld [vmem:[%s14 + $0x28] sm:$0xff]
    %v9211 = vld [vmem:[%s14 + $0x30] sm:$0xff]
    %v9212 = vld [vmem:[%s14 + $0x38] sm:$0xff]
    %v9213 = vld [vmem:[%s15] sm:$0x1]
    %v9215 = vperm.slane %v9213, 0
    %v9218 = vsel %vm339, %v9201, 0
    %v9221 = vsel %vm339, %v9202, 0
    %9223 = vmatpush.msra.mxu0 0.0
    %9224 = vmatpush.msra.mxu0 0.0
    %9225 = vmatpush.msra.mxu0 0.0
    %9226 = vmatpush.msra.mxu0 0.0
    %9227 = vmatpush.msra.mxu0 0.0
    %9228 = vmatpush.msra.mxu0 0.0
    %9229 = vmatpush.msra.mxu0 0.0
    %9230 = vmatpush.msra.mxu0 0.0
    %9231 = vmatpush.msra.mxu0 %v9212
    %9232 = vmatpush.msra.mxu0 %v9211
    %9233 = vmatpush.msra.mxu0 %v9210
    %9234 = vmatpush.msra.mxu0 %v9209
    %9235 = vmatpush.msra.mxu0 %v9208
    %9236 = vmatpush.msra.mxu0 %v9207
    %9237 = vmatpush.msra.mxu0 %v9206
    %9238 = vmatpush.msra.mxu0 %v9205
    %9239 = vmatmul.f32.gmra.mxu0 %v9218
    %v9240 = vpop.f32.mrf.mxu0
    %v9241 = vadd.f32 %v9215, %v9240
    %9242 = vmatmul.f32.gmra.mxu0 %v9221
    %v9243 = vpop.f32.mrf.mxu0
    %v9244 = vadd.f32 %v9215, %v9243
    %9245 = vdwg.mxu0
    %v9246 = vmax.f32 %v9241, 0.0
    %v9247 = vmax.f32 %v9244, 0.0
    %v9248 = vld [vmem:[%s16] sm:$0xff]
    %v9249 = vld [vmem:[#allocation2] sm:$0x1]
    %v9251 = vperm.slane %v9249, 0
    %vm9253 = vcmask 64512
    %v9255 = vsel %vm9253, %v9246, 0
    %v9258 = vsel %vm9253, %v9247, 0
    %9260 = vmatpush.msra.mxu0 0.0
    %9261 = vmatpush.msra.mxu0 0.0
    %9262 = vmatpush.msra.mxu0 0.0
    %9263 = vmatpush.msra.mxu0 0.0
    %9264 = vmatpush.msra.mxu0 0.0
    %9265 = vmatpush.msra.mxu0 0.0
    %9266 = vmatpush.msra.mxu0 0.0
    %9267 = vmatpush.msra.mxu0 0.0
    %9268 = vmatpush.msra.mxu0 0.0
    %9269 = vmatpush.msra.mxu0 0.0
    %9270 = vmatpush.msra.mxu0 0.0
    %9271 = vmatpush.msra.mxu0 0.0
    %9272 = vmatpush.msra.mxu0 0.0
    %9273 = vmatpush.msra.mxu0 0.0
    %9274 = vmatpush.msra.mxu0 0.0
    %9275 = vmatpush.msra.mxu0 %v9248
    %9276 = vmatmul.f32.gmra.mxu0 %v9255
    %v9277 = vpop.f32.mrf.mxu0
    %v9278 = vadd.f32 %v9251, %v9277
    %9279 = vmatmul.f32.gmra.mxu0 %v9258
    %v9280 = vpop.f32.mrf.mxu0
    %v9281 = vadd.f32 %v9251, %v9280
    %9282 = vdwg.mxu0
    %v9283 = vmax.f32 %v9278, 0.0
    %v9284 = vmax.f32 %v9281, 0.0
    %vm9285 = vcmask 7168
    %9286 = vst.msk [vmem:[%s18] sm:$0xff] %vm9285, %v9283
    %9287 = vst.msk [vmem:[%s18 + $0x8] sm:$0xff] %vm9285, %v9284
    // Predicated region
    $region78: #{tpu_custom_call.1} parent=1 // pred_check
      _
    $region79: #{tpu_custom_call.1} parent=1 // pred_check_branch
      %9289 = sbr.rel (0) target = $region81
    $region80: #{tpu_custom_call.1} parent=1 // pred_region
      _
    $region81: #{tpu_custom_call.1} parent=1 // pred_fallthru
      _
    // Predicated region
    $region82: #{tpu_custom_call.1} parent=1 // pred_check
      _
    $region83: #{tpu_custom_call.1} parent=1 // pred_check_branch
      %9291 = sbr.rel (0) target = $region85
    $region84: #{tpu_custom_call.1} parent=1 // pred_region
      %9293 = vsyncadd [#allocation5], 0
      %s9294 = sshll.u32 [#allocation6], 4
      %s9295 = int_to_ptr.vmem [resolvable:$true] %s9294
      %s9296 = sshll.u32 %s19, 4
      %s9297 = int_to_ptr.hbm [resolvable:$true] %s9296
      %9302 = dma.vmem_to_hbm [thread:$0]  %s9295, 256, %s9297, [#allocation5], 128, 128, 8
    $region85: #{tpu_custom_call.1} parent=1 // pred_fallthru
      _
    // Predicated region
    $region86: #{tpu_custom_call.1} parent=1 // pred_check
      _
    $region87: #{tpu_custom_call.1} parent=1 // pred_check_branch
      %9304 = sbr.rel (0) target = $region89
    $region88: #{tpu_custom_call.1} parent=1 // pred_region
      %9306 = vsyncadd [#allocation8], 0
      %s9307 = sshll.u32 [#allocation7], 4
      %s9308 = int_to_ptr.vmem [resolvable:$true] %s9307
      %s9309 = sshll.u32 %s20, 4
      %s9310 = int_to_ptr.hbm [resolvable:$true] %s9309
      %9315 = dma.vmem_to_hbm [thread:$0]  %s9308, 2048, %s9310, [#allocation8], 128, 128, 8
    $region89: #{tpu_custom_call.1} parent=1 // pred_fallthru
      _
    // Predicated region
    $region90: #{tpu_custom_call.1} parent=1 // pred_check
      _
    $region91: #{tpu_custom_call.1} parent=1 // pred_check_branch
      %9317 = sbr.rel (0) target = $region93
    $region92: #{tpu_custom_call.1} parent=1 // pred_region
      _
    $region93: #{tpu_custom_call.1} parent=1 // pred_fallthru
      _
    // Predicated region
    $region94: #{tpu_custom_call.1} parent=1 // pred_check
      _
    $region95: #{tpu_custom_call.1} parent=1 // pred_check_branch
      %9319 = sbr.rel (0) target = $region97
    $region96: #{tpu_custom_call.1} parent=1 // pred_region
      %9321 = dma.done [#allocation5], 256
    $region97: #{tpu_custom_call.1} parent=1 // pred_fallthru
      _
    // Predicated region
    $region98: #{tpu_custom_call.1} parent=1 // pred_check
      _
    $region99: #{tpu_custom_call.1} parent=1 // pred_check_branch
      %9323 = sbr.rel (0) target = $region101
    $region100: #{tpu_custom_call.1} parent=1 // pred_region
      %9325 = dma.done [#allocation8], 2048
    $region101: #{tpu_custom_call.1} parent=1 // pred_fallthru
      _
    %9326 = vsyncpa [#allocation4], 1
    %9327 = vsyncpa [#allocation5], 1
    %9328 = vsyncpa [#allocation8], 1

</llo_original>
